<compile_context>
chip_gen: v7x
topology: tpu7x:2x2x1
jax: 0.10.0
libtpu: 0.0.40
codegen_flags: <defaults>
</compile_context>

<pallas_src>
import jax
import jax.numpy as jnp
from jax.experimental import pallas as pl
from jax.experimental.pallas import tpu as pltpu


# ------------------------------------------------------------------ kernel 1
def _stem_kernel(x_ref, wh1_ref, bh1_ref, wh2_ref, bh2_ref, wc1_ref, bc1_ref,
                 heat_ref, color_ref, hsum_ref, csum_ref):
    j = pl.program_id(1)

    @pl.when(j == 0)
    def _():
        hsum_ref[...] = jnp.zeros_like(hsum_ref)
        csum_ref[...] = jnp.zeros_like(csum_ref)

    x = x_ref[0].astype(jnp.float32)            # (tm, Cin), Cin tiny (3)
    cin = x.shape[1]

    # hrnet stand-in 3 -> J: unrolled VPU broadcast-FMAs (K=3 too small for MXU)
    wh1 = wh1_ref[...]                          # (Cin, J)
    h = x[:, 0:1] * wh1[0:1, :]
    for c in range(1, cin):
        h = h + x[:, c:c+1] * wh1[c:c+1, :]
    h = jnp.maximum(h + bh1_ref[...], 0.0)      # (tm, J) -- stays in vregs

    # heatmap_transform J -> 256 (fused: J-wide intermediate never stored)
    heat = jnp.dot(h, wh2_ref[...], preferred_element_type=jnp.float32)
    heat = jnp.maximum(heat + bh2_ref[...], 0.0)            # (tm, 256) f32

    # resnet-stem stand-in 3 -> 256: unrolled broadcast-FMAs
    wc1 = wc1_ref[...]                          # (Cin, 256)
    col = x[:, 0:1] * wc1[0:1, :]
    for c in range(1, cin):
        col = col + x[:, c:c+1] * wc1[c:c+1, :]
    col = jnp.maximum(col + bc1_ref[...], 0.0)               # (tm, 256) f32

    # lane-dense bf16 row slabs for the tail kernel (halves HBM traffic)
    heat_ref[0] = heat.astype(jnp.bfloat16)
    color_ref[0] = col.astype(jnp.bfloat16)

    # channel-attention pooling: per-batch channel sums (output-resident acc)
    hsum_ref[...] = hsum_ref[...] + jnp.sum(heat, axis=0, keepdims=True)[None]
    csum_ref[...] = csum_ref[...] + jnp.sum(col, axis=0, keepdims=True)[None]


def stem_forward(x_bhwc, wh1, bh1, wh2, bh2, wc1, bc1, tm):
    B, HW, Cin = x_bhwc.shape
    J = wh1.shape[1]
    C = wh2.shape[1]
    grid = (B, HW // tm)
    return pl.pallas_call(
        _stem_kernel,
        out_shape=(
            jax.ShapeDtypeStruct((B, HW, C), jnp.bfloat16),   # heat rows
            jax.ShapeDtypeStruct((B, HW, C), jnp.bfloat16),   # color rows
            jax.ShapeDtypeStruct((B, 1, C), jnp.float32),     # sum_hw(heat)
            jax.ShapeDtypeStruct((B, 1, C), jnp.float32),     # sum_hw(color)
        ),
        grid=grid,
        in_specs=[
            pl.BlockSpec((1, tm, Cin), lambda b, j: (b, j, 0)),
            pl.BlockSpec((Cin, J), lambda b, j: (0, 0)),
            pl.BlockSpec((1, J), lambda b, j: (0, 0)),
            pl.BlockSpec((J, C), lambda b, j: (0, 0)),
            pl.BlockSpec((1, C), lambda b, j: (0, 0)),
            pl.BlockSpec((Cin, C), lambda b, j: (0, 0)),
            pl.BlockSpec((1, C), lambda b, j: (0, 0)),
        ],
        out_specs=(
            pl.BlockSpec((1, tm, C), lambda b, j: (b, j, 0)),
            pl.BlockSpec((1, tm, C), lambda b, j: (b, j, 0)),
            pl.BlockSpec((1, 1, C), lambda b, j: (b, 0, 0)),
            pl.BlockSpec((1, 1, C), lambda b, j: (b, 0, 0)),
        ),
        compiler_params=pltpu.CompilerParams(
            dimension_semantics=("parallel", "arbitrary")),
    )(x_bhwc, wh1, bh1, wh2, bh2, wc1, bc1)


# ------------------------------------------------------------------ kernel 2
def _tail_kernel(heat_ref, color_ref, scale_ref, wcomb_ref, bcomb_ref,
                 wres_ref, bres_ref, o_ref):
    j = pl.program_id(1)

    @pl.when(j == 0)
    def _():
        o_ref[...] = jnp.zeros_like(o_ref)

    # deferred channel attention: (heat*y_h)*(col*y_c) == heat*col*(y_h.y_c)
    h = heat_ref[0].astype(jnp.float32)                      # (tm, 256)
    c = color_ref[0].astype(jnp.float32)
    combined = h * c * scale_ref[0]                          # broadcast (1,256)

    # combined_features_transform 256 -> 256 (bf16 MXU, f32 accumulate)
    c2 = jnp.dot(combined.astype(jnp.bfloat16), wcomb_ref[...],
                 preferred_element_type=jnp.float32) + bcomb_ref[...]
    c2 = jnp.maximum(c2, 0.0)

    # resnet_continued stand-in 256 -> 2048 (bf16 MXU, f32 accumulate)
    feat = jnp.dot(c2.astype(jnp.bfloat16), wres_ref[...],
                   preferred_element_type=jnp.float32) + bres_ref[...]
    feat = jnp.maximum(feat, 0.0)                            # (tm, 2048)

    # fused adaptive_avg_pool2d: accumulate row sums, never write (HW,2048)
    part = jnp.sum(feat, axis=0, keepdims=True)              # (1, 2048)
    o_ref[...] = o_ref[...] + part[None]


def tail_forward(heat, color, scale, wcomb, bcomb, wres, bres, tm):
    B, HW, C = heat.shape
    Cout = wres.shape[1]
    grid = (B, HW // tm)
    return pl.pallas_call(
        _tail_kernel,
        out_shape=jax.ShapeDtypeStruct((B, 1, Cout), jnp.float32),
        grid=grid,
        in_specs=[
            pl.BlockSpec((1, tm, C), lambda b, j: (b, j, 0)),
            pl.BlockSpec((1, tm, C), lambda b, j: (b, j, 0)),
            pl.BlockSpec((1, 1, C), lambda b, j: (b, 0, 0)),
            pl.BlockSpec((C, C), lambda b, j: (0, 0)),
            pl.BlockSpec((1, C), lambda b, j: (0, 0)),
            pl.BlockSpec((C, Cout), lambda b, j: (0, 0)),
            pl.BlockSpec((1, Cout), lambda b, j: (0, 0)),
        ],
        out_specs=pl.BlockSpec((1, 1, Cout), lambda b, j: (b, 0, 0)),
        compiler_params=pltpu.CompilerParams(
            dimension_semantics=("parallel", "arbitrary")),
    )(heat, color, scale, wcomb, bcomb, wres, bres)


# -------------------------------------------------------------- params/util
def make_ft_params(key, cin, cout, std=0.05, w_dtype=jnp.float32):
    """1x1 conv + eval-mode BatchNorm folded into a single (W, b)."""
    kw, kb = jax.random.split(key)
    w = std * jax.random.normal(kw, (cin, cout), jnp.float32)
    b = std * jax.random.normal(kb, (1, cout), jnp.float32)
    eps = 1e-5
    gamma = jnp.ones((1, cout), jnp.float32)
    beta = jnp.zeros((1, cout), jnp.float32)
    mean = jnp.zeros((1, cout), jnp.float32)
    var = jnp.ones((1, cout), jnp.float32)
    s = gamma / jnp.sqrt(var + eps)
    w_fold = (w * s).astype(w_dtype)          # fold BN scale into the weight
    b_fold = b * s + beta - mean * s          # fold conv bias + BN shift (f32)
    return w_fold, b_fold


def make_ca_params(key, c, reduction=16, std=0.05):
    mid = max(1, c // reduction)
    k1, k2 = jax.random.split(key)
    w1 = std * jax.random.normal(k1, (c, mid), jnp.float32)   # Linear(C, mid)
    w2 = std * jax.random.normal(k2, (mid, c), jnp.float32)   # Linear(mid, C)
    return w1, w2


def _pick_row_tile(hw, max_tile=512):
    # biggest multiple of 16 (bf16 sublane packing) <= max_tile dividing HW
    assert hw % 16 == 0, "H*W must be a multiple of 16"
    tm = min(max_tile, hw)
    while hw % tm != 0:
        tm -= 16
    return tm


# ------------------------------------------------------------------ forward
def local_feature_extractor_forward(x, params):
    B, Cin, H, W = x.shape
    HW = H * W
    x_bhwc = jnp.transpose(x, (0, 2, 3, 1)).reshape(B, HW, Cin)
    tm = _pick_row_tile(HW)

    heat, color, hsum, csum = stem_forward(
        x_bhwc,
        *params["hrnet_standin"],
        *params["heatmap_transform"],
        *params["resnet_stem_standin"],
        tm=tm)

    heat_mean = hsum.reshape(B, -1) / HW      # (B, 256) global avg pools
    color_mean = csum.reshape(B, -1) / HW

    # squeeze-excite MLPs: (B,256)@(256,16)@(16,256) + sigmoid -- too small
    # for the MXU; run as plain jnp on the pooled means (perf review).
    wa1, wa2 = params["heatmap_ca"]
    wb1, wb2 = params["color_ca"]
    y_h = jax.nn.sigmoid(jnp.maximum(heat_mean @ wa1, 0.0) @ wa2)
    y_c = jax.nn.sigmoid(jnp.maximum(color_mean @ wb1, 0.0) @ wb2)
    scale = (y_h * y_c).astype(jnp.float32).reshape(B, 1, -1)

    fsum = tail_forward(heat, color, scale,
                        *params["combined_transform"],
                        *params["resnet_cont_standin"],
                        tm=tm)
    # fused adaptive_avg_pool2d((1,1)) + flatten
    return fsum.reshape(B, -1) / HW           # (B, 2048)


# --------------------------------------------------------------------- main
if __name__ == "__main__":
    B, C_IN, H, W = 2, 3, 16, 16
    NUM_JOINTS = 8

    root = jax.random.PRNGKey(0)
    keys = jax.random.split(root, 8)

    params = {
        "hrnet_standin":       make_ft_params(keys[0], C_IN, NUM_JOINTS),
        "heatmap_transform":   make_ft_params(keys[1], NUM_JOINTS, 256),
        "heatmap_ca":          make_ca_params(keys[2], 256),
        "resnet_stem_standin": make_ft_params(keys[3], C_IN, 256),
        "color_ca":            make_ca_params(keys[4], 256),
        "combined_transform":  make_ft_params(keys[5], 256, 256,
                                              w_dtype=jnp.bfloat16),
        "resnet_cont_standin": make_ft_params(keys[6], 256, 2048,
                                              w_dtype=jnp.bfloat16),
    }

    x = jax.random.normal(keys[7], (B, C_IN, H, W), jnp.float32)   # NCHW input

    fwd = jax.jit(lambda xx: local_feature_extractor_forward(xx, params))
    f = fwd(x)
    jax.block_until_ready(f)

    assert f.shape == (B, 2048), f.shape
    assert bool(jnp.all(jnp.isfinite(f)))
    print("KERNEL_OK")
</pallas_src>

<mosaic_0001>
module attributes {stable_mosaic.version = 11 : i64} {
  func.func @_stem_kernel(%arg0: i32, %arg1: i32, %arg2: memref<1x256x3xf32, #tpu.memory_space<vmem>>, %arg3: memref<3x8xf32, #tpu.memory_space<vmem>>, %arg4: memref<1x8xf32, #tpu.memory_space<vmem>>, %arg5: memref<8x256xf32, #tpu.memory_space<vmem>>, %arg6: memref<1x256xf32, #tpu.memory_space<vmem>>, %arg7: memref<3x256xf32, #tpu.memory_space<vmem>>, %arg8: memref<1x256xf32, #tpu.memory_space<vmem>>, %arg9: memref<1x256x256xbf16, #tpu.memory_space<vmem>>, %arg10: memref<1x256x256xbf16, #tpu.memory_space<vmem>>, %arg11: memref<1x1x256xf32, #tpu.memory_space<vmem>>, %arg12: memref<1x1x256xf32, #tpu.memory_space<vmem>>) attributes {dimension_semantics = [#tpu.dimension_semantics<parallel>, #tpu.dimension_semantics<arbitrary>], iteration_bounds = array<i64: 2, 1>, scalar_prefetch = 0 : i64, scratch_operands = 0 : i64, tpu.core_type = #tpu.core_type<tc>, window_params = [{transform_indices = @transform_0, window_bounds = array<i64: 1, 256, 3>}, {pipeline_mode = #tpu.pipeline_mode<synchronous>, transform_indices = @transform_1, window_bounds = array<i64: 3, 8>}, {pipeline_mode = #tpu.pipeline_mode<synchronous>, transform_indices = @transform_2, window_bounds = array<i64: 1, 8>}, {pipeline_mode = #tpu.pipeline_mode<synchronous>, transform_indices = @transform_3, window_bounds = array<i64: 8, 256>}, {pipeline_mode = #tpu.pipeline_mode<synchronous>, transform_indices = @transform_4, window_bounds = array<i64: 1, 256>}, {pipeline_mode = #tpu.pipeline_mode<synchronous>, transform_indices = @transform_5, window_bounds = array<i64: 3, 256>}, {pipeline_mode = #tpu.pipeline_mode<synchronous>, transform_indices = @transform_6, window_bounds = array<i64: 1, 256>}, {transform_indices = @transform_7, window_bounds = array<i64: 1, 256, 256>}, {transform_indices = @transform_8, window_bounds = array<i64: 1, 256, 256>}, {transform_indices = @transform_9, window_bounds = array<i64: 1, 1, 256>}, {transform_indices = @transform_10, window_bounds = array<i64: 1, 1, 256>}]} {
    %c0_i32 = arith.constant 0 : i32
    %0 = arith.cmpi eq, %arg1, %c0_i32 : i32
    %1 = arith.extui %0 : i1 to i32
    %c0_i32_0 = arith.constant 0 : i32
    %2 = arith.cmpi ne, %1, %c0_i32_0 : i32
    scf.if %2 {
      %cst_38 = arith.constant 0.000000e+00 : f32
      %78 = vector.broadcast %cst_38 : f32 to vector<1x1x256xf32>
      %c0_39 = arith.constant 0 : index
      %c0_40 = arith.constant 0 : index
      %c0_41 = arith.constant 0 : index
      %79 = vector.load %arg11[%c0_39, %c0_40, %c0_41] : memref<1x1x256xf32, #tpu.memory_space<vmem>>, vector<1x1x256xf32>
      tpu.vector_store %arg11[%c0_39, %c0_40, %c0_41], %78 {strides = array<i32>} : memref<1x1x256xf32, #tpu.memory_space<vmem>>, vector<1x1x256xf32>,
      %cst_42 = arith.constant 0.000000e+00 : f32
      %80 = vector.broadcast %cst_42 : f32 to vector<1x1x256xf32>
      %c0_43 = arith.constant 0 : index
      %c0_44 = arith.constant 0 : index
      %c0_45 = arith.constant 0 : index
      %81 = vector.load %arg12[%c0_43, %c0_44, %c0_45] : memref<1x1x256xf32, #tpu.memory_space<vmem>>, vector<1x1x256xf32>
      tpu.vector_store %arg12[%c0_43, %c0_44, %c0_45], %80 {strides = array<i32>} : memref<1x1x256xf32, #tpu.memory_space<vmem>>, vector<1x1x256xf32>,
    } else {
    }
    %c0 = arith.constant 0 : index
    %c0_1 = arith.constant 0 : index
    %c0_2 = arith.constant 0 : index
    %3 = vector.load %arg2[%c0, %c0_1, %c0_2] : memref<1x256x3xf32, #tpu.memory_space<vmem>>, vector<1x256x3xf32>
    %4 = vector.shape_cast %3 : vector<1x256x3xf32> to vector<256x3xf32>
    %c0_3 = arith.constant 0 : index
    %c0_4 = arith.constant 0 : index
    %5 = vector.load %arg3[%c0_3, %c0_4] : memref<3x8xf32, #tpu.memory_space<vmem>>, vector<3x8xf32>
    %6 = vector.extract_strided_slice %4 {offsets = [0, 0], sizes = [256, 1], strides = [1, 1]} : vector<256x3xf32> to vector<256x1xf32>
    %7 = vector.extract_strided_slice %5 {offsets = [0, 0], sizes = [1, 8], strides = [1, 1]} : vector<3x8xf32> to vector<1x8xf32>
    %8 = vector.broadcast %6 : vector<256x1xf32> to vector<256x8xf32>
    %9 = vector.broadcast %7 : vector<1x8xf32> to vector<256x8xf32>
    %10 = arith.mulf %8, %9 : vector<256x8xf32>
    %11 = vector.extract_strided_slice %4 {offsets = [0, 1], sizes = [256, 1], strides = [1, 1]} : vector<256x3xf32> to vector<256x1xf32>
    %12 = vector.extract_strided_slice %5 {offsets = [1, 0], sizes = [1, 8], strides = [1, 1]} : vector<3x8xf32> to vector<1x8xf32>
    %13 = vector.broadcast %11 : vector<256x1xf32> to vector<256x8xf32>
    %14 = vector.broadcast %12 : vector<1x8xf32> to vector<256x8xf32>
    %15 = arith.mulf %13, %14 : vector<256x8xf32>
    %16 = arith.addf %10, %15 : vector<256x8xf32>
    %17 = vector.extract_strided_slice %4 {offsets = [0, 2], sizes = [256, 1], strides = [1, 1]} : vector<256x3xf32> to vector<256x1xf32>
    %18 = vector.extract_strided_slice %5 {offsets = [2, 0], sizes = [1, 8], strides = [1, 1]} : vector<3x8xf32> to vector<1x8xf32>
    %19 = vector.broadcast %17 : vector<256x1xf32> to vector<256x8xf32>
    %20 = vector.broadcast %18 : vector<1x8xf32> to vector<256x8xf32>
    %21 = arith.mulf %19, %20 : vector<256x8xf32>
    %22 = arith.addf %16, %21 : vector<256x8xf32>
    %c0_5 = arith.constant 0 : index
    %c0_6 = arith.constant 0 : index
    %23 = vector.load %arg4[%c0_5, %c0_6] : memref<1x8xf32, #tpu.memory_space<vmem>>, vector<1x8xf32>
    %24 = vector.broadcast %23 : vector<1x8xf32> to vector<256x8xf32>
    %25 = arith.addf %22, %24 : vector<256x8xf32>
    %cst = arith.constant 0.000000e+00 : f32
    %26 = vector.broadcast %cst : f32 to vector<256x8xf32>
    %27 = arith.maximumf %25, %26 : vector<256x8xf32>
    %c0_7 = arith.constant 0 : index
    %c0_8 = arith.constant 0 : index
    %28 = vector.load %arg5[%c0_7, %c0_8] : memref<8x256xf32, #tpu.memory_space<vmem>>, vector<8x256xf32>
    %cst_9 = arith.constant dense<0.000000e+00> : vector<256x256xf32>
    %29 = tpu.matmul %27, %28, %cst_9 {dimension_numbers = #tpu.dot_dimension_numbers<[1], [0], [0], [1], [0, 0, 1, 1], [], []>} : vector<256x8xf32>, vector<8x256xf32>, vector<256x256xf32> -> vector<256x256xf32>
    %c0_10 = arith.constant 0 : index
    %c0_11 = arith.constant 0 : index
    %30 = vector.load %arg6[%c0_10, %c0_11] : memref<1x256xf32, #tpu.memory_space<vmem>>, vector<1x256xf32>
    %31 = vector.broadcast %30 : vector<1x256xf32> to vector<256x256xf32>
    %32 = arith.addf %29, %31 : vector<256x256xf32>
    %cst_12 = arith.constant 0.000000e+00 : f32
    %33 = vector.broadcast %cst_12 : f32 to vector<256x256xf32>
    %34 = arith.maximumf %32, %33 : vector<256x256xf32>
    %c0_13 = arith.constant 0 : index
    %c0_14 = arith.constant 0 : index
    %35 = vector.load %arg7[%c0_13, %c0_14] : memref<3x256xf32, #tpu.memory_space<vmem>>, vector<3x256xf32>
    %36 = vector.extract_strided_slice %4 {offsets = [0, 0], sizes = [256, 1], strides = [1, 1]} : vector<256x3xf32> to vector<256x1xf32>
    %37 = vector.extract_strided_slice %35 {offsets = [0, 0], sizes = [1, 256], strides = [1, 1]} : vector<3x256xf32> to vector<1x256xf32>
    %38 = vector.broadcast %36 : vector<256x1xf32> to vector<256x256xf32>
    %39 = vector.broadcast %37 : vector<1x256xf32> to vector<256x256xf32>
    %40 = arith.mulf %38, %39 : vector<256x256xf32>
    %41 = vector.extract_strided_slice %4 {offsets = [0, 1], sizes = [256, 1], strides = [1, 1]} : vector<256x3xf32> to vector<256x1xf32>
    %42 = vector.extract_strided_slice %35 {offsets = [1, 0], sizes = [1, 256], strides = [1, 1]} : vector<3x256xf32> to vector<1x256xf32>
    %43 = vector.broadcast %41 : vector<256x1xf32> to vector<256x256xf32>
    %44 = vector.broadcast %42 : vector<1x256xf32> to vector<256x256xf32>
    %45 = arith.mulf %43, %44 : vector<256x256xf32>
    %46 = arith.addf %40, %45 : vector<256x256xf32>
    %47 = vector.extract_strided_slice %4 {offsets = [0, 2], sizes = [256, 1], strides = [1, 1]} : vector<256x3xf32> to vector<256x1xf32>
    %48 = vector.extract_strided_slice %35 {offsets = [2, 0], sizes = [1, 256], strides = [1, 1]} : vector<3x256xf32> to vector<1x256xf32>
    %49 = vector.broadcast %47 : vector<256x1xf32> to vector<256x256xf32>
    %50 = vector.broadcast %48 : vector<1x256xf32> to vector<256x256xf32>
    %51 = arith.mulf %49, %50 : vector<256x256xf32>
    %52 = arith.addf %46, %51 : vector<256x256xf32>
    %c0_15 = arith.constant 0 : index
    %c0_16 = arith.constant 0 : index
    %53 = vector.load %arg8[%c0_15, %c0_16] : memref<1x256xf32, #tpu.memory_space<vmem>>, vector<1x256xf32>
    %54 = vector.broadcast %53 : vector<1x256xf32> to vector<256x256xf32>
    %55 = arith.addf %52, %54 : vector<256x256xf32>
    %cst_17 = arith.constant 0.000000e+00 : f32
    %56 = vector.broadcast %cst_17 : f32 to vector<256x256xf32>
    %57 = arith.maximumf %55, %56 : vector<256x256xf32>
    %58 = arith.truncf %34 : vector<256x256xf32> to vector<256x256xbf16>
    %c0_18 = arith.constant 0 : index
    %c0_19 = arith.constant 0 : index
    %c0_20 = arith.constant 0 : index
    %59 = vector.load %arg9[%c0_18, %c0_19, %c0_20] : memref<1x256x256xbf16, #tpu.memory_space<vmem>>, vector<1x256x256xbf16>
    %60 = vector.shape_cast %59 : vector<1x256x256xbf16> to vector<256x256xbf16>
    %61 = vector.shape_cast %58 : vector<256x256xbf16> to vector<1x256x256xbf16>
    tpu.vector_store %arg9[%c0_18, %c0_19, %c0_20], %61 {strides = array<i32>} : memref<1x256x256xbf16, #tpu.memory_space<vmem>>, vector<1x256x256xbf16>,
    %62 = arith.truncf %57 : vector<256x256xf32> to vector<256x256xbf16>
    %c0_21 = arith.constant 0 : index
    %c0_22 = arith.constant 0 : index
    %c0_23 = arith.constant 0 : index
    %63 = vector.load %arg10[%c0_21, %c0_22, %c0_23] : memref<1x256x256xbf16, #tpu.memory_space<vmem>>, vector<1x256x256xbf16>
    %64 = vector.shape_cast %63 : vector<1x256x256xbf16> to vector<256x256xbf16>
    %65 = vector.shape_cast %62 : vector<256x256xbf16> to vector<1x256x256xbf16>
    tpu.vector_store %arg10[%c0_21, %c0_22, %c0_23], %65 {strides = array<i32>} : memref<1x256x256xbf16, #tpu.memory_space<vmem>>, vector<1x256x256xbf16>,
    %c0_24 = arith.constant 0 : index
    %c0_25 = arith.constant 0 : index
    %c0_26 = arith.constant 0 : index
    %66 = vector.load %arg11[%c0_24, %c0_25, %c0_26] : memref<1x1x256xf32, #tpu.memory_space<vmem>>, vector<1x1x256xf32>
    %cst_27 = arith.constant dense<0.000000e+00> : vector<256xf32>
    %67 = vector.multi_reduction <add>, %34, %cst_27 [0] : vector<256x256xf32> to vector<256xf32>
    %68 = vector.shape_cast %67 : vector<256xf32> to vector<1x256xf32>
    %69 = vector.shape_cast %68 : vector<1x256xf32> to vector<1x1x256xf32>
    %70 = arith.addf %66, %69 : vector<1x1x256xf32>
    %c0_28 = arith.constant 0 : index
    %c0_29 = arith.constant 0 : index
    %c0_30 = arith.constant 0 : index
    %71 = vector.load %arg11[%c0_28, %c0_29, %c0_30] : memref<1x1x256xf32, #tpu.memory_space<vmem>>, vector<1x1x256xf32>
    tpu.vector_store %arg11[%c0_28, %c0_29, %c0_30], %70 {strides = array<i32>} : memref<1x1x256xf32, #tpu.memory_space<vmem>>, vector<1x1x256xf32>,
    %c0_31 = arith.constant 0 : index
    %c0_32 = arith.constant 0 : index
    %c0_33 = arith.constant 0 : index
    %72 = vector.load %arg12[%c0_31, %c0_32, %c0_33] : memref<1x1x256xf32, #tpu.memory_space<vmem>>, vector<1x1x256xf32>
    %cst_34 = arith.constant dense<0.000000e+00> : vector<256xf32>
    %73 = vector.multi_reduction <add>, %57, %cst_34 [0] : vector<256x256xf32> to vector<256xf32>
    %74 = vector.shape_cast %73 : vector<256xf32> to vector<1x256xf32>
    %75 = vector.shape_cast %74 : vector<1x256xf32> to vector<1x1x256xf32>
    %76 = arith.addf %72, %75 : vector<1x1x256xf32>
    %c0_35 = arith.constant 0 : index
    %c0_36 = arith.constant 0 : index
    %c0_37 = arith.constant 0 : index
    %77 = vector.load %arg12[%c0_35, %c0_36, %c0_37] : memref<1x1x256xf32, #tpu.memory_space<vmem>>, vector<1x1x256xf32>
    tpu.vector_store %arg12[%c0_35, %c0_36, %c0_37], %76 {strides = array<i32>} : memref<1x1x256xf32, #tpu.memory_space<vmem>>, vector<1x1x256xf32>,
    return
  }
  func.func @transform_0(%arg0: i32, %arg1: i32) -> (i32, i32, i32) {
    %c0_i32 = arith.constant 0 : i32
    %c0_i32_0 = arith.constant 0 : i32
    return %arg0, %arg1, %c0_i32 : i32, i32, i32
  }
  func.func @transform_1(%arg0: i32, %arg1: i32) -> (i32, i32) {
    %c0_i32 = arith.constant 0 : i32
    %c0_i32_0 = arith.constant 0 : i32
    %c0_i32_1 = arith.constant 0 : i32
    return %c0_i32, %c0_i32_0 : i32, i32
  }
  func.func @transform_2(%arg0: i32, %arg1: i32) -> (i32, i32) {
    %c0_i32 = arith.constant 0 : i32
    %c0_i32_0 = arith.constant 0 : i32
    %c0_i32_1 = arith.constant 0 : i32
    return %c0_i32, %c0_i32_0 : i32, i32
  }
  func.func @transform_3(%arg0: i32, %arg1: i32) -> (i32, i32) {
    %c0_i32 = arith.constant 0 : i32
    %c0_i32_0 = arith.constant 0 : i32
    %c0_i32_1 = arith.constant 0 : i32
    return %c0_i32, %c0_i32_0 : i32, i32
  }
  func.func @transform_4(%arg0: i32, %arg1: i32) -> (i32, i32) {
    %c0_i32 = arith.constant 0 : i32
    %c0_i32_0 = arith.constant 0 : i32
    %c0_i32_1 = arith.constant 0 : i32
    return %c0_i32, %c0_i32_0 : i32, i32
  }
  func.func @transform_5(%arg0: i32, %arg1: i32) -> (i32, i32) {
    %c0_i32 = arith.constant 0 : i32
    %c0_i32_0 = arith.constant 0 : i32
    %c0_i32_1 = arith.constant 0 : i32
    return %c0_i32, %c0_i32_0 : i32, i32
  }
  func.func @transform_6(%arg0: i32, %arg1: i32) -> (i32, i32) {
    %c0_i32 = arith.constant 0 : i32
    %c0_i32_0 = arith.constant 0 : i32
    %c0_i32_1 = arith.constant 0 : i32
    return %c0_i32, %c0_i32_0 : i32, i32
  }
  func.func @transform_7(%arg0: i32, %arg1: i32) -> (i32, i32, i32) {
    %c0_i32 = arith.constant 0 : i32
    %c0_i32_0 = arith.constant 0 : i32
    return %arg0, %arg1, %c0_i32 : i32, i32, i32
  }
  func.func @transform_8(%arg0: i32, %arg1: i32) -> (i32, i32, i32) {
    %c0_i32 = arith.constant 0 : i32
    %c0_i32_0 = arith.constant 0 : i32
    return %arg0, %arg1, %c0_i32 : i32, i32, i32
  }
  func.func @transform_9(%arg0: i32, %arg1: i32) -> (i32, i32, i32) {
    %c0_i32 = arith.constant 0 : i32
    %c0_i32_0 = arith.constant 0 : i32
    %c0_i32_1 = arith.constant 0 : i32
    return %arg0, %c0_i32, %c0_i32_0 : i32, i32, i32
  }
  func.func @transform_10(%arg0: i32, %arg1: i32) -> (i32, i32, i32) {
    %c0_i32 = arith.constant 0 : i32
    %c0_i32_0 = arith.constant 0 : i32
    %c0_i32_1 = arith.constant 0 : i32
    return %arg0, %c0_i32, %c0_i32_0 : i32, i32, i32
  }
}

module attributes {stable_mosaic.version = 11 : i64} {
  func.func @_tail_kernel(%arg0: i32, %arg1: i32, %arg2: memref<1x256x256xbf16, #tpu.memory_space<vmem>>, %arg3: memref<1x256x256xbf16, #tpu.memory_space<vmem>>, %arg4: memref<1x1x256xf32, #tpu.memory_space<vmem>>, %arg5: memref<256x256xbf16, #tpu.memory_space<vmem>>, %arg6: memref<1x256xf32, #tpu.memory_space<vmem>>, %arg7: memref<256x2048xbf16, #tpu.memory_space<vmem>>, %arg8: memref<1x2048xf32, #tpu.memory_space<vmem>>, %arg9: memref<1x1x2048xf32, #tpu.memory_space<vmem>>) attributes {dimension_semantics = [#tpu.dimension_semantics<parallel>, #tpu.dimension_semantics<arbitrary>], iteration_bounds = array<i64: 2, 1>, scalar_prefetch = 0 : i64, scratch_operands = 0 : i64, tpu.core_type = #tpu.core_type<tc>, window_params = [{transform_indices = @transform_0, window_bounds = array<i64: 1, 256, 256>}, {transform_indices = @transform_1, window_bounds = array<i64: 1, 256, 256>}, {transform_indices = @transform_2, window_bounds = array<i64: 1, 1, 256>}, {pipeline_mode = #tpu.pipeline_mode<synchronous>, transform_indices = @transform_3, window_bounds = array<i64: 256, 256>}, {pipeline_mode = #tpu.pipeline_mode<synchronous>, transform_indices = @transform_4, window_bounds = array<i64: 1, 256>}, {pipeline_mode = #tpu.pipeline_mode<synchronous>, transform_indices = @transform_5, window_bounds = array<i64: 256, 2048>}, {pipeline_mode = #tpu.pipeline_mode<synchronous>, transform_indices = @transform_6, window_bounds = array<i64: 1, 2048>}, {transform_indices = @transform_7, window_bounds = array<i64: 1, 1, 2048>}]} {
    %c0_i32 = arith.constant 0 : i32
    %0 = arith.cmpi eq, %arg1, %c0_i32 : i32
    %1 = arith.extui %0 : i1 to i32
    %c0_i32_0 = arith.constant 0 : i32
    %2 = arith.cmpi ne, %1, %c0_i32_0 : i32
    scf.if %2 {
      %cst_27 = arith.constant 0.000000e+00 : f32
      %36 = vector.broadcast %cst_27 : f32 to vector<1x1x2048xf32>
      %c0_28 = arith.constant 0 : index
      %c0_29 = arith.constant 0 : index
      %c0_30 = arith.constant 0 : index
      %37 = vector.load %arg9[%c0_28, %c0_29, %c0_30] : memref<1x1x2048xf32, #tpu.memory_space<vmem>>, vector<1x1x2048xf32>
      tpu.vector_store %arg9[%c0_28, %c0_29, %c0_30], %36 {strides = array<i32>} : memref<1x1x2048xf32, #tpu.memory_space<vmem>>, vector<1x1x2048xf32>,
    } else {
    }
    %c0 = arith.constant 0 : index
    %c0_1 = arith.constant 0 : index
    %c0_2 = arith.constant 0 : index
    %3 = vector.load %arg2[%c0, %c0_1, %c0_2] : memref<1x256x256xbf16, #tpu.memory_space<vmem>>, vector<1x256x256xbf16>
    %4 = vector.shape_cast %3 : vector<1x256x256xbf16> to vector<256x256xbf16>
    %5 = arith.extf %4 : vector<256x256xbf16> to vector<256x256xf32>
    %c0_3 = arith.constant 0 : index
    %c0_4 = arith.constant 0 : index
    %c0_5 = arith.constant 0 : index
    %6 = vector.load %arg3[%c0_3, %c0_4, %c0_5] : memref<1x256x256xbf16, #tpu.memory_space<vmem>>, vector<1x256x256xbf16>
    %7 = vector.shape_cast %6 : vector<1x256x256xbf16> to vector<256x256xbf16>
    %8 = arith.extf %7 : vector<256x256xbf16> to vector<256x256xf32>
    %9 = arith.mulf %5, %8 : vector<256x256xf32>
    %c0_6 = arith.constant 0 : index
    %c0_7 = arith.constant 0 : index
    %c0_8 = arith.constant 0 : index
    %10 = vector.load %arg4[%c0_6, %c0_7, %c0_8] : memref<1x1x256xf32, #tpu.memory_space<vmem>>, vector<1x1x256xf32>
    %11 = vector.shape_cast %10 : vector<1x1x256xf32> to vector<1x256xf32>
    %12 = vector.broadcast %11 : vector<1x256xf32> to vector<256x256xf32>
    %13 = arith.mulf %9, %12 : vector<256x256xf32>
    %14 = arith.truncf %13 : vector<256x256xf32> to vector<256x256xbf16>
    %c0_9 = arith.constant 0 : index
    %c0_10 = arith.constant 0 : index
    %15 = vector.load %arg5[%c0_9, %c0_10] : memref<256x256xbf16, #tpu.memory_space<vmem>>, vector<256x256xbf16>
    %cst = arith.constant dense<0.000000e+00> : vector<256x256xf32>
    %16 = tpu.matmul %14, %15, %cst {dimension_numbers = #tpu.dot_dimension_numbers<[1], [0], [0], [1], [0, 0, 1, 1], [], []>} : vector<256x256xbf16>, vector<256x256xbf16>, vector<256x256xf32> -> vector<256x256xf32>
    %c0_11 = arith.constant 0 : index
    %c0_12 = arith.constant 0 : index
    %17 = vector.load %arg6[%c0_11, %c0_12] : memref<1x256xf32, #tpu.memory_space<vmem>>, vector<1x256xf32>
    %18 = vector.broadcast %17 : vector<1x256xf32> to vector<256x256xf32>
    %19 = arith.addf %16, %18 : vector<256x256xf32>
    %cst_13 = arith.constant 0.000000e+00 : f32
    %20 = vector.broadcast %cst_13 : f32 to vector<256x256xf32>
    %21 = arith.maximumf %19, %20 : vector<256x256xf32>
    %22 = arith.truncf %21 : vector<256x256xf32> to vector<256x256xbf16>
    %c0_14 = arith.constant 0 : index
    %c0_15 = arith.constant 0 : index
    %23 = vector.load %arg7[%c0_14, %c0_15] : memref<256x2048xbf16, #tpu.memory_space<vmem>>, vector<256x2048xbf16>
    %cst_16 = arith.constant dense<0.000000e+00> : vector<256x2048xf32>
    %24 = tpu.matmul %22, %23, %cst_16 {dimension_numbers = #tpu.dot_dimension_numbers<[1], [0], [0], [1], [0, 0, 1, 1], [], []>} : vector<256x256xbf16>, vector<256x2048xbf16>, vector<256x2048xf32> -> vector<256x2048xf32>
    %c0_17 = arith.constant 0 : index
    %c0_18 = arith.constant 0 : index
    %25 = vector.load %arg8[%c0_17, %c0_18] : memref<1x2048xf32, #tpu.memory_space<vmem>>, vector<1x2048xf32>
    %26 = vector.broadcast %25 : vector<1x2048xf32> to vector<256x2048xf32>
    %27 = arith.addf %24, %26 : vector<256x2048xf32>
    %cst_19 = arith.constant 0.000000e+00 : f32
    %28 = vector.broadcast %cst_19 : f32 to vector<256x2048xf32>
    %29 = arith.maximumf %27, %28 : vector<256x2048xf32>
    %cst_20 = arith.constant dense<0.000000e+00> : vector<2048xf32>
    %30 = vector.multi_reduction <add>, %29, %cst_20 [0] : vector<256x2048xf32> to vector<2048xf32>
    %31 = vector.shape_cast %30 : vector<2048xf32> to vector<1x2048xf32>
    %c0_21 = arith.constant 0 : index
    %c0_22 = arith.constant 0 : index
    %c0_23 = arith.constant 0 : index
    %32 = vector.load %arg9[%c0_21, %c0_22, %c0_23] : memref<1x1x2048xf32, #tpu.memory_space<vmem>>, vector<1x1x2048xf32>
    %33 = vector.shape_cast %31 : vector<1x2048xf32> to vector<1x1x2048xf32>
    %34 = arith.addf %32, %33 : vector<1x1x2048xf32>
    %c0_24 = arith.constant 0 : index
    %c0_25 = arith.constant 0 : index
    %c0_26 = arith.constant 0 : index
    %35 = vector.load %arg9[%c0_24, %c0_25, %c0_26] : memref<1x1x2048xf32, #tpu.memory_space<vmem>>, vector<1x1x2048xf32>
    tpu.vector_store %arg9[%c0_24, %c0_25, %c0_26], %34 {strides = array<i32>} : memref<1x1x2048xf32, #tpu.memory_space<vmem>>, vector<1x1x2048xf32>,
    return
  }
  func.func @transform_0(%arg0: i32, %arg1: i32) -> (i32, i32, i32) {
    %c0_i32 = arith.constant 0 : i32
    %c0_i32_0 = arith.constant 0 : i32
    return %arg0, %arg1, %c0_i32 : i32, i32, i32
  }
  func.func @transform_1(%arg0: i32, %arg1: i32) -> (i32, i32, i32) {
    %c0_i32 = arith.constant 0 : i32
    %c0_i32_0 = arith.constant 0 : i32
    return %arg0, %arg1, %c0_i32 : i32, i32, i32
  }
  func.func @transform_2(%arg0: i32, %arg1: i32) -> (i32, i32, i32) {
    %c0_i32 = arith.constant 0 : i32
    %c0_i32_0 = arith.constant 0 : i32
    %c0_i32_1 = arith.constant 0 : i32
    return %arg0, %c0_i32, %c0_i32_0 : i32, i32, i32
  }
  func.func @transform_3(%arg0: i32, %arg1: i32) -> (i32, i32) {
    %c0_i32 = arith.constant 0 : i32
    %c0_i32_0 = arith.constant 0 : i32
    %c0_i32_1 = arith.constant 0 : i32
    return %c0_i32, %c0_i32_0 : i32, i32
  }
  func.func @transform_4(%arg0: i32, %arg1: i32) -> (i32, i32) {
    %c0_i32 = arith.constant 0 : i32
    %c0_i32_0 = arith.constant 0 : i32
    %c0_i32_1 = arith.constant 0 : i32
    return %c0_i32, %c0_i32_0 : i32, i32
  }
  func.func @transform_5(%arg0: i32, %arg1: i32) -> (i32, i32) {
    %c0_i32 = arith.constant 0 : i32
    %c0_i32_0 = arith.constant 0 : i32
    %c0_i32_1 = arith.constant 0 : i32
    return %c0_i32, %c0_i32_0 : i32, i32
  }
  func.func @transform_6(%arg0: i32, %arg1: i32) -> (i32, i32) {
    %c0_i32 = arith.constant 0 : i32
    %c0_i32_0 = arith.constant 0 : i32
    %c0_i32_1 = arith.constant 0 : i32
    return %c0_i32, %c0_i32_0 : i32, i32
  }
  func.func @transform_7(%arg0: i32, %arg1: i32) -> (i32, i32, i32) {
    %c0_i32 = arith.constant 0 : i32
    %c0_i32_0 = arith.constant 0 : i32
    %c0_i32_1 = arith.constant 0 : i32
    return %arg0, %c0_i32, %c0_i32_0 : i32, i32, i32
  }
}

</mosaic_0001>

<llo_original>
// kernel: _lambda_.2
$region0: #{_lambda_.2}
  #allocation0 [shape = 'u32[]', space=smem, size = 0x4, offset = 0x4, fixed_abs, tag = 'smem constant byte address 0x4 - core index']
  #allocation1 [shape = 'u32[144,128]{1,0:T(1,128)}', space=vmem, size = 0x12000, scoped, tag = 'internal scratch']
  %s0 = inlined_call_operand.vmem [shape: f32[2,256,3], index: 0, kind: input, shape index: {}]
  %s1 = inlined_call_operand.vmem [shape: f32[3,8], index: 1, kind: input, shape index: {}]
  %s2 = inlined_call_operand.vmem [shape: f32[1,8], index: 2, kind: input, shape index: {}]
  %s3 = inlined_call_operand.vmem [shape: f32[8,256], index: 3, kind: input, shape index: {}]
  %s4 = inlined_call_operand.vmem [shape: f32[1,256], index: 4, kind: input, shape index: {}]
  %s5 = inlined_call_operand.vmem [shape: f32[3,256], index: 5, kind: input, shape index: {}]
  %s6 = inlined_call_operand.vmem [shape: f32[1,256], index: 6, kind: input, shape index: {}]
  %s7 = inlined_call_operand.vmem [shape: bf16[2,256,256], index: 7, kind: output, shape index: {0}]
  %s8 = inlined_call_operand.vmem [shape: bf16[2,256,256], index: 8, kind: output, shape index: {1}]
  %s9 = inlined_call_operand.vmem [shape: f32[2,1,256], index: 9, kind: output, shape index: {2}]
  %s10 = inlined_call_operand.vmem [shape: f32[2,1,256], index: 10, kind: output, shape index: {3}]
  %11 = xla_tuple %s7, %s8, %s9, %s10
  %s12 = sld [smem:[#allocation0]]
  $region89: #{_lambda_.2} parent=0
    _
  %s14 = ssub.s32 1, %s12
  %s15 = scalar_select 0, %s14, %s12
  loop: start=0, step=1, limit=4
  $region2: #{_lambda_.2} parent=0 // loop_pre_header
    _
  $region3: #{_lambda_.2} parent=0 // loop_header
    %s17 = sphi 0, %s21
    %p18 = scmp.ge.s32.totalorder %s17, 4
    %s24 = sphi 0, %s36
    %s25 = sphi 0, %s32
    %s26 = sphi 0, %s24
    %s27 = sphi 0, %s25
    %s28 = sphi 0, %s26
    %s29 = sphi 0, %s27
    %s41 = sphi 0, %s43
    %s44 = sphi 0, %s41
    %s45 = sphi 0, %s44
    %s61 = sphi 0, %s45
    %s65 = sphi 0, %s65
    %s67 = sphi 0, %s65
    %s68 = sphi 0, %s67
    %s82 = sphi 0, %s68
    %s86 = sphi 0, %s86
    %s88 = sphi 0, %s86
    %s89 = sphi 0, %s88
    %s103 = sphi 0, %s89
    %s107 = sphi 0, %s107
    %s109 = sphi 0, %s107
    %s110 = sphi 0, %s109
    %s124 = sphi 0, %s110
    %s128 = sphi 0, %s128
    %s130 = sphi 0, %s128
    %s131 = sphi 0, %s130
    %s145 = sphi 0, %s131
    %s149 = sphi 0, %s149
    %s151 = sphi 0, %s149
    %s152 = sphi 0, %s151
    %s166 = sphi 0, %s152
    %s170 = sphi 0, %s170
    %s172 = sphi 0, %s170
    %s173 = sphi 0, %s172
    %s187 = sphi 0, %s173
    %s195 = sphi 0, %s197
    %s198 = sphi 0, %s195
    %s199 = sphi 0, %s198
    %s215 = sphi 0, %s199
    %s223 = sphi 0, %s225
    %s226 = sphi 0, %s223
    %s227 = sphi 0, %s226
    %s243 = sphi 0, %s227
    %s249 = sphi 0, %s251
    %s252 = sphi 0, %s249
    %s253 = sphi 0, %s252
    %s269 = sphi 0, %s253
    %s275 = sphi 0, %s277
    %s278 = sphi 0, %s275
    %s279 = sphi 0, %s278
    %s295 = sphi 0, %s279
  $region4: #{_lambda_.2} parent=0 // loop_header_branch
    %20 = sbr.rel (%p18) target = $region8
  $region5: #{_lambda_.2} parent=0 // loop_body
    %s22 = ssub.s32 %s17, 1
    %s23 = ssub.s32 %s17, 2
    %s30 = sadd.s32 1, %s25
    %p31 = scmp.ge.s32.totalorder %s30, 1
    %s32 = scalar_select %p31, 0, %s30
    %s33 = sadd.s32 1, %s24
    %s34 = scalar_select %p31, %s33, %s24
    %p35 = scmp.ge.s32.totalorder %s34, 2
    %s36 = scalar_select %p35, 0, %s34
    %s37 = ssub.s32 %s24, %s36
    %s38 = ssub.s32 %s25, %s32
    %s39 = sor.u32 %s37, %s38
    %p40 = scmp.eq.s32.totalorder %s39, 0
    %s42 = sadd.s32 %s41, 1
    %s43 = scalar_select %p40, %s41, %s42
    %p46 = pneg %p40
    %p47 = scmp.eq.s32.totalorder %s17, 1
    %p48 = por %p46, %p47
    %p49 = scmp.ne.s32.totalorder %s41, %s44
    %p50 = scmp.eq.s32.totalorder %s17, 0
    %p51 = por %p49, %p50
    %p52 = scmp.ne.s32.totalorder %s41, %s44
    %p53 = scmp.eq.s32.totalorder %s22, 1
    %p54 = por %p52, %p53
    %p55 = scmp.ne.s32.totalorder %s44, %s45
    %p56 = scmp.eq.s32.totalorder %s22, 0
    %p57 = por %p55, %p56
    %p58 = scmp.ne.s32.totalorder %s44, %s45
    %p59 = scmp.eq.s32.totalorder %s23, 1
    %p60 = por %p58, %p59
    %p62 = scmp.ne.s32.totalorder %s45, %s61
    %p63 = scmp.eq.s32.totalorder %s23, 0
    %p64 = por %p62, %p63
    %s66 = sadd.s32 %s65, 1
    %p69 = scmp.eq.s32.totalorder %s17, 1
    %p70 = scmp.ne.s32.totalorder %s65, %s67
    %p71 = scmp.eq.s32.totalorder %s17, 0
    %p72 = por %p70, %p71
    %p73 = scmp.ne.s32.totalorder %s65, %s67
    %p74 = scmp.eq.s32.totalorder %s22, 1
    %p75 = por %p73, %p74
    %p76 = scmp.ne.s32.totalorder %s67, %s68
    %p77 = scmp.eq.s32.totalorder %s22, 0
    %p78 = por %p76, %p77
    %p79 = scmp.ne.s32.totalorder %s67, %s68
    %p80 = scmp.eq.s32.totalorder %s23, 1
    %p81 = por %p79, %p80
    %p83 = scmp.ne.s32.totalorder %s68, %s82
    %p84 = scmp.eq.s32.totalorder %s23, 0
    %p85 = por %p83, %p84
    %s87 = sadd.s32 %s86, 1
    %p90 = scmp.eq.s32.totalorder %s17, 1
    %p91 = scmp.ne.s32.totalorder %s86, %s88
    %p92 = scmp.eq.s32.totalorder %s17, 0
    %p93 = por %p91, %p92
    %p94 = scmp.ne.s32.totalorder %s86, %s88
    %p95 = scmp.eq.s32.totalorder %s22, 1
    %p96 = por %p94, %p95
    %p97 = scmp.ne.s32.totalorder %s88, %s89
    %p98 = scmp.eq.s32.totalorder %s22, 0
    %p99 = por %p97, %p98
    %p100 = scmp.ne.s32.totalorder %s88, %s89
    %p101 = scmp.eq.s32.totalorder %s23, 1
    %p102 = por %p100, %p101
    %p104 = scmp.ne.s32.totalorder %s89, %s103
    %p105 = scmp.eq.s32.totalorder %s23, 0
    %p106 = por %p104, %p105
    %s108 = sadd.s32 %s107, 1
    %p111 = scmp.eq.s32.totalorder %s17, 1
    %p112 = scmp.ne.s32.totalorder %s107, %s109
    %p113 = scmp.eq.s32.totalorder %s17, 0
    %p114 = por %p112, %p113
    %p115 = scmp.ne.s32.totalorder %s107, %s109
    %p116 = scmp.eq.s32.totalorder %s22, 1
    %p117 = por %p115, %p116
    %p118 = scmp.ne.s32.totalorder %s109, %s110
    %p119 = scmp.eq.s32.totalorder %s22, 0
    %p120 = por %p118, %p119
    %p121 = scmp.ne.s32.totalorder %s109, %s110
    %p122 = scmp.eq.s32.totalorder %s23, 1
    %p123 = por %p121, %p122
    %p125 = scmp.ne.s32.totalorder %s110, %s124
    %p126 = scmp.eq.s32.totalorder %s23, 0
    %p127 = por %p125, %p126
    %s129 = sadd.s32 %s128, 1
    %p132 = scmp.eq.s32.totalorder %s17, 1
    %p133 = scmp.ne.s32.totalorder %s128, %s130
    %p134 = scmp.eq.s32.totalorder %s17, 0
    %p135 = por %p133, %p134
    %p136 = scmp.ne.s32.totalorder %s128, %s130
    %p137 = scmp.eq.s32.totalorder %s22, 1
    %p138 = por %p136, %p137
    %p139 = scmp.ne.s32.totalorder %s130, %s131
    %p140 = scmp.eq.s32.totalorder %s22, 0
    %p141 = por %p139, %p140
    %p142 = scmp.ne.s32.totalorder %s130, %s131
    %p143 = scmp.eq.s32.totalorder %s23, 1
    %p144 = por %p142, %p143
    %p146 = scmp.ne.s32.totalorder %s131, %s145
    %p147 = scmp.eq.s32.totalorder %s23, 0
    %p148 = por %p146, %p147
    %s150 = sadd.s32 %s149, 1
    %p153 = scmp.eq.s32.totalorder %s17, 1
    %p154 = scmp.ne.s32.totalorder %s149, %s151
    %p155 = scmp.eq.s32.totalorder %s17, 0
    %p156 = por %p154, %p155
    %p157 = scmp.ne.s32.totalorder %s149, %s151
    %p158 = scmp.eq.s32.totalorder %s22, 1
    %p159 = por %p157, %p158
    %p160 = scmp.ne.s32.totalorder %s151, %s152
    %p161 = scmp.eq.s32.totalorder %s22, 0
    %p162 = por %p160, %p161
    %p163 = scmp.ne.s32.totalorder %s151, %s152
    %p164 = scmp.eq.s32.totalorder %s23, 1
    %p165 = por %p163, %p164
    %p167 = scmp.ne.s32.totalorder %s152, %s166
    %p168 = scmp.eq.s32.totalorder %s23, 0
    %p169 = por %p167, %p168
    %s171 = sadd.s32 %s170, 1
    %p174 = scmp.eq.s32.totalorder %s17, 1
    %p175 = scmp.ne.s32.totalorder %s170, %s172
    %p176 = scmp.eq.s32.totalorder %s17, 0
    %p177 = por %p175, %p176
    %p178 = scmp.ne.s32.totalorder %s170, %s172
    %p179 = scmp.eq.s32.totalorder %s22, 1
    %p180 = por %p178, %p179
    %p181 = scmp.ne.s32.totalorder %s172, %s173
    %p182 = scmp.eq.s32.totalorder %s22, 0
    %p183 = por %p181, %p182
    %p184 = scmp.ne.s32.totalorder %s172, %s173
    %p185 = scmp.eq.s32.totalorder %s23, 1
    %p186 = por %p184, %p185
    %p188 = scmp.ne.s32.totalorder %s173, %s187
    %p189 = scmp.eq.s32.totalorder %s23, 0
    %p190 = por %p188, %p189
    %s191 = ssub.s32 %s24, %s36
    %s192 = ssub.s32 %s25, %s32
    %s193 = sor.u32 %s191, %s192
    %p194 = scmp.eq.s32.totalorder %s193, 0
    %s196 = sadd.s32 %s195, 1
    %s197 = scalar_select %p194, %s195, %s196
    %p200 = pneg %p194
    %p201 = scmp.eq.s32.totalorder %s17, 1
    %p202 = por %p200, %p201
    %p203 = scmp.ne.s32.totalorder %s195, %s198
    %p204 = scmp.eq.s32.totalorder %s17, 0
    %p205 = por %p203, %p204
    %p206 = scmp.ne.s32.totalorder %s195, %s198
    %p207 = scmp.eq.s32.totalorder %s22, 1
    %p208 = por %p206, %p207
    %p209 = scmp.ne.s32.totalorder %s198, %s199
    %p210 = scmp.eq.s32.totalorder %s22, 0
    %p211 = por %p209, %p210
    %p212 = scmp.ne.s32.totalorder %s198, %s199
    %p213 = scmp.eq.s32.totalorder %s23, 1
    %p214 = por %p212, %p213
    %p216 = scmp.ne.s32.totalorder %s199, %s215
    %p217 = scmp.eq.s32.totalorder %s23, 0
    %p218 = por %p216, %p217
    %s219 = ssub.s32 %s24, %s36
    %s220 = ssub.s32 %s25, %s32
    %s221 = sor.u32 %s219, %s220
    %p222 = scmp.eq.s32.totalorder %s221, 0
    %s224 = sadd.s32 %s223, 1
    %s225 = scalar_select %p222, %s223, %s224
    %p228 = pneg %p222
    %p229 = scmp.eq.s32.totalorder %s17, 1
    %p230 = por %p228, %p229
    %p231 = scmp.ne.s32.totalorder %s223, %s226
    %p232 = scmp.eq.s32.totalorder %s17, 0
    %p233 = por %p231, %p232
    %p234 = scmp.ne.s32.totalorder %s223, %s226
    %p235 = scmp.eq.s32.totalorder %s22, 1
    %p236 = por %p234, %p235
    %p237 = scmp.ne.s32.totalorder %s226, %s227
    %p238 = scmp.eq.s32.totalorder %s22, 0
    %p239 = por %p237, %p238
    %p240 = scmp.ne.s32.totalorder %s226, %s227
    %p241 = scmp.eq.s32.totalorder %s23, 1
    %p242 = por %p240, %p241
    %p244 = scmp.ne.s32.totalorder %s227, %s243
    %p245 = scmp.eq.s32.totalorder %s23, 0
    %p246 = por %p244, %p245
    %s247 = ssub.s32 %s24, %s36
    %p248 = scmp.eq.s32.totalorder %s247, 0
    %s250 = sadd.s32 %s249, 1
    %s251 = scalar_select %p248, %s249, %s250
    %p254 = pneg %p248
    %p255 = scmp.eq.s32.totalorder %s17, 1
    %p256 = por %p254, %p255
    %p257 = scmp.ne.s32.totalorder %s249, %s252
    %p258 = scmp.eq.s32.totalorder %s17, 0
    %p259 = por %p257, %p258
    %p260 = scmp.ne.s32.totalorder %s249, %s252
    %p261 = scmp.eq.s32.totalorder %s22, 1
    %p262 = por %p260, %p261
    %p263 = scmp.ne.s32.totalorder %s252, %s253
    %p264 = scmp.eq.s32.totalorder %s22, 0
    %p265 = por %p263, %p264
    %p266 = scmp.ne.s32.totalorder %s252, %s253
    %p267 = scmp.eq.s32.totalorder %s23, 1
    %p268 = por %p266, %p267
    %p270 = scmp.ne.s32.totalorder %s253, %s269
    %p271 = scmp.eq.s32.totalorder %s23, 0
    %p272 = por %p270, %p271
    %s273 = ssub.s32 %s24, %s36
    %p274 = scmp.eq.s32.totalorder %s273, 0
    %s276 = sadd.s32 %s275, 1
    %s277 = scalar_select %p274, %s275, %s276
    %p280 = pneg %p274
    %p281 = scmp.eq.s32.totalorder %s17, 1
    %p282 = por %p280, %p281
    %p283 = scmp.ne.s32.totalorder %s275, %s278
    %p284 = scmp.eq.s32.totalorder %s17, 0
    %p285 = por %p283, %p284
    %p286 = scmp.ne.s32.totalorder %s275, %s278
    %p287 = scmp.eq.s32.totalorder %s22, 1
    %p288 = por %p286, %p287
    %p289 = scmp.ne.s32.totalorder %s278, %s279
    %p290 = scmp.eq.s32.totalorder %s22, 0
    %p291 = por %p289, %p290
    %p292 = scmp.ne.s32.totalorder %s278, %s279
    %p293 = scmp.eq.s32.totalorder %s23, 1
    %p294 = por %p292, %p293
    %p296 = scmp.ne.s32.totalorder %s279, %s295
    %p297 = scmp.eq.s32.totalorder %s23, 0
    %p298 = por %p296, %p297
    %p299 = scmp.le.s32.totalorder 1, %s17
    %p300 = scmp.lt.s32.totalorder %s17, 3
    %p301 = pnand %p299, %p300
    %p302 = pneg %p301
    // Predicated region
    $region9: #{_lambda_.2} parent=5 // pred_check
      _
    $region10: #{_lambda_.2} parent=5 // pred_check_branch
      %304 = sbr.rel (%p301) target = $region12
    $region11: #{_lambda_.2} parent=5 // pred_region
      %s305 = ssub.s32 %s17, 1
      // Predicated region
      $region13: #{_lambda_.2} parent=11 // pred_check
        %p306 = pneg %p78
      $region14: #{_lambda_.2} parent=11 // pred_check_branch
        %308 = sbr.rel (%p306) target = $region16
      $region15: #{_lambda_.2} parent=11 // pred_region
        _
      $region16: #{_lambda_.2} parent=11 // pred_fallthru
        _
      // Predicated region
      $region17: #{_lambda_.2} parent=11 // pred_check
        %p309 = pneg %p99
      $region18: #{_lambda_.2} parent=11 // pred_check_branch
        %311 = sbr.rel (%p309) target = $region20
      $region19: #{_lambda_.2} parent=11 // pred_region
        _
      $region20: #{_lambda_.2} parent=11 // pred_fallthru
        _
      // Predicated region
      $region21: #{_lambda_.2} parent=11 // pred_check
        %p312 = pneg %p120
      $region22: #{_lambda_.2} parent=11 // pred_check_branch
        %314 = sbr.rel (%p312) target = $region24
      $region23: #{_lambda_.2} parent=11 // pred_region
        _
      $region24: #{_lambda_.2} parent=11 // pred_fallthru
        _
      // Predicated region
      $region25: #{_lambda_.2} parent=11 // pred_check
        %p315 = pneg %p141
      $region26: #{_lambda_.2} parent=11 // pred_check_branch
        %317 = sbr.rel (%p315) target = $region28
      $region27: #{_lambda_.2} parent=11 // pred_region
        _
      $region28: #{_lambda_.2} parent=11 // pred_fallthru
        _
      // Predicated region
      $region29: #{_lambda_.2} parent=11 // pred_check
        %p318 = pneg %p162
      $region30: #{_lambda_.2} parent=11 // pred_check_branch
        %320 = sbr.rel (%p318) target = $region32
      $region31: #{_lambda_.2} parent=11 // pred_region
        _
      $region32: #{_lambda_.2} parent=11 // pred_fallthru
        _
      // Predicated region
      $region33: #{_lambda_.2} parent=11 // pred_check
        %p321 = pneg %p183
      $region34: #{_lambda_.2} parent=11 // pred_check_branch
        %323 = sbr.rel (%p321) target = $region36
      $region35: #{_lambda_.2} parent=11 // pred_region
        _
      $region36: #{_lambda_.2} parent=11 // pred_fallthru
        _
    $region12: #{_lambda_.2} parent=5 // pred_fallthru
      _
    %p324 = scmp.lt.s32.totalorder %s17, 2
    // Predicated region
    $region37: #{_lambda_.2} parent=5 // pred_check
      %p325 = pneg %p324
    $region38: #{_lambda_.2} parent=5 // pred_check_branch
      %327 = sbr.rel (%p325) target = $region40
    $region39: #{_lambda_.2} parent=5 // pred_region
      // Predicated region
      $region41: #{_lambda_.2} parent=39 // pred_check
        %p328 = pneg %p51
      $region42: #{_lambda_.2} parent=39 // pred_check_branch
        %330 = sbr.rel (%p328) target = $region44
      $region43: #{_lambda_.2} parent=39 // pred_region
        %s331 = smul.u32 32, %s25
        %p332 = scmp.lt.s32.totalorder %s24, 1
        %s333 = scalar_select %p332, %s24, 1
        %p334 = scmp.lt.s32.totalorder %s331, 31
        %s335 = scalar_select %p334, %s331, 31
        %s336 = smul.addr %s333, 32
        %s337 = sadd.s32 %s335, %s336
        %s338 = smul.addr %s337, 8
        %s339 = scalar_lea.vmem %s0, %s338
        %s340 = smul.u32 32, %s25
      $region44: #{_lambda_.2} parent=39 // pred_fallthru
        _
    $region40: #{_lambda_.2} parent=5 // pred_fallthru
      _
    %p341 = scmp.le.s32.totalorder 1, %s17
    %p342 = scmp.lt.s32.totalorder %s17, 3
    %p343 = pnand %p341, %p342
    %p344 = pneg %p343
    // Predicated region
    $region45: #{_lambda_.2} parent=5 // pred_check
      _
    $region46: #{_lambda_.2} parent=5 // pred_check_branch
      %346 = sbr.rel (%p343) target = $region48
    $region47: #{_lambda_.2} parent=5 // pred_region
      %s347 = ssub.s32 %s17, 1
      %s348 = smul.u32 32, %s27
      %p349 = scmp.lt.s32.totalorder %s26, 1
      %s350 = scalar_select %p349, %s26, 1
      %p351 = scmp.lt.s32.totalorder %s348, 31
      %s352 = scalar_select %p351, %s348, 31
      %s353 = smul.addr %s350, 32
      %s354 = sadd.s32 %s352, %s353
      %s355 = smul.addr %s354, 8
      %s356 = scalar_lea.vmem %s0, %s355
      %p357 = pneg %p57
      %p358 = pneg %p54
      %p359 = pneg %p78
      %p360 = pneg %p75
      %p361 = pneg %p99
      %p362 = pneg %p96
      %p363 = pneg %p120
      %p364 = pneg %p117
      %p365 = pneg %p141
      %p366 = pneg %p138
      %p367 = pneg %p162
      %p368 = pneg %p159
      %p369 = pneg %p183
      %p370 = pneg %p180
      %p371 = pneg %p211
      %p372 = pneg %p208
      %s373 = smul.u32 32, %s27
      %p374 = scmp.lt.s32.totalorder %s26, 1
      %s375 = scalar_select %p374, %s26, 1
      %p376 = scmp.lt.s32.totalorder %s373, 31
      %s377 = scalar_select %p376, %s373, 31
      %s378 = smul.addr %s377, 2
      %s379 = smul.addr %s375, 64
      %s380 = sadd.s32 %s378, %s379
      %s381 = smul.addr %s380, 4
      %s382 = scalar_lea.vmem %s7, %s381
      %p383 = pneg %p239
      %p384 = pneg %p236
      %s385 = smul.u32 32, %s27
      %p386 = scmp.lt.s32.totalorder %s26, 1
      %s387 = scalar_select %p386, %s26, 1
      %p388 = scmp.lt.s32.totalorder %s385, 31
      %s389 = scalar_select %p388, %s385, 31
      %s390 = smul.addr %s389, 2
      %s391 = smul.addr %s387, 64
      %s392 = sadd.s32 %s390, %s391
      %s393 = smul.addr %s392, 4
      %s394 = scalar_lea.vmem %s8, %s393
      %p395 = pneg %p265
      %p396 = pneg %p262
      %p397 = scmp.lt.s32.totalorder %s26, 1
      %s398 = scalar_select %p397, %s26, 1
      %s399 = smul.addr %s398, 2
      %s400 = scalar_lea.vmem %s9, %s399
      %p401 = pneg %p291
      %p402 = pneg %p288
      %p403 = scmp.lt.s32.totalorder %s26, 1
      %s404 = scalar_select %p403, %s26, 1
      %s405 = smul.addr %s404, 2
      %s406 = scalar_lea.vmem %s10, %s405
      %s407 = smul.u32 32, %s27
      %p408 = scmp.lt.s32.totalorder %s26, 1
      %s409 = scalar_select %p408, %s26, 1
      %p410 = scmp.lt.s32.totalorder %s407, 31
      %s411 = scalar_select %p410, %s407, 31
      %s412 = smul.addr %s409, 32
      %s413 = sadd.s32 %s411, %s412
      %s414 = smul.addr %s413, 8
      %s415 = scalar_lea.vmem %s0, %s414
      %s416 = smul.u32 32, %s27
      %s417 = smul.u32 32, %s27
      %p418 = scmp.lt.s32.totalorder %s26, 1
      %s419 = scalar_select %p418, %s26, 1
      %p420 = scmp.lt.s32.totalorder %s417, 31
      %s421 = scalar_select %p420, %s417, 31
      %s422 = smul.addr %s421, 2
      %s423 = smul.addr %s419, 64
      %s424 = sadd.s32 %s422, %s423
      %s425 = smul.addr %s424, 4
      %s426 = scalar_lea.vmem %s7, %s425
      %s427 = smul.u32 32, %s27
      %s428 = smul.u32 32, %s27
      %p429 = scmp.lt.s32.totalorder %s26, 1
      %s430 = scalar_select %p429, %s26, 1
      %p431 = scmp.lt.s32.totalorder %s428, 31
      %s432 = scalar_select %p431, %s428, 31
      %s433 = smul.addr %s432, 2
      %s434 = smul.addr %s430, 64
      %s435 = sadd.s32 %s433, %s434
      %s436 = smul.addr %s435, 4
      %s437 = scalar_lea.vmem %s8, %s436
      %s438 = smul.u32 32, %s27
      %p439 = scmp.lt.s32.totalorder %s26, 1
      %s440 = scalar_select %p439, %s26, 1
      %s441 = smul.addr %s440, 2
      %s442 = scalar_lea.vmem %s9, %s441
      %p443 = scmp.lt.s32.totalorder %s26, 1
      %s444 = scalar_select %p443, %s26, 1
      %s445 = smul.addr %s444, 2
      %s446 = scalar_lea.vmem %s10, %s445
      %p447 = scmp.eq.s32.totalorder %s27, 0
      // Predicated region
      $region49: #{_lambda_.2} parent=47 // pred_check
        %p448 = pneg %p447
      $region50: #{_lambda_.2} parent=47 // pred_check_branch
        %450 = sbr.rel (%p448) target = $region52
      $region51: #{_lambda_.2} parent=47 // pred_region
        %v451 = vlaneseq
        %vm452 = vcmp.ge.s32.totalorder %v451, 0
        %vm453 = vcmp.lt.s32.totalorder %v451, 256
        %vm454 = vmand %vm452, %vm453
        %455 = vst.msk [vmem:[%s442] sm:$0x3] %vm454, 0.0
        %456 = vst.msk [vmem:[%s446] sm:$0x3] %vm454, 0.0
      $region52: #{_lambda_.2} parent=47 // pred_fallthru
        _
      %v457 = vld [vmem:[%s415] sm:$0xff]
      %v458 = vld [vmem:[%s415 + $0x8] sm:$0xff]
      %v459 = vld [vmem:[%s415 + $0x10] sm:$0xff]
      %v460 = vld [vmem:[%s415 + $0x18] sm:$0xff]
      %v461 = vld [vmem:[%s415 + $0x20] sm:$0xff]
      %v462 = vld [vmem:[%s415 + $0x28] sm:$0xff]
      %v463 = vld [vmem:[%s415 + $0x30] sm:$0xff]
      %v464 = vld [vmem:[%s415 + $0x38] sm:$0xff]
      %v465 = vld [vmem:[%s415 + $0x40] sm:$0xff]
      %v466 = vld [vmem:[%s415 + $0x48] sm:$0xff]
      %v467 = vld [vmem:[%s415 + $0x50] sm:$0xff]
      %v468 = vld [vmem:[%s415 + $0x58] sm:$0xff]
      %v469 = vld [vmem:[%s415 + $0x60] sm:$0xff]
      %v470 = vld [vmem:[%s415 + $0x68] sm:$0xff]
      %v471 = vld [vmem:[%s415 + $0x70] sm:$0xff]
      %v472 = vld [vmem:[%s415 + $0x78] sm:$0xff]
      %v473 = vld [vmem:[%s415 + $0x80] sm:$0xff]
      %v474 = vld [vmem:[%s415 + $0x88] sm:$0xff]
      %v475 = vld [vmem:[%s415 + $0x90] sm:$0xff]
      %v476 = vld [vmem:[%s415 + $0x98] sm:$0xff]
      %v477 = vld [vmem:[%s415 + $0xa0] sm:$0xff]
      %v478 = vld [vmem:[%s415 + $0xa8] sm:$0xff]
      %v479 = vld [vmem:[%s415 + $0xb0] sm:$0xff]
      %v480 = vld [vmem:[%s415 + $0xb8] sm:$0xff]
      %v481 = vld [vmem:[%s415 + $0xc0] sm:$0xff]
      %v482 = vld [vmem:[%s415 + $0xc8] sm:$0xff]
      %v483 = vld [vmem:[%s415 + $0xd0] sm:$0xff]
      %v484 = vld [vmem:[%s415 + $0xd8] sm:$0xff]
      %v485 = vld [vmem:[%s415 + $0xe0] sm:$0xff]
      %v486 = vld [vmem:[%s415 + $0xe8] sm:$0xff]
      %v487 = vld [vmem:[%s415 + $0xf0] sm:$0xff]
      %v488 = vld [vmem:[%s415 + $0xf8] sm:$0xff]
      %v489 = vld [vmem:[%s1] sm:$0x7]
      %491 = vset.pattern.permute.xlu0 0
      %492 = vperm.xlu0 %491, %v457
      %v493 = vpop.permute.xlu0 %492
      %496 = vset.pattern.permute.xlu0 0
      %497 = vperm.xlu0 %496, %v458
      %v498 = vpop.permute.xlu0 %497
      %501 = vset.pattern.permute.xlu0 0
      %502 = vperm.xlu0 %501, %v459
      %v503 = vpop.permute.xlu0 %502
      %506 = vset.pattern.permute.xlu0 0
      %507 = vperm.xlu0 %506, %v460
      %v508 = vpop.permute.xlu0 %507
      %511 = vset.pattern.permute.xlu0 0
      %512 = vperm.xlu0 %511, %v461
      %v513 = vpop.permute.xlu0 %512
      %516 = vset.pattern.permute.xlu0 0
      %517 = vperm.xlu0 %516, %v462
      %v518 = vpop.permute.xlu0 %517
      %521 = vset.pattern.permute.xlu0 0
      %522 = vperm.xlu0 %521, %v463
      %v523 = vpop.permute.xlu0 %522
      %526 = vset.pattern.permute.xlu0 0
      %527 = vperm.xlu0 %526, %v464
      %v528 = vpop.permute.xlu0 %527
      %531 = vset.pattern.permute.xlu0 0
      %532 = vperm.xlu0 %531, %v465
      %v533 = vpop.permute.xlu0 %532
      %536 = vset.pattern.permute.xlu0 0
      %537 = vperm.xlu0 %536, %v466
      %v538 = vpop.permute.xlu0 %537
      %541 = vset.pattern.permute.xlu0 0
      %542 = vperm.xlu0 %541, %v467
      %v543 = vpop.permute.xlu0 %542
      %546 = vset.pattern.permute.xlu0 0
      %547 = vperm.xlu0 %546, %v468
      %v548 = vpop.permute.xlu0 %547
      %551 = vset.pattern.permute.xlu0 0
      %552 = vperm.xlu0 %551, %v469
      %v553 = vpop.permute.xlu0 %552
      %556 = vset.pattern.permute.xlu0 0
      %557 = vperm.xlu0 %556, %v470
      %v558 = vpop.permute.xlu0 %557
      %561 = vset.pattern.permute.xlu0 0
      %562 = vperm.xlu0 %561, %v471
      %v563 = vpop.permute.xlu0 %562
      %566 = vset.pattern.permute.xlu0 0
      %567 = vperm.xlu0 %566, %v472
      %v568 = vpop.permute.xlu0 %567
      %571 = vset.pattern.permute.xlu0 0
      %572 = vperm.xlu0 %571, %v473
      %v573 = vpop.permute.xlu0 %572
      %576 = vset.pattern.permute.xlu0 0
      %577 = vperm.xlu0 %576, %v474
      %v578 = vpop.permute.xlu0 %577
      %581 = vset.pattern.permute.xlu0 0
      %582 = vperm.xlu0 %581, %v475
      %v583 = vpop.permute.xlu0 %582
      %586 = vset.pattern.permute.xlu0 0
      %587 = vperm.xlu0 %586, %v476
      %v588 = vpop.permute.xlu0 %587
      %591 = vset.pattern.permute.xlu0 0
      %592 = vperm.xlu0 %591, %v477
      %v593 = vpop.permute.xlu0 %592
      %596 = vset.pattern.permute.xlu0 0
      %597 = vperm.xlu0 %596, %v478
      %v598 = vpop.permute.xlu0 %597
      %601 = vset.pattern.permute.xlu0 0
      %602 = vperm.xlu0 %601, %v479
      %v603 = vpop.permute.xlu0 %602
      %606 = vset.pattern.permute.xlu0 0
      %607 = vperm.xlu0 %606, %v480
      %v608 = vpop.permute.xlu0 %607
      %611 = vset.pattern.permute.xlu0 0
      %612 = vperm.xlu0 %611, %v481
      %v613 = vpop.permute.xlu0 %612
      %616 = vset.pattern.permute.xlu0 0
      %617 = vperm.xlu0 %616, %v482
      %v618 = vpop.permute.xlu0 %617
      %621 = vset.pattern.permute.xlu0 0
      %622 = vperm.xlu0 %621, %v483
      %v623 = vpop.permute.xlu0 %622
      %626 = vset.pattern.permute.xlu0 0
      %627 = vperm.xlu0 %626, %v484
      %v628 = vpop.permute.xlu0 %627
      %631 = vset.pattern.permute.xlu0 0
      %632 = vperm.xlu0 %631, %v485
      %v633 = vpop.permute.xlu0 %632
      %636 = vset.pattern.permute.xlu0 0
      %637 = vperm.xlu0 %636, %v486
      %v638 = vpop.permute.xlu0 %637
      %641 = vset.pattern.permute.xlu0 0
      %642 = vperm.xlu0 %641, %v487
      %v643 = vpop.permute.xlu0 %642
      %646 = vset.pattern.permute.xlu0 0
      %647 = vperm.xlu0 %646, %v488
      %v648 = vpop.permute.xlu0 %647
      %v650 = vlaneseq
      %v651 = vshrl.u32 %v650, 7
      %v652 = vsub.s32 0, %v651
      %v653 = vrot.slane %v489, %v652
      %v654 = vmul.f32 %v493, %v653
      %v655 = vmul.f32 %v498, %v653
      %v656 = vmul.f32 %v503, %v653
      %v657 = vmul.f32 %v508, %v653
      %v658 = vmul.f32 %v513, %v653
      %v659 = vmul.f32 %v518, %v653
      %v660 = vmul.f32 %v523, %v653
      %v661 = vmul.f32 %v528, %v653
      %v662 = vmul.f32 %v533, %v653
      %v663 = vmul.f32 %v538, %v653
      %v664 = vmul.f32 %v543, %v653
      %v665 = vmul.f32 %v548, %v653
      %v666 = vmul.f32 %v553, %v653
      %v667 = vmul.f32 %v558, %v653
      %v668 = vmul.f32 %v563, %v653
      %v669 = vmul.f32 %v568, %v653
      %v670 = vmul.f32 %v573, %v653
      %v671 = vmul.f32 %v578, %v653
      %v672 = vmul.f32 %v583, %v653
      %v673 = vmul.f32 %v588, %v653
      %v674 = vmul.f32 %v593, %v653
      %v675 = vmul.f32 %v598, %v653
      %v676 = vmul.f32 %v603, %v653
      %v677 = vmul.f32 %v608, %v653
      %v678 = vmul.f32 %v613, %v653
      %v679 = vmul.f32 %v618, %v653
      %v680 = vmul.f32 %v623, %v653
      %v681 = vmul.f32 %v628, %v653
      %v682 = vmul.f32 %v633, %v653
      %v683 = vmul.f32 %v638, %v653
      %v684 = vmul.f32 %v643, %v653
      %v685 = vmul.f32 %v648, %v653
      %686 = vset.pattern.permute.xlu0 1
      %687 = vperm.xlu0 %686, %v457
      %v688 = vpop.permute.xlu0 %687
      %690 = vset.pattern.permute.xlu0 1
      %691 = vperm.xlu0 %690, %v458
      %v692 = vpop.permute.xlu0 %691
      %694 = vset.pattern.permute.xlu0 1
      %695 = vperm.xlu0 %694, %v459
      %v696 = vpop.permute.xlu0 %695
      %698 = vset.pattern.permute.xlu0 1
      %699 = vperm.xlu0 %698, %v460
      %v700 = vpop.permute.xlu0 %699
      %702 = vset.pattern.permute.xlu0 1
      %703 = vperm.xlu0 %702, %v461
      %v704 = vpop.permute.xlu0 %703
      %706 = vset.pattern.permute.xlu0 1
      %707 = vperm.xlu0 %706, %v462
      %v708 = vpop.permute.xlu0 %707
      %710 = vset.pattern.permute.xlu0 1
      %711 = vperm.xlu0 %710, %v463
      %v712 = vpop.permute.xlu0 %711
      %714 = vset.pattern.permute.xlu0 1
      %715 = vperm.xlu0 %714, %v464
      %v716 = vpop.permute.xlu0 %715
      %718 = vset.pattern.permute.xlu0 1
      %719 = vperm.xlu0 %718, %v465
      %v720 = vpop.permute.xlu0 %719
      %722 = vset.pattern.permute.xlu0 1
      %723 = vperm.xlu0 %722, %v466
      %v724 = vpop.permute.xlu0 %723
      %726 = vset.pattern.permute.xlu0 1
      %727 = vperm.xlu0 %726, %v467
      %v728 = vpop.permute.xlu0 %727
      %730 = vset.pattern.permute.xlu0 1
      %731 = vperm.xlu0 %730, %v468
      %v732 = vpop.permute.xlu0 %731
      %734 = vset.pattern.permute.xlu0 1
      %735 = vperm.xlu0 %734, %v469
      %v736 = vpop.permute.xlu0 %735
      %738 = vset.pattern.permute.xlu0 1
      %739 = vperm.xlu0 %738, %v470
      %v740 = vpop.permute.xlu0 %739
      %742 = vset.pattern.permute.xlu0 1
      %743 = vperm.xlu0 %742, %v471
      %v744 = vpop.permute.xlu0 %743
      %746 = vset.pattern.permute.xlu0 1
      %747 = vperm.xlu0 %746, %v472
      %v748 = vpop.permute.xlu0 %747
      %750 = vset.pattern.permute.xlu0 1
      %751 = vperm.xlu0 %750, %v473
      %v752 = vpop.permute.xlu0 %751
      %754 = vset.pattern.permute.xlu0 1
      %755 = vperm.xlu0 %754, %v474
      %v756 = vpop.permute.xlu0 %755
      %758 = vset.pattern.permute.xlu0 1
      %759 = vperm.xlu0 %758, %v475
      %v760 = vpop.permute.xlu0 %759
      %762 = vset.pattern.permute.xlu0 1
      %763 = vperm.xlu0 %762, %v476
      %v764 = vpop.permute.xlu0 %763
      %766 = vset.pattern.permute.xlu0 1
      %767 = vperm.xlu0 %766, %v477
      %v768 = vpop.permute.xlu0 %767
      %770 = vset.pattern.permute.xlu0 1
      %771 = vperm.xlu0 %770, %v478
      %v772 = vpop.permute.xlu0 %771
      %774 = vset.pattern.permute.xlu0 1
      %775 = vperm.xlu0 %774, %v479
      %v776 = vpop.permute.xlu0 %775
      %778 = vset.pattern.permute.xlu0 1
      %779 = vperm.xlu0 %778, %v480
      %v780 = vpop.permute.xlu0 %779
      %782 = vset.pattern.permute.xlu0 1
      %783 = vperm.xlu0 %782, %v481
      %v784 = vpop.permute.xlu0 %783
      %786 = vset.pattern.permute.xlu0 1
      %787 = vperm.xlu0 %786, %v482
      %v788 = vpop.permute.xlu0 %787
      %790 = vset.pattern.permute.xlu0 1
      %791 = vperm.xlu0 %790, %v483
      %v792 = vpop.permute.xlu0 %791
      %794 = vset.pattern.permute.xlu0 1
      %795 = vperm.xlu0 %794, %v484
      %v796 = vpop.permute.xlu0 %795
      %798 = vset.pattern.permute.xlu0 1
      %799 = vperm.xlu0 %798, %v485
      %v800 = vpop.permute.xlu0 %799
      %802 = vset.pattern.permute.xlu0 1
      %803 = vperm.xlu0 %802, %v486
      %v804 = vpop.permute.xlu0 %803
      %806 = vset.pattern.permute.xlu0 1
      %807 = vperm.xlu0 %806, %v487
      %v808 = vpop.permute.xlu0 %807
      %810 = vset.pattern.permute.xlu0 1
      %811 = vperm.xlu0 %810, %v488
      %v812 = vpop.permute.xlu0 %811
      %v814 = vlaneseq
      %v815 = vshrl.u32 %v814, 7
      %v816 = vsub.s32 1, %v815
      %v817 = vrot.slane %v489, %v816
      %v818 = vmul.f32 %v688, %v817
      %v819 = vmul.f32 %v692, %v817
      %v820 = vmul.f32 %v696, %v817
      %v821 = vmul.f32 %v700, %v817
      %v822 = vmul.f32 %v704, %v817
      %v823 = vmul.f32 %v708, %v817
      %v824 = vmul.f32 %v712, %v817
      %v825 = vmul.f32 %v716, %v817
      %v826 = vmul.f32 %v720, %v817
      %v827 = vmul.f32 %v724, %v817
      %v828 = vmul.f32 %v728, %v817
      %v829 = vmul.f32 %v732, %v817
      %v830 = vmul.f32 %v736, %v817
      %v831 = vmul.f32 %v740, %v817
      %v832 = vmul.f32 %v744, %v817
      %v833 = vmul.f32 %v748, %v817
      %v834 = vmul.f32 %v752, %v817
      %v835 = vmul.f32 %v756, %v817
      %v836 = vmul.f32 %v760, %v817
      %v837 = vmul.f32 %v764, %v817
      %v838 = vmul.f32 %v768, %v817
      %v839 = vmul.f32 %v772, %v817
      %v840 = vmul.f32 %v776, %v817
      %v841 = vmul.f32 %v780, %v817
      %v842 = vmul.f32 %v784, %v817
      %v843 = vmul.f32 %v788, %v817
      %v844 = vmul.f32 %v792, %v817
      %v845 = vmul.f32 %v796, %v817
      %v846 = vmul.f32 %v800, %v817
      %v847 = vmul.f32 %v804, %v817
      %v848 = vmul.f32 %v808, %v817
      %v849 = vmul.f32 %v812, %v817
      %v850 = vadd.f32 %v654, %v818
      %v851 = vadd.f32 %v655, %v819
      %v852 = vadd.f32 %v656, %v820
      %v853 = vadd.f32 %v657, %v821
      %v854 = vadd.f32 %v658, %v822
      %v855 = vadd.f32 %v659, %v823
      %v856 = vadd.f32 %v660, %v824
      %v857 = vadd.f32 %v661, %v825
      %v858 = vadd.f32 %v662, %v826
      %v859 = vadd.f32 %v663, %v827
      %v860 = vadd.f32 %v664, %v828
      %v861 = vadd.f32 %v665, %v829
      %v862 = vadd.f32 %v666, %v830
      %v863 = vadd.f32 %v667, %v831
      %v864 = vadd.f32 %v668, %v832
      %v865 = vadd.f32 %v669, %v833
      %v866 = vadd.f32 %v670, %v834
      %v867 = vadd.f32 %v671, %v835
      %v868 = vadd.f32 %v672, %v836
      %v869 = vadd.f32 %v673, %v837
      %v870 = vadd.f32 %v674, %v838
      %v871 = vadd.f32 %v675, %v839
      %v872 = vadd.f32 %v676, %v840
      %v873 = vadd.f32 %v677, %v841
      %v874 = vadd.f32 %v678, %v842
      %v875 = vadd.f32 %v679, %v843
      %v876 = vadd.f32 %v680, %v844
      %v877 = vadd.f32 %v681, %v845
      %v878 = vadd.f32 %v682, %v846
      %v879 = vadd.f32 %v683, %v847
      %v880 = vadd.f32 %v684, %v848
      %v881 = vadd.f32 %v685, %v849
      %882 = vset.pattern.permute.xlu0 2
      %883 = vperm.xlu0 %882, %v457
      %v884 = vpop.permute.xlu0 %883
      %886 = vset.pattern.permute.xlu0 2
      %887 = vperm.xlu0 %886, %v458
      %v888 = vpop.permute.xlu0 %887
      %890 = vset.pattern.permute.xlu0 2
      %891 = vperm.xlu0 %890, %v459
      %v892 = vpop.permute.xlu0 %891
      %894 = vset.pattern.permute.xlu0 2
      %895 = vperm.xlu0 %894, %v460
      %v896 = vpop.permute.xlu0 %895
      %898 = vset.pattern.permute.xlu0 2
      %899 = vperm.xlu0 %898, %v461
      %v900 = vpop.permute.xlu0 %899
      %902 = vset.pattern.permute.xlu0 2
      %903 = vperm.xlu0 %902, %v462
      %v904 = vpop.permute.xlu0 %903
      %906 = vset.pattern.permute.xlu0 2
      %907 = vperm.xlu0 %906, %v463
      %v908 = vpop.permute.xlu0 %907
      %910 = vset.pattern.permute.xlu0 2
      %911 = vperm.xlu0 %910, %v464
      %v912 = vpop.permute.xlu0 %911
      %914 = vset.pattern.permute.xlu0 2
      %915 = vperm.xlu0 %914, %v465
      %v916 = vpop.permute.xlu0 %915
      %918 = vset.pattern.permute.xlu0 2
      %919 = vperm.xlu0 %918, %v466
      %v920 = vpop.permute.xlu0 %919
      %922 = vset.pattern.permute.xlu0 2
      %923 = vperm.xlu0 %922, %v467
      %v924 = vpop.permute.xlu0 %923
      %926 = vset.pattern.permute.xlu0 2
      %927 = vperm.xlu0 %926, %v468
      %v928 = vpop.permute.xlu0 %927
      %930 = vset.pattern.permute.xlu0 2
      %931 = vperm.xlu0 %930, %v469
      %v932 = vpop.permute.xlu0 %931
      %934 = vset.pattern.permute.xlu0 2
      %935 = vperm.xlu0 %934, %v470
      %v936 = vpop.permute.xlu0 %935
      %938 = vset.pattern.permute.xlu0 2
      %939 = vperm.xlu0 %938, %v471
      %v940 = vpop.permute.xlu0 %939
      %942 = vset.pattern.permute.xlu0 2
      %943 = vperm.xlu0 %942, %v472
      %v944 = vpop.permute.xlu0 %943
      %946 = vset.pattern.permute.xlu0 2
      %947 = vperm.xlu0 %946, %v473
      %v948 = vpop.permute.xlu0 %947
      %950 = vset.pattern.permute.xlu0 2
      %951 = vperm.xlu0 %950, %v474
      %v952 = vpop.permute.xlu0 %951
      %954 = vset.pattern.permute.xlu0 2
      %955 = vperm.xlu0 %954, %v475
      %v956 = vpop.permute.xlu0 %955
      %958 = vset.pattern.permute.xlu0 2
      %959 = vperm.xlu0 %958, %v476
      %v960 = vpop.permute.xlu0 %959
      %962 = vset.pattern.permute.xlu0 2
      %963 = vperm.xlu0 %962, %v477
      %v964 = vpop.permute.xlu0 %963
      %966 = vset.pattern.permute.xlu0 2
      %967 = vperm.xlu0 %966, %v478
      %v968 = vpop.permute.xlu0 %967
      %970 = vset.pattern.permute.xlu0 2
      %971 = vperm.xlu0 %970, %v479
      %v972 = vpop.permute.xlu0 %971
      %974 = vset.pattern.permute.xlu0 2
      %975 = vperm.xlu0 %974, %v480
      %v976 = vpop.permute.xlu0 %975
      %978 = vset.pattern.permute.xlu0 2
      %979 = vperm.xlu0 %978, %v481
      %v980 = vpop.permute.xlu0 %979
      %982 = vset.pattern.permute.xlu0 2
      %983 = vperm.xlu0 %982, %v482
      %v984 = vpop.permute.xlu0 %983
      %986 = vset.pattern.permute.xlu0 2
      %987 = vperm.xlu0 %986, %v483
      %v988 = vpop.permute.xlu0 %987
      %990 = vset.pattern.permute.xlu0 2
      %991 = vperm.xlu0 %990, %v484
      %v992 = vpop.permute.xlu0 %991
      %994 = vset.pattern.permute.xlu0 2
      %995 = vperm.xlu0 %994, %v485
      %v996 = vpop.permute.xlu0 %995
      %998 = vset.pattern.permute.xlu0 2
      %999 = vperm.xlu0 %998, %v486
      %v1000 = vpop.permute.xlu0 %999
      %1002 = vset.pattern.permute.xlu0 2
      %1003 = vperm.xlu0 %1002, %v487
      %v1004 = vpop.permute.xlu0 %1003
      %1006 = vset.pattern.permute.xlu0 2
      %1007 = vperm.xlu0 %1006, %v488
      %v1008 = vpop.permute.xlu0 %1007
      %v1010 = vlaneseq
      %v1011 = vshrl.u32 %v1010, 7
      %v1012 = vsub.s32 2, %v1011
      %v1013 = vrot.slane %v489, %v1012
      %v1014 = vmul.f32 %v884, %v1013
      %v1015 = vmul.f32 %v888, %v1013
      %v1016 = vmul.f32 %v892, %v1013
      %v1017 = vmul.f32 %v896, %v1013
      %v1018 = vmul.f32 %v900, %v1013
      %v1019 = vmul.f32 %v904, %v1013
      %v1020 = vmul.f32 %v908, %v1013
      %v1021 = vmul.f32 %v912, %v1013
      %v1022 = vmul.f32 %v916, %v1013
      %v1023 = vmul.f32 %v920, %v1013
      %v1024 = vmul.f32 %v924, %v1013
      %v1025 = vmul.f32 %v928, %v1013
      %v1026 = vmul.f32 %v932, %v1013
      %v1027 = vmul.f32 %v936, %v1013
      %v1028 = vmul.f32 %v940, %v1013
      %v1029 = vmul.f32 %v944, %v1013
      %v1030 = vmul.f32 %v948, %v1013
      %v1031 = vmul.f32 %v952, %v1013
      %v1032 = vmul.f32 %v956, %v1013
      %v1033 = vmul.f32 %v960, %v1013
      %v1034 = vmul.f32 %v964, %v1013
      %v1035 = vmul.f32 %v968, %v1013
      %v1036 = vmul.f32 %v972, %v1013
      %v1037 = vmul.f32 %v976, %v1013
      %v1038 = vmul.f32 %v980, %v1013
      %v1039 = vmul.f32 %v984, %v1013
      %v1040 = vmul.f32 %v988, %v1013
      %v1041 = vmul.f32 %v992, %v1013
      %v1042 = vmul.f32 %v996, %v1013
      %v1043 = vmul.f32 %v1000, %v1013
      %v1044 = vmul.f32 %v1004, %v1013
      %v1045 = vmul.f32 %v1008, %v1013
      %v1046 = vadd.f32 %v850, %v1014
      %v1047 = vadd.f32 %v851, %v1015
      %v1048 = vadd.f32 %v852, %v1016
      %v1049 = vadd.f32 %v853, %v1017
      %v1050 = vadd.f32 %v854, %v1018
      %v1051 = vadd.f32 %v855, %v1019
      %v1052 = vadd.f32 %v856, %v1020
      %v1053 = vadd.f32 %v857, %v1021
      %v1054 = vadd.f32 %v858, %v1022
      %v1055 = vadd.f32 %v859, %v1023
      %v1056 = vadd.f32 %v860, %v1024
      %v1057 = vadd.f32 %v861, %v1025
      %v1058 = vadd.f32 %v862, %v1026
      %v1059 = vadd.f32 %v863, %v1027
      %v1060 = vadd.f32 %v864, %v1028
      %v1061 = vadd.f32 %v865, %v1029
      %v1062 = vadd.f32 %v866, %v1030
      %v1063 = vadd.f32 %v867, %v1031
      %v1064 = vadd.f32 %v868, %v1032
      %v1065 = vadd.f32 %v869, %v1033
      %v1066 = vadd.f32 %v870, %v1034
      %v1067 = vadd.f32 %v871, %v1035
      %v1068 = vadd.f32 %v872, %v1036
      %v1069 = vadd.f32 %v873, %v1037
      %v1070 = vadd.f32 %v874, %v1038
      %v1071 = vadd.f32 %v875, %v1039
      %v1072 = vadd.f32 %v876, %v1040
      %v1073 = vadd.f32 %v877, %v1041
      %v1074 = vadd.f32 %v878, %v1042
      %v1075 = vadd.f32 %v879, %v1043
      %v1076 = vadd.f32 %v880, %v1044
      %v1077 = vadd.f32 %v881, %v1045
      %v1078 = vld [vmem:[%s2] sm:$0x1]
      %v1080 = vlaneseq
      %v1081 = vshrl.u32 %v1080, 7
      %v1082 = vsub.s32 0, %v1081
      %v1083 = vrot.slane %v1078, %v1082
      %v1085 = vadd.f32 %v1046, %v1083
      %v1086 = vadd.f32 %v1047, %v1083
      %v1087 = vadd.f32 %v1048, %v1083
      %v1088 = vadd.f32 %v1049, %v1083
      %v1089 = vadd.f32 %v1050, %v1083
      %v1090 = vadd.f32 %v1051, %v1083
      %v1091 = vadd.f32 %v1052, %v1083
      %v1092 = vadd.f32 %v1053, %v1083
      %v1093 = vadd.f32 %v1054, %v1083
      %v1094 = vadd.f32 %v1055, %v1083
      %v1095 = vadd.f32 %v1056, %v1083
      %v1096 = vadd.f32 %v1057, %v1083
      %v1097 = vadd.f32 %v1058, %v1083
      %v1098 = vadd.f32 %v1059, %v1083
      %v1099 = vadd.f32 %v1060, %v1083
      %v1100 = vadd.f32 %v1061, %v1083
      %v1101 = vadd.f32 %v1062, %v1083
      %v1102 = vadd.f32 %v1063, %v1083
      %v1103 = vadd.f32 %v1064, %v1083
      %v1104 = vadd.f32 %v1065, %v1083
      %v1105 = vadd.f32 %v1066, %v1083
      %v1106 = vadd.f32 %v1067, %v1083
      %v1107 = vadd.f32 %v1068, %v1083
      %v1108 = vadd.f32 %v1069, %v1083
      %v1109 = vadd.f32 %v1070, %v1083
      %v1110 = vadd.f32 %v1071, %v1083
      %v1111 = vadd.f32 %v1072, %v1083
      %v1112 = vadd.f32 %v1073, %v1083
      %v1113 = vadd.f32 %v1074, %v1083
      %v1114 = vadd.f32 %v1075, %v1083
      %v1115 = vadd.f32 %v1076, %v1083
      %v1116 = vadd.f32 %v1077, %v1083
      %v1117 = vmax.f32 %v1085, 0.0
      %v1118 = vmax.f32 %v1086, 0.0
      %v1119 = vmax.f32 %v1087, 0.0
      %v1120 = vmax.f32 %v1088, 0.0
      %v1121 = vmax.f32 %v1089, 0.0
      %v1122 = vmax.f32 %v1090, 0.0
      %v1123 = vmax.f32 %v1091, 0.0
      %v1124 = vmax.f32 %v1092, 0.0
      %v1125 = vmax.f32 %v1093, 0.0
      %v1126 = vmax.f32 %v1094, 0.0
      %v1127 = vmax.f32 %v1095, 0.0
      %v1128 = vmax.f32 %v1096, 0.0
      %v1129 = vmax.f32 %v1097, 0.0
      %v1130 = vmax.f32 %v1098, 0.0
      %v1131 = vmax.f32 %v1099, 0.0
      %v1132 = vmax.f32 %v1100, 0.0
      %v1133 = vmax.f32 %v1101, 0.0
      %v1134 = vmax.f32 %v1102, 0.0
      %v1135 = vmax.f32 %v1103, 0.0
      %v1136 = vmax.f32 %v1104, 0.0
      %v1137 = vmax.f32 %v1105, 0.0
      %v1138 = vmax.f32 %v1106, 0.0
      %v1139 = vmax.f32 %v1107, 0.0
      %v1140 = vmax.f32 %v1108, 0.0
      %v1141 = vmax.f32 %v1109, 0.0
      %v1142 = vmax.f32 %v1110, 0.0
      %v1143 = vmax.f32 %v1111, 0.0
      %v1144 = vmax.f32 %v1112, 0.0
      %v1145 = vmax.f32 %v1113, 0.0
      %v1146 = vmax.f32 %v1114, 0.0
      %v1147 = vmax.f32 %v1115, 0.0
      %v1148 = vmax.f32 %v1116, 0.0
      %v1149 = vld [vmem:[%s3] sm:$0xff]
      %v1150 = vld [vmem:[%s3 + $0x8] sm:$0xff]
      %v1151 = vld [vmem:[%s4] sm:$0x3]
      %v1153 = vlaneseq
      %v1154 = vshrl.u32 %v1153, 7
      %v1155 = vsub.s32 0, %v1154
      %v1156 = vrot.slane %v1151, %v1155
      %v1157 = vlaneseq
      %v1158 = vshrl.u32 %v1157, 7
      %v1159 = vsub.s32 1, %v1158
      %v1160 = vrot.slane %v1151, %v1159
      %vm1163 = vcmask 64512
      %v1165 = vsel %vm1163, %v1117, 0
      %v1168 = vsel %vm1163, %v1118, 0
      %v1171 = vsel %vm1163, %v1119, 0
      %v1174 = vsel %vm1163, %v1120, 0
      %v1177 = vsel %vm1163, %v1121, 0
      %v1180 = vsel %vm1163, %v1122, 0
      %v1183 = vsel %vm1163, %v1123, 0
      %v1186 = vsel %vm1163, %v1124, 0
      %v1189 = vsel %vm1163, %v1125, 0
      %v1192 = vsel %vm1163, %v1126, 0
      %v1195 = vsel %vm1163, %v1127, 0
      %v1198 = vsel %vm1163, %v1128, 0
      %v1201 = vsel %vm1163, %v1129, 0
      %v1204 = vsel %vm1163, %v1130, 0
      %v1207 = vsel %vm1163, %v1131, 0
      %v1210 = vsel %vm1163, %v1132, 0
      %v1213 = vsel %vm1163, %v1133, 0
      %v1216 = vsel %vm1163, %v1134, 0
      %v1219 = vsel %vm1163, %v1135, 0
      %v1222 = vsel %vm1163, %v1136, 0
      %v1225 = vsel %vm1163, %v1137, 0
      %v1228 = vsel %vm1163, %v1138, 0
      %v1231 = vsel %vm1163, %v1139, 0
      %v1234 = vsel %vm1163, %v1140, 0
      %v1237 = vsel %vm1163, %v1141, 0
      %v1240 = vsel %vm1163, %v1142, 0
      %v1243 = vsel %vm1163, %v1143, 0
      %v1246 = vsel %vm1163, %v1144, 0
      %v1249 = vsel %vm1163, %v1145, 0
      %v1252 = vsel %vm1163, %v1146, 0
      %v1255 = vsel %vm1163, %v1147, 0
      %v1258 = vsel %vm1163, %v1148, 0
      %1260 = vmatprep.subr.mxu0 %v1150
      %1261 = vmatpush1.msra.mxu0 %v1149
      %1262 = vmatprep.subr.mxu0 0.0
      %1263 = vmatpush1.msra.mxu0 0.0
      %1264 = vmatprep.subr.mxu0 0.0
      %1265 = vmatpush1.msra.mxu0 0.0
      %1266 = vmatprep.subr.mxu0 0.0
      %1267 = vmatpush1.msra.mxu0 0.0
      %1268 = vmatprep.subr.mxu0 0.0
      %1269 = vmatpush1.msra.mxu0 0.0
      %1270 = vmatprep.subr.mxu0 0.0
      %1271 = vmatpush1.msra.mxu0 0.0
      %1272 = vmatprep.subr.mxu0 0.0
      %1273 = vmatpush1.msra.mxu0 0.0
      %1274 = vmatprep.subr.mxu0 0.0
      %1275 = vmatpush1.msra.mxu0 0.0
      %1276 = vmatprep.subr.mxu0 0.0
      %1277 = vmatpush1.msra.mxu0 0.0
      %1278 = vmatprep.subr.mxu0 0.0
      %1279 = vmatpush1.msra.mxu0 0.0
      %1280 = vmatprep.subr.mxu0 0.0
      %1281 = vmatpush1.msra.mxu0 0.0
      %1282 = vmatprep.subr.mxu0 0.0
      %1283 = vmatpush1.msra.mxu0 0.0
      %1284 = vmatprep.subr.mxu0 0.0
      %1285 = vmatpush1.msra.mxu0 0.0
      %1286 = vmatprep.subr.mxu0 0.0
      %1287 = vmatpush1.msra.mxu0 0.0
      %1288 = vmatprep.subr.mxu0 0.0
      %1289 = vmatpush1.msra.mxu0 0.0
      %1290 = vmatprep.subr.mxu0 0.0
      %1291 = vmatpush1.msra.mxu0 0.0
      %1292 = vmatprep.subr.mxu0 0.0
      %1293 = vmatpush1.msra.mxu0 0.0
      %1294 = vmatprep.subr.mxu0 0.0
      %1295 = vmatpush1.msra.mxu0 0.0
      %1296 = vmatprep.subr.mxu0 0.0
      %1297 = vmatpush1.msra.mxu0 0.0
      %1298 = vmatprep.subr.mxu0 0.0
      %1299 = vmatpush1.msra.mxu0 0.0
      %1300 = vmatprep.subr.mxu0 0.0
      %1301 = vmatpush1.msra.mxu0 0.0
      %1302 = vmatprep.subr.mxu0 0.0
      %1303 = vmatpush1.msra.mxu0 0.0
      %1304 = vmatprep.subr.mxu0 0.0
      %1305 = vmatpush1.msra.mxu0 0.0
      %1306 = vmatprep.subr.mxu0 0.0
      %1307 = vmatpush1.msra.mxu0 0.0
      %1308 = vmatprep.subr.mxu0 0.0
      %1309 = vmatpush1.msra.mxu0 0.0
      %1310 = vmatprep.subr.mxu0 0.0
      %1311 = vmatpush1.msra.mxu0 0.0
      %1312 = vmatprep.subr.mxu0 0.0
      %1313 = vmatpush1.msra.mxu0 0.0
      %1314 = vmatprep.subr.mxu0 0.0
      %1315 = vmatpush1.msra.mxu0 0.0
      %1316 = vmatprep.subr.mxu0 0.0
      %1317 = vmatpush1.msra.mxu0 0.0
      %1318 = vmatprep.subr.mxu0 0.0
      %1319 = vmatpush1.msra.mxu0 0.0
      %1320 = vmatprep.subr.mxu0 0.0
      %1321 = vmatpush1.msra.mxu0 0.0
      %1322 = vmatprep.subr.mxu0 0.0
      %1323 = vmatpush1.msra.mxu0 0.0
      %1324 = vmatprep.mubr.f32.mxu0 0.0
      %1325 = vmatmul.mubr.f32.gmra.mrb[0].mxu0 %v1165
      %v1326 = vpop.f32.mrb[0].mxu0
      %v1327 = vadd.f32 %v1156, %v1326
      %v1328 = vpop.f32.mrb[0].mxu0
      %v1329 = vadd.f32 %v1160, %v1328
      %1330 = vmatprep.mubr.f32.mxu0 0.0
      %1331 = vmatmul.mubr.f32.gmra.mrb[0].mxu0 %v1168
      %v1332 = vpop.f32.mrb[0].mxu0
      %v1333 = vadd.f32 %v1156, %v1332
      %v1334 = vpop.f32.mrb[0].mxu0
      %v1335 = vadd.f32 %v1160, %v1334
      %1336 = vmatprep.mubr.f32.mxu0 0.0
      %1337 = vmatmul.mubr.f32.gmra.mrb[0].mxu0 %v1171
      %v1338 = vpop.f32.mrb[0].mxu0
      %v1339 = vadd.f32 %v1156, %v1338
      %v1340 = vpop.f32.mrb[0].mxu0
      %v1341 = vadd.f32 %v1160, %v1340
      %1342 = vmatprep.mubr.f32.mxu0 0.0
      %1343 = vmatmul.mubr.f32.gmra.mrb[0].mxu0 %v1174
      %v1344 = vpop.f32.mrb[0].mxu0
      %v1345 = vadd.f32 %v1156, %v1344
      %v1346 = vpop.f32.mrb[0].mxu0
      %v1347 = vadd.f32 %v1160, %v1346
      %1348 = vmatprep.mubr.f32.mxu0 0.0
      %1349 = vmatmul.mubr.f32.gmra.mrb[0].mxu0 %v1177
      %v1350 = vpop.f32.mrb[0].mxu0
      %v1351 = vadd.f32 %v1156, %v1350
      %v1352 = vpop.f32.mrb[0].mxu0
      %v1353 = vadd.f32 %v1160, %v1352
      %1354 = vmatprep.mubr.f32.mxu0 0.0
      %1355 = vmatmul.mubr.f32.gmra.mrb[0].mxu0 %v1180
      %v1356 = vpop.f32.mrb[0].mxu0
      %v1357 = vadd.f32 %v1156, %v1356
      %v1358 = vpop.f32.mrb[0].mxu0
      %v1359 = vadd.f32 %v1160, %v1358
      %1360 = vmatprep.mubr.f32.mxu0 0.0
      %1361 = vmatmul.mubr.f32.gmra.mrb[0].mxu0 %v1183
      %v1362 = vpop.f32.mrb[0].mxu0
      %v1363 = vadd.f32 %v1156, %v1362
      %v1364 = vpop.f32.mrb[0].mxu0
      %v1365 = vadd.f32 %v1160, %v1364
      %1366 = vmatprep.mubr.f32.mxu0 0.0
      %1367 = vmatmul.mubr.f32.gmra.mrb[0].mxu0 %v1186
      %v1368 = vpop.f32.mrb[0].mxu0
      %v1369 = vadd.f32 %v1156, %v1368
      %v1370 = vpop.f32.mrb[0].mxu0
      %v1371 = vadd.f32 %v1160, %v1370
      %1372 = vmatprep.mubr.f32.mxu0 0.0
      %1373 = vmatmul.mubr.f32.gmra.mrb[0].mxu0 %v1189
      %v1374 = vpop.f32.mrb[0].mxu0
      %v1375 = vadd.f32 %v1156, %v1374
      %v1376 = vpop.f32.mrb[0].mxu0
      %v1377 = vadd.f32 %v1160, %v1376
      %1378 = vmatprep.mubr.f32.mxu0 0.0
      %1379 = vmatmul.mubr.f32.gmra.mrb[0].mxu0 %v1192
      %v1380 = vpop.f32.mrb[0].mxu0
      %v1381 = vadd.f32 %v1156, %v1380
      %v1382 = vpop.f32.mrb[0].mxu0
      %v1383 = vadd.f32 %v1160, %v1382
      %1384 = vmatprep.mubr.f32.mxu0 0.0
      %1385 = vmatmul.mubr.f32.gmra.mrb[0].mxu0 %v1195
      %v1386 = vpop.f32.mrb[0].mxu0
      %v1387 = vadd.f32 %v1156, %v1386
      %v1388 = vpop.f32.mrb[0].mxu0
      %v1389 = vadd.f32 %v1160, %v1388
      %1390 = vmatprep.mubr.f32.mxu0 0.0
      %1391 = vmatmul.mubr.f32.gmra.mrb[0].mxu0 %v1198
      %v1392 = vpop.f32.mrb[0].mxu0
      %v1393 = vadd.f32 %v1156, %v1392
      %v1394 = vpop.f32.mrb[0].mxu0
      %v1395 = vadd.f32 %v1160, %v1394
      %1396 = vmatprep.mubr.f32.mxu0 0.0
      %1397 = vmatmul.mubr.f32.gmra.mrb[0].mxu0 %v1201
      %v1398 = vpop.f32.mrb[0].mxu0
      %v1399 = vadd.f32 %v1156, %v1398
      %v1400 = vpop.f32.mrb[0].mxu0
      %v1401 = vadd.f32 %v1160, %v1400
      %1402 = vmatprep.mubr.f32.mxu0 0.0
      %1403 = vmatmul.mubr.f32.gmra.mrb[0].mxu0 %v1204
      %v1404 = vpop.f32.mrb[0].mxu0
      %v1405 = vadd.f32 %v1156, %v1404
      %v1406 = vpop.f32.mrb[0].mxu0
      %v1407 = vadd.f32 %v1160, %v1406
      %1408 = vmatprep.mubr.f32.mxu0 0.0
      %1409 = vmatmul.mubr.f32.gmra.mrb[0].mxu0 %v1207
      %v1410 = vpop.f32.mrb[0].mxu0
      %v1411 = vadd.f32 %v1156, %v1410
      %v1412 = vpop.f32.mrb[0].mxu0
      %v1413 = vadd.f32 %v1160, %v1412
      %1414 = vmatprep.mubr.f32.mxu0 0.0
      %1415 = vmatmul.mubr.f32.gmra.mrb[0].mxu0 %v1210
      %v1416 = vpop.f32.mrb[0].mxu0
      %v1417 = vadd.f32 %v1156, %v1416
      %v1418 = vpop.f32.mrb[0].mxu0
      %v1419 = vadd.f32 %v1160, %v1418
      %1420 = vmatprep.mubr.f32.mxu0 0.0
      %1421 = vmatmul.mubr.f32.gmra.mrb[0].mxu0 %v1213
      %v1422 = vpop.f32.mrb[0].mxu0
      %v1423 = vadd.f32 %v1156, %v1422
      %v1424 = vpop.f32.mrb[0].mxu0
      %v1425 = vadd.f32 %v1160, %v1424
      %1426 = vmatprep.mubr.f32.mxu0 0.0
      %1427 = vmatmul.mubr.f32.gmra.mrb[0].mxu0 %v1216
      %v1428 = vpop.f32.mrb[0].mxu0
      %v1429 = vadd.f32 %v1156, %v1428
      %v1430 = vpop.f32.mrb[0].mxu0
      %v1431 = vadd.f32 %v1160, %v1430
      %1432 = vmatprep.mubr.f32.mxu0 0.0
      %1433 = vmatmul.mubr.f32.gmra.mrb[0].mxu0 %v1219
      %v1434 = vpop.f32.mrb[0].mxu0
      %v1435 = vadd.f32 %v1156, %v1434
      %v1436 = vpop.f32.mrb[0].mxu0
      %v1437 = vadd.f32 %v1160, %v1436
      %1438 = vmatprep.mubr.f32.mxu0 0.0
      %1439 = vmatmul.mubr.f32.gmra.mrb[0].mxu0 %v1222
      %v1440 = vpop.f32.mrb[0].mxu0
      %v1441 = vadd.f32 %v1156, %v1440
      %v1442 = vpop.f32.mrb[0].mxu0
      %v1443 = vadd.f32 %v1160, %v1442
      %1444 = vmatprep.mubr.f32.mxu0 0.0
      %1445 = vmatmul.mubr.f32.gmra.mrb[0].mxu0 %v1225
      %v1446 = vpop.f32.mrb[0].mxu0
      %v1447 = vadd.f32 %v1156, %v1446
      %v1448 = vpop.f32.mrb[0].mxu0
      %v1449 = vadd.f32 %v1160, %v1448
      %1450 = vmatprep.mubr.f32.mxu0 0.0
      %1451 = vmatmul.mubr.f32.gmra.mrb[0].mxu0 %v1228
      %v1452 = vpop.f32.mrb[0].mxu0
      %v1453 = vadd.f32 %v1156, %v1452
      %v1454 = vpop.f32.mrb[0].mxu0
      %v1455 = vadd.f32 %v1160, %v1454
      %1456 = vmatprep.mubr.f32.mxu0 0.0
      %1457 = vmatmul.mubr.f32.gmra.mrb[0].mxu0 %v1231
      %v1458 = vpop.f32.mrb[0].mxu0
      %v1459 = vadd.f32 %v1156, %v1458
      %v1460 = vpop.f32.mrb[0].mxu0
      %v1461 = vadd.f32 %v1160, %v1460
      %1462 = vmatprep.mubr.f32.mxu0 0.0
      %1463 = vmatmul.mubr.f32.gmra.mrb[0].mxu0 %v1234
      %v1464 = vpop.f32.mrb[0].mxu0
      %v1465 = vadd.f32 %v1156, %v1464
      %v1466 = vpop.f32.mrb[0].mxu0
      %v1467 = vadd.f32 %v1160, %v1466
      %1468 = vmatprep.mubr.f32.mxu0 0.0
      %1469 = vmatmul.mubr.f32.gmra.mrb[0].mxu0 %v1237
      %v1470 = vpop.f32.mrb[0].mxu0
      %v1471 = vadd.f32 %v1156, %v1470
      %v1472 = vpop.f32.mrb[0].mxu0
      %v1473 = vadd.f32 %v1160, %v1472
      %1474 = vmatprep.mubr.f32.mxu0 0.0
      %1475 = vmatmul.mubr.f32.gmra.mrb[0].mxu0 %v1240
      %v1476 = vpop.f32.mrb[0].mxu0
      %v1477 = vadd.f32 %v1156, %v1476
      %v1478 = vpop.f32.mrb[0].mxu0
      %v1479 = vadd.f32 %v1160, %v1478
      %1480 = vmatprep.mubr.f32.mxu0 0.0
      %1481 = vmatmul.mubr.f32.gmra.mrb[0].mxu0 %v1243
      %v1482 = vpop.f32.mrb[0].mxu0
      %v1483 = vadd.f32 %v1156, %v1482
      %v1484 = vpop.f32.mrb[0].mxu0
      %v1485 = vadd.f32 %v1160, %v1484
      %1486 = vmatprep.mubr.f32.mxu0 0.0
      %1487 = vmatmul.mubr.f32.gmra.mrb[0].mxu0 %v1246
      %v1488 = vpop.f32.mrb[0].mxu0
      %v1489 = vadd.f32 %v1156, %v1488
      %v1490 = vpop.f32.mrb[0].mxu0
      %v1491 = vadd.f32 %v1160, %v1490
      %1492 = vmatprep.mubr.f32.mxu0 0.0
      %1493 = vmatmul.mubr.f32.gmra.mrb[0].mxu0 %v1249
      %v1494 = vpop.f32.mrb[0].mxu0
      %v1495 = vadd.f32 %v1156, %v1494
      %v1496 = vpop.f32.mrb[0].mxu0
      %v1497 = vadd.f32 %v1160, %v1496
      %1498 = vmatprep.mubr.f32.mxu0 0.0
      %1499 = vmatmul.mubr.f32.gmra.mrb[0].mxu0 %v1252
      %v1500 = vpop.f32.mrb[0].mxu0
      %v1501 = vadd.f32 %v1156, %v1500
      %v1502 = vpop.f32.mrb[0].mxu0
      %v1503 = vadd.f32 %v1160, %v1502
      %1504 = vmatprep.mubr.f32.mxu0 0.0
      %1505 = vmatmul.mubr.f32.gmra.mrb[0].mxu0 %v1255
      %v1506 = vpop.f32.mrb[0].mxu0
      %v1507 = vadd.f32 %v1156, %v1506
      %v1508 = vpop.f32.mrb[0].mxu0
      %v1509 = vadd.f32 %v1160, %v1508
      %1510 = vmatprep.mubr.f32.mxu0 0.0
      %1511 = vmatmul.mubr.f32.gmra.mrb[0].mxu0 %v1258
      %v1512 = vpop.f32.mrb[0].mxu0
      %v1513 = vadd.f32 %v1156, %v1512
      %v1514 = vpop.f32.mrb[0].mxu0
      %v1515 = vadd.f32 %v1160, %v1514
      %1516 = vdwg.mxu0
      %v1517 = vmax.f32 %v1327, 0.0
      %v1518 = vmax.f32 %v1329, 0.0
      %v1519 = vmax.f32 %v1333, 0.0
      %v1520 = vmax.f32 %v1335, 0.0
      %v1521 = vmax.f32 %v1339, 0.0
      %v1522 = vmax.f32 %v1341, 0.0
      %v1523 = vmax.f32 %v1345, 0.0
      %v1524 = vmax.f32 %v1347, 0.0
      %v1525 = vmax.f32 %v1351, 0.0
      %v1526 = vmax.f32 %v1353, 0.0
      %v1527 = vmax.f32 %v1357, 0.0
      %v1528 = vmax.f32 %v1359, 0.0
      %v1529 = vmax.f32 %v1363, 0.0
      %v1530 = vmax.f32 %v1365, 0.0
      %v1531 = vmax.f32 %v1369, 0.0
      %v1532 = vmax.f32 %v1371, 0.0
      %v1533 = vmax.f32 %v1375, 0.0
      %v1534 = vmax.f32 %v1377, 0.0
      %v1535 = vmax.f32 %v1381, 0.0
      %v1536 = vmax.f32 %v1383, 0.0
      %v1537 = vmax.f32 %v1387, 0.0
      %v1538 = vmax.f32 %v1389, 0.0
      %v1539 = vmax.f32 %v1393, 0.0
      %v1540 = vmax.f32 %v1395, 0.0
      %v1541 = vmax.f32 %v1399, 0.0
      %v1542 = vmax.f32 %v1401, 0.0
      %v1543 = vmax.f32 %v1405, 0.0
      %v1544 = vmax.f32 %v1407, 0.0
      %v1545 = vmax.f32 %v1411, 0.0
      %v1546 = vmax.f32 %v1413, 0.0
      %v1547 = vmax.f32 %v1417, 0.0
      %v1548 = vmax.f32 %v1419, 0.0
      %v1549 = vmax.f32 %v1423, 0.0
      %v1550 = vmax.f32 %v1425, 0.0
      %v1551 = vmax.f32 %v1429, 0.0
      %v1552 = vmax.f32 %v1431, 0.0
      %v1553 = vmax.f32 %v1435, 0.0
      %v1554 = vmax.f32 %v1437, 0.0
      %v1555 = vmax.f32 %v1441, 0.0
      %v1556 = vmax.f32 %v1443, 0.0
      %v1557 = vmax.f32 %v1447, 0.0
      %v1558 = vmax.f32 %v1449, 0.0
      %v1559 = vmax.f32 %v1453, 0.0
      %v1560 = vmax.f32 %v1455, 0.0
      %v1561 = vmax.f32 %v1459, 0.0
      %v1562 = vmax.f32 %v1461, 0.0
      %v1563 = vmax.f32 %v1465, 0.0
      %v1564 = vmax.f32 %v1467, 0.0
      %v1565 = vmax.f32 %v1471, 0.0
      %v1566 = vmax.f32 %v1473, 0.0
      %v1567 = vmax.f32 %v1477, 0.0
      %v1568 = vmax.f32 %v1479, 0.0
      %v1569 = vmax.f32 %v1483, 0.0
      %v1570 = vmax.f32 %v1485, 0.0
      %v1571 = vmax.f32 %v1489, 0.0
      %v1572 = vmax.f32 %v1491, 0.0
      %v1573 = vmax.f32 %v1495, 0.0
      %v1574 = vmax.f32 %v1497, 0.0
      %v1575 = vmax.f32 %v1501, 0.0
      %v1576 = vmax.f32 %v1503, 0.0
      %v1577 = vmax.f32 %v1507, 0.0
      %v1578 = vmax.f32 %v1509, 0.0
      %v1579 = vmax.f32 %v1513, 0.0
      %v1580 = vmax.f32 %v1515, 0.0
      %v1581 = vld [vmem:[%s5] sm:$0x77]
      %v1583 = vlaneseq
      %v1584 = vshrl.u32 %v1583, 7
      %v1585 = vsub.s32 0, %v1584
      %v1586 = vrot.slane %v1581, %v1585
      %v1587 = vlaneseq
      %v1588 = vshrl.u32 %v1587, 7
      %v1589 = vsub.s32 4, %v1588
      %v1590 = vrot.slane %v1581, %v1589
      %v1593 = vlaneseq
      %v1594 = vshrl.u32 %v1593, 7
      %v1595 = vsub.s32 0, %v1594
      %v1596 = vrot.slane %v1586, %v1595
      %v1597 = vlaneseq
      %v1598 = vshrl.u32 %v1597, 7
      %v1599 = vsub.s32 0, %v1598
      %v1600 = vrot.slane %v1590, %v1599
      %v1601 = vmul.f32 %v493, %v1596
      %v1602 = vmul.f32 %v493, %v1600
      %v1603 = vmul.f32 %v498, %v1596
      %v1604 = vmul.f32 %v498, %v1600
      %v1605 = vmul.f32 %v503, %v1596
      %v1606 = vmul.f32 %v503, %v1600
      %v1607 = vmul.f32 %v508, %v1596
      %v1608 = vmul.f32 %v508, %v1600
      %v1609 = vmul.f32 %v513, %v1596
      %v1610 = vmul.f32 %v513, %v1600
      %v1611 = vmul.f32 %v518, %v1596
      %v1612 = vmul.f32 %v518, %v1600
      %v1613 = vmul.f32 %v523, %v1596
      %v1614 = vmul.f32 %v523, %v1600
      %v1615 = vmul.f32 %v528, %v1596
      %v1616 = vmul.f32 %v528, %v1600
      %v1617 = vmul.f32 %v533, %v1596
      %v1618 = vmul.f32 %v533, %v1600
      %v1619 = vmul.f32 %v538, %v1596
      %v1620 = vmul.f32 %v538, %v1600
      %v1621 = vmul.f32 %v543, %v1596
      %v1622 = vmul.f32 %v543, %v1600
      %v1623 = vmul.f32 %v548, %v1596
      %v1624 = vmul.f32 %v548, %v1600
      %v1625 = vmul.f32 %v553, %v1596
      %v1626 = vmul.f32 %v553, %v1600
      %v1627 = vmul.f32 %v558, %v1596
      %v1628 = vmul.f32 %v558, %v1600
      %v1629 = vmul.f32 %v563, %v1596
      %v1630 = vmul.f32 %v563, %v1600
      %v1631 = vmul.f32 %v568, %v1596
      %v1632 = vmul.f32 %v568, %v1600
      %v1633 = vmul.f32 %v573, %v1596
      %v1634 = vmul.f32 %v573, %v1600
      %v1635 = vmul.f32 %v578, %v1596
      %v1636 = vmul.f32 %v578, %v1600
      %v1637 = vmul.f32 %v583, %v1596
      %v1638 = vmul.f32 %v583, %v1600
      %v1639 = vmul.f32 %v588, %v1596
      %v1640 = vmul.f32 %v588, %v1600
      %v1641 = vmul.f32 %v593, %v1596
      %v1642 = vmul.f32 %v593, %v1600
      %v1643 = vmul.f32 %v598, %v1596
      %v1644 = vmul.f32 %v598, %v1600
      %v1645 = vmul.f32 %v603, %v1596
      %v1646 = vmul.f32 %v603, %v1600
      %v1647 = vmul.f32 %v608, %v1596
      %v1648 = vmul.f32 %v608, %v1600
      %v1649 = vmul.f32 %v613, %v1596
      %v1650 = vmul.f32 %v613, %v1600
      %v1651 = vmul.f32 %v618, %v1596
      %v1652 = vmul.f32 %v618, %v1600
      %v1653 = vmul.f32 %v623, %v1596
      %v1654 = vmul.f32 %v623, %v1600
      %v1655 = vmul.f32 %v628, %v1596
      %v1656 = vmul.f32 %v628, %v1600
      %v1657 = vmul.f32 %v633, %v1596
      %v1658 = vmul.f32 %v633, %v1600
      %v1659 = vmul.f32 %v638, %v1596
      %v1660 = vmul.f32 %v638, %v1600
      %v1661 = vmul.f32 %v643, %v1596
      %v1662 = vmul.f32 %v643, %v1600
      %v1663 = vmul.f32 %v648, %v1596
      %v1664 = vmul.f32 %v648, %v1600
      %v1665 = vlaneseq
      %v1666 = vshrl.u32 %v1665, 7
      %v1667 = vsub.s32 1, %v1666
      %v1668 = vrot.slane %v1581, %v1667
      %v1669 = vlaneseq
      %v1670 = vshrl.u32 %v1669, 7
      %v1671 = vsub.s32 5, %v1670
      %v1672 = vrot.slane %v1581, %v1671
      %v1675 = vlaneseq
      %v1676 = vshrl.u32 %v1675, 7
      %v1677 = vsub.s32 1, %v1676
      %v1678 = vrot.slane %v1668, %v1677
      %v1679 = vlaneseq
      %v1680 = vshrl.u32 %v1679, 7
      %v1681 = vsub.s32 1, %v1680
      %v1682 = vrot.slane %v1672, %v1681
      %v1683 = vmul.f32 %v688, %v1678
      %v1684 = vmul.f32 %v688, %v1682
      %v1685 = vmul.f32 %v692, %v1678
      %v1686 = vmul.f32 %v692, %v1682
      %v1687 = vmul.f32 %v696, %v1678
      %v1688 = vmul.f32 %v696, %v1682
      %v1689 = vmul.f32 %v700, %v1678
      %v1690 = vmul.f32 %v700, %v1682
      %v1691 = vmul.f32 %v704, %v1678
      %v1692 = vmul.f32 %v704, %v1682
      %v1693 = vmul.f32 %v708, %v1678
      %v1694 = vmul.f32 %v708, %v1682
      %v1695 = vmul.f32 %v712, %v1678
      %v1696 = vmul.f32 %v712, %v1682
      %v1697 = vmul.f32 %v716, %v1678
      %v1698 = vmul.f32 %v716, %v1682
      %v1699 = vmul.f32 %v720, %v1678
      %v1700 = vmul.f32 %v720, %v1682
      %v1701 = vmul.f32 %v724, %v1678
      %v1702 = vmul.f32 %v724, %v1682
      %v1703 = vmul.f32 %v728, %v1678
      %v1704 = vmul.f32 %v728, %v1682
      %v1705 = vmul.f32 %v732, %v1678
      %v1706 = vmul.f32 %v732, %v1682
      %v1707 = vmul.f32 %v736, %v1678
      %v1708 = vmul.f32 %v736, %v1682
      %v1709 = vmul.f32 %v740, %v1678
      %v1710 = vmul.f32 %v740, %v1682
      %v1711 = vmul.f32 %v744, %v1678
      %v1712 = vmul.f32 %v744, %v1682
      %v1713 = vmul.f32 %v748, %v1678
      %v1714 = vmul.f32 %v748, %v1682
      %v1715 = vmul.f32 %v752, %v1678
      %v1716 = vmul.f32 %v752, %v1682
      %v1717 = vmul.f32 %v756, %v1678
      %v1718 = vmul.f32 %v756, %v1682
      %v1719 = vmul.f32 %v760, %v1678
      %v1720 = vmul.f32 %v760, %v1682
      %v1721 = vmul.f32 %v764, %v1678
      %v1722 = vmul.f32 %v764, %v1682
      %v1723 = vmul.f32 %v768, %v1678
      %v1724 = vmul.f32 %v768, %v1682
      %v1725 = vmul.f32 %v772, %v1678
      %v1726 = vmul.f32 %v772, %v1682
      %v1727 = vmul.f32 %v776, %v1678
      %v1728 = vmul.f32 %v776, %v1682
      %v1729 = vmul.f32 %v780, %v1678
      %v1730 = vmul.f32 %v780, %v1682
      %v1731 = vmul.f32 %v784, %v1678
      %v1732 = vmul.f32 %v784, %v1682
      %v1733 = vmul.f32 %v788, %v1678
      %v1734 = vmul.f32 %v788, %v1682
      %v1735 = vmul.f32 %v792, %v1678
      %v1736 = vmul.f32 %v792, %v1682
      %v1737 = vmul.f32 %v796, %v1678
      %v1738 = vmul.f32 %v796, %v1682
      %v1739 = vmul.f32 %v800, %v1678
      %v1740 = vmul.f32 %v800, %v1682
      %v1741 = vmul.f32 %v804, %v1678
      %v1742 = vmul.f32 %v804, %v1682
      %v1743 = vmul.f32 %v808, %v1678
      %v1744 = vmul.f32 %v808, %v1682
      %v1745 = vmul.f32 %v812, %v1678
      %v1746 = vmul.f32 %v812, %v1682
      %v1747 = vadd.f32 %v1601, %v1683
      %v1748 = vadd.f32 %v1602, %v1684
      %v1749 = vadd.f32 %v1603, %v1685
      %v1750 = vadd.f32 %v1604, %v1686
      %v1751 = vadd.f32 %v1605, %v1687
      %v1752 = vadd.f32 %v1606, %v1688
      %v1753 = vadd.f32 %v1607, %v1689
      %v1754 = vadd.f32 %v1608, %v1690
      %v1755 = vadd.f32 %v1609, %v1691
      %v1756 = vadd.f32 %v1610, %v1692
      %v1757 = vadd.f32 %v1611, %v1693
      %v1758 = vadd.f32 %v1612, %v1694
      %v1759 = vadd.f32 %v1613, %v1695
      %v1760 = vadd.f32 %v1614, %v1696
      %v1761 = vadd.f32 %v1615, %v1697
      %v1762 = vadd.f32 %v1616, %v1698
      %v1763 = vadd.f32 %v1617, %v1699
      %v1764 = vadd.f32 %v1618, %v1700
      %v1765 = vadd.f32 %v1619, %v1701
      %v1766 = vadd.f32 %v1620, %v1702
      %v1767 = vadd.f32 %v1621, %v1703
      %v1768 = vadd.f32 %v1622, %v1704
      %v1769 = vadd.f32 %v1623, %v1705
      %v1770 = vadd.f32 %v1624, %v1706
      %v1771 = vadd.f32 %v1625, %v1707
      %v1772 = vadd.f32 %v1626, %v1708
      %v1773 = vadd.f32 %v1627, %v1709
      %v1774 = vadd.f32 %v1628, %v1710
      %v1775 = vadd.f32 %v1629, %v1711
      %v1776 = vadd.f32 %v1630, %v1712
      %v1777 = vadd.f32 %v1631, %v1713
      %v1778 = vadd.f32 %v1632, %v1714
      %v1779 = vadd.f32 %v1633, %v1715
      %v1780 = vadd.f32 %v1634, %v1716
      %v1781 = vadd.f32 %v1635, %v1717
      %v1782 = vadd.f32 %v1636, %v1718
      %v1783 = vadd.f32 %v1637, %v1719
      %v1784 = vadd.f32 %v1638, %v1720
      %v1785 = vadd.f32 %v1639, %v1721
      %v1786 = vadd.f32 %v1640, %v1722
      %v1787 = vadd.f32 %v1641, %v1723
      %v1788 = vadd.f32 %v1642, %v1724
      %v1789 = vadd.f32 %v1643, %v1725
      %v1790 = vadd.f32 %v1644, %v1726
      %v1791 = vadd.f32 %v1645, %v1727
      %v1792 = vadd.f32 %v1646, %v1728
      %v1793 = vadd.f32 %v1647, %v1729
      %v1794 = vadd.f32 %v1648, %v1730
      %v1795 = vadd.f32 %v1649, %v1731
      %v1796 = vadd.f32 %v1650, %v1732
      %v1797 = vadd.f32 %v1651, %v1733
      %v1798 = vadd.f32 %v1652, %v1734
      %v1799 = vadd.f32 %v1653, %v1735
      %v1800 = vadd.f32 %v1654, %v1736
      %v1801 = vadd.f32 %v1655, %v1737
      %v1802 = vadd.f32 %v1656, %v1738
      %v1803 = vadd.f32 %v1657, %v1739
      %v1804 = vadd.f32 %v1658, %v1740
      %v1805 = vadd.f32 %v1659, %v1741
      %v1806 = vadd.f32 %v1660, %v1742
      %v1807 = vadd.f32 %v1661, %v1743
      %v1808 = vadd.f32 %v1662, %v1744
      %v1809 = vadd.f32 %v1663, %v1745
      %v1810 = vadd.f32 %v1664, %v1746
      %v1811 = vlaneseq
      %v1812 = vshrl.u32 %v1811, 7
      %v1813 = vsub.s32 2, %v1812
      %v1814 = vrot.slane %v1581, %v1813
      %v1815 = vlaneseq
      %v1816 = vshrl.u32 %v1815, 7
      %v1817 = vsub.s32 6, %v1816
      %v1818 = vrot.slane %v1581, %v1817
      %v1821 = vlaneseq
      %v1822 = vshrl.u32 %v1821, 7
      %v1823 = vsub.s32 2, %v1822
      %v1824 = vrot.slane %v1814, %v1823
      %v1825 = vlaneseq
      %v1826 = vshrl.u32 %v1825, 7
      %v1827 = vsub.s32 2, %v1826
      %v1828 = vrot.slane %v1818, %v1827
      %v1829 = vmul.f32 %v884, %v1824
      %v1830 = vmul.f32 %v884, %v1828
      %v1831 = vmul.f32 %v888, %v1824
      %v1832 = vmul.f32 %v888, %v1828
      %v1833 = vmul.f32 %v892, %v1824
      %v1834 = vmul.f32 %v892, %v1828
      %v1835 = vmul.f32 %v896, %v1824
      %v1836 = vmul.f32 %v896, %v1828
      %v1837 = vmul.f32 %v900, %v1824
      %v1838 = vmul.f32 %v900, %v1828
      %v1839 = vmul.f32 %v904, %v1824
      %v1840 = vmul.f32 %v904, %v1828
      %v1841 = vmul.f32 %v908, %v1824
      %v1842 = vmul.f32 %v908, %v1828
      %v1843 = vmul.f32 %v912, %v1824
      %v1844 = vmul.f32 %v912, %v1828
      %v1845 = vmul.f32 %v916, %v1824
      %v1846 = vmul.f32 %v916, %v1828
      %v1847 = vmul.f32 %v920, %v1824
      %v1848 = vmul.f32 %v920, %v1828
      %v1849 = vmul.f32 %v924, %v1824
      %v1850 = vmul.f32 %v924, %v1828
      %v1851 = vmul.f32 %v928, %v1824
      %v1852 = vmul.f32 %v928, %v1828
      %v1853 = vmul.f32 %v932, %v1824
      %v1854 = vmul.f32 %v932, %v1828
      %v1855 = vmul.f32 %v936, %v1824
      %v1856 = vmul.f32 %v936, %v1828
      %v1857 = vmul.f32 %v940, %v1824
      %v1858 = vmul.f32 %v940, %v1828
      %v1859 = vmul.f32 %v944, %v1824
      %v1860 = vmul.f32 %v944, %v1828
      %v1861 = vmul.f32 %v948, %v1824
      %v1862 = vmul.f32 %v948, %v1828
      %v1863 = vmul.f32 %v952, %v1824
      %v1864 = vmul.f32 %v952, %v1828
      %v1865 = vmul.f32 %v956, %v1824
      %v1866 = vmul.f32 %v956, %v1828
      %v1867 = vmul.f32 %v960, %v1824
      %v1868 = vmul.f32 %v960, %v1828
      %v1869 = vmul.f32 %v964, %v1824
      %v1870 = vmul.f32 %v964, %v1828
      %v1871 = vmul.f32 %v968, %v1824
      %v1872 = vmul.f32 %v968, %v1828
      %v1873 = vmul.f32 %v972, %v1824
      %v1874 = vmul.f32 %v972, %v1828
      %v1875 = vmul.f32 %v976, %v1824
      %v1876 = vmul.f32 %v976, %v1828
      %v1877 = vmul.f32 %v980, %v1824
      %v1878 = vmul.f32 %v980, %v1828
      %v1879 = vmul.f32 %v984, %v1824
      %v1880 = vmul.f32 %v984, %v1828
      %v1881 = vmul.f32 %v988, %v1824
      %v1882 = vmul.f32 %v988, %v1828
      %v1883 = vmul.f32 %v992, %v1824
      %v1884 = vmul.f32 %v992, %v1828
      %v1885 = vmul.f32 %v996, %v1824
      %v1886 = vmul.f32 %v996, %v1828
      %v1887 = vmul.f32 %v1000, %v1824
      %v1888 = vmul.f32 %v1000, %v1828
      %v1889 = vmul.f32 %v1004, %v1824
      %v1890 = vmul.f32 %v1004, %v1828
      %v1891 = vmul.f32 %v1008, %v1824
      %v1892 = vmul.f32 %v1008, %v1828
      %v1893 = vadd.f32 %v1747, %v1829
      %v1894 = vadd.f32 %v1748, %v1830
      %v1895 = vadd.f32 %v1749, %v1831
      %v1896 = vadd.f32 %v1750, %v1832
      %v1897 = vadd.f32 %v1751, %v1833
      %v1898 = vadd.f32 %v1752, %v1834
      %v1899 = vadd.f32 %v1753, %v1835
      %v1900 = vadd.f32 %v1754, %v1836
      %v1901 = vadd.f32 %v1755, %v1837
      %v1902 = vadd.f32 %v1756, %v1838
      %v1903 = vadd.f32 %v1757, %v1839
      %v1904 = vadd.f32 %v1758, %v1840
      %v1905 = vadd.f32 %v1759, %v1841
      %v1906 = vadd.f32 %v1760, %v1842
      %v1907 = vadd.f32 %v1761, %v1843
      %v1908 = vadd.f32 %v1762, %v1844
      %v1909 = vadd.f32 %v1763, %v1845
      %v1910 = vadd.f32 %v1764, %v1846
      %v1911 = vadd.f32 %v1765, %v1847
      %v1912 = vadd.f32 %v1766, %v1848
      %v1913 = vadd.f32 %v1767, %v1849
      %v1914 = vadd.f32 %v1768, %v1850
      %v1915 = vadd.f32 %v1769, %v1851
      %v1916 = vadd.f32 %v1770, %v1852
      %v1917 = vadd.f32 %v1771, %v1853
      %v1918 = vadd.f32 %v1772, %v1854
      %v1919 = vadd.f32 %v1773, %v1855
      %v1920 = vadd.f32 %v1774, %v1856
      %v1921 = vadd.f32 %v1775, %v1857
      %v1922 = vadd.f32 %v1776, %v1858
      %v1923 = vadd.f32 %v1777, %v1859
      %v1924 = vadd.f32 %v1778, %v1860
      %v1925 = vadd.f32 %v1779, %v1861
      %v1926 = vadd.f32 %v1780, %v1862
      %v1927 = vadd.f32 %v1781, %v1863
      %v1928 = vadd.f32 %v1782, %v1864
      %v1929 = vadd.f32 %v1783, %v1865
      %v1930 = vadd.f32 %v1784, %v1866
      %v1931 = vadd.f32 %v1785, %v1867
      %v1932 = vadd.f32 %v1786, %v1868
      %v1933 = vadd.f32 %v1787, %v1869
      %v1934 = vadd.f32 %v1788, %v1870
      %v1935 = vadd.f32 %v1789, %v1871
      %v1936 = vadd.f32 %v1790, %v1872
      %v1937 = vadd.f32 %v1791, %v1873
      %v1938 = vadd.f32 %v1792, %v1874
      %v1939 = vadd.f32 %v1793, %v1875
      %v1940 = vadd.f32 %v1794, %v1876
      %v1941 = vadd.f32 %v1795, %v1877
      %v1942 = vadd.f32 %v1796, %v1878
      %v1943 = vadd.f32 %v1797, %v1879
      %v1944 = vadd.f32 %v1798, %v1880
      %v1945 = vadd.f32 %v1799, %v1881
      %v1946 = vadd.f32 %v1800, %v1882
      %v1947 = vadd.f32 %v1801, %v1883
      %v1948 = vadd.f32 %v1802, %v1884
      %v1949 = vadd.f32 %v1803, %v1885
      %v1950 = vadd.f32 %v1804, %v1886
      %v1951 = vadd.f32 %v1805, %v1887
      %v1952 = vadd.f32 %v1806, %v1888
      %v1953 = vadd.f32 %v1807, %v1889
      %v1954 = vadd.f32 %v1808, %v1890
      %v1955 = vadd.f32 %v1809, %v1891
      %v1956 = vadd.f32 %v1810, %v1892
      %v1957 = vld [vmem:[%s6] sm:$0x3]
      %v1959 = vlaneseq
      %v1960 = vshrl.u32 %v1959, 7
      %v1961 = vsub.s32 0, %v1960
      %v1962 = vrot.slane %v1957, %v1961
      %v1963 = vlaneseq
      %v1964 = vshrl.u32 %v1963, 7
      %v1965 = vsub.s32 1, %v1964
      %v1966 = vrot.slane %v1957, %v1965
      %v1969 = vadd.f32 %v1893, %v1962
      %v1970 = vadd.f32 %v1894, %v1966
      %v1971 = vadd.f32 %v1895, %v1962
      %v1972 = vadd.f32 %v1896, %v1966
      %v1973 = vadd.f32 %v1897, %v1962
      %v1974 = vadd.f32 %v1898, %v1966
      %v1975 = vadd.f32 %v1899, %v1962
      %v1976 = vadd.f32 %v1900, %v1966
      %v1977 = vadd.f32 %v1901, %v1962
      %v1978 = vadd.f32 %v1902, %v1966
      %v1979 = vadd.f32 %v1903, %v1962
      %v1980 = vadd.f32 %v1904, %v1966
      %v1981 = vadd.f32 %v1905, %v1962
      %v1982 = vadd.f32 %v1906, %v1966
      %v1983 = vadd.f32 %v1907, %v1962
      %v1984 = vadd.f32 %v1908, %v1966
      %v1985 = vadd.f32 %v1909, %v1962
      %v1986 = vadd.f32 %v1910, %v1966
      %v1987 = vadd.f32 %v1911, %v1962
      %v1988 = vadd.f32 %v1912, %v1966
      %v1989 = vadd.f32 %v1913, %v1962
      %v1990 = vadd.f32 %v1914, %v1966
      %v1991 = vadd.f32 %v1915, %v1962
      %v1992 = vadd.f32 %v1916, %v1966
      %v1993 = vadd.f32 %v1917, %v1962
      %v1994 = vadd.f32 %v1918, %v1966
      %v1995 = vadd.f32 %v1919, %v1962
      %v1996 = vadd.f32 %v1920, %v1966
      %v1997 = vadd.f32 %v1921, %v1962
      %v1998 = vadd.f32 %v1922, %v1966
      %v1999 = vadd.f32 %v1923, %v1962
      %v2000 = vadd.f32 %v1924, %v1966
      %v2001 = vadd.f32 %v1925, %v1962
      %v2002 = vadd.f32 %v1926, %v1966
      %v2003 = vadd.f32 %v1927, %v1962
      %v2004 = vadd.f32 %v1928, %v1966
      %v2005 = vadd.f32 %v1929, %v1962
      %v2006 = vadd.f32 %v1930, %v1966
      %v2007 = vadd.f32 %v1931, %v1962
      %v2008 = vadd.f32 %v1932, %v1966
      %v2009 = vadd.f32 %v1933, %v1962
      %v2010 = vadd.f32 %v1934, %v1966
      %v2011 = vadd.f32 %v1935, %v1962
      %v2012 = vadd.f32 %v1936, %v1966
      %v2013 = vadd.f32 %v1937, %v1962
      %v2014 = vadd.f32 %v1938, %v1966
      %v2015 = vadd.f32 %v1939, %v1962
      %v2016 = vadd.f32 %v1940, %v1966
      %v2017 = vadd.f32 %v1941, %v1962
      %v2018 = vadd.f32 %v1942, %v1966
      %v2019 = vadd.f32 %v1943, %v1962
      %v2020 = vadd.f32 %v1944, %v1966
      %v2021 = vadd.f32 %v1945, %v1962
      %v2022 = vadd.f32 %v1946, %v1966
      %v2023 = vadd.f32 %v1947, %v1962
      %v2024 = vadd.f32 %v1948, %v1966
      %v2025 = vadd.f32 %v1949, %v1962
      %v2026 = vadd.f32 %v1950, %v1966
      %v2027 = vadd.f32 %v1951, %v1962
      %v2028 = vadd.f32 %v1952, %v1966
      %v2029 = vadd.f32 %v1953, %v1962
      %v2030 = vadd.f32 %v1954, %v1966
      %v2031 = vadd.f32 %v1955, %v1962
      %v2032 = vadd.f32 %v1956, %v1966
      %v2033 = vmax.f32 %v1969, 0.0
      %v2034 = vmax.f32 %v1970, 0.0
      %v2035 = vmax.f32 %v1971, 0.0
      %v2036 = vmax.f32 %v1972, 0.0
      %v2037 = vmax.f32 %v1973, 0.0
      %v2038 = vmax.f32 %v1974, 0.0
      %v2039 = vmax.f32 %v1975, 0.0
      %v2040 = vmax.f32 %v1976, 0.0
      %v2041 = vmax.f32 %v1977, 0.0
      %v2042 = vmax.f32 %v1978, 0.0
      %v2043 = vmax.f32 %v1979, 0.0
      %v2044 = vmax.f32 %v1980, 0.0
      %v2045 = vmax.f32 %v1981, 0.0
      %v2046 = vmax.f32 %v1982, 0.0
      %v2047 = vmax.f32 %v1983, 0.0
      %v2048 = vmax.f32 %v1984, 0.0
      %v2049 = vmax.f32 %v1985, 0.0
      %v2050 = vmax.f32 %v1986, 0.0
      %v2051 = vmax.f32 %v1987, 0.0
      %v2052 = vmax.f32 %v1988, 0.0
      %v2053 = vmax.f32 %v1989, 0.0
      %v2054 = vmax.f32 %v1990, 0.0
      %v2055 = vmax.f32 %v1991, 0.0
      %v2056 = vmax.f32 %v1992, 0.0
      %v2057 = vmax.f32 %v1993, 0.0
      %v2058 = vmax.f32 %v1994, 0.0
      %v2059 = vmax.f32 %v1995, 0.0
      %v2060 = vmax.f32 %v1996, 0.0
      %v2061 = vmax.f32 %v1997, 0.0
      %v2062 = vmax.f32 %v1998, 0.0
      %v2063 = vmax.f32 %v1999, 0.0
      %v2064 = vmax.f32 %v2000, 0.0
      %v2065 = vmax.f32 %v2001, 0.0
      %v2066 = vmax.f32 %v2002, 0.0
      %v2067 = vmax.f32 %v2003, 0.0
      %v2068 = vmax.f32 %v2004, 0.0
      %v2069 = vmax.f32 %v2005, 0.0
      %v2070 = vmax.f32 %v2006, 0.0
      %v2071 = vmax.f32 %v2007, 0.0
      %v2072 = vmax.f32 %v2008, 0.0
      %v2073 = vmax.f32 %v2009, 0.0
      %v2074 = vmax.f32 %v2010, 0.0
      %v2075 = vmax.f32 %v2011, 0.0
      %v2076 = vmax.f32 %v2012, 0.0
      %v2077 = vmax.f32 %v2013, 0.0
      %v2078 = vmax.f32 %v2014, 0.0
      %v2079 = vmax.f32 %v2015, 0.0
      %v2080 = vmax.f32 %v2016, 0.0
      %v2081 = vmax.f32 %v2017, 0.0
      %v2082 = vmax.f32 %v2018, 0.0
      %v2083 = vmax.f32 %v2019, 0.0
      %v2084 = vmax.f32 %v2020, 0.0
      %v2085 = vmax.f32 %v2021, 0.0
      %v2086 = vmax.f32 %v2022, 0.0
      %v2087 = vmax.f32 %v2023, 0.0
      %v2088 = vmax.f32 %v2024, 0.0
      %v2089 = vmax.f32 %v2025, 0.0
      %v2090 = vmax.f32 %v2026, 0.0
      %v2091 = vmax.f32 %v2027, 0.0
      %v2092 = vmax.f32 %v2028, 0.0
      %v2093 = vmax.f32 %v2029, 0.0
      %v2094 = vmax.f32 %v2030, 0.0
      %v2095 = vmax.f32 %v2031, 0.0
      %v2096 = vmax.f32 %v2032, 0.0
      %v2097 = vpack.c.bf16 %v1519, %v1517
      %v2098 = vpack.c.bf16 %v1520, %v1518
      %v2099 = vpack.c.bf16 %v1523, %v1521
      %v2100 = vpack.c.bf16 %v1524, %v1522
      %v2101 = vpack.c.bf16 %v1527, %v1525
      %v2102 = vpack.c.bf16 %v1528, %v1526
      %v2103 = vpack.c.bf16 %v1531, %v1529
      %v2104 = vpack.c.bf16 %v1532, %v1530
      %v2105 = vpack.c.bf16 %v1535, %v1533
      %v2106 = vpack.c.bf16 %v1536, %v1534
      %v2107 = vpack.c.bf16 %v1539, %v1537
      %v2108 = vpack.c.bf16 %v1540, %v1538
      %v2109 = vpack.c.bf16 %v1543, %v1541
      %v2110 = vpack.c.bf16 %v1544, %v1542
      %v2111 = vpack.c.bf16 %v1547, %v1545
      %v2112 = vpack.c.bf16 %v1548, %v1546
      %v2113 = vpack.c.bf16 %v1551, %v1549
      %v2114 = vpack.c.bf16 %v1552, %v1550
      %v2115 = vpack.c.bf16 %v1555, %v1553
      %v2116 = vpack.c.bf16 %v1556, %v1554
      %v2117 = vpack.c.bf16 %v1559, %v1557
      %v2118 = vpack.c.bf16 %v1560, %v1558
      %v2119 = vpack.c.bf16 %v1563, %v1561
      %v2120 = vpack.c.bf16 %v1564, %v1562
      %v2121 = vpack.c.bf16 %v1567, %v1565
      %v2122 = vpack.c.bf16 %v1568, %v1566
      %v2123 = vpack.c.bf16 %v1571, %v1569
      %v2124 = vpack.c.bf16 %v1572, %v1570
      %v2125 = vpack.c.bf16 %v1575, %v1573
      %v2126 = vpack.c.bf16 %v1576, %v1574
      %v2127 = vpack.c.bf16 %v1579, %v1577
      %v2128 = vpack.c.bf16 %v1580, %v1578
      %v2161 = vunpack.c.l.b16 %v2097
      %v2162 = vunpack.c.l.b16 %v2098
      %v2163 = vunpack.c.h.b16 %v2097
      %v2164 = vunpack.c.h.b16 %v2098
      %v2165 = vunpack.c.l.b16 %v2099
      %v2166 = vunpack.c.l.b16 %v2100
      %v2167 = vunpack.c.h.b16 %v2099
      %v2168 = vunpack.c.h.b16 %v2100
      %v2169 = vunpack.c.l.b16 %v2101
      %v2170 = vunpack.c.l.b16 %v2102
      %v2171 = vunpack.c.h.b16 %v2101
      %v2172 = vunpack.c.h.b16 %v2102
      %v2173 = vunpack.c.l.b16 %v2103
      %v2174 = vunpack.c.l.b16 %v2104
      %v2175 = vunpack.c.h.b16 %v2103
      %v2176 = vunpack.c.h.b16 %v2104
      %v2177 = vunpack.c.l.b16 %v2105
      %v2178 = vunpack.c.l.b16 %v2106
      %v2179 = vunpack.c.h.b16 %v2105
      %v2180 = vunpack.c.h.b16 %v2106
      %v2181 = vunpack.c.l.b16 %v2107
      %v2182 = vunpack.c.l.b16 %v2108
      %v2183 = vunpack.c.h.b16 %v2107
      %v2184 = vunpack.c.h.b16 %v2108
      %v2185 = vunpack.c.l.b16 %v2109
      %v2186 = vunpack.c.l.b16 %v2110
      %v2187 = vunpack.c.h.b16 %v2109
      %v2188 = vunpack.c.h.b16 %v2110
      %v2189 = vunpack.c.l.b16 %v2111
      %v2190 = vunpack.c.l.b16 %v2112
      %v2191 = vunpack.c.h.b16 %v2111
      %v2192 = vunpack.c.h.b16 %v2112
      %v2193 = vunpack.c.l.b16 %v2113
      %v2194 = vunpack.c.l.b16 %v2114
      %v2195 = vunpack.c.h.b16 %v2113
      %v2196 = vunpack.c.h.b16 %v2114
      %v2197 = vunpack.c.l.b16 %v2115
      %v2198 = vunpack.c.l.b16 %v2116
      %v2199 = vunpack.c.h.b16 %v2115
      %v2200 = vunpack.c.h.b16 %v2116
      %v2201 = vunpack.c.l.b16 %v2117
      %v2202 = vunpack.c.l.b16 %v2118
      %v2203 = vunpack.c.h.b16 %v2117
      %v2204 = vunpack.c.h.b16 %v2118
      %v2205 = vunpack.c.l.b16 %v2119
      %v2206 = vunpack.c.l.b16 %v2120
      %v2207 = vunpack.c.h.b16 %v2119
      %v2208 = vunpack.c.h.b16 %v2120
      %v2209 = vunpack.c.l.b16 %v2121
      %v2210 = vunpack.c.l.b16 %v2122
      %v2211 = vunpack.c.h.b16 %v2121
      %v2212 = vunpack.c.h.b16 %v2122
      %v2213 = vunpack.c.l.b16 %v2123
      %v2214 = vunpack.c.l.b16 %v2124
      %v2215 = vunpack.c.h.b16 %v2123
      %v2216 = vunpack.c.h.b16 %v2124
      %v2217 = vunpack.c.l.b16 %v2125
      %v2218 = vunpack.c.l.b16 %v2126
      %v2219 = vunpack.c.h.b16 %v2125
      %v2220 = vunpack.c.h.b16 %v2126
      %v2221 = vunpack.c.l.b16 %v2127
      %v2222 = vunpack.c.l.b16 %v2128
      %v2223 = vunpack.c.h.b16 %v2127
      %v2224 = vunpack.c.h.b16 %v2128
      %v2225 = vpack.c.b16 %v2162, %v2161
      %v2226 = vpack.c.b16 %v2164, %v2163
      %v2227 = vpack.c.b16 %v2166, %v2165
      %v2228 = vpack.c.b16 %v2168, %v2167
      %v2229 = vpack.c.b16 %v2170, %v2169
      %v2230 = vpack.c.b16 %v2172, %v2171
      %v2231 = vpack.c.b16 %v2174, %v2173
      %v2232 = vpack.c.b16 %v2176, %v2175
      %v2233 = vpack.c.b16 %v2178, %v2177
      %v2234 = vpack.c.b16 %v2180, %v2179
      %v2235 = vpack.c.b16 %v2182, %v2181
      %v2236 = vpack.c.b16 %v2184, %v2183
      %v2237 = vpack.c.b16 %v2186, %v2185
      %v2238 = vpack.c.b16 %v2188, %v2187
      %v2239 = vpack.c.b16 %v2190, %v2189
      %v2240 = vpack.c.b16 %v2192, %v2191
      %v2241 = vpack.c.b16 %v2194, %v2193
      %v2242 = vpack.c.b16 %v2196, %v2195
      %v2243 = vpack.c.b16 %v2198, %v2197
      %v2244 = vpack.c.b16 %v2200, %v2199
      %v2245 = vpack.c.b16 %v2202, %v2201
      %v2246 = vpack.c.b16 %v2204, %v2203
      %v2247 = vpack.c.b16 %v2206, %v2205
      %v2248 = vpack.c.b16 %v2208, %v2207
      %v2249 = vpack.c.b16 %v2210, %v2209
      %v2250 = vpack.c.b16 %v2212, %v2211
      %v2251 = vpack.c.b16 %v2214, %v2213
      %v2252 = vpack.c.b16 %v2216, %v2215
      %v2253 = vpack.c.b16 %v2218, %v2217
      %v2254 = vpack.c.b16 %v2220, %v2219
      %v2255 = vpack.c.b16 %v2222, %v2221
      %v2256 = vpack.c.b16 %v2224, %v2223
      %2289 = vst [vmem:[%s426] sm:$0xff] %v2225
      %2290 = vst [vmem:[%s426 + $0x8] sm:$0xff] %v2226
      %2291 = vst [vmem:[%s426 + $0x10] sm:$0xff] %v2227
      %2292 = vst [vmem:[%s426 + $0x18] sm:$0xff] %v2228
      %2293 = vst [vmem:[%s426 + $0x20] sm:$0xff] %v2229
      %2294 = vst [vmem:[%s426 + $0x28] sm:$0xff] %v2230
      %2295 = vst [vmem:[%s426 + $0x30] sm:$0xff] %v2231
      %2296 = vst [vmem:[%s426 + $0x38] sm:$0xff] %v2232
      %2297 = vst [vmem:[%s426 + $0x40] sm:$0xff] %v2233
      %2298 = vst [vmem:[%s426 + $0x48] sm:$0xff] %v2234
      %2299 = vst [vmem:[%s426 + $0x50] sm:$0xff] %v2235
      %2300 = vst [vmem:[%s426 + $0x58] sm:$0xff] %v2236
      %2301 = vst [vmem:[%s426 + $0x60] sm:$0xff] %v2237
      %2302 = vst [vmem:[%s426 + $0x68] sm:$0xff] %v2238
      %2303 = vst [vmem:[%s426 + $0x70] sm:$0xff] %v2239
      %2304 = vst [vmem:[%s426 + $0x78] sm:$0xff] %v2240
      %2305 = vst [vmem:[%s426 + $0x80] sm:$0xff] %v2241
      %2306 = vst [vmem:[%s426 + $0x88] sm:$0xff] %v2242
      %2307 = vst [vmem:[%s426 + $0x90] sm:$0xff] %v2243
      %2308 = vst [vmem:[%s426 + $0x98] sm:$0xff] %v2244
      %2309 = vst [vmem:[%s426 + $0xa0] sm:$0xff] %v2245
      %2310 = vst [vmem:[%s426 + $0xa8] sm:$0xff] %v2246
      %2311 = vst [vmem:[%s426 + $0xb0] sm:$0xff] %v2247
      %2312 = vst [vmem:[%s426 + $0xb8] sm:$0xff] %v2248
      %2313 = vst [vmem:[%s426 + $0xc0] sm:$0xff] %v2249
      %2314 = vst [vmem:[%s426 + $0xc8] sm:$0xff] %v2250
      %2315 = vst [vmem:[%s426 + $0xd0] sm:$0xff] %v2251
      %2316 = vst [vmem:[%s426 + $0xd8] sm:$0xff] %v2252
      %2317 = vst [vmem:[%s426 + $0xe0] sm:$0xff] %v2253
      %2318 = vst [vmem:[%s426 + $0xe8] sm:$0xff] %v2254
      %2319 = vst [vmem:[%s426 + $0xf0] sm:$0xff] %v2255
      %2320 = vst [vmem:[%s426 + $0xf8] sm:$0xff] %v2256
      %v2321 = vpack.c.bf16 %v2035, %v2033
      %v2322 = vpack.c.bf16 %v2036, %v2034
      %v2323 = vpack.c.bf16 %v2039, %v2037
      %v2324 = vpack.c.bf16 %v2040, %v2038
      %v2325 = vpack.c.bf16 %v2043, %v2041
      %v2326 = vpack.c.bf16 %v2044, %v2042
      %v2327 = vpack.c.bf16 %v2047, %v2045
      %v2328 = vpack.c.bf16 %v2048, %v2046
      %v2329 = vpack.c.bf16 %v2051, %v2049
      %v2330 = vpack.c.bf16 %v2052, %v2050
      %v2331 = vpack.c.bf16 %v2055, %v2053
      %v2332 = vpack.c.bf16 %v2056, %v2054
      %v2333 = vpack.c.bf16 %v2059, %v2057
      %v2334 = vpack.c.bf16 %v2060, %v2058
      %v2335 = vpack.c.bf16 %v2063, %v2061
      %v2336 = vpack.c.bf16 %v2064, %v2062
      %v2337 = vpack.c.bf16 %v2067, %v2065
      %v2338 = vpack.c.bf16 %v2068, %v2066
      %v2339 = vpack.c.bf16 %v2071, %v2069
      %v2340 = vpack.c.bf16 %v2072, %v2070
      %v2341 = vpack.c.bf16 %v2075, %v2073
      %v2342 = vpack.c.bf16 %v2076, %v2074
      %v2343 = vpack.c.bf16 %v2079, %v2077
      %v2344 = vpack.c.bf16 %v2080, %v2078
      %v2345 = vpack.c.bf16 %v2083, %v2081
      %v2346 = vpack.c.bf16 %v2084, %v2082
      %v2347 = vpack.c.bf16 %v2087, %v2085
      %v2348 = vpack.c.bf16 %v2088, %v2086
      %v2349 = vpack.c.bf16 %v2091, %v2089
      %v2350 = vpack.c.bf16 %v2092, %v2090
      %v2351 = vpack.c.bf16 %v2095, %v2093
      %v2352 = vpack.c.bf16 %v2096, %v2094
      %v2385 = vunpack.c.l.b16 %v2321
      %v2386 = vunpack.c.l.b16 %v2322
      %v2387 = vunpack.c.h.b16 %v2321
      %v2388 = vunpack.c.h.b16 %v2322
      %v2389 = vunpack.c.l.b16 %v2323
      %v2390 = vunpack.c.l.b16 %v2324
      %v2391 = vunpack.c.h.b16 %v2323
      %v2392 = vunpack.c.h.b16 %v2324
      %v2393 = vunpack.c.l.b16 %v2325
      %v2394 = vunpack.c.l.b16 %v2326
      %v2395 = vunpack.c.h.b16 %v2325
      %v2396 = vunpack.c.h.b16 %v2326
      %v2397 = vunpack.c.l.b16 %v2327
      %v2398 = vunpack.c.l.b16 %v2328
      %v2399 = vunpack.c.h.b16 %v2327
      %v2400 = vunpack.c.h.b16 %v2328
      %v2401 = vunpack.c.l.b16 %v2329
      %v2402 = vunpack.c.l.b16 %v2330
      %v2403 = vunpack.c.h.b16 %v2329
      %v2404 = vunpack.c.h.b16 %v2330
      %v2405 = vunpack.c.l.b16 %v2331
      %v2406 = vunpack.c.l.b16 %v2332
      %v2407 = vunpack.c.h.b16 %v2331
      %v2408 = vunpack.c.h.b16 %v2332
      %v2409 = vunpack.c.l.b16 %v2333
      %v2410 = vunpack.c.l.b16 %v2334
      %v2411 = vunpack.c.h.b16 %v2333
      %v2412 = vunpack.c.h.b16 %v2334
      %v2413 = vunpack.c.l.b16 %v2335
      %v2414 = vunpack.c.l.b16 %v2336
      %v2415 = vunpack.c.h.b16 %v2335
      %v2416 = vunpack.c.h.b16 %v2336
      %v2417 = vunpack.c.l.b16 %v2337
      %v2418 = vunpack.c.l.b16 %v2338
      %v2419 = vunpack.c.h.b16 %v2337
      %v2420 = vunpack.c.h.b16 %v2338
      %v2421 = vunpack.c.l.b16 %v2339
      %v2422 = vunpack.c.l.b16 %v2340
      %v2423 = vunpack.c.h.b16 %v2339
      %v2424 = vunpack.c.h.b16 %v2340
      %v2425 = vunpack.c.l.b16 %v2341
      %v2426 = vunpack.c.l.b16 %v2342
      %v2427 = vunpack.c.h.b16 %v2341
      %v2428 = vunpack.c.h.b16 %v2342
      %v2429 = vunpack.c.l.b16 %v2343
      %v2430 = vunpack.c.l.b16 %v2344
      %v2431 = vunpack.c.h.b16 %v2343
      %v2432 = vunpack.c.h.b16 %v2344
      %v2433 = vunpack.c.l.b16 %v2345
      %v2434 = vunpack.c.l.b16 %v2346
      %v2435 = vunpack.c.h.b16 %v2345
      %v2436 = vunpack.c.h.b16 %v2346
      %v2437 = vunpack.c.l.b16 %v2347
      %v2438 = vunpack.c.l.b16 %v2348
      %v2439 = vunpack.c.h.b16 %v2347
      %v2440 = vunpack.c.h.b16 %v2348
      %v2441 = vunpack.c.l.b16 %v2349
      %v2442 = vunpack.c.l.b16 %v2350
      %v2443 = vunpack.c.h.b16 %v2349
      %v2444 = vunpack.c.h.b16 %v2350
      %v2445 = vunpack.c.l.b16 %v2351
      %v2446 = vunpack.c.l.b16 %v2352
      %v2447 = vunpack.c.h.b16 %v2351
      %v2448 = vunpack.c.h.b16 %v2352
      %v2449 = vpack.c.b16 %v2386, %v2385
      %v2450 = vpack.c.b16 %v2388, %v2387
      %v2451 = vpack.c.b16 %v2390, %v2389
      %v2452 = vpack.c.b16 %v2392, %v2391
      %v2453 = vpack.c.b16 %v2394, %v2393
      %v2454 = vpack.c.b16 %v2396, %v2395
      %v2455 = vpack.c.b16 %v2398, %v2397
      %v2456 = vpack.c.b16 %v2400, %v2399
      %v2457 = vpack.c.b16 %v2402, %v2401
      %v2458 = vpack.c.b16 %v2404, %v2403
      %v2459 = vpack.c.b16 %v2406, %v2405
      %v2460 = vpack.c.b16 %v2408, %v2407
      %v2461 = vpack.c.b16 %v2410, %v2409
      %v2462 = vpack.c.b16 %v2412, %v2411
      %v2463 = vpack.c.b16 %v2414, %v2413
      %v2464 = vpack.c.b16 %v2416, %v2415
      %v2465 = vpack.c.b16 %v2418, %v2417
      %v2466 = vpack.c.b16 %v2420, %v2419
      %v2467 = vpack.c.b16 %v2422, %v2421
      %v2468 = vpack.c.b16 %v2424, %v2423
      %v2469 = vpack.c.b16 %v2426, %v2425
      %v2470 = vpack.c.b16 %v2428, %v2427
      %v2471 = vpack.c.b16 %v2430, %v2429
      %v2472 = vpack.c.b16 %v2432, %v2431
      %v2473 = vpack.c.b16 %v2434, %v2433
      %v2474 = vpack.c.b16 %v2436, %v2435
      %v2475 = vpack.c.b16 %v2438, %v2437
      %v2476 = vpack.c.b16 %v2440, %v2439
      %v2477 = vpack.c.b16 %v2442, %v2441
      %v2478 = vpack.c.b16 %v2444, %v2443
      %v2479 = vpack.c.b16 %v2446, %v2445
      %v2480 = vpack.c.b16 %v2448, %v2447
      %2513 = vst [vmem:[%s437] sm:$0xff] %v2449
      %2514 = vst [vmem:[%s437 + $0x8] sm:$0xff] %v2450
      %2515 = vst [vmem:[%s437 + $0x10] sm:$0xff] %v2451
      %2516 = vst [vmem:[%s437 + $0x18] sm:$0xff] %v2452
      %2517 = vst [vmem:[%s437 + $0x20] sm:$0xff] %v2453
      %2518 = vst [vmem:[%s437 + $0x28] sm:$0xff] %v2454
      %2519 = vst [vmem:[%s437 + $0x30] sm:$0xff] %v2455
      %2520 = vst [vmem:[%s437 + $0x38] sm:$0xff] %v2456
      %2521 = vst [vmem:[%s437 + $0x40] sm:$0xff] %v2457
      %2522 = vst [vmem:[%s437 + $0x48] sm:$0xff] %v2458
      %2523 = vst [vmem:[%s437 + $0x50] sm:$0xff] %v2459
      %2524 = vst [vmem:[%s437 + $0x58] sm:$0xff] %v2460
      %2525 = vst [vmem:[%s437 + $0x60] sm:$0xff] %v2461
      %2526 = vst [vmem:[%s437 + $0x68] sm:$0xff] %v2462
      %2527 = vst [vmem:[%s437 + $0x70] sm:$0xff] %v2463
      %2528 = vst [vmem:[%s437 + $0x78] sm:$0xff] %v2464
      %2529 = vst [vmem:[%s437 + $0x80] sm:$0xff] %v2465
      %2530 = vst [vmem:[%s437 + $0x88] sm:$0xff] %v2466
      %2531 = vst [vmem:[%s437 + $0x90] sm:$0xff] %v2467
      %2532 = vst [vmem:[%s437 + $0x98] sm:$0xff] %v2468
      %2533 = vst [vmem:[%s437 + $0xa0] sm:$0xff] %v2469
      %2534 = vst [vmem:[%s437 + $0xa8] sm:$0xff] %v2470
      %2535 = vst [vmem:[%s437 + $0xb0] sm:$0xff] %v2471
      %2536 = vst [vmem:[%s437 + $0xb8] sm:$0xff] %v2472
      %2537 = vst [vmem:[%s437 + $0xc0] sm:$0xff] %v2473
      %2538 = vst [vmem:[%s437 + $0xc8] sm:$0xff] %v2474
      %2539 = vst [vmem:[%s437 + $0xd0] sm:$0xff] %v2475
      %2540 = vst [vmem:[%s437 + $0xd8] sm:$0xff] %v2476
      %2541 = vst [vmem:[%s437 + $0xe0] sm:$0xff] %v2477
      %2542 = vst [vmem:[%s437 + $0xe8] sm:$0xff] %v2478
      %2543 = vst [vmem:[%s437 + $0xf0] sm:$0xff] %v2479
      %2544 = vst [vmem:[%s437 + $0xf8] sm:$0xff] %v2480
      %v2545 = vld [vmem:[%s442] sm:$0x3]
      %v2546 = vadd.f32 %v1517, %v1519
      %v2547 = vadd.f32 %v2546, %v1521
      %v2548 = vadd.f32 %v2547, %v1523
      %v2549 = vadd.f32 %v2548, %v1525
      %v2550 = vadd.f32 %v2549, %v1527
      %v2551 = vadd.f32 %v2550, %v1529
      %v2552 = vadd.f32 %v2551, %v1531
      %v2553 = vadd.f32 %v2552, %v1533
      %v2554 = vadd.f32 %v2553, %v1535
      %v2555 = vadd.f32 %v2554, %v1537
      %v2556 = vadd.f32 %v2555, %v1539
      %v2557 = vadd.f32 %v2556, %v1541
      %v2558 = vadd.f32 %v2557, %v1543
      %v2559 = vadd.f32 %v2558, %v1545
      %v2560 = vadd.f32 %v2559, %v1547
      %v2561 = vadd.f32 %v2560, %v1549
      %v2562 = vadd.f32 %v2561, %v1551
      %v2563 = vadd.f32 %v2562, %v1553
      %v2564 = vadd.f32 %v2563, %v1555
      %v2565 = vadd.f32 %v2564, %v1557
      %v2566 = vadd.f32 %v2565, %v1559
      %v2567 = vadd.f32 %v2566, %v1561
      %v2568 = vadd.f32 %v2567, %v1563
      %v2569 = vadd.f32 %v2568, %v1565
      %v2570 = vadd.f32 %v2569, %v1567
      %v2571 = vadd.f32 %v2570, %v1569
      %v2572 = vadd.f32 %v2571, %v1571
      %v2573 = vadd.f32 %v2572, %v1573
      %v2574 = vadd.f32 %v2573, %v1575
      %v2575 = vadd.f32 %v2574, %v1577
      %v2576 = vadd.f32 %v2575, %v1579
      %v2577 = vrot.slane %v2576, 4
      %v2578 = vadd.f32 %v2576, %v2577
      %v2579 = vrot.slane %v2578, 2
      %v2580 = vadd.f32 %v2578, %v2579
      %v2581 = vrot.slane %v2580, 1
      %v2582 = vadd.f32 %v2580, %v2581
      %v2583 = vadd.f32 %v1518, %v1520
      %v2584 = vadd.f32 %v2583, %v1522
      %v2585 = vadd.f32 %v2584, %v1524
      %v2586 = vadd.f32 %v2585, %v1526
      %v2587 = vadd.f32 %v2586, %v1528
      %v2588 = vadd.f32 %v2587, %v1530
      %v2589 = vadd.f32 %v2588, %v1532
      %v2590 = vadd.f32 %v2589, %v1534
      %v2591 = vadd.f32 %v2590, %v1536
      %v2592 = vadd.f32 %v2591, %v1538
      %v2593 = vadd.f32 %v2592, %v1540
      %v2594 = vadd.f32 %v2593, %v1542
      %v2595 = vadd.f32 %v2594, %v1544
      %v2596 = vadd.f32 %v2595, %v1546
      %v2597 = vadd.f32 %v2596, %v1548
      %v2598 = vadd.f32 %v2597, %v1550
      %v2599 = vadd.f32 %v2598, %v1552
      %v2600 = vadd.f32 %v2599, %v1554
      %v2601 = vadd.f32 %v2600, %v1556
      %v2602 = vadd.f32 %v2601, %v1558
      %v2603 = vadd.f32 %v2602, %v1560
      %v2604 = vadd.f32 %v2603, %v1562
      %v2605 = vadd.f32 %v2604, %v1564
      %v2606 = vadd.f32 %v2605, %v1566
      %v2607 = vadd.f32 %v2606, %v1568
      %v2608 = vadd.f32 %v2607, %v1570
      %v2609 = vadd.f32 %v2608, %v1572
      %v2610 = vadd.f32 %v2609, %v1574
      %v2611 = vadd.f32 %v2610, %v1576
      %v2612 = vadd.f32 %v2611, %v1578
      %v2613 = vadd.f32 %v2612, %v1580
      %v2614 = vrot.slane %v2613, 4
      %v2615 = vadd.f32 %v2613, %v2614
      %v2616 = vrot.slane %v2615, 2
      %v2617 = vadd.f32 %v2615, %v2616
      %v2618 = vrot.slane %v2617, 1
      %v2619 = vadd.f32 %v2617, %v2618
      %v2622 = vcombine.low %v2582, %v2619
      %v2624 = vunpack.c.l.s4 1966171168
      %v2625 = vunpack.c.0.s8 %v2624
      %v2626 = vlaneseq
      %v2627 = vshrl.u32 %v2626, 7
      %v2628 = vsub.s32 %v2625, %v2627
      %v2629 = vrot.slane %v2622, %v2628
      %v2631 = vunpack.c.l.s4 1966171168
      %v2632 = vunpack.c.0.s8 %v2631
      %v2633 = vlaneseq
      %v2634 = vshrl.u32 %v2633, 7
      %v2635 = vsub.s32 %v2632, %v2634
      %v2636 = vrot.slane %v2629, %v2635
      %v2638 = vadd.f32 %v2545, %v2636
      %v2639 = vlaneseq
      %vm2640 = vcmp.ge.s32.totalorder %v2639, 0
      %vm2641 = vcmp.lt.s32.totalorder %v2639, 256
      %vm2642 = vmand %vm2640, %vm2641
      %2643 = vst.msk [vmem:[%s442] sm:$0x3] %vm2642, %v2638
      %v2644 = vld [vmem:[%s446] sm:$0x3]
      %v2645 = vadd.f32 %v2033, %v2035
      %v2646 = vadd.f32 %v2645, %v2037
      %v2647 = vadd.f32 %v2646, %v2039
      %v2648 = vadd.f32 %v2647, %v2041
      %v2649 = vadd.f32 %v2648, %v2043
      %v2650 = vadd.f32 %v2649, %v2045
      %v2651 = vadd.f32 %v2650, %v2047
      %v2652 = vadd.f32 %v2651, %v2049
      %v2653 = vadd.f32 %v2652, %v2051
      %v2654 = vadd.f32 %v2653, %v2053
      %v2655 = vadd.f32 %v2654, %v2055
      %v2656 = vadd.f32 %v2655, %v2057
      %v2657 = vadd.f32 %v2656, %v2059
      %v2658 = vadd.f32 %v2657, %v2061
      %v2659 = vadd.f32 %v2658, %v2063
      %v2660 = vadd.f32 %v2659, %v2065
      %v2661 = vadd.f32 %v2660, %v2067
      %v2662 = vadd.f32 %v2661, %v2069
      %v2663 = vadd.f32 %v2662, %v2071
      %v2664 = vadd.f32 %v2663, %v2073
      %v2665 = vadd.f32 %v2664, %v2075
      %v2666 = vadd.f32 %v2665, %v2077
      %v2667 = vadd.f32 %v2666, %v2079
      %v2668 = vadd.f32 %v2667, %v2081
      %v2669 = vadd.f32 %v2668, %v2083
      %v2670 = vadd.f32 %v2669, %v2085
      %v2671 = vadd.f32 %v2670, %v2087
      %v2672 = vadd.f32 %v2671, %v2089
      %v2673 = vadd.f32 %v2672, %v2091
      %v2674 = vadd.f32 %v2673, %v2093
      %v2675 = vadd.f32 %v2674, %v2095
      %v2676 = vrot.slane %v2675, 4
      %v2677 = vadd.f32 %v2675, %v2676
      %v2678 = vrot.slane %v2677, 2
      %v2679 = vadd.f32 %v2677, %v2678
      %v2680 = vrot.slane %v2679, 1
      %v2681 = vadd.f32 %v2679, %v2680
      %v2682 = vadd.f32 %v2034, %v2036
      %v2683 = vadd.f32 %v2682, %v2038
      %v2684 = vadd.f32 %v2683, %v2040
      %v2685 = vadd.f32 %v2684, %v2042
      %v2686 = vadd.f32 %v2685, %v2044
      %v2687 = vadd.f32 %v2686, %v2046
      %v2688 = vadd.f32 %v2687, %v2048
      %v2689 = vadd.f32 %v2688, %v2050
      %v2690 = vadd.f32 %v2689, %v2052
      %v2691 = vadd.f32 %v2690, %v2054
      %v2692 = vadd.f32 %v2691, %v2056
      %v2693 = vadd.f32 %v2692, %v2058
      %v2694 = vadd.f32 %v2693, %v2060
      %v2695 = vadd.f32 %v2694, %v2062
      %v2696 = vadd.f32 %v2695, %v2064
      %v2697 = vadd.f32 %v2696, %v2066
      %v2698 = vadd.f32 %v2697, %v2068
      %v2699 = vadd.f32 %v2698, %v2070
      %v2700 = vadd.f32 %v2699, %v2072
      %v2701 = vadd.f32 %v2700, %v2074
      %v2702 = vadd.f32 %v2701, %v2076
      %v2703 = vadd.f32 %v2702, %v2078
      %v2704 = vadd.f32 %v2703, %v2080
      %v2705 = vadd.f32 %v2704, %v2082
      %v2706 = vadd.f32 %v2705, %v2084
      %v2707 = vadd.f32 %v2706, %v2086
      %v2708 = vadd.f32 %v2707, %v2088
      %v2709 = vadd.f32 %v2708, %v2090
      %v2710 = vadd.f32 %v2709, %v2092
      %v2711 = vadd.f32 %v2710, %v2094
      %v2712 = vadd.f32 %v2711, %v2096
      %v2713 = vrot.slane %v2712, 4
      %v2714 = vadd.f32 %v2712, %v2713
      %v2715 = vrot.slane %v2714, 2
      %v2716 = vadd.f32 %v2714, %v2715
      %v2717 = vrot.slane %v2716, 1
      %v2718 = vadd.f32 %v2716, %v2717
      %v2721 = vcombine.low %v2681, %v2718
      %v2723 = vunpack.c.l.s4 1966171168
      %v2724 = vunpack.c.0.s8 %v2723
      %v2725 = vlaneseq
      %v2726 = vshrl.u32 %v2725, 7
      %v2727 = vsub.s32 %v2724, %v2726
      %v2728 = vrot.slane %v2721, %v2727
      %v2730 = vunpack.c.l.s4 1966171168
      %v2731 = vunpack.c.0.s8 %v2730
      %v2732 = vlaneseq
      %v2733 = vshrl.u32 %v2732, 7
      %v2734 = vsub.s32 %v2731, %v2733
      %v2735 = vrot.slane %v2728, %v2734
      %v2737 = vadd.f32 %v2644, %v2735
      %2738 = vst.msk [vmem:[%s446] sm:$0x3] %vm2642, %v2737
      %s2739 = smul.u32 32, %s27
      %p2740 = scmp.lt.s32.totalorder %s26, 1
      %s2741 = scalar_select %p2740, %s26, 1
      %p2742 = scmp.lt.s32.totalorder %s2739, 31
      %s2743 = scalar_select %p2742, %s2739, 31
      %s2744 = smul.addr %s2743, 2
      %s2745 = smul.addr %s2741, 64
      %s2746 = sadd.s32 %s2744, %s2745
      %s2747 = smul.addr %s2746, 4
      %s2748 = scalar_lea.vmem %s7, %s2747
      %s2749 = smul.u32 32, %s27
      %p2750 = scmp.lt.s32.totalorder %s26, 1
      %s2751 = scalar_select %p2750, %s26, 1
      %p2752 = scmp.lt.s32.totalorder %s2749, 31
      %s2753 = scalar_select %p2752, %s2749, 31
      %s2754 = smul.addr %s2753, 2
      %s2755 = smul.addr %s2751, 64
      %s2756 = sadd.s32 %s2754, %s2755
      %s2757 = smul.addr %s2756, 4
      %s2758 = scalar_lea.vmem %s8, %s2757
      %p2759 = scmp.lt.s32.totalorder %s26, 1
      %s2760 = scalar_select %p2759, %s26, 1
      %s2761 = smul.addr %s2760, 2
      %s2762 = scalar_lea.vmem %s9, %s2761
      %p2763 = scmp.lt.s32.totalorder %s26, 1
      %s2764 = scalar_select %p2763, %s26, 1
      %s2765 = smul.addr %s2764, 2
      %s2766 = scalar_lea.vmem %s10, %s2765
      // Predicated region
      $region53: #{_lambda_.2} parent=47 // pred_check
        %p2767 = pneg %p208
      $region54: #{_lambda_.2} parent=47 // pred_check_branch
        %2769 = sbr.rel (%p2767) target = $region56
      $region55: #{_lambda_.2} parent=47 // pred_region
        %s2770 = smul.u32 32, %s27
      $region56: #{_lambda_.2} parent=47 // pred_fallthru
        _
      // Predicated region
      $region57: #{_lambda_.2} parent=47 // pred_check
        %p2771 = pneg %p236
      $region58: #{_lambda_.2} parent=47 // pred_check_branch
        %2773 = sbr.rel (%p2771) target = $region60
      $region59: #{_lambda_.2} parent=47 // pred_region
        %s2774 = smul.u32 32, %s27
      $region60: #{_lambda_.2} parent=47 // pred_fallthru
        _
      // Predicated region
      $region61: #{_lambda_.2} parent=47 // pred_check
        %p2775 = pneg %p262
      $region62: #{_lambda_.2} parent=47 // pred_check_branch
        %2777 = sbr.rel (%p2775) target = $region64
      $region63: #{_lambda_.2} parent=47 // pred_region
        _
      $region64: #{_lambda_.2} parent=47 // pred_fallthru
        _
      // Predicated region
      $region65: #{_lambda_.2} parent=47 // pred_check
        %p2778 = pneg %p288
      $region66: #{_lambda_.2} parent=47 // pred_check_branch
        %2780 = sbr.rel (%p2778) target = $region68
      $region67: #{_lambda_.2} parent=47 // pred_region
        _
      $region68: #{_lambda_.2} parent=47 // pred_fallthru
        _
    $region48: #{_lambda_.2} parent=5 // pred_fallthru
      _
    %p2781 = scmp.le.s32.totalorder 2, %s17
    // Predicated region
    $region69: #{_lambda_.2} parent=5 // pred_check
      %p2782 = pneg %p2781
    $region70: #{_lambda_.2} parent=5 // pred_check_branch
      %2784 = sbr.rel (%p2782) target = $region72
    $region71: #{_lambda_.2} parent=5 // pred_region
      %s2785 = ssub.s32 %s17, 2
      // Predicated region
      $region73: #{_lambda_.2} parent=71 // pred_check
        %p2786 = pneg %p214
      $region74: #{_lambda_.2} parent=71 // pred_check_branch
        %2788 = sbr.rel (%p2786) target = $region76
      $region75: #{_lambda_.2} parent=71 // pred_region
        %s2789 = smul.u32 32, %s29
        %p2790 = scmp.lt.s32.totalorder %s28, 1
        %s2791 = scalar_select %p2790, %s28, 1
        %p2792 = scmp.lt.s32.totalorder %s2789, 31
        %s2793 = scalar_select %p2792, %s2789, 31
        %s2794 = smul.addr %s2793, 2
        %s2795 = smul.addr %s2791, 64
        %s2796 = sadd.s32 %s2794, %s2795
        %s2797 = smul.addr %s2796, 4
        %s2798 = scalar_lea.vmem %s7, %s2797
      $region76: #{_lambda_.2} parent=71 // pred_fallthru
        _
      // Predicated region
      $region77: #{_lambda_.2} parent=71 // pred_check
        %p2799 = pneg %p242
      $region78: #{_lambda_.2} parent=71 // pred_check_branch
        %2801 = sbr.rel (%p2799) target = $region80
      $region79: #{_lambda_.2} parent=71 // pred_region
        %s2802 = smul.u32 32, %s29
        %p2803 = scmp.lt.s32.totalorder %s28, 1
        %s2804 = scalar_select %p2803, %s28, 1
        %p2805 = scmp.lt.s32.totalorder %s2802, 31
        %s2806 = scalar_select %p2805, %s2802, 31
        %s2807 = smul.addr %s2806, 2
        %s2808 = smul.addr %s2804, 64
        %s2809 = sadd.s32 %s2807, %s2808
        %s2810 = smul.addr %s2809, 4
        %s2811 = scalar_lea.vmem %s8, %s2810
      $region80: #{_lambda_.2} parent=71 // pred_fallthru
        _
      // Predicated region
      $region81: #{_lambda_.2} parent=71 // pred_check
        %p2812 = pneg %p268
      $region82: #{_lambda_.2} parent=71 // pred_check_branch
        %2814 = sbr.rel (%p2812) target = $region84
      $region83: #{_lambda_.2} parent=71 // pred_region
        %p2815 = scmp.lt.s32.totalorder %s28, 1
        %s2816 = scalar_select %p2815, %s28, 1
        %s2817 = smul.addr %s2816, 2
        %s2818 = scalar_lea.vmem %s9, %s2817
      $region84: #{_lambda_.2} parent=71 // pred_fallthru
        _
      // Predicated region
      $region85: #{_lambda_.2} parent=71 // pred_check
        %p2819 = pneg %p294
      $region86: #{_lambda_.2} parent=71 // pred_check_branch
        %2821 = sbr.rel (%p2819) target = $region88
      $region87: #{_lambda_.2} parent=71 // pred_region
        %p2822 = scmp.lt.s32.totalorder %s28, 1
        %s2823 = scalar_select %p2822, %s28, 1
        %s2824 = smul.addr %s2823, 2
        %s2825 = scalar_lea.vmem %s10, %s2824
      $region88: #{_lambda_.2} parent=71 // pred_fallthru
        _
    $region72: #{_lambda_.2} parent=5 // pred_fallthru
      _
  $region6: #{_lambda_.2} parent=0 // loop_footer
    %s21 = sadd.s32 1, %s17
  $region7: #{_lambda_.2} parent=0 // loop_footer_branch
    %16 = sbr.rel target = $region3
  $region8: #{_lambda_.2} parent=0 // loop_exit
    _

// kernel: _lambda_.3
$region0: #{_lambda_.3}
  #allocation0 [shape = 'u32[]', space=smem, size = 0x4, offset = 0x4, fixed_abs, tag = 'smem constant byte address 0x4 - core index']
  #allocation1 [shape = 'u32[144,128]{1,0:T(1,128)}', space=vmem, size = 0x12000, scoped, tag = 'internal scratch']
  %s0 = inlined_call_operand.vmem [shape: bf16[2,256,256], index: 0, kind: input, shape index: {}]
  %s1 = inlined_call_operand.vmem [shape: bf16[2,256,256], index: 1, kind: input, shape index: {}]
  %s2 = inlined_call_operand.vmem [shape: f32[2,1,256], index: 2, kind: input, shape index: {}]
  %s3 = inlined_call_operand.vmem [shape: bf16[256,256], index: 3, kind: input, shape index: {}]
  %s4 = inlined_call_operand.vmem [shape: f32[1,256], index: 4, kind: input, shape index: {}]
  %s5 = inlined_call_operand.vmem [shape: bf16[256,2048], index: 5, kind: input, shape index: {}]
  %s6 = inlined_call_operand.vmem [shape: f32[1,2048], index: 6, kind: input, shape index: {}]
  %s7 = inlined_call_operand.vmem [shape: f32[2,1,2048], index: 7, kind: output, shape index: {}]
  %s8 = sld [smem:[#allocation0]]
  $region65: #{_lambda_.3} parent=0
    _
  %s10 = ssub.s32 1, %s8
  %s11 = scalar_select 0, %s10, %s8
  loop: start=0, step=1, limit=4
  $region2: #{_lambda_.3} parent=0 // loop_pre_header
    _
  $region3: #{_lambda_.3} parent=0 // loop_header
    %s13 = sphi 0, %s17
    %p14 = scmp.ge.s32.totalorder %s13, 4
    %s20 = sphi 0, %s32
    %s21 = sphi 0, %s28
    %s22 = sphi 0, %s20
    %s23 = sphi 0, %s21
    %s24 = sphi 0, %s22
    %s25 = sphi 0, %s23
    %s37 = sphi 0, %s39
    %s40 = sphi 0, %s37
    %s41 = sphi 0, %s40
    %s57 = sphi 0, %s41
    %s65 = sphi 0, %s67
    %s68 = sphi 0, %s65
    %s69 = sphi 0, %s68
    %s85 = sphi 0, %s69
    %s91 = sphi 0, %s93
    %s94 = sphi 0, %s91
    %s95 = sphi 0, %s94
    %s111 = sphi 0, %s95
    %s115 = sphi 0, %s115
    %s117 = sphi 0, %s115
    %s118 = sphi 0, %s117
    %s132 = sphi 0, %s118
    %s136 = sphi 0, %s136
    %s138 = sphi 0, %s136
    %s139 = sphi 0, %s138
    %s153 = sphi 0, %s139
    %s157 = sphi 0, %s157
    %s159 = sphi 0, %s157
    %s160 = sphi 0, %s159
    %s174 = sphi 0, %s160
    %s178 = sphi 0, %s178
    %s180 = sphi 0, %s178
    %s181 = sphi 0, %s180
    %s195 = sphi 0, %s181
    %s201 = sphi 0, %s203
    %s204 = sphi 0, %s201
    %s205 = sphi 0, %s204
    %s221 = sphi 0, %s205
  $region4: #{_lambda_.3} parent=0 // loop_header_branch
    %16 = sbr.rel (%p14) target = $region8
  $region5: #{_lambda_.3} parent=0 // loop_body
    %s18 = ssub.s32 %s13, 1
    %s19 = ssub.s32 %s13, 2
    %s26 = sadd.s32 1, %s21
    %p27 = scmp.ge.s32.totalorder %s26, 1
    %s28 = scalar_select %p27, 0, %s26
    %s29 = sadd.s32 1, %s20
    %s30 = scalar_select %p27, %s29, %s20
    %p31 = scmp.ge.s32.totalorder %s30, 2
    %s32 = scalar_select %p31, 0, %s30
    %s33 = ssub.s32 %s20, %s32
    %s34 = ssub.s32 %s21, %s28
    %s35 = sor.u32 %s33, %s34
    %p36 = scmp.eq.s32.totalorder %s35, 0
    %s38 = sadd.s32 %s37, 1
    %s39 = scalar_select %p36, %s37, %s38
    %p42 = pneg %p36
    %p43 = scmp.eq.s32.totalorder %s13, 1
    %p44 = por %p42, %p43
    %p45 = scmp.ne.s32.totalorder %s37, %s40
    %p46 = scmp.eq.s32.totalorder %s13, 0
    %p47 = por %p45, %p46
    %p48 = scmp.ne.s32.totalorder %s37, %s40
    %p49 = scmp.eq.s32.totalorder %s18, 1
    %p50 = por %p48, %p49
    %p51 = scmp.ne.s32.totalorder %s40, %s41
    %p52 = scmp.eq.s32.totalorder %s18, 0
    %p53 = por %p51, %p52
    %p54 = scmp.ne.s32.totalorder %s40, %s41
    %p55 = scmp.eq.s32.totalorder %s19, 1
    %p56 = por %p54, %p55
    %p58 = scmp.ne.s32.totalorder %s41, %s57
    %p59 = scmp.eq.s32.totalorder %s19, 0
    %p60 = por %p58, %p59
    %s61 = ssub.s32 %s20, %s32
    %s62 = ssub.s32 %s21, %s28
    %s63 = sor.u32 %s61, %s62
    %p64 = scmp.eq.s32.totalorder %s63, 0
    %s66 = sadd.s32 %s65, 1
    %s67 = scalar_select %p64, %s65, %s66
    %p70 = pneg %p64
    %p71 = scmp.eq.s32.totalorder %s13, 1
    %p72 = por %p70, %p71
    %p73 = scmp.ne.s32.totalorder %s65, %s68
    %p74 = scmp.eq.s32.totalorder %s13, 0
    %p75 = por %p73, %p74
    %p76 = scmp.ne.s32.totalorder %s65, %s68
    %p77 = scmp.eq.s32.totalorder %s18, 1
    %p78 = por %p76, %p77
    %p79 = scmp.ne.s32.totalorder %s68, %s69
    %p80 = scmp.eq.s32.totalorder %s18, 0
    %p81 = por %p79, %p80
    %p82 = scmp.ne.s32.totalorder %s68, %s69
    %p83 = scmp.eq.s32.totalorder %s19, 1
    %p84 = por %p82, %p83
    %p86 = scmp.ne.s32.totalorder %s69, %s85
    %p87 = scmp.eq.s32.totalorder %s19, 0
    %p88 = por %p86, %p87
    %s89 = ssub.s32 %s20, %s32
    %p90 = scmp.eq.s32.totalorder %s89, 0
    %s92 = sadd.s32 %s91, 1
    %s93 = scalar_select %p90, %s91, %s92
    %p96 = pneg %p90
    %p97 = scmp.eq.s32.totalorder %s13, 1
    %p98 = por %p96, %p97
    %p99 = scmp.ne.s32.totalorder %s91, %s94
    %p100 = scmp.eq.s32.totalorder %s13, 0
    %p101 = por %p99, %p100
    %p102 = scmp.ne.s32.totalorder %s91, %s94
    %p103 = scmp.eq.s32.totalorder %s18, 1
    %p104 = por %p102, %p103
    %p105 = scmp.ne.s32.totalorder %s94, %s95
    %p106 = scmp.eq.s32.totalorder %s18, 0
    %p107 = por %p105, %p106
    %p108 = scmp.ne.s32.totalorder %s94, %s95
    %p109 = scmp.eq.s32.totalorder %s19, 1
    %p110 = por %p108, %p109
    %p112 = scmp.ne.s32.totalorder %s95, %s111
    %p113 = scmp.eq.s32.totalorder %s19, 0
    %p114 = por %p112, %p113
    %s116 = sadd.s32 %s115, 1
    %p119 = scmp.eq.s32.totalorder %s13, 1
    %p120 = scmp.ne.s32.totalorder %s115, %s117
    %p121 = scmp.eq.s32.totalorder %s13, 0
    %p122 = por %p120, %p121
    %p123 = scmp.ne.s32.totalorder %s115, %s117
    %p124 = scmp.eq.s32.totalorder %s18, 1
    %p125 = por %p123, %p124
    %p126 = scmp.ne.s32.totalorder %s117, %s118
    %p127 = scmp.eq.s32.totalorder %s18, 0
    %p128 = por %p126, %p127
    %p129 = scmp.ne.s32.totalorder %s117, %s118
    %p130 = scmp.eq.s32.totalorder %s19, 1
    %p131 = por %p129, %p130
    %p133 = scmp.ne.s32.totalorder %s118, %s132
    %p134 = scmp.eq.s32.totalorder %s19, 0
    %p135 = por %p133, %p134
    %s137 = sadd.s32 %s136, 1
    %p140 = scmp.eq.s32.totalorder %s13, 1
    %p141 = scmp.ne.s32.totalorder %s136, %s138
    %p142 = scmp.eq.s32.totalorder %s13, 0
    %p143 = por %p141, %p142
    %p144 = scmp.ne.s32.totalorder %s136, %s138
    %p145 = scmp.eq.s32.totalorder %s18, 1
    %p146 = por %p144, %p145
    %p147 = scmp.ne.s32.totalorder %s138, %s139
    %p148 = scmp.eq.s32.totalorder %s18, 0
    %p149 = por %p147, %p148
    %p150 = scmp.ne.s32.totalorder %s138, %s139
    %p151 = scmp.eq.s32.totalorder %s19, 1
    %p152 = por %p150, %p151
    %p154 = scmp.ne.s32.totalorder %s139, %s153
    %p155 = scmp.eq.s32.totalorder %s19, 0
    %p156 = por %p154, %p155
    %s158 = sadd.s32 %s157, 1
    %p161 = scmp.eq.s32.totalorder %s13, 1
    %p162 = scmp.ne.s32.totalorder %s157, %s159
    %p163 = scmp.eq.s32.totalorder %s13, 0
    %p164 = por %p162, %p163
    %p165 = scmp.ne.s32.totalorder %s157, %s159
    %p166 = scmp.eq.s32.totalorder %s18, 1
    %p167 = por %p165, %p166
    %p168 = scmp.ne.s32.totalorder %s159, %s160
    %p169 = scmp.eq.s32.totalorder %s18, 0
    %p170 = por %p168, %p169
    %p171 = scmp.ne.s32.totalorder %s159, %s160
    %p172 = scmp.eq.s32.totalorder %s19, 1
    %p173 = por %p171, %p172
    %p175 = scmp.ne.s32.totalorder %s160, %s174
    %p176 = scmp.eq.s32.totalorder %s19, 0
    %p177 = por %p175, %p176
    %s179 = sadd.s32 %s178, 1
    %p182 = scmp.eq.s32.totalorder %s13, 1
    %p183 = scmp.ne.s32.totalorder %s178, %s180
    %p184 = scmp.eq.s32.totalorder %s13, 0
    %p185 = por %p183, %p184
    %p186 = scmp.ne.s32.totalorder %s178, %s180
    %p187 = scmp.eq.s32.totalorder %s18, 1
    %p188 = por %p186, %p187
    %p189 = scmp.ne.s32.totalorder %s180, %s181
    %p190 = scmp.eq.s32.totalorder %s18, 0
    %p191 = por %p189, %p190
    %p192 = scmp.ne.s32.totalorder %s180, %s181
    %p193 = scmp.eq.s32.totalorder %s19, 1
    %p194 = por %p192, %p193
    %p196 = scmp.ne.s32.totalorder %s181, %s195
    %p197 = scmp.eq.s32.totalorder %s19, 0
    %p198 = por %p196, %p197
    %s199 = ssub.s32 %s20, %s32
    %p200 = scmp.eq.s32.totalorder %s199, 0
    %s202 = sadd.s32 %s201, 1
    %s203 = scalar_select %p200, %s201, %s202
    %p206 = pneg %p200
    %p207 = scmp.eq.s32.totalorder %s13, 1
    %p208 = por %p206, %p207
    %p209 = scmp.ne.s32.totalorder %s201, %s204
    %p210 = scmp.eq.s32.totalorder %s13, 0
    %p211 = por %p209, %p210
    %p212 = scmp.ne.s32.totalorder %s201, %s204
    %p213 = scmp.eq.s32.totalorder %s18, 1
    %p214 = por %p212, %p213
    %p215 = scmp.ne.s32.totalorder %s204, %s205
    %p216 = scmp.eq.s32.totalorder %s18, 0
    %p217 = por %p215, %p216
    %p218 = scmp.ne.s32.totalorder %s204, %s205
    %p219 = scmp.eq.s32.totalorder %s19, 1
    %p220 = por %p218, %p219
    %p222 = scmp.ne.s32.totalorder %s205, %s221
    %p223 = scmp.eq.s32.totalorder %s19, 0
    %p224 = por %p222, %p223
    %p225 = scmp.le.s32.totalorder 1, %s13
    %p226 = scmp.lt.s32.totalorder %s13, 3
    %p227 = pnand %p225, %p226
    %p228 = pneg %p227
    // Predicated region
    $region9: #{_lambda_.3} parent=5 // pred_check
      _
    $region10: #{_lambda_.3} parent=5 // pred_check_branch
      %230 = sbr.rel (%p227) target = $region12
    $region11: #{_lambda_.3} parent=5 // pred_region
      %s231 = ssub.s32 %s13, 1
      // Predicated region
      $region13: #{_lambda_.3} parent=11 // pred_check
        %p232 = pneg %p128
      $region14: #{_lambda_.3} parent=11 // pred_check_branch
        %234 = sbr.rel (%p232) target = $region16
      $region15: #{_lambda_.3} parent=11 // pred_region
        _
      $region16: #{_lambda_.3} parent=11 // pred_fallthru
        _
      // Predicated region
      $region17: #{_lambda_.3} parent=11 // pred_check
        %p235 = pneg %p149
      $region18: #{_lambda_.3} parent=11 // pred_check_branch
        %237 = sbr.rel (%p235) target = $region20
      $region19: #{_lambda_.3} parent=11 // pred_region
        _
      $region20: #{_lambda_.3} parent=11 // pred_fallthru
        _
      // Predicated region
      $region21: #{_lambda_.3} parent=11 // pred_check
        %p238 = pneg %p170
      $region22: #{_lambda_.3} parent=11 // pred_check_branch
        %240 = sbr.rel (%p238) target = $region24
      $region23: #{_lambda_.3} parent=11 // pred_region
        _
      $region24: #{_lambda_.3} parent=11 // pred_fallthru
        _
      // Predicated region
      $region25: #{_lambda_.3} parent=11 // pred_check
        %p241 = pneg %p191
      $region26: #{_lambda_.3} parent=11 // pred_check_branch
        %243 = sbr.rel (%p241) target = $region28
      $region27: #{_lambda_.3} parent=11 // pred_region
        _
      $region28: #{_lambda_.3} parent=11 // pred_fallthru
        _
    $region12: #{_lambda_.3} parent=5 // pred_fallthru
      _
    %p244 = scmp.lt.s32.totalorder %s13, 2
    // Predicated region
    $region29: #{_lambda_.3} parent=5 // pred_check
      %p245 = pneg %p244
    $region30: #{_lambda_.3} parent=5 // pred_check_branch
      %247 = sbr.rel (%p245) target = $region32
    $region31: #{_lambda_.3} parent=5 // pred_region
      // Predicated region
      $region33: #{_lambda_.3} parent=31 // pred_check
        %p248 = pneg %p47
      $region34: #{_lambda_.3} parent=31 // pred_check_branch
        %250 = sbr.rel (%p248) target = $region36
      $region35: #{_lambda_.3} parent=31 // pred_region
        %s251 = smul.u32 32, %s21
        %p252 = scmp.lt.s32.totalorder %s20, 1
        %s253 = scalar_select %p252, %s20, 1
        %p254 = scmp.lt.s32.totalorder %s251, 31
        %s255 = scalar_select %p254, %s251, 31
        %s256 = smul.addr %s255, 2
        %s257 = smul.addr %s253, 64
        %s258 = sadd.s32 %s256, %s257
        %s259 = smul.addr %s258, 4
        %s260 = scalar_lea.vmem %s0, %s259
        %s261 = smul.u32 32, %s21
      $region36: #{_lambda_.3} parent=31 // pred_fallthru
        _
      // Predicated region
      $region37: #{_lambda_.3} parent=31 // pred_check
        %p262 = pneg %p75
      $region38: #{_lambda_.3} parent=31 // pred_check_branch
        %264 = sbr.rel (%p262) target = $region40
      $region39: #{_lambda_.3} parent=31 // pred_region
        %s265 = smul.u32 32, %s21
        %p266 = scmp.lt.s32.totalorder %s20, 1
        %s267 = scalar_select %p266, %s20, 1
        %p268 = scmp.lt.s32.totalorder %s265, 31
        %s269 = scalar_select %p268, %s265, 31
        %s270 = smul.addr %s269, 2
        %s271 = smul.addr %s267, 64
        %s272 = sadd.s32 %s270, %s271
        %s273 = smul.addr %s272, 4
        %s274 = scalar_lea.vmem %s1, %s273
        %s275 = smul.u32 32, %s21
      $region40: #{_lambda_.3} parent=31 // pred_fallthru
        _
      // Predicated region
      $region41: #{_lambda_.3} parent=31 // pred_check
        %p276 = pneg %p101
      $region42: #{_lambda_.3} parent=31 // pred_check_branch
        %278 = sbr.rel (%p276) target = $region44
      $region43: #{_lambda_.3} parent=31 // pred_region
        %p279 = scmp.lt.s32.totalorder %s20, 1
        %s280 = scalar_select %p279, %s20, 1
        %s281 = smul.addr %s280, 2
        %s282 = scalar_lea.vmem %s2, %s281
      $region44: #{_lambda_.3} parent=31 // pred_fallthru
        _
    $region32: #{_lambda_.3} parent=5 // pred_fallthru
      _
    %p283 = scmp.le.s32.totalorder 1, %s13
    %p284 = scmp.lt.s32.totalorder %s13, 3
    %p285 = pnand %p283, %p284
    %p286 = pneg %p285
    // Predicated region
    $region45: #{_lambda_.3} parent=5 // pred_check
      _
    $region46: #{_lambda_.3} parent=5 // pred_check_branch
      %288 = sbr.rel (%p285) target = $region48
    $region47: #{_lambda_.3} parent=5 // pred_region
      %s289 = ssub.s32 %s13, 1
      %s290 = smul.u32 32, %s23
      %p291 = scmp.lt.s32.totalorder %s22, 1
      %s292 = scalar_select %p291, %s22, 1
      %p293 = scmp.lt.s32.totalorder %s290, 31
      %s294 = scalar_select %p293, %s290, 31
      %s295 = smul.addr %s294, 2
      %s296 = smul.addr %s292, 64
      %s297 = sadd.s32 %s295, %s296
      %s298 = smul.addr %s297, 4
      %s299 = scalar_lea.vmem %s0, %s298
      %p300 = pneg %p53
      %p301 = pneg %p50
      %s302 = smul.u32 32, %s23
      %p303 = scmp.lt.s32.totalorder %s22, 1
      %s304 = scalar_select %p303, %s22, 1
      %p305 = scmp.lt.s32.totalorder %s302, 31
      %s306 = scalar_select %p305, %s302, 31
      %s307 = smul.addr %s306, 2
      %s308 = smul.addr %s304, 64
      %s309 = sadd.s32 %s307, %s308
      %s310 = smul.addr %s309, 4
      %s311 = scalar_lea.vmem %s1, %s310
      %p312 = pneg %p81
      %p313 = pneg %p78
      %p314 = scmp.lt.s32.totalorder %s22, 1
      %s315 = scalar_select %p314, %s22, 1
      %s316 = smul.addr %s315, 2
      %s317 = scalar_lea.vmem %s2, %s316
      %p318 = pneg %p107
      %p319 = pneg %p104
      %p320 = pneg %p128
      %p321 = pneg %p125
      %p322 = pneg %p149
      %p323 = pneg %p146
      %p324 = pneg %p170
      %p325 = pneg %p167
      %p326 = pneg %p191
      %p327 = pneg %p188
      %p328 = pneg %p217
      %p329 = pneg %p214
      %p330 = scmp.lt.s32.totalorder %s22, 1
      %s331 = scalar_select %p330, %s22, 1
      %s332 = smul.addr %s331, 16
      %s333 = scalar_lea.vmem %s7, %s332
      %s334 = smul.u32 32, %s23
      %p335 = scmp.lt.s32.totalorder %s22, 1
      %s336 = scalar_select %p335, %s22, 1
      %p337 = scmp.lt.s32.totalorder %s334, 31
      %s338 = scalar_select %p337, %s334, 31
      %s339 = smul.addr %s338, 2
      %s340 = smul.addr %s336, 64
      %s341 = sadd.s32 %s339, %s340
      %s342 = smul.addr %s341, 4
      %s343 = scalar_lea.vmem %s0, %s342
      %s344 = smul.u32 32, %s23
      %s345 = smul.u32 32, %s23
      %p346 = scmp.lt.s32.totalorder %s22, 1
      %s347 = scalar_select %p346, %s22, 1
      %p348 = scmp.lt.s32.totalorder %s345, 31
      %s349 = scalar_select %p348, %s345, 31
      %s350 = smul.addr %s349, 2
      %s351 = smul.addr %s347, 64
      %s352 = sadd.s32 %s350, %s351
      %s353 = smul.addr %s352, 4
      %s354 = scalar_lea.vmem %s1, %s353
      %s355 = smul.u32 32, %s23
      %p356 = scmp.lt.s32.totalorder %s22, 1
      %s357 = scalar_select %p356, %s22, 1
      %s358 = smul.addr %s357, 2
      %s359 = scalar_lea.vmem %s2, %s358
      %p360 = scmp.lt.s32.totalorder %s22, 1
      %s361 = scalar_select %p360, %s22, 1
      %s362 = smul.addr %s361, 16
      %s363 = scalar_lea.vmem %s7, %s362
      %p364 = scmp.eq.s32.totalorder %s23, 0
      // Predicated region
      $region49: #{_lambda_.3} parent=47 // pred_check
        %p365 = pneg %p364
      $region50: #{_lambda_.3} parent=47 // pred_check_branch
        %367 = sbr.rel (%p365) target = $region52
      $region51: #{_lambda_.3} parent=47 // pred_region
        %368 = vst [vmem:[%s363] sm:$0xff] 0.0
        %369 = vst [vmem:[%s363 + $0x8] sm:$0xff] 0.0
      $region52: #{_lambda_.3} parent=47 // pred_fallthru
        _
      %v370 = vld [vmem:[%s343] sm:$0xff]
      %v371 = vld [vmem:[%s343 + $0x8] sm:$0xff]
      %v372 = vld [vmem:[%s343 + $0x10] sm:$0xff]
      %v373 = vld [vmem:[%s343 + $0x18] sm:$0xff]
      %v374 = vld [vmem:[%s343 + $0x20] sm:$0xff]
      %v375 = vld [vmem:[%s343 + $0x28] sm:$0xff]
      %v376 = vld [vmem:[%s343 + $0x30] sm:$0xff]
      %v377 = vld [vmem:[%s343 + $0x38] sm:$0xff]
      %v378 = vld [vmem:[%s343 + $0x40] sm:$0xff]
      %v379 = vld [vmem:[%s343 + $0x48] sm:$0xff]
      %v380 = vld [vmem:[%s343 + $0x50] sm:$0xff]
      %v381 = vld [vmem:[%s343 + $0x58] sm:$0xff]
      %v382 = vld [vmem:[%s343 + $0x60] sm:$0xff]
      %v383 = vld [vmem:[%s343 + $0x68] sm:$0xff]
      %v384 = vld [vmem:[%s343 + $0x70] sm:$0xff]
      %v385 = vld [vmem:[%s343 + $0x78] sm:$0xff]
      %v386 = vld [vmem:[%s343 + $0x80] sm:$0xff]
      %v387 = vld [vmem:[%s343 + $0x88] sm:$0xff]
      %v388 = vld [vmem:[%s343 + $0x90] sm:$0xff]
      %v389 = vld [vmem:[%s343 + $0x98] sm:$0xff]
      %v390 = vld [vmem:[%s343 + $0xa0] sm:$0xff]
      %v391 = vld [vmem:[%s343 + $0xa8] sm:$0xff]
      %v392 = vld [vmem:[%s343 + $0xb0] sm:$0xff]
      %v393 = vld [vmem:[%s343 + $0xb8] sm:$0xff]
      %v394 = vld [vmem:[%s343 + $0xc0] sm:$0xff]
      %v395 = vld [vmem:[%s343 + $0xc8] sm:$0xff]
      %v396 = vld [vmem:[%s343 + $0xd0] sm:$0xff]
      %v397 = vld [vmem:[%s343 + $0xd8] sm:$0xff]
      %v398 = vld [vmem:[%s343 + $0xe0] sm:$0xff]
      %v399 = vld [vmem:[%s343 + $0xe8] sm:$0xff]
      %v400 = vld [vmem:[%s343 + $0xf0] sm:$0xff]
      %v401 = vld [vmem:[%s343 + $0xf8] sm:$0xff]
      %v402 = vunpack.c.l.bf16 %v370
      %v403 = vunpack.c.h.bf16 %v370
      %v404 = vunpack.c.l.bf16 %v371
      %v405 = vunpack.c.h.bf16 %v371
      %v406 = vunpack.c.l.bf16 %v372
      %v407 = vunpack.c.h.bf16 %v372
      %v408 = vunpack.c.l.bf16 %v373
      %v409 = vunpack.c.h.bf16 %v373
      %v410 = vunpack.c.l.bf16 %v374
      %v411 = vunpack.c.h.bf16 %v374
      %v412 = vunpack.c.l.bf16 %v375
      %v413 = vunpack.c.h.bf16 %v375
      %v414 = vunpack.c.l.bf16 %v376
      %v415 = vunpack.c.h.bf16 %v376
      %v416 = vunpack.c.l.bf16 %v377
      %v417 = vunpack.c.h.bf16 %v377
      %v418 = vunpack.c.l.bf16 %v378
      %v419 = vunpack.c.h.bf16 %v378
      %v420 = vunpack.c.l.bf16 %v379
      %v421 = vunpack.c.h.bf16 %v379
      %v422 = vunpack.c.l.bf16 %v380
      %v423 = vunpack.c.h.bf16 %v380
      %v424 = vunpack.c.l.bf16 %v381
      %v425 = vunpack.c.h.bf16 %v381
      %v426 = vunpack.c.l.bf16 %v382
      %v427 = vunpack.c.h.bf16 %v382
      %v428 = vunpack.c.l.bf16 %v383
      %v429 = vunpack.c.h.bf16 %v383
      %v430 = vunpack.c.l.bf16 %v384
      %v431 = vunpack.c.h.bf16 %v384
      %v432 = vunpack.c.l.bf16 %v385
      %v433 = vunpack.c.h.bf16 %v385
      %v434 = vunpack.c.l.bf16 %v386
      %v435 = vunpack.c.h.bf16 %v386
      %v436 = vunpack.c.l.bf16 %v387
      %v437 = vunpack.c.h.bf16 %v387
      %v438 = vunpack.c.l.bf16 %v388
      %v439 = vunpack.c.h.bf16 %v388
      %v440 = vunpack.c.l.bf16 %v389
      %v441 = vunpack.c.h.bf16 %v389
      %v442 = vunpack.c.l.bf16 %v390
      %v443 = vunpack.c.h.bf16 %v390
      %v444 = vunpack.c.l.bf16 %v391
      %v445 = vunpack.c.h.bf16 %v391
      %v446 = vunpack.c.l.bf16 %v392
      %v447 = vunpack.c.h.bf16 %v392
      %v448 = vunpack.c.l.bf16 %v393
      %v449 = vunpack.c.h.bf16 %v393
      %v450 = vunpack.c.l.bf16 %v394
      %v451 = vunpack.c.h.bf16 %v394
      %v452 = vunpack.c.l.bf16 %v395
      %v453 = vunpack.c.h.bf16 %v395
      %v454 = vunpack.c.l.bf16 %v396
      %v455 = vunpack.c.h.bf16 %v396
      %v456 = vunpack.c.l.bf16 %v397
      %v457 = vunpack.c.h.bf16 %v397
      %v458 = vunpack.c.l.bf16 %v398
      %v459 = vunpack.c.h.bf16 %v398
      %v460 = vunpack.c.l.bf16 %v399
      %v461 = vunpack.c.h.bf16 %v399
      %v462 = vunpack.c.l.bf16 %v400
      %v463 = vunpack.c.h.bf16 %v400
      %v464 = vunpack.c.l.bf16 %v401
      %v465 = vunpack.c.h.bf16 %v401
      %v466 = vld [vmem:[%s354] sm:$0xff]
      %v467 = vld [vmem:[%s354 + $0x8] sm:$0xff]
      %v468 = vld [vmem:[%s354 + $0x10] sm:$0xff]
      %v469 = vld [vmem:[%s354 + $0x18] sm:$0xff]
      %v470 = vld [vmem:[%s354 + $0x20] sm:$0xff]
      %v471 = vld [vmem:[%s354 + $0x28] sm:$0xff]
      %v472 = vld [vmem:[%s354 + $0x30] sm:$0xff]
      %v473 = vld [vmem:[%s354 + $0x38] sm:$0xff]
      %v474 = vld [vmem:[%s354 + $0x40] sm:$0xff]
      %v475 = vld [vmem:[%s354 + $0x48] sm:$0xff]
      %v476 = vld [vmem:[%s354 + $0x50] sm:$0xff]
      %v477 = vld [vmem:[%s354 + $0x58] sm:$0xff]
      %v478 = vld [vmem:[%s354 + $0x60] sm:$0xff]
      %v479 = vld [vmem:[%s354 + $0x68] sm:$0xff]
      %v480 = vld [vmem:[%s354 + $0x70] sm:$0xff]
      %v481 = vld [vmem:[%s354 + $0x78] sm:$0xff]
      %v482 = vld [vmem:[%s354 + $0x80] sm:$0xff]
      %v483 = vld [vmem:[%s354 + $0x88] sm:$0xff]
      %v484 = vld [vmem:[%s354 + $0x90] sm:$0xff]
      %v485 = vld [vmem:[%s354 + $0x98] sm:$0xff]
      %v486 = vld [vmem:[%s354 + $0xa0] sm:$0xff]
      %v487 = vld [vmem:[%s354 + $0xa8] sm:$0xff]
      %v488 = vld [vmem:[%s354 + $0xb0] sm:$0xff]
      %v489 = vld [vmem:[%s354 + $0xb8] sm:$0xff]
      %v490 = vld [vmem:[%s354 + $0xc0] sm:$0xff]
      %v491 = vld [vmem:[%s354 + $0xc8] sm:$0xff]
      %v492 = vld [vmem:[%s354 + $0xd0] sm:$0xff]
      %v493 = vld [vmem:[%s354 + $0xd8] sm:$0xff]
      %v494 = vld [vmem:[%s354 + $0xe0] sm:$0xff]
      %v495 = vld [vmem:[%s354 + $0xe8] sm:$0xff]
      %v496 = vld [vmem:[%s354 + $0xf0] sm:$0xff]
      %v497 = vld [vmem:[%s354 + $0xf8] sm:$0xff]
      %v498 = vunpack.c.l.bf16 %v466
      %v499 = vunpack.c.h.bf16 %v466
      %v500 = vunpack.c.l.bf16 %v467
      %v501 = vunpack.c.h.bf16 %v467
      %v502 = vunpack.c.l.bf16 %v468
      %v503 = vunpack.c.h.bf16 %v468
      %v504 = vunpack.c.l.bf16 %v469
      %v505 = vunpack.c.h.bf16 %v469
      %v506 = vunpack.c.l.bf16 %v470
      %v507 = vunpack.c.h.bf16 %v470
      %v508 = vunpack.c.l.bf16 %v471
      %v509 = vunpack.c.h.bf16 %v471
      %v510 = vunpack.c.l.bf16 %v472
      %v511 = vunpack.c.h.bf16 %v472
      %v512 = vunpack.c.l.bf16 %v473
      %v513 = vunpack.c.h.bf16 %v473
      %v514 = vunpack.c.l.bf16 %v474
      %v515 = vunpack.c.h.bf16 %v474
      %v516 = vunpack.c.l.bf16 %v475
      %v517 = vunpack.c.h.bf16 %v475
      %v518 = vunpack.c.l.bf16 %v476
      %v519 = vunpack.c.h.bf16 %v476
      %v520 = vunpack.c.l.bf16 %v477
      %v521 = vunpack.c.h.bf16 %v477
      %v522 = vunpack.c.l.bf16 %v478
      %v523 = vunpack.c.h.bf16 %v478
      %v524 = vunpack.c.l.bf16 %v479
      %v525 = vunpack.c.h.bf16 %v479
      %v526 = vunpack.c.l.bf16 %v480
      %v527 = vunpack.c.h.bf16 %v480
      %v528 = vunpack.c.l.bf16 %v481
      %v529 = vunpack.c.h.bf16 %v481
      %v530 = vunpack.c.l.bf16 %v482
      %v531 = vunpack.c.h.bf16 %v482
      %v532 = vunpack.c.l.bf16 %v483
      %v533 = vunpack.c.h.bf16 %v483
      %v534 = vunpack.c.l.bf16 %v484
      %v535 = vunpack.c.h.bf16 %v484
      %v536 = vunpack.c.l.bf16 %v485
      %v537 = vunpack.c.h.bf16 %v485
      %v538 = vunpack.c.l.bf16 %v486
      %v539 = vunpack.c.h.bf16 %v486
      %v540 = vunpack.c.l.bf16 %v487
      %v541 = vunpack.c.h.bf16 %v487
      %v542 = vunpack.c.l.bf16 %v488
      %v543 = vunpack.c.h.bf16 %v488
      %v544 = vunpack.c.l.bf16 %v489
      %v545 = vunpack.c.h.bf16 %v489
      %v546 = vunpack.c.l.bf16 %v490
      %v547 = vunpack.c.h.bf16 %v490
      %v548 = vunpack.c.l.bf16 %v491
      %v549 = vunpack.c.h.bf16 %v491
      %v550 = vunpack.c.l.bf16 %v492
      %v551 = vunpack.c.h.bf16 %v492
      %v552 = vunpack.c.l.bf16 %v493
      %v553 = vunpack.c.h.bf16 %v493
      %v554 = vunpack.c.l.bf16 %v494
      %v555 = vunpack.c.h.bf16 %v494
      %v556 = vunpack.c.l.bf16 %v495
      %v557 = vunpack.c.h.bf16 %v495
      %v558 = vunpack.c.l.bf16 %v496
      %v559 = vunpack.c.h.bf16 %v496
      %v560 = vunpack.c.l.bf16 %v497
      %v561 = vunpack.c.h.bf16 %v497
      %v562 = vmul.f32 %v402, %v498
      %v563 = vmul.f32 %v403, %v499
      %v564 = vmul.f32 %v404, %v500
      %v565 = vmul.f32 %v405, %v501
      %v566 = vmul.f32 %v406, %v502
      %v567 = vmul.f32 %v407, %v503
      %v568 = vmul.f32 %v408, %v504
      %v569 = vmul.f32 %v409, %v505
      %v570 = vmul.f32 %v410, %v506
      %v571 = vmul.f32 %v411, %v507
      %v572 = vmul.f32 %v412, %v508
      %v573 = vmul.f32 %v413, %v509
      %v574 = vmul.f32 %v414, %v510
      %v575 = vmul.f32 %v415, %v511
      %v576 = vmul.f32 %v416, %v512
      %v577 = vmul.f32 %v417, %v513
      %v578 = vmul.f32 %v418, %v514
      %v579 = vmul.f32 %v419, %v515
      %v580 = vmul.f32 %v420, %v516
      %v581 = vmul.f32 %v421, %v517
      %v582 = vmul.f32 %v422, %v518
      %v583 = vmul.f32 %v423, %v519
      %v584 = vmul.f32 %v424, %v520
      %v585 = vmul.f32 %v425, %v521
      %v586 = vmul.f32 %v426, %v522
      %v587 = vmul.f32 %v427, %v523
      %v588 = vmul.f32 %v428, %v524
      %v589 = vmul.f32 %v429, %v525
      %v590 = vmul.f32 %v430, %v526
      %v591 = vmul.f32 %v431, %v527
      %v592 = vmul.f32 %v432, %v528
      %v593 = vmul.f32 %v433, %v529
      %v594 = vmul.f32 %v434, %v530
      %v595 = vmul.f32 %v435, %v531
      %v596 = vmul.f32 %v436, %v532
      %v597 = vmul.f32 %v437, %v533
      %v598 = vmul.f32 %v438, %v534
      %v599 = vmul.f32 %v439, %v535
      %v600 = vmul.f32 %v440, %v536
      %v601 = vmul.f32 %v441, %v537
      %v602 = vmul.f32 %v442, %v538
      %v603 = vmul.f32 %v443, %v539
      %v604 = vmul.f32 %v444, %v540
      %v605 = vmul.f32 %v445, %v541
      %v606 = vmul.f32 %v446, %v542
      %v607 = vmul.f32 %v447, %v543
      %v608 = vmul.f32 %v448, %v544
      %v609 = vmul.f32 %v449, %v545
      %v610 = vmul.f32 %v450, %v546
      %v611 = vmul.f32 %v451, %v547
      %v612 = vmul.f32 %v452, %v548
      %v613 = vmul.f32 %v453, %v549
      %v614 = vmul.f32 %v454, %v550
      %v615 = vmul.f32 %v455, %v551
      %v616 = vmul.f32 %v456, %v552
      %v617 = vmul.f32 %v457, %v553
      %v618 = vmul.f32 %v458, %v554
      %v619 = vmul.f32 %v459, %v555
      %v620 = vmul.f32 %v460, %v556
      %v621 = vmul.f32 %v461, %v557
      %v622 = vmul.f32 %v462, %v558
      %v623 = vmul.f32 %v463, %v559
      %v624 = vmul.f32 %v464, %v560
      %v625 = vmul.f32 %v465, %v561
      %v626 = vld [vmem:[%s359] sm:$0x3]
      %v628 = vlaneseq
      %v629 = vshrl.u32 %v628, 7
      %v630 = vsub.s32 0, %v629
      %v631 = vrot.slane %v626, %v630
      %v632 = vlaneseq
      %v633 = vshrl.u32 %v632, 7
      %v634 = vsub.s32 1, %v633
      %v635 = vrot.slane %v626, %v634
      %v638 = vmul.f32 %v562, %v631
      %v639 = vmul.f32 %v563, %v635
      %v640 = vmul.f32 %v564, %v631
      %v641 = vmul.f32 %v565, %v635
      %v642 = vmul.f32 %v566, %v631
      %v643 = vmul.f32 %v567, %v635
      %v644 = vmul.f32 %v568, %v631
      %v645 = vmul.f32 %v569, %v635
      %v646 = vmul.f32 %v570, %v631
      %v647 = vmul.f32 %v571, %v635
      %v648 = vmul.f32 %v572, %v631
      %v649 = vmul.f32 %v573, %v635
      %v650 = vmul.f32 %v574, %v631
      %v651 = vmul.f32 %v575, %v635
      %v652 = vmul.f32 %v576, %v631
      %v653 = vmul.f32 %v577, %v635
      %v654 = vmul.f32 %v578, %v631
      %v655 = vmul.f32 %v579, %v635
      %v656 = vmul.f32 %v580, %v631
      %v657 = vmul.f32 %v581, %v635
      %v658 = vmul.f32 %v582, %v631
      %v659 = vmul.f32 %v583, %v635
      %v660 = vmul.f32 %v584, %v631
      %v661 = vmul.f32 %v585, %v635
      %v662 = vmul.f32 %v586, %v631
      %v663 = vmul.f32 %v587, %v635
      %v664 = vmul.f32 %v588, %v631
      %v665 = vmul.f32 %v589, %v635
      %v666 = vmul.f32 %v590, %v631
      %v667 = vmul.f32 %v591, %v635
      %v668 = vmul.f32 %v592, %v631
      %v669 = vmul.f32 %v593, %v635
      %v670 = vmul.f32 %v594, %v631
      %v671 = vmul.f32 %v595, %v635
      %v672 = vmul.f32 %v596, %v631
      %v673 = vmul.f32 %v597, %v635
      %v674 = vmul.f32 %v598, %v631
      %v675 = vmul.f32 %v599, %v635
      %v676 = vmul.f32 %v600, %v631
      %v677 = vmul.f32 %v601, %v635
      %v678 = vmul.f32 %v602, %v631
      %v679 = vmul.f32 %v603, %v635
      %v680 = vmul.f32 %v604, %v631
      %v681 = vmul.f32 %v605, %v635
      %v682 = vmul.f32 %v606, %v631
      %v683 = vmul.f32 %v607, %v635
      %v684 = vmul.f32 %v608, %v631
      %v685 = vmul.f32 %v609, %v635
      %v686 = vmul.f32 %v610, %v631
      %v687 = vmul.f32 %v611, %v635
      %v688 = vmul.f32 %v612, %v631
      %v689 = vmul.f32 %v613, %v635
      %v690 = vmul.f32 %v614, %v631
      %v691 = vmul.f32 %v615, %v635
      %v692 = vmul.f32 %v616, %v631
      %v693 = vmul.f32 %v617, %v635
      %v694 = vmul.f32 %v618, %v631
      %v695 = vmul.f32 %v619, %v635
      %v696 = vmul.f32 %v620, %v631
      %v697 = vmul.f32 %v621, %v635
      %v698 = vmul.f32 %v622, %v631
      %v699 = vmul.f32 %v623, %v635
      %v700 = vmul.f32 %v624, %v631
      %v701 = vmul.f32 %v625, %v635
      %v702 = vpack.c.bf16 %v640, %v638
      %v703 = vpack.c.bf16 %v641, %v639
      %v704 = vpack.c.bf16 %v644, %v642
      %v705 = vpack.c.bf16 %v645, %v643
      %v706 = vpack.c.bf16 %v648, %v646
      %v707 = vpack.c.bf16 %v649, %v647
      %v708 = vpack.c.bf16 %v652, %v650
      %v709 = vpack.c.bf16 %v653, %v651
      %v710 = vpack.c.bf16 %v656, %v654
      %v711 = vpack.c.bf16 %v657, %v655
      %v712 = vpack.c.bf16 %v660, %v658
      %v713 = vpack.c.bf16 %v661, %v659
      %v714 = vpack.c.bf16 %v664, %v662
      %v715 = vpack.c.bf16 %v665, %v663
      %v716 = vpack.c.bf16 %v668, %v666
      %v717 = vpack.c.bf16 %v669, %v667
      %v718 = vpack.c.bf16 %v672, %v670
      %v719 = vpack.c.bf16 %v673, %v671
      %v720 = vpack.c.bf16 %v676, %v674
      %v721 = vpack.c.bf16 %v677, %v675
      %v722 = vpack.c.bf16 %v680, %v678
      %v723 = vpack.c.bf16 %v681, %v679
      %v724 = vpack.c.bf16 %v684, %v682
      %v725 = vpack.c.bf16 %v685, %v683
      %v726 = vpack.c.bf16 %v688, %v686
      %v727 = vpack.c.bf16 %v689, %v687
      %v728 = vpack.c.bf16 %v692, %v690
      %v729 = vpack.c.bf16 %v693, %v691
      %v730 = vpack.c.bf16 %v696, %v694
      %v731 = vpack.c.bf16 %v697, %v695
      %v732 = vpack.c.bf16 %v700, %v698
      %v733 = vpack.c.bf16 %v701, %v699
      %v734 = vld [vmem:[%s3] sm:$0xff]
      %v735 = vld [vmem:[%s3 + $0x8] sm:$0xff]
      %v736 = vld [vmem:[%s3 + $0x10] sm:$0xff]
      %v737 = vld [vmem:[%s3 + $0x18] sm:$0xff]
      %v738 = vld [vmem:[%s3 + $0x20] sm:$0xff]
      %v739 = vld [vmem:[%s3 + $0x28] sm:$0xff]
      %v740 = vld [vmem:[%s3 + $0x30] sm:$0xff]
      %v741 = vld [vmem:[%s3 + $0x38] sm:$0xff]
      %v742 = vld [vmem:[%s3 + $0x40] sm:$0xff]
      %v743 = vld [vmem:[%s3 + $0x48] sm:$0xff]
      %v744 = vld [vmem:[%s3 + $0x50] sm:$0xff]
      %v745 = vld [vmem:[%s3 + $0x58] sm:$0xff]
      %v746 = vld [vmem:[%s3 + $0x60] sm:$0xff]
      %v747 = vld [vmem:[%s3 + $0x68] sm:$0xff]
      %v748 = vld [vmem:[%s3 + $0x70] sm:$0xff]
      %v749 = vld [vmem:[%s3 + $0x78] sm:$0xff]
      %v750 = vld [vmem:[%s3 + $0x80] sm:$0xff]
      %v751 = vld [vmem:[%s3 + $0x88] sm:$0xff]
      %v752 = vld [vmem:[%s3 + $0x90] sm:$0xff]
      %v753 = vld [vmem:[%s3 + $0x98] sm:$0xff]
      %v754 = vld [vmem:[%s3 + $0xa0] sm:$0xff]
      %v755 = vld [vmem:[%s3 + $0xa8] sm:$0xff]
      %v756 = vld [vmem:[%s3 + $0xb0] sm:$0xff]
      %v757 = vld [vmem:[%s3 + $0xb8] sm:$0xff]
      %v758 = vld [vmem:[%s3 + $0xc0] sm:$0xff]
      %v759 = vld [vmem:[%s3 + $0xc8] sm:$0xff]
      %v760 = vld [vmem:[%s3 + $0xd0] sm:$0xff]
      %v761 = vld [vmem:[%s3 + $0xd8] sm:$0xff]
      %v762 = vld [vmem:[%s3 + $0xe0] sm:$0xff]
      %v763 = vld [vmem:[%s3 + $0xe8] sm:$0xff]
      %v764 = vld [vmem:[%s3 + $0xf0] sm:$0xff]
      %v765 = vld [vmem:[%s3 + $0xf8] sm:$0xff]
      %v766 = vld [vmem:[%s4] sm:$0x3]
      %v768 = vlaneseq
      %v769 = vshrl.u32 %v768, 7
      %v770 = vsub.s32 0, %v769
      %v771 = vrot.slane %v766, %v770
      %v772 = vlaneseq
      %v773 = vshrl.u32 %v772, 7
      %v774 = vsub.s32 1, %v773
      %v775 = vrot.slane %v766, %v774
      %v810 = vunpack.c.l.b16 %v734
      %v811 = vunpack.c.h.b16 %v734
      %v812 = vunpack.c.l.b16 %v735
      %v813 = vunpack.c.h.b16 %v735
      %v814 = vunpack.c.l.b16 %v736
      %v815 = vunpack.c.h.b16 %v736
      %v816 = vunpack.c.l.b16 %v737
      %v817 = vunpack.c.h.b16 %v737
      %v818 = vunpack.c.l.b16 %v738
      %v819 = vunpack.c.h.b16 %v738
      %v820 = vunpack.c.l.b16 %v739
      %v821 = vunpack.c.h.b16 %v739
      %v822 = vunpack.c.l.b16 %v740
      %v823 = vunpack.c.h.b16 %v740
      %v824 = vunpack.c.l.b16 %v741
      %v825 = vunpack.c.h.b16 %v741
      %v826 = vunpack.c.l.b16 %v742
      %v827 = vunpack.c.h.b16 %v742
      %v828 = vunpack.c.l.b16 %v743
      %v829 = vunpack.c.h.b16 %v743
      %v830 = vunpack.c.l.b16 %v744
      %v831 = vunpack.c.h.b16 %v744
      %v832 = vunpack.c.l.b16 %v745
      %v833 = vunpack.c.h.b16 %v745
      %v834 = vunpack.c.l.b16 %v746
      %v835 = vunpack.c.h.b16 %v746
      %v836 = vunpack.c.l.b16 %v747
      %v837 = vunpack.c.h.b16 %v747
      %v838 = vunpack.c.l.b16 %v748
      %v839 = vunpack.c.h.b16 %v748
      %v840 = vunpack.c.l.b16 %v749
      %v841 = vunpack.c.h.b16 %v749
      %v842 = vunpack.c.l.b16 %v750
      %v843 = vunpack.c.h.b16 %v750
      %v844 = vunpack.c.l.b16 %v751
      %v845 = vunpack.c.h.b16 %v751
      %v846 = vunpack.c.l.b16 %v752
      %v847 = vunpack.c.h.b16 %v752
      %v848 = vunpack.c.l.b16 %v753
      %v849 = vunpack.c.h.b16 %v753
      %v850 = vunpack.c.l.b16 %v754
      %v851 = vunpack.c.h.b16 %v754
      %v852 = vunpack.c.l.b16 %v755
      %v853 = vunpack.c.h.b16 %v755
      %v854 = vunpack.c.l.b16 %v756
      %v855 = vunpack.c.h.b16 %v756
      %v856 = vunpack.c.l.b16 %v757
      %v857 = vunpack.c.h.b16 %v757
      %v858 = vunpack.c.l.b16 %v758
      %v859 = vunpack.c.h.b16 %v758
      %v860 = vunpack.c.l.b16 %v759
      %v861 = vunpack.c.h.b16 %v759
      %v862 = vunpack.c.l.b16 %v760
      %v863 = vunpack.c.h.b16 %v760
      %v864 = vunpack.c.l.b16 %v761
      %v865 = vunpack.c.h.b16 %v761
      %v866 = vunpack.c.l.b16 %v762
      %v867 = vunpack.c.h.b16 %v762
      %v868 = vunpack.c.l.b16 %v763
      %v869 = vunpack.c.h.b16 %v763
      %v870 = vunpack.c.l.b16 %v764
      %v871 = vunpack.c.h.b16 %v764
      %v872 = vunpack.c.l.b16 %v765
      %v873 = vunpack.c.h.b16 %v765
      %v874 = vpack.c.b16 %v812, %v810
      %v875 = vpack.c.b16 %v813, %v811
      %v876 = vpack.c.b16 %v816, %v814
      %v877 = vpack.c.b16 %v817, %v815
      %v878 = vpack.c.b16 %v820, %v818
      %v879 = vpack.c.b16 %v821, %v819
      %v880 = vpack.c.b16 %v824, %v822
      %v881 = vpack.c.b16 %v825, %v823
      %v882 = vpack.c.b16 %v828, %v826
      %v883 = vpack.c.b16 %v829, %v827
      %v884 = vpack.c.b16 %v832, %v830
      %v885 = vpack.c.b16 %v833, %v831
      %v886 = vpack.c.b16 %v836, %v834
      %v887 = vpack.c.b16 %v837, %v835
      %v888 = vpack.c.b16 %v840, %v838
      %v889 = vpack.c.b16 %v841, %v839
      %v890 = vpack.c.b16 %v844, %v842
      %v891 = vpack.c.b16 %v845, %v843
      %v892 = vpack.c.b16 %v848, %v846
      %v893 = vpack.c.b16 %v849, %v847
      %v894 = vpack.c.b16 %v852, %v850
      %v895 = vpack.c.b16 %v853, %v851
      %v896 = vpack.c.b16 %v856, %v854
      %v897 = vpack.c.b16 %v857, %v855
      %v898 = vpack.c.b16 %v860, %v858
      %v899 = vpack.c.b16 %v861, %v859
      %v900 = vpack.c.b16 %v864, %v862
      %v901 = vpack.c.b16 %v865, %v863
      %v902 = vpack.c.b16 %v868, %v866
      %v903 = vpack.c.b16 %v869, %v867
      %v904 = vpack.c.b16 %v872, %v870
      %v905 = vpack.c.b16 %v873, %v871
      %938 = vmatprep.subr.bf16.mxu0 %v875
      %939 = vmatpush1.bf16.msra.mxu0 %v874
      %940 = vmatprep.subr.bf16.mxu0 %v877
      %941 = vmatpush1.bf16.msra.mxu0 %v876
      %942 = vmatprep.subr.bf16.mxu0 %v879
      %943 = vmatpush1.bf16.msra.mxu0 %v878
      %944 = vmatprep.subr.bf16.mxu0 %v881
      %945 = vmatpush1.bf16.msra.mxu0 %v880
      %946 = vmatprep.subr.bf16.mxu0 %v883
      %947 = vmatpush1.bf16.msra.mxu0 %v882
      %948 = vmatprep.subr.bf16.mxu0 %v885
      %949 = vmatpush1.bf16.msra.mxu0 %v884
      %950 = vmatprep.subr.bf16.mxu0 %v887
      %951 = vmatpush1.bf16.msra.mxu0 %v886
      %952 = vmatprep.subr.bf16.mxu0 %v889
      %953 = vmatpush1.bf16.msra.mxu0 %v888
      %954 = vmatprep.subr.bf16.mxu0 %v891
      %955 = vmatpush1.bf16.msra.mxu0 %v890
      %956 = vmatprep.subr.bf16.mxu0 %v893
      %957 = vmatpush1.bf16.msra.mxu0 %v892
      %958 = vmatprep.subr.bf16.mxu0 %v895
      %959 = vmatpush1.bf16.msra.mxu0 %v894
      %960 = vmatprep.subr.bf16.mxu0 %v897
      %961 = vmatpush1.bf16.msra.mxu0 %v896
      %962 = vmatprep.subr.bf16.mxu0 %v899
      %963 = vmatpush1.bf16.msra.mxu0 %v898
      %964 = vmatprep.subr.bf16.mxu0 %v901
      %965 = vmatpush1.bf16.msra.mxu0 %v900
      %966 = vmatprep.subr.bf16.mxu0 %v903
      %967 = vmatpush1.bf16.msra.mxu0 %v902
      %968 = vmatprep.subr.bf16.mxu0 %v905
      %969 = vmatpush1.bf16.msra.mxu0 %v904
      %970 = vmatprep.mubr.bf16.mxu0 %v703
      %971 = vmatmul.mubr.bf16.gmra.mrb[0].mxu0 %v702
      %v972 = vpop.f32.mrb[0].mxu0
      %v973 = vadd.f32 %v771, %v972
      %v974 = vpop.f32.mrb[0].mxu0
      %v975 = vadd.f32 %v775, %v974
      %v976 = vpop.f32.mrb[0].mxu0
      %v977 = vadd.f32 %v771, %v976
      %v978 = vpop.f32.mrb[0].mxu0
      %v979 = vadd.f32 %v775, %v978
      %980 = vmatprep.mubr.bf16.mxu0 %v705
      %981 = vmatmul.mubr.bf16.gmra.mrb[0].mxu0 %v704
      %v982 = vpop.f32.mrb[0].mxu0
      %v983 = vadd.f32 %v771, %v982
      %v984 = vpop.f32.mrb[0].mxu0
      %v985 = vadd.f32 %v775, %v984
      %v986 = vpop.f32.mrb[0].mxu0
      %v987 = vadd.f32 %v771, %v986
      %v988 = vpop.f32.mrb[0].mxu0
      %v989 = vadd.f32 %v775, %v988
      %990 = vmatprep.mubr.bf16.mxu0 %v707
      %991 = vmatmul.mubr.bf16.gmra.mrb[0].mxu0 %v706
      %v992 = vpop.f32.mrb[0].mxu0
      %v993 = vadd.f32 %v771, %v992
      %v994 = vpop.f32.mrb[0].mxu0
      %v995 = vadd.f32 %v775, %v994
      %v996 = vpop.f32.mrb[0].mxu0
      %v997 = vadd.f32 %v771, %v996
      %v998 = vpop.f32.mrb[0].mxu0
      %v999 = vadd.f32 %v775, %v998
      %1000 = vmatprep.mubr.bf16.mxu0 %v709
      %1001 = vmatmul.mubr.bf16.gmra.mrb[0].mxu0 %v708
      %v1002 = vpop.f32.mrb[0].mxu0
      %v1003 = vadd.f32 %v771, %v1002
      %v1004 = vpop.f32.mrb[0].mxu0
      %v1005 = vadd.f32 %v775, %v1004
      %v1006 = vpop.f32.mrb[0].mxu0
      %v1007 = vadd.f32 %v771, %v1006
      %v1008 = vpop.f32.mrb[0].mxu0
      %v1009 = vadd.f32 %v775, %v1008
      %1010 = vmatprep.mubr.bf16.mxu0 %v711
      %1011 = vmatmul.mubr.bf16.gmra.mrb[0].mxu0 %v710
      %v1012 = vpop.f32.mrb[0].mxu0
      %v1013 = vadd.f32 %v771, %v1012
      %v1014 = vpop.f32.mrb[0].mxu0
      %v1015 = vadd.f32 %v775, %v1014
      %v1016 = vpop.f32.mrb[0].mxu0
      %v1017 = vadd.f32 %v771, %v1016
      %v1018 = vpop.f32.mrb[0].mxu0
      %v1019 = vadd.f32 %v775, %v1018
      %1020 = vmatprep.mubr.bf16.mxu0 %v713
      %1021 = vmatmul.mubr.bf16.gmra.mrb[0].mxu0 %v712
      %v1022 = vpop.f32.mrb[0].mxu0
      %v1023 = vadd.f32 %v771, %v1022
      %v1024 = vpop.f32.mrb[0].mxu0
      %v1025 = vadd.f32 %v775, %v1024
      %v1026 = vpop.f32.mrb[0].mxu0
      %v1027 = vadd.f32 %v771, %v1026
      %v1028 = vpop.f32.mrb[0].mxu0
      %v1029 = vadd.f32 %v775, %v1028
      %1030 = vmatprep.mubr.bf16.mxu0 %v715
      %1031 = vmatmul.mubr.bf16.gmra.mrb[0].mxu0 %v714
      %v1032 = vpop.f32.mrb[0].mxu0
      %v1033 = vadd.f32 %v771, %v1032
      %v1034 = vpop.f32.mrb[0].mxu0
      %v1035 = vadd.f32 %v775, %v1034
      %v1036 = vpop.f32.mrb[0].mxu0
      %v1037 = vadd.f32 %v771, %v1036
      %v1038 = vpop.f32.mrb[0].mxu0
      %v1039 = vadd.f32 %v775, %v1038
      %1040 = vmatprep.mubr.bf16.mxu0 %v717
      %1041 = vmatmul.mubr.bf16.gmra.mrb[0].mxu0 %v716
      %v1042 = vpop.f32.mrb[0].mxu0
      %v1043 = vadd.f32 %v771, %v1042
      %v1044 = vpop.f32.mrb[0].mxu0
      %v1045 = vadd.f32 %v775, %v1044
      %v1046 = vpop.f32.mrb[0].mxu0
      %v1047 = vadd.f32 %v771, %v1046
      %v1048 = vpop.f32.mrb[0].mxu0
      %v1049 = vadd.f32 %v775, %v1048
      %1050 = vmatprep.mubr.bf16.mxu0 %v719
      %1051 = vmatmul.mubr.bf16.gmra.mrb[0].mxu0 %v718
      %v1052 = vpop.f32.mrb[0].mxu0
      %v1053 = vadd.f32 %v771, %v1052
      %v1054 = vpop.f32.mrb[0].mxu0
      %v1055 = vadd.f32 %v775, %v1054
      %v1056 = vpop.f32.mrb[0].mxu0
      %v1057 = vadd.f32 %v771, %v1056
      %v1058 = vpop.f32.mrb[0].mxu0
      %v1059 = vadd.f32 %v775, %v1058
      %1060 = vmatprep.mubr.bf16.mxu0 %v721
      %1061 = vmatmul.mubr.bf16.gmra.mrb[0].mxu0 %v720
      %v1062 = vpop.f32.mrb[0].mxu0
      %v1063 = vadd.f32 %v771, %v1062
      %v1064 = vpop.f32.mrb[0].mxu0
      %v1065 = vadd.f32 %v775, %v1064
      %v1066 = vpop.f32.mrb[0].mxu0
      %v1067 = vadd.f32 %v771, %v1066
      %v1068 = vpop.f32.mrb[0].mxu0
      %v1069 = vadd.f32 %v775, %v1068
      %1070 = vmatprep.mubr.bf16.mxu0 %v723
      %1071 = vmatmul.mubr.bf16.gmra.mrb[0].mxu0 %v722
      %v1072 = vpop.f32.mrb[0].mxu0
      %v1073 = vadd.f32 %v771, %v1072
      %v1074 = vpop.f32.mrb[0].mxu0
      %v1075 = vadd.f32 %v775, %v1074
      %v1076 = vpop.f32.mrb[0].mxu0
      %v1077 = vadd.f32 %v771, %v1076
      %v1078 = vpop.f32.mrb[0].mxu0
      %v1079 = vadd.f32 %v775, %v1078
      %1080 = vmatprep.mubr.bf16.mxu0 %v725
      %1081 = vmatmul.mubr.bf16.gmra.mrb[0].mxu0 %v724
      %v1082 = vpop.f32.mrb[0].mxu0
      %v1083 = vadd.f32 %v771, %v1082
      %v1084 = vpop.f32.mrb[0].mxu0
      %v1085 = vadd.f32 %v775, %v1084
      %v1086 = vpop.f32.mrb[0].mxu0
      %v1087 = vadd.f32 %v771, %v1086
      %v1088 = vpop.f32.mrb[0].mxu0
      %v1089 = vadd.f32 %v775, %v1088
      %1090 = vmatprep.mubr.bf16.mxu0 %v727
      %1091 = vmatmul.mubr.bf16.gmra.mrb[0].mxu0 %v726
      %v1092 = vpop.f32.mrb[0].mxu0
      %v1093 = vadd.f32 %v771, %v1092
      %v1094 = vpop.f32.mrb[0].mxu0
      %v1095 = vadd.f32 %v775, %v1094
      %v1096 = vpop.f32.mrb[0].mxu0
      %v1097 = vadd.f32 %v771, %v1096
      %v1098 = vpop.f32.mrb[0].mxu0
      %v1099 = vadd.f32 %v775, %v1098
      %1100 = vmatprep.mubr.bf16.mxu0 %v729
      %1101 = vmatmul.mubr.bf16.gmra.mrb[0].mxu0 %v728
      %v1102 = vpop.f32.mrb[0].mxu0
      %v1103 = vadd.f32 %v771, %v1102
      %v1104 = vpop.f32.mrb[0].mxu0
      %v1105 = vadd.f32 %v775, %v1104
      %v1106 = vpop.f32.mrb[0].mxu0
      %v1107 = vadd.f32 %v771, %v1106
      %v1108 = vpop.f32.mrb[0].mxu0
      %v1109 = vadd.f32 %v775, %v1108
      %1110 = vmatprep.mubr.bf16.mxu0 %v731
      %1111 = vmatmul.mubr.bf16.gmra.mrb[0].mxu0 %v730
      %v1112 = vpop.f32.mrb[0].mxu0
      %v1113 = vadd.f32 %v771, %v1112
      %v1114 = vpop.f32.mrb[0].mxu0
      %v1115 = vadd.f32 %v775, %v1114
      %v1116 = vpop.f32.mrb[0].mxu0
      %v1117 = vadd.f32 %v771, %v1116
      %v1118 = vpop.f32.mrb[0].mxu0
      %v1119 = vadd.f32 %v775, %v1118
      %1120 = vmatprep.mubr.bf16.mxu0 %v733
      %1121 = vmatmul.mubr.bf16.gmra.mrb[0].mxu0 %v732
      %v1122 = vpop.f32.mrb[0].mxu0
      %v1123 = vadd.f32 %v771, %v1122
      %v1124 = vpop.f32.mrb[0].mxu0
      %v1125 = vadd.f32 %v775, %v1124
      %v1126 = vpop.f32.mrb[0].mxu0
      %v1127 = vadd.f32 %v771, %v1126
      %v1128 = vpop.f32.mrb[0].mxu0
      %v1129 = vadd.f32 %v775, %v1128
      %1130 = vdwg.mxu0
      %v1131 = vmax.f32 %v973, 0.0
      %v1132 = vmax.f32 %v975, 0.0
      %v1133 = vmax.f32 %v977, 0.0
      %v1134 = vmax.f32 %v979, 0.0
      %v1135 = vmax.f32 %v983, 0.0
      %v1136 = vmax.f32 %v985, 0.0
      %v1137 = vmax.f32 %v987, 0.0
      %v1138 = vmax.f32 %v989, 0.0
      %v1139 = vmax.f32 %v993, 0.0
      %v1140 = vmax.f32 %v995, 0.0
      %v1141 = vmax.f32 %v997, 0.0
      %v1142 = vmax.f32 %v999, 0.0
      %v1143 = vmax.f32 %v1003, 0.0
      %v1144 = vmax.f32 %v1005, 0.0
      %v1145 = vmax.f32 %v1007, 0.0
      %v1146 = vmax.f32 %v1009, 0.0
      %v1147 = vmax.f32 %v1013, 0.0
      %v1148 = vmax.f32 %v1015, 0.0
      %v1149 = vmax.f32 %v1017, 0.0
      %v1150 = vmax.f32 %v1019, 0.0
      %v1151 = vmax.f32 %v1023, 0.0
      %v1152 = vmax.f32 %v1025, 0.0
      %v1153 = vmax.f32 %v1027, 0.0
      %v1154 = vmax.f32 %v1029, 0.0
      %v1155 = vmax.f32 %v1033, 0.0
      %v1156 = vmax.f32 %v1035, 0.0
      %v1157 = vmax.f32 %v1037, 0.0
      %v1158 = vmax.f32 %v1039, 0.0
      %v1159 = vmax.f32 %v1043, 0.0
      %v1160 = vmax.f32 %v1045, 0.0
      %v1161 = vmax.f32 %v1047, 0.0
      %v1162 = vmax.f32 %v1049, 0.0
      %v1163 = vmax.f32 %v1053, 0.0
      %v1164 = vmax.f32 %v1055, 0.0
      %v1165 = vmax.f32 %v1057, 0.0
      %v1166 = vmax.f32 %v1059, 0.0
      %v1167 = vmax.f32 %v1063, 0.0
      %v1168 = vmax.f32 %v1065, 0.0
      %v1169 = vmax.f32 %v1067, 0.0
      %v1170 = vmax.f32 %v1069, 0.0
      %v1171 = vmax.f32 %v1073, 0.0
      %v1172 = vmax.f32 %v1075, 0.0
      %v1173 = vmax.f32 %v1077, 0.0
      %v1174 = vmax.f32 %v1079, 0.0
      %v1175 = vmax.f32 %v1083, 0.0
      %v1176 = vmax.f32 %v1085, 0.0
      %v1177 = vmax.f32 %v1087, 0.0
      %v1178 = vmax.f32 %v1089, 0.0
      %v1179 = vmax.f32 %v1093, 0.0
      %v1180 = vmax.f32 %v1095, 0.0
      %v1181 = vmax.f32 %v1097, 0.0
      %v1182 = vmax.f32 %v1099, 0.0
      %v1183 = vmax.f32 %v1103, 0.0
      %v1184 = vmax.f32 %v1105, 0.0
      %v1185 = vmax.f32 %v1107, 0.0
      %v1186 = vmax.f32 %v1109, 0.0
      %v1187 = vmax.f32 %v1113, 0.0
      %v1188 = vmax.f32 %v1115, 0.0
      %v1189 = vmax.f32 %v1117, 0.0
      %v1190 = vmax.f32 %v1119, 0.0
      %v1191 = vmax.f32 %v1123, 0.0
      %v1192 = vmax.f32 %v1125, 0.0
      %v1193 = vmax.f32 %v1127, 0.0
      %v1194 = vmax.f32 %v1129, 0.0
      %v1195 = vpack.c.bf16 %v1133, %v1131
      %v1196 = vpack.c.bf16 %v1134, %v1132
      %v1197 = vpack.c.bf16 %v1137, %v1135
      %v1198 = vpack.c.bf16 %v1138, %v1136
      %v1199 = vpack.c.bf16 %v1141, %v1139
      %v1200 = vpack.c.bf16 %v1142, %v1140
      %v1201 = vpack.c.bf16 %v1145, %v1143
      %v1202 = vpack.c.bf16 %v1146, %v1144
      %v1203 = vpack.c.bf16 %v1149, %v1147
      %v1204 = vpack.c.bf16 %v1150, %v1148
      %v1205 = vpack.c.bf16 %v1153, %v1151
      %v1206 = vpack.c.bf16 %v1154, %v1152
      %v1207 = vpack.c.bf16 %v1157, %v1155
      %v1208 = vpack.c.bf16 %v1158, %v1156
      %v1209 = vpack.c.bf16 %v1161, %v1159
      %v1210 = vpack.c.bf16 %v1162, %v1160
      %v1211 = vpack.c.bf16 %v1165, %v1163
      %v1212 = vpack.c.bf16 %v1166, %v1164
      %v1213 = vpack.c.bf16 %v1169, %v1167
      %v1214 = vpack.c.bf16 %v1170, %v1168
      %v1215 = vpack.c.bf16 %v1173, %v1171
      %v1216 = vpack.c.bf16 %v1174, %v1172
      %v1217 = vpack.c.bf16 %v1177, %v1175
      %v1218 = vpack.c.bf16 %v1178, %v1176
      %v1219 = vpack.c.bf16 %v1181, %v1179
      %v1220 = vpack.c.bf16 %v1182, %v1180
      %v1221 = vpack.c.bf16 %v1185, %v1183
      %v1222 = vpack.c.bf16 %v1186, %v1184
      %v1223 = vpack.c.bf16 %v1189, %v1187
      %v1224 = vpack.c.bf16 %v1190, %v1188
      %v1225 = vpack.c.bf16 %v1193, %v1191
      %v1226 = vpack.c.bf16 %v1194, %v1192
      %v1227 = vld [vmem:[%s5] sm:$0xff]
      %v1228 = vld [vmem:[%s5 + $0x8] sm:$0xff]
      %v1229 = vld [vmem:[%s5 + $0x10] sm:$0xff]
      %v1230 = vld [vmem:[%s5 + $0x18] sm:$0xff]
      %v1231 = vld [vmem:[%s5 + $0x20] sm:$0xff]
      %v1232 = vld [vmem:[%s5 + $0x28] sm:$0xff]
      %v1233 = vld [vmem:[%s5 + $0x30] sm:$0xff]
      %v1234 = vld [vmem:[%s5 + $0x38] sm:$0xff]
      %v1235 = vld [vmem:[%s5 + $0x40] sm:$0xff]
      %v1236 = vld [vmem:[%s5 + $0x48] sm:$0xff]
      %v1237 = vld [vmem:[%s5 + $0x50] sm:$0xff]
      %v1238 = vld [vmem:[%s5 + $0x58] sm:$0xff]
      %v1239 = vld [vmem:[%s5 + $0x60] sm:$0xff]
      %v1240 = vld [vmem:[%s5 + $0x68] sm:$0xff]
      %v1241 = vld [vmem:[%s5 + $0x70] sm:$0xff]
      %v1242 = vld [vmem:[%s5 + $0x78] sm:$0xff]
      %v1243 = vld [vmem:[%s5 + $0x80] sm:$0xff]
      %v1244 = vld [vmem:[%s5 + $0x88] sm:$0xff]
      %v1245 = vld [vmem:[%s5 + $0x90] sm:$0xff]
      %v1246 = vld [vmem:[%s5 + $0x98] sm:$0xff]
      %v1247 = vld [vmem:[%s5 + $0xa0] sm:$0xff]
      %v1248 = vld [vmem:[%s5 + $0xa8] sm:$0xff]
      %v1249 = vld [vmem:[%s5 + $0xb0] sm:$0xff]
      %v1250 = vld [vmem:[%s5 + $0xb8] sm:$0xff]
      %v1251 = vld [vmem:[%s5 + $0xc0] sm:$0xff]
      %v1252 = vld [vmem:[%s5 + $0xc8] sm:$0xff]
      %v1253 = vld [vmem:[%s5 + $0xd0] sm:$0xff]
      %v1254 = vld [vmem:[%s5 + $0xd8] sm:$0xff]
      %v1255 = vld [vmem:[%s5 + $0xe0] sm:$0xff]
      %v1256 = vld [vmem:[%s5 + $0xe8] sm:$0xff]
      %v1257 = vld [vmem:[%s5 + $0xf0] sm:$0xff]
      %v1258 = vld [vmem:[%s5 + $0xf8] sm:$0xff]
      %v1259 = vld [vmem:[%s5 + $0x100] sm:$0xff]
      %v1260 = vld [vmem:[%s5 + $0x108] sm:$0xff]
      %v1261 = vld [vmem:[%s5 + $0x110] sm:$0xff]
      %v1262 = vld [vmem:[%s5 + $0x118] sm:$0xff]
      %v1263 = vld [vmem:[%s5 + $0x120] sm:$0xff]
      %v1264 = vld [vmem:[%s5 + $0x128] sm:$0xff]
      %v1265 = vld [vmem:[%s5 + $0x130] sm:$0xff]
      %v1266 = vld [vmem:[%s5 + $0x138] sm:$0xff]
      %v1267 = vld [vmem:[%s5 + $0x140] sm:$0xff]
      %v1268 = vld [vmem:[%s5 + $0x148] sm:$0xff]
      %v1269 = vld [vmem:[%s5 + $0x150] sm:$0xff]
      %v1270 = vld [vmem:[%s5 + $0x158] sm:$0xff]
      %v1271 = vld [vmem:[%s5 + $0x160] sm:$0xff]
      %v1272 = vld [vmem:[%s5 + $0x168] sm:$0xff]
      %v1273 = vld [vmem:[%s5 + $0x170] sm:$0xff]
      %v1274 = vld [vmem:[%s5 + $0x178] sm:$0xff]
      %v1275 = vld [vmem:[%s5 + $0x180] sm:$0xff]
      %v1276 = vld [vmem:[%s5 + $0x188] sm:$0xff]
      %v1277 = vld [vmem:[%s5 + $0x190] sm:$0xff]
      %v1278 = vld [vmem:[%s5 + $0x198] sm:$0xff]
      %v1279 = vld [vmem:[%s5 + $0x1a0] sm:$0xff]
      %v1280 = vld [vmem:[%s5 + $0x1a8] sm:$0xff]
      %v1281 = vld [vmem:[%s5 + $0x1b0] sm:$0xff]
      %v1282 = vld [vmem:[%s5 + $0x1b8] sm:$0xff]
      %v1283 = vld [vmem:[%s5 + $0x1c0] sm:$0xff]
      %v1284 = vld [vmem:[%s5 + $0x1c8] sm:$0xff]
      %v1285 = vld [vmem:[%s5 + $0x1d0] sm:$0xff]
      %v1286 = vld [vmem:[%s5 + $0x1d8] sm:$0xff]
      %v1287 = vld [vmem:[%s5 + $0x1e0] sm:$0xff]
      %v1288 = vld [vmem:[%s5 + $0x1e8] sm:$0xff]
      %v1289 = vld [vmem:[%s5 + $0x1f0] sm:$0xff]
      %v1290 = vld [vmem:[%s5 + $0x1f8] sm:$0xff]
      %v1291 = vld [vmem:[%s5 + $0x200] sm:$0xff]
      %v1292 = vld [vmem:[%s5 + $0x208] sm:$0xff]
      %v1293 = vld [vmem:[%s5 + $0x210] sm:$0xff]
      %v1294 = vld [vmem:[%s5 + $0x218] sm:$0xff]
      %v1295 = vld [vmem:[%s5 + $0x220] sm:$0xff]
      %v1296 = vld [vmem:[%s5 + $0x228] sm:$0xff]
      %v1297 = vld [vmem:[%s5 + $0x230] sm:$0xff]
      %v1298 = vld [vmem:[%s5 + $0x238] sm:$0xff]
      %v1299 = vld [vmem:[%s5 + $0x240] sm:$0xff]
      %v1300 = vld [vmem:[%s5 + $0x248] sm:$0xff]
      %v1301 = vld [vmem:[%s5 + $0x250] sm:$0xff]
      %v1302 = vld [vmem:[%s5 + $0x258] sm:$0xff]
      %v1303 = vld [vmem:[%s5 + $0x260] sm:$0xff]
      %v1304 = vld [vmem:[%s5 + $0x268] sm:$0xff]
      %v1305 = vld [vmem:[%s5 + $0x270] sm:$0xff]
      %v1306 = vld [vmem:[%s5 + $0x278] sm:$0xff]
      %v1307 = vld [vmem:[%s5 + $0x280] sm:$0xff]
      %v1308 = vld [vmem:[%s5 + $0x288] sm:$0xff]
      %v1309 = vld [vmem:[%s5 + $0x290] sm:$0xff]
      %v1310 = vld [vmem:[%s5 + $0x298] sm:$0xff]
      %v1311 = vld [vmem:[%s5 + $0x2a0] sm:$0xff]
      %v1312 = vld [vmem:[%s5 + $0x2a8] sm:$0xff]
      %v1313 = vld [vmem:[%s5 + $0x2b0] sm:$0xff]
      %v1314 = vld [vmem:[%s5 + $0x2b8] sm:$0xff]
      %v1315 = vld [vmem:[%s5 + $0x2c0] sm:$0xff]
      %v1316 = vld [vmem:[%s5 + $0x2c8] sm:$0xff]
      %v1317 = vld [vmem:[%s5 + $0x2d0] sm:$0xff]
      %v1318 = vld [vmem:[%s5 + $0x2d8] sm:$0xff]
      %v1319 = vld [vmem:[%s5 + $0x2e0] sm:$0xff]
      %v1320 = vld [vmem:[%s5 + $0x2e8] sm:$0xff]
      %v1321 = vld [vmem:[%s5 + $0x2f0] sm:$0xff]
      %v1322 = vld [vmem:[%s5 + $0x2f8] sm:$0xff]
      %v1323 = vld [vmem:[%s5 + $0x300] sm:$0xff]
      %v1324 = vld [vmem:[%s5 + $0x308] sm:$0xff]
      %v1325 = vld [vmem:[%s5 + $0x310] sm:$0xff]
      %v1326 = vld [vmem:[%s5 + $0x318] sm:$0xff]
      %v1327 = vld [vmem:[%s5 + $0x320] sm:$0xff]
      %v1328 = vld [vmem:[%s5 + $0x328] sm:$0xff]
      %v1329 = vld [vmem:[%s5 + $0x330] sm:$0xff]
      %v1330 = vld [vmem:[%s5 + $0x338] sm:$0xff]
      %v1331 = vld [vmem:[%s5 + $0x340] sm:$0xff]
      %v1332 = vld [vmem:[%s5 + $0x348] sm:$0xff]
      %v1333 = vld [vmem:[%s5 + $0x350] sm:$0xff]
      %v1334 = vld [vmem:[%s5 + $0x358] sm:$0xff]
      %v1335 = vld [vmem:[%s5 + $0x360] sm:$0xff]
      %v1336 = vld [vmem:[%s5 + $0x368] sm:$0xff]
      %v1337 = vld [vmem:[%s5 + $0x370] sm:$0xff]
      %v1338 = vld [vmem:[%s5 + $0x378] sm:$0xff]
      %v1339 = vld [vmem:[%s5 + $0x380] sm:$0xff]
      %v1340 = vld [vmem:[%s5 + $0x388] sm:$0xff]
      %v1341 = vld [vmem:[%s5 + $0x390] sm:$0xff]
      %v1342 = vld [vmem:[%s5 + $0x398] sm:$0xff]
      %v1343 = vld [vmem:[%s5 + $0x3a0] sm:$0xff]
      %v1344 = vld [vmem:[%s5 + $0x3a8] sm:$0xff]
      %v1345 = vld [vmem:[%s5 + $0x3b0] sm:$0xff]
      %v1346 = vld [vmem:[%s5 + $0x3b8] sm:$0xff]
      %v1347 = vld [vmem:[%s5 + $0x3c0] sm:$0xff]
      %v1348 = vld [vmem:[%s5 + $0x3c8] sm:$0xff]
      %v1349 = vld [vmem:[%s5 + $0x3d0] sm:$0xff]
      %v1350 = vld [vmem:[%s5 + $0x3d8] sm:$0xff]
      %v1351 = vld [vmem:[%s5 + $0x3e0] sm:$0xff]
      %v1352 = vld [vmem:[%s5 + $0x3e8] sm:$0xff]
      %v1353 = vld [vmem:[%s5 + $0x3f0] sm:$0xff]
      %v1354 = vld [vmem:[%s5 + $0x3f8] sm:$0xff]
      %v1355 = vld [vmem:[%s5 + $0x400] sm:$0xff]
      %v1356 = vld [vmem:[%s5 + $0x408] sm:$0xff]
      %v1357 = vld [vmem:[%s5 + $0x410] sm:$0xff]
      %v1358 = vld [vmem:[%s5 + $0x418] sm:$0xff]
      %v1359 = vld [vmem:[%s5 + $0x420] sm:$0xff]
      %v1360 = vld [vmem:[%s5 + $0x428] sm:$0xff]
      %v1361 = vld [vmem:[%s5 + $0x430] sm:$0xff]
      %v1362 = vld [vmem:[%s5 + $0x438] sm:$0xff]
      %v1363 = vld [vmem:[%s5 + $0x440] sm:$0xff]
      %v1364 = vld [vmem:[%s5 + $0x448] sm:$0xff]
      %v1365 = vld [vmem:[%s5 + $0x450] sm:$0xff]
      %v1366 = vld [vmem:[%s5 + $0x458] sm:$0xff]
      %v1367 = vld [vmem:[%s5 + $0x460] sm:$0xff]
      %v1368 = vld [vmem:[%s5 + $0x468] sm:$0xff]
      %v1369 = vld [vmem:[%s5 + $0x470] sm:$0xff]
      %v1370 = vld [vmem:[%s5 + $0x478] sm:$0xff]
      %v1371 = vld [vmem:[%s5 + $0x480] sm:$0xff]
      %v1372 = vld [vmem:[%s5 + $0x488] sm:$0xff]
      %v1373 = vld [vmem:[%s5 + $0x490] sm:$0xff]
      %v1374 = vld [vmem:[%s5 + $0x498] sm:$0xff]
      %v1375 = vld [vmem:[%s5 + $0x4a0] sm:$0xff]
      %v1376 = vld [vmem:[%s5 + $0x4a8] sm:$0xff]
      %v1377 = vld [vmem:[%s5 + $0x4b0] sm:$0xff]
      %v1378 = vld [vmem:[%s5 + $0x4b8] sm:$0xff]
      %v1379 = vld [vmem:[%s5 + $0x4c0] sm:$0xff]
      %v1380 = vld [vmem:[%s5 + $0x4c8] sm:$0xff]
      %v1381 = vld [vmem:[%s5 + $0x4d0] sm:$0xff]
      %v1382 = vld [vmem:[%s5 + $0x4d8] sm:$0xff]
      %v1383 = vld [vmem:[%s5 + $0x4e0] sm:$0xff]
      %v1384 = vld [vmem:[%s5 + $0x4e8] sm:$0xff]
      %v1385 = vld [vmem:[%s5 + $0x4f0] sm:$0xff]
      %v1386 = vld [vmem:[%s5 + $0x4f8] sm:$0xff]
      %v1387 = vld [vmem:[%s5 + $0x500] sm:$0xff]
      %v1388 = vld [vmem:[%s5 + $0x508] sm:$0xff]
      %v1389 = vld [vmem:[%s5 + $0x510] sm:$0xff]
      %v1390 = vld [vmem:[%s5 + $0x518] sm:$0xff]
      %v1391 = vld [vmem:[%s5 + $0x520] sm:$0xff]
      %v1392 = vld [vmem:[%s5 + $0x528] sm:$0xff]
      %v1393 = vld [vmem:[%s5 + $0x530] sm:$0xff]
      %v1394 = vld [vmem:[%s5 + $0x538] sm:$0xff]
      %v1395 = vld [vmem:[%s5 + $0x540] sm:$0xff]
      %v1396 = vld [vmem:[%s5 + $0x548] sm:$0xff]
      %v1397 = vld [vmem:[%s5 + $0x550] sm:$0xff]
      %v1398 = vld [vmem:[%s5 + $0x558] sm:$0xff]
      %v1399 = vld [vmem:[%s5 + $0x560] sm:$0xff]
      %v1400 = vld [vmem:[%s5 + $0x568] sm:$0xff]
      %v1401 = vld [vmem:[%s5 + $0x570] sm:$0xff]
      %v1402 = vld [vmem:[%s5 + $0x578] sm:$0xff]
      %v1403 = vld [vmem:[%s5 + $0x580] sm:$0xff]
      %v1404 = vld [vmem:[%s5 + $0x588] sm:$0xff]
      %v1405 = vld [vmem:[%s5 + $0x590] sm:$0xff]
      %v1406 = vld [vmem:[%s5 + $0x598] sm:$0xff]
      %v1407 = vld [vmem:[%s5 + $0x5a0] sm:$0xff]
      %v1408 = vld [vmem:[%s5 + $0x5a8] sm:$0xff]
      %v1409 = vld [vmem:[%s5 + $0x5b0] sm:$0xff]
      %v1410 = vld [vmem:[%s5 + $0x5b8] sm:$0xff]
      %v1411 = vld [vmem:[%s5 + $0x5c0] sm:$0xff]
      %v1412 = vld [vmem:[%s5 + $0x5c8] sm:$0xff]
      %v1413 = vld [vmem:[%s5 + $0x5d0] sm:$0xff]
      %v1414 = vld [vmem:[%s5 + $0x5d8] sm:$0xff]
      %v1415 = vld [vmem:[%s5 + $0x5e0] sm:$0xff]
      %v1416 = vld [vmem:[%s5 + $0x5e8] sm:$0xff]
      %v1417 = vld [vmem:[%s5 + $0x5f0] sm:$0xff]
      %v1418 = vld [vmem:[%s5 + $0x5f8] sm:$0xff]
      %v1419 = vld [vmem:[%s5 + $0x600] sm:$0xff]
      %v1420 = vld [vmem:[%s5 + $0x608] sm:$0xff]
      %v1421 = vld [vmem:[%s5 + $0x610] sm:$0xff]
      %v1422 = vld [vmem:[%s5 + $0x618] sm:$0xff]
      %v1423 = vld [vmem:[%s5 + $0x620] sm:$0xff]
      %v1424 = vld [vmem:[%s5 + $0x628] sm:$0xff]
      %v1425 = vld [vmem:[%s5 + $0x630] sm:$0xff]
      %v1426 = vld [vmem:[%s5 + $0x638] sm:$0xff]
      %v1427 = vld [vmem:[%s5 + $0x640] sm:$0xff]
      %v1428 = vld [vmem:[%s5 + $0x648] sm:$0xff]
      %v1429 = vld [vmem:[%s5 + $0x650] sm:$0xff]
      %v1430 = vld [vmem:[%s5 + $0x658] sm:$0xff]
      %v1431 = vld [vmem:[%s5 + $0x660] sm:$0xff]
      %v1432 = vld [vmem:[%s5 + $0x668] sm:$0xff]
      %v1433 = vld [vmem:[%s5 + $0x670] sm:$0xff]
      %v1434 = vld [vmem:[%s5 + $0x678] sm:$0xff]
      %v1435 = vld [vmem:[%s5 + $0x680] sm:$0xff]
      %v1436 = vld [vmem:[%s5 + $0x688] sm:$0xff]
      %v1437 = vld [vmem:[%s5 + $0x690] sm:$0xff]
      %v1438 = vld [vmem:[%s5 + $0x698] sm:$0xff]
      %v1439 = vld [vmem:[%s5 + $0x6a0] sm:$0xff]
      %v1440 = vld [vmem:[%s5 + $0x6a8] sm:$0xff]
      %v1441 = vld [vmem:[%s5 + $0x6b0] sm:$0xff]
      %v1442 = vld [vmem:[%s5 + $0x6b8] sm:$0xff]
      %v1443 = vld [vmem:[%s5 + $0x6c0] sm:$0xff]
      %v1444 = vld [vmem:[%s5 + $0x6c8] sm:$0xff]
      %v1445 = vld [vmem:[%s5 + $0x6d0] sm:$0xff]
      %v1446 = vld [vmem:[%s5 + $0x6d8] sm:$0xff]
      %v1447 = vld [vmem:[%s5 + $0x6e0] sm:$0xff]
      %v1448 = vld [vmem:[%s5 + $0x6e8] sm:$0xff]
      %v1449 = vld [vmem:[%s5 + $0x6f0] sm:$0xff]
      %v1450 = vld [vmem:[%s5 + $0x6f8] sm:$0xff]
      %v1451 = vld [vmem:[%s5 + $0x700] sm:$0xff]
      %v1452 = vld [vmem:[%s5 + $0x708] sm:$0xff]
      %v1453 = vld [vmem:[%s5 + $0x710] sm:$0xff]
      %v1454 = vld [vmem:[%s5 + $0x718] sm:$0xff]
      %v1455 = vld [vmem:[%s5 + $0x720] sm:$0xff]
      %v1456 = vld [vmem:[%s5 + $0x728] sm:$0xff]
      %v1457 = vld [vmem:[%s5 + $0x730] sm:$0xff]
      %v1458 = vld [vmem:[%s5 + $0x738] sm:$0xff]
      %v1459 = vld [vmem:[%s5 + $0x740] sm:$0xff]
      %v1460 = vld [vmem:[%s5 + $0x748] sm:$0xff]
      %v1461 = vld [vmem:[%s5 + $0x750] sm:$0xff]
      %v1462 = vld [vmem:[%s5 + $0x758] sm:$0xff]
      %v1463 = vld [vmem:[%s5 + $0x760] sm:$0xff]
      %v1464 = vld [vmem:[%s5 + $0x768] sm:$0xff]
      %v1465 = vld [vmem:[%s5 + $0x770] sm:$0xff]
      %v1466 = vld [vmem:[%s5 + $0x778] sm:$0xff]
      %v1467 = vld [vmem:[%s5 + $0x780] sm:$0xff]
      %v1468 = vld [vmem:[%s5 + $0x788] sm:$0xff]
      %v1469 = vld [vmem:[%s5 + $0x790] sm:$0xff]
      %v1470 = vld [vmem:[%s5 + $0x798] sm:$0xff]
      %v1471 = vld [vmem:[%s5 + $0x7a0] sm:$0xff]
      %v1472 = vld [vmem:[%s5 + $0x7a8] sm:$0xff]
      %v1473 = vld [vmem:[%s5 + $0x7b0] sm:$0xff]
      %v1474 = vld [vmem:[%s5 + $0x7b8] sm:$0xff]
      %v1475 = vld [vmem:[%s5 + $0x7c0] sm:$0xff]
      %v1476 = vld [vmem:[%s5 + $0x7c8] sm:$0xff]
      %v1477 = vld [vmem:[%s5 + $0x7d0] sm:$0xff]
      %v1478 = vld [vmem:[%s5 + $0x7d8] sm:$0xff]
      %v1479 = vld [vmem:[%s5 + $0x7e0] sm:$0xff]
      %v1480 = vld [vmem:[%s5 + $0x7e8] sm:$0xff]
      %v1481 = vld [vmem:[%s5 + $0x7f0] sm:$0xff]
      %v1482 = vld [vmem:[%s5 + $0x7f8] sm:$0xff]
      %v1483 = vld [vmem:[%s6] sm:$0xff]
      %v1484 = vld [vmem:[%s6 + $0x8] sm:$0xff]
      %v1487 = vlaneseq
      %v1488 = vshrl.u32 %v1487, 7
      %v1489 = vsub.s32 0, %v1488
      %v1490 = vrot.slane %v1483, %v1489
      %v1491 = vlaneseq
      %v1492 = vshrl.u32 %v1491, 7
      %v1493 = vsub.s32 1, %v1492
      %v1494 = vrot.slane %v1483, %v1493
      %v1495 = vlaneseq
      %v1496 = vshrl.u32 %v1495, 7
      %v1497 = vsub.s32 2, %v1496
      %v1498 = vrot.slane %v1483, %v1497
      %v1499 = vlaneseq
      %v1500 = vshrl.u32 %v1499, 7
      %v1501 = vsub.s32 3, %v1500
      %v1502 = vrot.slane %v1483, %v1501
      %v1503 = vlaneseq
      %v1504 = vshrl.u32 %v1503, 7
      %v1505 = vsub.s32 4, %v1504
      %v1506 = vrot.slane %v1483, %v1505
      %v1507 = vlaneseq
      %v1508 = vshrl.u32 %v1507, 7
      %v1509 = vsub.s32 5, %v1508
      %v1510 = vrot.slane %v1483, %v1509
      %v1511 = vlaneseq
      %v1512 = vshrl.u32 %v1511, 7
      %v1513 = vsub.s32 6, %v1512
      %v1514 = vrot.slane %v1483, %v1513
      %v1515 = vlaneseq
      %v1516 = vshrl.u32 %v1515, 7
      %v1517 = vsub.s32 7, %v1516
      %v1518 = vrot.slane %v1483, %v1517
      %v1519 = vlaneseq
      %v1520 = vshrl.u32 %v1519, 7
      %v1521 = vsub.s32 0, %v1520
      %v1522 = vrot.slane %v1484, %v1521
      %v1523 = vlaneseq
      %v1524 = vshrl.u32 %v1523, 7
      %v1525 = vsub.s32 1, %v1524
      %v1526 = vrot.slane %v1484, %v1525
      %v1527 = vlaneseq
      %v1528 = vshrl.u32 %v1527, 7
      %v1529 = vsub.s32 2, %v1528
      %v1530 = vrot.slane %v1484, %v1529
      %v1531 = vlaneseq
      %v1532 = vshrl.u32 %v1531, 7
      %v1533 = vsub.s32 3, %v1532
      %v1534 = vrot.slane %v1484, %v1533
      %v1535 = vlaneseq
      %v1536 = vshrl.u32 %v1535, 7
      %v1537 = vsub.s32 4, %v1536
      %v1538 = vrot.slane %v1484, %v1537
      %v1539 = vlaneseq
      %v1540 = vshrl.u32 %v1539, 7
      %v1541 = vsub.s32 5, %v1540
      %v1542 = vrot.slane %v1484, %v1541
      %v1543 = vlaneseq
      %v1544 = vshrl.u32 %v1543, 7
      %v1545 = vsub.s32 6, %v1544
      %v1546 = vrot.slane %v1484, %v1545
      %v1547 = vlaneseq
      %v1548 = vshrl.u32 %v1547, 7
      %v1549 = vsub.s32 7, %v1548
      %v1550 = vrot.slane %v1484, %v1549
      %v1823 = vunpack.c.l.b16 %v1227
      %v1824 = vunpack.c.h.b16 %v1227
      %v1825 = vunpack.c.l.b16 %v1228
      %v1826 = vunpack.c.h.b16 %v1228
      %v1827 = vunpack.c.l.b16 %v1229
      %v1828 = vunpack.c.h.b16 %v1229
      %v1829 = vunpack.c.l.b16 %v1230
      %v1830 = vunpack.c.h.b16 %v1230
      %v1831 = vunpack.c.l.b16 %v1231
      %v1832 = vunpack.c.h.b16 %v1231
      %v1833 = vunpack.c.l.b16 %v1232
      %v1834 = vunpack.c.h.b16 %v1232
      %v1835 = vunpack.c.l.b16 %v1233
      %v1836 = vunpack.c.h.b16 %v1233
      %v1837 = vunpack.c.l.b16 %v1234
      %v1838 = vunpack.c.h.b16 %v1234
      %v1839 = vunpack.c.l.b16 %v1235
      %v1840 = vunpack.c.h.b16 %v1235
      %v1841 = vunpack.c.l.b16 %v1236
      %v1842 = vunpack.c.h.b16 %v1236
      %v1843 = vunpack.c.l.b16 %v1237
      %v1844 = vunpack.c.h.b16 %v1237
      %v1845 = vunpack.c.l.b16 %v1238
      %v1846 = vunpack.c.h.b16 %v1238
      %v1847 = vunpack.c.l.b16 %v1239
      %v1848 = vunpack.c.h.b16 %v1239
      %v1849 = vunpack.c.l.b16 %v1240
      %v1850 = vunpack.c.h.b16 %v1240
      %v1851 = vunpack.c.l.b16 %v1241
      %v1852 = vunpack.c.h.b16 %v1241
      %v1853 = vunpack.c.l.b16 %v1242
      %v1854 = vunpack.c.h.b16 %v1242
      %v1855 = vunpack.c.l.b16 %v1243
      %v1856 = vunpack.c.h.b16 %v1243
      %v1857 = vunpack.c.l.b16 %v1244
      %v1858 = vunpack.c.h.b16 %v1244
      %v1859 = vunpack.c.l.b16 %v1245
      %v1860 = vunpack.c.h.b16 %v1245
      %v1861 = vunpack.c.l.b16 %v1246
      %v1862 = vunpack.c.h.b16 %v1246
      %v1863 = vunpack.c.l.b16 %v1247
      %v1864 = vunpack.c.h.b16 %v1247
      %v1865 = vunpack.c.l.b16 %v1248
      %v1866 = vunpack.c.h.b16 %v1248
      %v1867 = vunpack.c.l.b16 %v1249
      %v1868 = vunpack.c.h.b16 %v1249
      %v1869 = vunpack.c.l.b16 %v1250
      %v1870 = vunpack.c.h.b16 %v1250
      %v1871 = vunpack.c.l.b16 %v1251
      %v1872 = vunpack.c.h.b16 %v1251
      %v1873 = vunpack.c.l.b16 %v1252
      %v1874 = vunpack.c.h.b16 %v1252
      %v1875 = vunpack.c.l.b16 %v1253
      %v1876 = vunpack.c.h.b16 %v1253
      %v1877 = vunpack.c.l.b16 %v1254
      %v1878 = vunpack.c.h.b16 %v1254
      %v1879 = vunpack.c.l.b16 %v1255
      %v1880 = vunpack.c.h.b16 %v1255
      %v1881 = vunpack.c.l.b16 %v1256
      %v1882 = vunpack.c.h.b16 %v1256
      %v1883 = vunpack.c.l.b16 %v1257
      %v1884 = vunpack.c.h.b16 %v1257
      %v1885 = vunpack.c.l.b16 %v1258
      %v1886 = vunpack.c.h.b16 %v1258
      %v1887 = vunpack.c.l.b16 %v1259
      %v1888 = vunpack.c.h.b16 %v1259
      %v1889 = vunpack.c.l.b16 %v1260
      %v1890 = vunpack.c.h.b16 %v1260
      %v1891 = vunpack.c.l.b16 %v1261
      %v1892 = vunpack.c.h.b16 %v1261
      %v1893 = vunpack.c.l.b16 %v1262
      %v1894 = vunpack.c.h.b16 %v1262
      %v1895 = vunpack.c.l.b16 %v1263
      %v1896 = vunpack.c.h.b16 %v1263
      %v1897 = vunpack.c.l.b16 %v1264
      %v1898 = vunpack.c.h.b16 %v1264
      %v1899 = vunpack.c.l.b16 %v1265
      %v1900 = vunpack.c.h.b16 %v1265
      %v1901 = vunpack.c.l.b16 %v1266
      %v1902 = vunpack.c.h.b16 %v1266
      %v1903 = vunpack.c.l.b16 %v1267
      %v1904 = vunpack.c.h.b16 %v1267
      %v1905 = vunpack.c.l.b16 %v1268
      %v1906 = vunpack.c.h.b16 %v1268
      %v1907 = vunpack.c.l.b16 %v1269
      %v1908 = vunpack.c.h.b16 %v1269
      %v1909 = vunpack.c.l.b16 %v1270
      %v1910 = vunpack.c.h.b16 %v1270
      %v1911 = vunpack.c.l.b16 %v1271
      %v1912 = vunpack.c.h.b16 %v1271
      %v1913 = vunpack.c.l.b16 %v1272
      %v1914 = vunpack.c.h.b16 %v1272
      %v1915 = vunpack.c.l.b16 %v1273
      %v1916 = vunpack.c.h.b16 %v1273
      %v1917 = vunpack.c.l.b16 %v1274
      %v1918 = vunpack.c.h.b16 %v1274
      %v1919 = vunpack.c.l.b16 %v1275
      %v1920 = vunpack.c.h.b16 %v1275
      %v1921 = vunpack.c.l.b16 %v1276
      %v1922 = vunpack.c.h.b16 %v1276
      %v1923 = vunpack.c.l.b16 %v1277
      %v1924 = vunpack.c.h.b16 %v1277
      %v1925 = vunpack.c.l.b16 %v1278
      %v1926 = vunpack.c.h.b16 %v1278
      %v1927 = vunpack.c.l.b16 %v1279
      %v1928 = vunpack.c.h.b16 %v1279
      %v1929 = vunpack.c.l.b16 %v1280
      %v1930 = vunpack.c.h.b16 %v1280
      %v1931 = vunpack.c.l.b16 %v1281
      %v1932 = vunpack.c.h.b16 %v1281
      %v1933 = vunpack.c.l.b16 %v1282
      %v1934 = vunpack.c.h.b16 %v1282
      %v1935 = vunpack.c.l.b16 %v1283
      %v1936 = vunpack.c.h.b16 %v1283
      %v1937 = vunpack.c.l.b16 %v1284
      %v1938 = vunpack.c.h.b16 %v1284
      %v1939 = vunpack.c.l.b16 %v1285
      %v1940 = vunpack.c.h.b16 %v1285
      %v1941 = vunpack.c.l.b16 %v1286
      %v1942 = vunpack.c.h.b16 %v1286
      %v1943 = vunpack.c.l.b16 %v1287
      %v1944 = vunpack.c.h.b16 %v1287
      %v1945 = vunpack.c.l.b16 %v1288
      %v1946 = vunpack.c.h.b16 %v1288
      %v1947 = vunpack.c.l.b16 %v1289
      %v1948 = vunpack.c.h.b16 %v1289
      %v1949 = vunpack.c.l.b16 %v1290
      %v1950 = vunpack.c.h.b16 %v1290
      %v1951 = vunpack.c.l.b16 %v1291
      %v1952 = vunpack.c.h.b16 %v1291
      %v1953 = vunpack.c.l.b16 %v1292
      %v1954 = vunpack.c.h.b16 %v1292
      %v1955 = vunpack.c.l.b16 %v1293
      %v1956 = vunpack.c.h.b16 %v1293
      %v1957 = vunpack.c.l.b16 %v1294
      %v1958 = vunpack.c.h.b16 %v1294
      %v1959 = vunpack.c.l.b16 %v1295
      %v1960 = vunpack.c.h.b16 %v1295
      %v1961 = vunpack.c.l.b16 %v1296
      %v1962 = vunpack.c.h.b16 %v1296
      %v1963 = vunpack.c.l.b16 %v1297
      %v1964 = vunpack.c.h.b16 %v1297
      %v1965 = vunpack.c.l.b16 %v1298
      %v1966 = vunpack.c.h.b16 %v1298
      %v1967 = vunpack.c.l.b16 %v1299
      %v1968 = vunpack.c.h.b16 %v1299
      %v1969 = vunpack.c.l.b16 %v1300
      %v1970 = vunpack.c.h.b16 %v1300
      %v1971 = vunpack.c.l.b16 %v1301
      %v1972 = vunpack.c.h.b16 %v1301
      %v1973 = vunpack.c.l.b16 %v1302
      %v1974 = vunpack.c.h.b16 %v1302
      %v1975 = vunpack.c.l.b16 %v1303
      %v1976 = vunpack.c.h.b16 %v1303
      %v1977 = vunpack.c.l.b16 %v1304
      %v1978 = vunpack.c.h.b16 %v1304
      %v1979 = vunpack.c.l.b16 %v1305
      %v1980 = vunpack.c.h.b16 %v1305
      %v1981 = vunpack.c.l.b16 %v1306
      %v1982 = vunpack.c.h.b16 %v1306
      %v1983 = vunpack.c.l.b16 %v1307
      %v1984 = vunpack.c.h.b16 %v1307
      %v1985 = vunpack.c.l.b16 %v1308
      %v1986 = vunpack.c.h.b16 %v1308
      %v1987 = vunpack.c.l.b16 %v1309
      %v1988 = vunpack.c.h.b16 %v1309
      %v1989 = vunpack.c.l.b16 %v1310
      %v1990 = vunpack.c.h.b16 %v1310
      %v1991 = vunpack.c.l.b16 %v1311
      %v1992 = vunpack.c.h.b16 %v1311
      %v1993 = vunpack.c.l.b16 %v1312
      %v1994 = vunpack.c.h.b16 %v1312
      %v1995 = vunpack.c.l.b16 %v1313
      %v1996 = vunpack.c.h.b16 %v1313
      %v1997 = vunpack.c.l.b16 %v1314
      %v1998 = vunpack.c.h.b16 %v1314
      %v1999 = vunpack.c.l.b16 %v1315
      %v2000 = vunpack.c.h.b16 %v1315
      %v2001 = vunpack.c.l.b16 %v1316
      %v2002 = vunpack.c.h.b16 %v1316
      %v2003 = vunpack.c.l.b16 %v1317
      %v2004 = vunpack.c.h.b16 %v1317
      %v2005 = vunpack.c.l.b16 %v1318
      %v2006 = vunpack.c.h.b16 %v1318
      %v2007 = vunpack.c.l.b16 %v1319
      %v2008 = vunpack.c.h.b16 %v1319
      %v2009 = vunpack.c.l.b16 %v1320
      %v2010 = vunpack.c.h.b16 %v1320
      %v2011 = vunpack.c.l.b16 %v1321
      %v2012 = vunpack.c.h.b16 %v1321
      %v2013 = vunpack.c.l.b16 %v1322
      %v2014 = vunpack.c.h.b16 %v1322
      %v2015 = vunpack.c.l.b16 %v1323
      %v2016 = vunpack.c.h.b16 %v1323
      %v2017 = vunpack.c.l.b16 %v1324
      %v2018 = vunpack.c.h.b16 %v1324
      %v2019 = vunpack.c.l.b16 %v1325
      %v2020 = vunpack.c.h.b16 %v1325
      %v2021 = vunpack.c.l.b16 %v1326
      %v2022 = vunpack.c.h.b16 %v1326
      %v2023 = vunpack.c.l.b16 %v1327
      %v2024 = vunpack.c.h.b16 %v1327
      %v2025 = vunpack.c.l.b16 %v1328
      %v2026 = vunpack.c.h.b16 %v1328
      %v2027 = vunpack.c.l.b16 %v1329
      %v2028 = vunpack.c.h.b16 %v1329
      %v2029 = vunpack.c.l.b16 %v1330
      %v2030 = vunpack.c.h.b16 %v1330
      %v2031 = vunpack.c.l.b16 %v1331
      %v2032 = vunpack.c.h.b16 %v1331
      %v2033 = vunpack.c.l.b16 %v1332
      %v2034 = vunpack.c.h.b16 %v1332
      %v2035 = vunpack.c.l.b16 %v1333
      %v2036 = vunpack.c.h.b16 %v1333
      %v2037 = vunpack.c.l.b16 %v1334
      %v2038 = vunpack.c.h.b16 %v1334
      %v2039 = vunpack.c.l.b16 %v1335
      %v2040 = vunpack.c.h.b16 %v1335
      %v2041 = vunpack.c.l.b16 %v1336
      %v2042 = vunpack.c.h.b16 %v1336
      %v2043 = vunpack.c.l.b16 %v1337
      %v2044 = vunpack.c.h.b16 %v1337
      %v2045 = vunpack.c.l.b16 %v1338
      %v2046 = vunpack.c.h.b16 %v1338
      %v2047 = vunpack.c.l.b16 %v1339
      %v2048 = vunpack.c.h.b16 %v1339
      %v2049 = vunpack.c.l.b16 %v1340
      %v2050 = vunpack.c.h.b16 %v1340
      %v2051 = vunpack.c.l.b16 %v1341
      %v2052 = vunpack.c.h.b16 %v1341
      %v2053 = vunpack.c.l.b16 %v1342
      %v2054 = vunpack.c.h.b16 %v1342
      %v2055 = vunpack.c.l.b16 %v1343
      %v2056 = vunpack.c.h.b16 %v1343
      %v2057 = vunpack.c.l.b16 %v1344
      %v2058 = vunpack.c.h.b16 %v1344
      %v2059 = vunpack.c.l.b16 %v1345
      %v2060 = vunpack.c.h.b16 %v1345
      %v2061 = vunpack.c.l.b16 %v1346
      %v2062 = vunpack.c.h.b16 %v1346
      %v2063 = vunpack.c.l.b16 %v1347
      %v2064 = vunpack.c.h.b16 %v1347
      %v2065 = vunpack.c.l.b16 %v1348
      %v2066 = vunpack.c.h.b16 %v1348
      %v2067 = vunpack.c.l.b16 %v1349
      %v2068 = vunpack.c.h.b16 %v1349
      %v2069 = vunpack.c.l.b16 %v1350
      %v2070 = vunpack.c.h.b16 %v1350
      %v2071 = vunpack.c.l.b16 %v1351
      %v2072 = vunpack.c.h.b16 %v1351
      %v2073 = vunpack.c.l.b16 %v1352
      %v2074 = vunpack.c.h.b16 %v1352
      %v2075 = vunpack.c.l.b16 %v1353
      %v2076 = vunpack.c.h.b16 %v1353
      %v2077 = vunpack.c.l.b16 %v1354
      %v2078 = vunpack.c.h.b16 %v1354
      %v2079 = vunpack.c.l.b16 %v1355
      %v2080 = vunpack.c.h.b16 %v1355
      %v2081 = vunpack.c.l.b16 %v1356
      %v2082 = vunpack.c.h.b16 %v1356
      %v2083 = vunpack.c.l.b16 %v1357
      %v2084 = vunpack.c.h.b16 %v1357
      %v2085 = vunpack.c.l.b16 %v1358
      %v2086 = vunpack.c.h.b16 %v1358
      %v2087 = vunpack.c.l.b16 %v1359
      %v2088 = vunpack.c.h.b16 %v1359
      %v2089 = vunpack.c.l.b16 %v1360
      %v2090 = vunpack.c.h.b16 %v1360
      %v2091 = vunpack.c.l.b16 %v1361
      %v2092 = vunpack.c.h.b16 %v1361
      %v2093 = vunpack.c.l.b16 %v1362
      %v2094 = vunpack.c.h.b16 %v1362
      %v2095 = vunpack.c.l.b16 %v1363
      %v2096 = vunpack.c.h.b16 %v1363
      %v2097 = vunpack.c.l.b16 %v1364
      %v2098 = vunpack.c.h.b16 %v1364
      %v2099 = vunpack.c.l.b16 %v1365
      %v2100 = vunpack.c.h.b16 %v1365
      %v2101 = vunpack.c.l.b16 %v1366
      %v2102 = vunpack.c.h.b16 %v1366
      %v2103 = vunpack.c.l.b16 %v1367
      %v2104 = vunpack.c.h.b16 %v1367
      %v2105 = vunpack.c.l.b16 %v1368
      %v2106 = vunpack.c.h.b16 %v1368
      %v2107 = vunpack.c.l.b16 %v1369
      %v2108 = vunpack.c.h.b16 %v1369
      %v2109 = vunpack.c.l.b16 %v1370
      %v2110 = vunpack.c.h.b16 %v1370
      %v2111 = vunpack.c.l.b16 %v1371
      %v2112 = vunpack.c.h.b16 %v1371
      %v2113 = vunpack.c.l.b16 %v1372
      %v2114 = vunpack.c.h.b16 %v1372
      %v2115 = vunpack.c.l.b16 %v1373
      %v2116 = vunpack.c.h.b16 %v1373
      %v2117 = vunpack.c.l.b16 %v1374
      %v2118 = vunpack.c.h.b16 %v1374
      %v2119 = vunpack.c.l.b16 %v1375
      %v2120 = vunpack.c.h.b16 %v1375
      %v2121 = vunpack.c.l.b16 %v1376
      %v2122 = vunpack.c.h.b16 %v1376
      %v2123 = vunpack.c.l.b16 %v1377
      %v2124 = vunpack.c.h.b16 %v1377
      %v2125 = vunpack.c.l.b16 %v1378
      %v2126 = vunpack.c.h.b16 %v1378
      %v2127 = vunpack.c.l.b16 %v1379
      %v2128 = vunpack.c.h.b16 %v1379
      %v2129 = vunpack.c.l.b16 %v1380
      %v2130 = vunpack.c.h.b16 %v1380
      %v2131 = vunpack.c.l.b16 %v1381
      %v2132 = vunpack.c.h.b16 %v1381
      %v2133 = vunpack.c.l.b16 %v1382
      %v2134 = vunpack.c.h.b16 %v1382
      %v2135 = vunpack.c.l.b16 %v1383
      %v2136 = vunpack.c.h.b16 %v1383
      %v2137 = vunpack.c.l.b16 %v1384
      %v2138 = vunpack.c.h.b16 %v1384
      %v2139 = vunpack.c.l.b16 %v1385
      %v2140 = vunpack.c.h.b16 %v1385
      %v2141 = vunpack.c.l.b16 %v1386
      %v2142 = vunpack.c.h.b16 %v1386
      %v2143 = vunpack.c.l.b16 %v1387
      %v2144 = vunpack.c.h.b16 %v1387
      %v2145 = vunpack.c.l.b16 %v1388
      %v2146 = vunpack.c.h.b16 %v1388
      %v2147 = vunpack.c.l.b16 %v1389
      %v2148 = vunpack.c.h.b16 %v1389
      %v2149 = vunpack.c.l.b16 %v1390
      %v2150 = vunpack.c.h.b16 %v1390
      %v2151 = vunpack.c.l.b16 %v1391
      %v2152 = vunpack.c.h.b16 %v1391
      %v2153 = vunpack.c.l.b16 %v1392
      %v2154 = vunpack.c.h.b16 %v1392
      %v2155 = vunpack.c.l.b16 %v1393
      %v2156 = vunpack.c.h.b16 %v1393
      %v2157 = vunpack.c.l.b16 %v1394
      %v2158 = vunpack.c.h.b16 %v1394
      %v2159 = vunpack.c.l.b16 %v1395
      %v2160 = vunpack.c.h.b16 %v1395
      %v2161 = vunpack.c.l.b16 %v1396
      %v2162 = vunpack.c.h.b16 %v1396
      %v2163 = vunpack.c.l.b16 %v1397
      %v2164 = vunpack.c.h.b16 %v1397
      %v2165 = vunpack.c.l.b16 %v1398
      %v2166 = vunpack.c.h.b16 %v1398
      %v2167 = vunpack.c.l.b16 %v1399
      %v2168 = vunpack.c.h.b16 %v1399
      %v2169 = vunpack.c.l.b16 %v1400
      %v2170 = vunpack.c.h.b16 %v1400
      %v2171 = vunpack.c.l.b16 %v1401
      %v2172 = vunpack.c.h.b16 %v1401
      %v2173 = vunpack.c.l.b16 %v1402
      %v2174 = vunpack.c.h.b16 %v1402
      %v2175 = vunpack.c.l.b16 %v1403
      %v2176 = vunpack.c.h.b16 %v1403
      %v2177 = vunpack.c.l.b16 %v1404
      %v2178 = vunpack.c.h.b16 %v1404
      %v2179 = vunpack.c.l.b16 %v1405
      %v2180 = vunpack.c.h.b16 %v1405
      %v2181 = vunpack.c.l.b16 %v1406
      %v2182 = vunpack.c.h.b16 %v1406
      %v2183 = vunpack.c.l.b16 %v1407
      %v2184 = vunpack.c.h.b16 %v1407
      %v2185 = vunpack.c.l.b16 %v1408
      %v2186 = vunpack.c.h.b16 %v1408
      %v2187 = vunpack.c.l.b16 %v1409
      %v2188 = vunpack.c.h.b16 %v1409
      %v2189 = vunpack.c.l.b16 %v1410
      %v2190 = vunpack.c.h.b16 %v1410
      %v2191 = vunpack.c.l.b16 %v1411
      %v2192 = vunpack.c.h.b16 %v1411
      %v2193 = vunpack.c.l.b16 %v1412
      %v2194 = vunpack.c.h.b16 %v1412
      %v2195 = vunpack.c.l.b16 %v1413
      %v2196 = vunpack.c.h.b16 %v1413
      %v2197 = vunpack.c.l.b16 %v1414
      %v2198 = vunpack.c.h.b16 %v1414
      %v2199 = vunpack.c.l.b16 %v1415
      %v2200 = vunpack.c.h.b16 %v1415
      %v2201 = vunpack.c.l.b16 %v1416
      %v2202 = vunpack.c.h.b16 %v1416
      %v2203 = vunpack.c.l.b16 %v1417
      %v2204 = vunpack.c.h.b16 %v1417
      %v2205 = vunpack.c.l.b16 %v1418
      %v2206 = vunpack.c.h.b16 %v1418
      %v2207 = vunpack.c.l.b16 %v1419
      %v2208 = vunpack.c.h.b16 %v1419
      %v2209 = vunpack.c.l.b16 %v1420
      %v2210 = vunpack.c.h.b16 %v1420
      %v2211 = vunpack.c.l.b16 %v1421
      %v2212 = vunpack.c.h.b16 %v1421
      %v2213 = vunpack.c.l.b16 %v1422
      %v2214 = vunpack.c.h.b16 %v1422
      %v2215 = vunpack.c.l.b16 %v1423
      %v2216 = vunpack.c.h.b16 %v1423
      %v2217 = vunpack.c.l.b16 %v1424
      %v2218 = vunpack.c.h.b16 %v1424
      %v2219 = vunpack.c.l.b16 %v1425
      %v2220 = vunpack.c.h.b16 %v1425
      %v2221 = vunpack.c.l.b16 %v1426
      %v2222 = vunpack.c.h.b16 %v1426
      %v2223 = vunpack.c.l.b16 %v1427
      %v2224 = vunpack.c.h.b16 %v1427
      %v2225 = vunpack.c.l.b16 %v1428
      %v2226 = vunpack.c.h.b16 %v1428
      %v2227 = vunpack.c.l.b16 %v1429
      %v2228 = vunpack.c.h.b16 %v1429
      %v2229 = vunpack.c.l.b16 %v1430
      %v2230 = vunpack.c.h.b16 %v1430
      %v2231 = vunpack.c.l.b16 %v1431
      %v2232 = vunpack.c.h.b16 %v1431
      %v2233 = vunpack.c.l.b16 %v1432
      %v2234 = vunpack.c.h.b16 %v1432
      %v2235 = vunpack.c.l.b16 %v1433
      %v2236 = vunpack.c.h.b16 %v1433
      %v2237 = vunpack.c.l.b16 %v1434
      %v2238 = vunpack.c.h.b16 %v1434
      %v2239 = vunpack.c.l.b16 %v1435
      %v2240 = vunpack.c.h.b16 %v1435
      %v2241 = vunpack.c.l.b16 %v1436
      %v2242 = vunpack.c.h.b16 %v1436
      %v2243 = vunpack.c.l.b16 %v1437
      %v2244 = vunpack.c.h.b16 %v1437
      %v2245 = vunpack.c.l.b16 %v1438
      %v2246 = vunpack.c.h.b16 %v1438
      %v2247 = vunpack.c.l.b16 %v1439
      %v2248 = vunpack.c.h.b16 %v1439
      %v2249 = vunpack.c.l.b16 %v1440
      %v2250 = vunpack.c.h.b16 %v1440
      %v2251 = vunpack.c.l.b16 %v1441
      %v2252 = vunpack.c.h.b16 %v1441
      %v2253 = vunpack.c.l.b16 %v1442
      %v2254 = vunpack.c.h.b16 %v1442
      %v2255 = vunpack.c.l.b16 %v1443
      %v2256 = vunpack.c.h.b16 %v1443
      %v2257 = vunpack.c.l.b16 %v1444
      %v2258 = vunpack.c.h.b16 %v1444
      %v2259 = vunpack.c.l.b16 %v1445
      %v2260 = vunpack.c.h.b16 %v1445
      %v2261 = vunpack.c.l.b16 %v1446
      %v2262 = vunpack.c.h.b16 %v1446
      %v2263 = vunpack.c.l.b16 %v1447
      %v2264 = vunpack.c.h.b16 %v1447
      %v2265 = vunpack.c.l.b16 %v1448
      %v2266 = vunpack.c.h.b16 %v1448
      %v2267 = vunpack.c.l.b16 %v1449
      %v2268 = vunpack.c.h.b16 %v1449
      %v2269 = vunpack.c.l.b16 %v1450
      %v2270 = vunpack.c.h.b16 %v1450
      %v2271 = vunpack.c.l.b16 %v1451
      %v2272 = vunpack.c.h.b16 %v1451
      %v2273 = vunpack.c.l.b16 %v1452
      %v2274 = vunpack.c.h.b16 %v1452
      %v2275 = vunpack.c.l.b16 %v1453
      %v2276 = vunpack.c.h.b16 %v1453
      %v2277 = vunpack.c.l.b16 %v1454
      %v2278 = vunpack.c.h.b16 %v1454
      %v2279 = vunpack.c.l.b16 %v1455
      %v2280 = vunpack.c.h.b16 %v1455
      %v2281 = vunpack.c.l.b16 %v1456
      %v2282 = vunpack.c.h.b16 %v1456
      %v2283 = vunpack.c.l.b16 %v1457
      %v2284 = vunpack.c.h.b16 %v1457
      %v2285 = vunpack.c.l.b16 %v1458
      %v2286 = vunpack.c.h.b16 %v1458
      %v2287 = vunpack.c.l.b16 %v1459
      %v2288 = vunpack.c.h.b16 %v1459
      %v2289 = vunpack.c.l.b16 %v1460
      %v2290 = vunpack.c.h.b16 %v1460
      %v2291 = vunpack.c.l.b16 %v1461
      %v2292 = vunpack.c.h.b16 %v1461
      %v2293 = vunpack.c.l.b16 %v1462
      %v2294 = vunpack.c.h.b16 %v1462
      %v2295 = vunpack.c.l.b16 %v1463
      %v2296 = vunpack.c.h.b16 %v1463
      %v2297 = vunpack.c.l.b16 %v1464
      %v2298 = vunpack.c.h.b16 %v1464
      %v2299 = vunpack.c.l.b16 %v1465
      %v2300 = vunpack.c.h.b16 %v1465
      %v2301 = vunpack.c.l.b16 %v1466
      %v2302 = vunpack.c.h.b16 %v1466
      %v2303 = vunpack.c.l.b16 %v1467
      %v2304 = vunpack.c.h.b16 %v1467
      %v2305 = vunpack.c.l.b16 %v1468
      %v2306 = vunpack.c.h.b16 %v1468
      %v2307 = vunpack.c.l.b16 %v1469
      %v2308 = vunpack.c.h.b16 %v1469
      %v2309 = vunpack.c.l.b16 %v1470
      %v2310 = vunpack.c.h.b16 %v1470
      %v2311 = vunpack.c.l.b16 %v1471
      %v2312 = vunpack.c.h.b16 %v1471
      %v2313 = vunpack.c.l.b16 %v1472
      %v2314 = vunpack.c.h.b16 %v1472
      %v2315 = vunpack.c.l.b16 %v1473
      %v2316 = vunpack.c.h.b16 %v1473
      %v2317 = vunpack.c.l.b16 %v1474
      %v2318 = vunpack.c.h.b16 %v1474
      %v2319 = vunpack.c.l.b16 %v1475
      %v2320 = vunpack.c.h.b16 %v1475
      %v2321 = vunpack.c.l.b16 %v1476
      %v2322 = vunpack.c.h.b16 %v1476
      %v2323 = vunpack.c.l.b16 %v1477
      %v2324 = vunpack.c.h.b16 %v1477
      %v2325 = vunpack.c.l.b16 %v1478
      %v2326 = vunpack.c.h.b16 %v1478
      %v2327 = vunpack.c.l.b16 %v1479
      %v2328 = vunpack.c.h.b16 %v1479
      %v2329 = vunpack.c.l.b16 %v1480
      %v2330 = vunpack.c.h.b16 %v1480
      %v2331 = vunpack.c.l.b16 %v1481
      %v2332 = vunpack.c.h.b16 %v1481
      %v2333 = vunpack.c.l.b16 %v1482
      %v2334 = vunpack.c.h.b16 %v1482
      %v2335 = vpack.c.b16 %v1839, %v1823
      %v2336 = vpack.c.b16 %v1840, %v1824
      %v2337 = vpack.c.b16 %v1841, %v1825
      %v2338 = vpack.c.b16 %v1842, %v1826
      %v2339 = vpack.c.b16 %v1843, %v1827
      %v2340 = vpack.c.b16 %v1844, %v1828
      %v2341 = vpack.c.b16 %v1845, %v1829
      %v2342 = vpack.c.b16 %v1846, %v1830
      %v2343 = vpack.c.b16 %v1847, %v1831
      %v2344 = vpack.c.b16 %v1848, %v1832
      %v2345 = vpack.c.b16 %v1849, %v1833
      %v2346 = vpack.c.b16 %v1850, %v1834
      %v2347 = vpack.c.b16 %v1851, %v1835
      %v2348 = vpack.c.b16 %v1852, %v1836
      %v2349 = vpack.c.b16 %v1853, %v1837
      %v2350 = vpack.c.b16 %v1854, %v1838
      %v2351 = vpack.c.b16 %v1871, %v1855
      %v2352 = vpack.c.b16 %v1872, %v1856
      %v2353 = vpack.c.b16 %v1873, %v1857
      %v2354 = vpack.c.b16 %v1874, %v1858
      %v2355 = vpack.c.b16 %v1875, %v1859
      %v2356 = vpack.c.b16 %v1876, %v1860
      %v2357 = vpack.c.b16 %v1877, %v1861
      %v2358 = vpack.c.b16 %v1878, %v1862
      %v2359 = vpack.c.b16 %v1879, %v1863
      %v2360 = vpack.c.b16 %v1880, %v1864
      %v2361 = vpack.c.b16 %v1881, %v1865
      %v2362 = vpack.c.b16 %v1882, %v1866
      %v2363 = vpack.c.b16 %v1883, %v1867
      %v2364 = vpack.c.b16 %v1884, %v1868
      %v2365 = vpack.c.b16 %v1885, %v1869
      %v2366 = vpack.c.b16 %v1886, %v1870
      %v2367 = vpack.c.b16 %v1903, %v1887
      %v2368 = vpack.c.b16 %v1904, %v1888
      %v2369 = vpack.c.b16 %v1905, %v1889
      %v2370 = vpack.c.b16 %v1906, %v1890
      %v2371 = vpack.c.b16 %v1907, %v1891
      %v2372 = vpack.c.b16 %v1908, %v1892
      %v2373 = vpack.c.b16 %v1909, %v1893
      %v2374 = vpack.c.b16 %v1910, %v1894
      %v2375 = vpack.c.b16 %v1911, %v1895
      %v2376 = vpack.c.b16 %v1912, %v1896
      %v2377 = vpack.c.b16 %v1913, %v1897
      %v2378 = vpack.c.b16 %v1914, %v1898
      %v2379 = vpack.c.b16 %v1915, %v1899
      %v2380 = vpack.c.b16 %v1916, %v1900
      %v2381 = vpack.c.b16 %v1917, %v1901
      %v2382 = vpack.c.b16 %v1918, %v1902
      %v2383 = vpack.c.b16 %v1935, %v1919
      %v2384 = vpack.c.b16 %v1936, %v1920
      %v2385 = vpack.c.b16 %v1937, %v1921
      %v2386 = vpack.c.b16 %v1938, %v1922
      %v2387 = vpack.c.b16 %v1939, %v1923
      %v2388 = vpack.c.b16 %v1940, %v1924
      %v2389 = vpack.c.b16 %v1941, %v1925
      %v2390 = vpack.c.b16 %v1942, %v1926
      %v2391 = vpack.c.b16 %v1943, %v1927
      %v2392 = vpack.c.b16 %v1944, %v1928
      %v2393 = vpack.c.b16 %v1945, %v1929
      %v2394 = vpack.c.b16 %v1946, %v1930
      %v2395 = vpack.c.b16 %v1947, %v1931
      %v2396 = vpack.c.b16 %v1948, %v1932
      %v2397 = vpack.c.b16 %v1949, %v1933
      %v2398 = vpack.c.b16 %v1950, %v1934
      %v2399 = vpack.c.b16 %v1967, %v1951
      %v2400 = vpack.c.b16 %v1968, %v1952
      %v2401 = vpack.c.b16 %v1969, %v1953
      %v2402 = vpack.c.b16 %v1970, %v1954
      %v2403 = vpack.c.b16 %v1971, %v1955
      %v2404 = vpack.c.b16 %v1972, %v1956
      %v2405 = vpack.c.b16 %v1973, %v1957
      %v2406 = vpack.c.b16 %v1974, %v1958
      %v2407 = vpack.c.b16 %v1975, %v1959
      %v2408 = vpack.c.b16 %v1976, %v1960
      %v2409 = vpack.c.b16 %v1977, %v1961
      %v2410 = vpack.c.b16 %v1978, %v1962
      %v2411 = vpack.c.b16 %v1979, %v1963
      %v2412 = vpack.c.b16 %v1980, %v1964
      %v2413 = vpack.c.b16 %v1981, %v1965
      %v2414 = vpack.c.b16 %v1982, %v1966
      %v2415 = vpack.c.b16 %v1999, %v1983
      %v2416 = vpack.c.b16 %v2000, %v1984
      %v2417 = vpack.c.b16 %v2001, %v1985
      %v2418 = vpack.c.b16 %v2002, %v1986
      %v2419 = vpack.c.b16 %v2003, %v1987
      %v2420 = vpack.c.b16 %v2004, %v1988
      %v2421 = vpack.c.b16 %v2005, %v1989
      %v2422 = vpack.c.b16 %v2006, %v1990
      %v2423 = vpack.c.b16 %v2007, %v1991
      %v2424 = vpack.c.b16 %v2008, %v1992
      %v2425 = vpack.c.b16 %v2009, %v1993
      %v2426 = vpack.c.b16 %v2010, %v1994
      %v2427 = vpack.c.b16 %v2011, %v1995
      %v2428 = vpack.c.b16 %v2012, %v1996
      %v2429 = vpack.c.b16 %v2013, %v1997
      %v2430 = vpack.c.b16 %v2014, %v1998
      %v2431 = vpack.c.b16 %v2031, %v2015
      %v2432 = vpack.c.b16 %v2032, %v2016
      %v2433 = vpack.c.b16 %v2033, %v2017
      %v2434 = vpack.c.b16 %v2034, %v2018
      %v2435 = vpack.c.b16 %v2035, %v2019
      %v2436 = vpack.c.b16 %v2036, %v2020
      %v2437 = vpack.c.b16 %v2037, %v2021
      %v2438 = vpack.c.b16 %v2038, %v2022
      %v2439 = vpack.c.b16 %v2039, %v2023
      %v2440 = vpack.c.b16 %v2040, %v2024
      %v2441 = vpack.c.b16 %v2041, %v2025
      %v2442 = vpack.c.b16 %v2042, %v2026
      %v2443 = vpack.c.b16 %v2043, %v2027
      %v2444 = vpack.c.b16 %v2044, %v2028
      %v2445 = vpack.c.b16 %v2045, %v2029
      %v2446 = vpack.c.b16 %v2046, %v2030
      %v2447 = vpack.c.b16 %v2063, %v2047
      %v2448 = vpack.c.b16 %v2064, %v2048
      %v2449 = vpack.c.b16 %v2065, %v2049
      %v2450 = vpack.c.b16 %v2066, %v2050
      %v2451 = vpack.c.b16 %v2067, %v2051
      %v2452 = vpack.c.b16 %v2068, %v2052
      %v2453 = vpack.c.b16 %v2069, %v2053
      %v2454 = vpack.c.b16 %v2070, %v2054
      %v2455 = vpack.c.b16 %v2071, %v2055
      %v2456 = vpack.c.b16 %v2072, %v2056
      %v2457 = vpack.c.b16 %v2073, %v2057
      %v2458 = vpack.c.b16 %v2074, %v2058
      %v2459 = vpack.c.b16 %v2075, %v2059
      %v2460 = vpack.c.b16 %v2076, %v2060
      %v2461 = vpack.c.b16 %v2077, %v2061
      %v2462 = vpack.c.b16 %v2078, %v2062
      %v2463 = vpack.c.b16 %v2095, %v2079
      %v2464 = vpack.c.b16 %v2096, %v2080
      %v2465 = vpack.c.b16 %v2097, %v2081
      %v2466 = vpack.c.b16 %v2098, %v2082
      %v2467 = vpack.c.b16 %v2099, %v2083
      %v2468 = vpack.c.b16 %v2100, %v2084
      %v2469 = vpack.c.b16 %v2101, %v2085
      %v2470 = vpack.c.b16 %v2102, %v2086
      %v2471 = vpack.c.b16 %v2103, %v2087
      %v2472 = vpack.c.b16 %v2104, %v2088
      %v2473 = vpack.c.b16 %v2105, %v2089
      %v2474 = vpack.c.b16 %v2106, %v2090
      %v2475 = vpack.c.b16 %v2107, %v2091
      %v2476 = vpack.c.b16 %v2108, %v2092
      %v2477 = vpack.c.b16 %v2109, %v2093
      %v2478 = vpack.c.b16 %v2110, %v2094
      %v2479 = vpack.c.b16 %v2127, %v2111
      %v2480 = vpack.c.b16 %v2128, %v2112
      %v2481 = vpack.c.b16 %v2129, %v2113
      %v2482 = vpack.c.b16 %v2130, %v2114
      %v2483 = vpack.c.b16 %v2131, %v2115
      %v2484 = vpack.c.b16 %v2132, %v2116
      %v2485 = vpack.c.b16 %v2133, %v2117
      %v2486 = vpack.c.b16 %v2134, %v2118
      %v2487 = vpack.c.b16 %v2135, %v2119
      %v2488 = vpack.c.b16 %v2136, %v2120
      %v2489 = vpack.c.b16 %v2137, %v2121
      %v2490 = vpack.c.b16 %v2138, %v2122
      %v2491 = vpack.c.b16 %v2139, %v2123
      %v2492 = vpack.c.b16 %v2140, %v2124
      %v2493 = vpack.c.b16 %v2141, %v2125
      %v2494 = vpack.c.b16 %v2142, %v2126
      %v2495 = vpack.c.b16 %v2159, %v2143
      %v2496 = vpack.c.b16 %v2160, %v2144
      %v2497 = vpack.c.b16 %v2161, %v2145
      %v2498 = vpack.c.b16 %v2162, %v2146
      %v2499 = vpack.c.b16 %v2163, %v2147
      %v2500 = vpack.c.b16 %v2164, %v2148
      %v2501 = vpack.c.b16 %v2165, %v2149
      %v2502 = vpack.c.b16 %v2166, %v2150
      %v2503 = vpack.c.b16 %v2167, %v2151
      %v2504 = vpack.c.b16 %v2168, %v2152
      %v2505 = vpack.c.b16 %v2169, %v2153
      %v2506 = vpack.c.b16 %v2170, %v2154
      %v2507 = vpack.c.b16 %v2171, %v2155
      %v2508 = vpack.c.b16 %v2172, %v2156
      %v2509 = vpack.c.b16 %v2173, %v2157
      %v2510 = vpack.c.b16 %v2174, %v2158
      %v2511 = vpack.c.b16 %v2191, %v2175
      %v2512 = vpack.c.b16 %v2192, %v2176
      %v2513 = vpack.c.b16 %v2193, %v2177
      %v2514 = vpack.c.b16 %v2194, %v2178
      %v2515 = vpack.c.b16 %v2195, %v2179
      %v2516 = vpack.c.b16 %v2196, %v2180
      %v2517 = vpack.c.b16 %v2197, %v2181
      %v2518 = vpack.c.b16 %v2198, %v2182
      %v2519 = vpack.c.b16 %v2199, %v2183
      %v2520 = vpack.c.b16 %v2200, %v2184
      %v2521 = vpack.c.b16 %v2201, %v2185
      %v2522 = vpack.c.b16 %v2202, %v2186
      %v2523 = vpack.c.b16 %v2203, %v2187
      %v2524 = vpack.c.b16 %v2204, %v2188
      %v2525 = vpack.c.b16 %v2205, %v2189
      %v2526 = vpack.c.b16 %v2206, %v2190
      %v2527 = vpack.c.b16 %v2223, %v2207
      %v2528 = vpack.c.b16 %v2224, %v2208
      %v2529 = vpack.c.b16 %v2225, %v2209
      %v2530 = vpack.c.b16 %v2226, %v2210
      %v2531 = vpack.c.b16 %v2227, %v2211
      %v2532 = vpack.c.b16 %v2228, %v2212
      %v2533 = vpack.c.b16 %v2229, %v2213
      %v2534 = vpack.c.b16 %v2230, %v2214
      %v2535 = vpack.c.b16 %v2231, %v2215
      %v2536 = vpack.c.b16 %v2232, %v2216
      %v2537 = vpack.c.b16 %v2233, %v2217
      %v2538 = vpack.c.b16 %v2234, %v2218
      %v2539 = vpack.c.b16 %v2235, %v2219
      %v2540 = vpack.c.b16 %v2236, %v2220
      %v2541 = vpack.c.b16 %v2237, %v2221
      %v2542 = vpack.c.b16 %v2238, %v2222
      %v2543 = vpack.c.b16 %v2255, %v2239
      %v2544 = vpack.c.b16 %v2256, %v2240
      %v2545 = vpack.c.b16 %v2257, %v2241
      %v2546 = vpack.c.b16 %v2258, %v2242
      %v2547 = vpack.c.b16 %v2259, %v2243
      %v2548 = vpack.c.b16 %v2260, %v2244
      %v2549 = vpack.c.b16 %v2261, %v2245
      %v2550 = vpack.c.b16 %v2262, %v2246
      %v2551 = vpack.c.b16 %v2263, %v2247
      %v2552 = vpack.c.b16 %v2264, %v2248
      %v2553 = vpack.c.b16 %v2265, %v2249
      %v2554 = vpack.c.b16 %v2266, %v2250
      %v2555 = vpack.c.b16 %v2267, %v2251
      %v2556 = vpack.c.b16 %v2268, %v2252
      %v2557 = vpack.c.b16 %v2269, %v2253
      %v2558 = vpack.c.b16 %v2270, %v2254
      %v2559 = vpack.c.b16 %v2287, %v2271
      %v2560 = vpack.c.b16 %v2288, %v2272
      %v2561 = vpack.c.b16 %v2289, %v2273
      %v2562 = vpack.c.b16 %v2290, %v2274
      %v2563 = vpack.c.b16 %v2291, %v2275
      %v2564 = vpack.c.b16 %v2292, %v2276
      %v2565 = vpack.c.b16 %v2293, %v2277
      %v2566 = vpack.c.b16 %v2294, %v2278
      %v2567 = vpack.c.b16 %v2295, %v2279
      %v2568 = vpack.c.b16 %v2296, %v2280
      %v2569 = vpack.c.b16 %v2297, %v2281
      %v2570 = vpack.c.b16 %v2298, %v2282
      %v2571 = vpack.c.b16 %v2299, %v2283
      %v2572 = vpack.c.b16 %v2300, %v2284
      %v2573 = vpack.c.b16 %v2301, %v2285
      %v2574 = vpack.c.b16 %v2302, %v2286
      %v2575 = vpack.c.b16 %v2319, %v2303
      %v2576 = vpack.c.b16 %v2320, %v2304
      %v2577 = vpack.c.b16 %v2321, %v2305
      %v2578 = vpack.c.b16 %v2322, %v2306
      %v2579 = vpack.c.b16 %v2323, %v2307
      %v2580 = vpack.c.b16 %v2324, %v2308
      %v2581 = vpack.c.b16 %v2325, %v2309
      %v2582 = vpack.c.b16 %v2326, %v2310
      %v2583 = vpack.c.b16 %v2327, %v2311
      %v2584 = vpack.c.b16 %v2328, %v2312
      %v2585 = vpack.c.b16 %v2329, %v2313
      %v2586 = vpack.c.b16 %v2330, %v2314
      %v2587 = vpack.c.b16 %v2331, %v2315
      %v2588 = vpack.c.b16 %v2332, %v2316
      %v2589 = vpack.c.b16 %v2333, %v2317
      %v2590 = vpack.c.b16 %v2334, %v2318
      %2847 = vmatprep.subr.bf16.mxu0 %v2336
      %2848 = vmatpush1.bf16.msra.mxu0 %v2335
      %2849 = vmatprep.subr.bf16.mxu0 %v2352
      %2850 = vmatpush1.bf16.msra.mxu0 %v2351
      %2851 = vmatprep.subr.bf16.mxu0 %v2368
      %2852 = vmatpush1.bf16.msra.mxu0 %v2367
      %2853 = vmatprep.subr.bf16.mxu0 %v2384
      %2854 = vmatpush1.bf16.msra.mxu0 %v2383
      %2855 = vmatprep.subr.bf16.mxu0 %v2400
      %2856 = vmatpush1.bf16.msra.mxu0 %v2399
      %2857 = vmatprep.subr.bf16.mxu0 %v2416
      %2858 = vmatpush1.bf16.msra.mxu0 %v2415
      %2859 = vmatprep.subr.bf16.mxu0 %v2432
      %2860 = vmatpush1.bf16.msra.mxu0 %v2431
      %2861 = vmatprep.subr.bf16.mxu0 %v2448
      %2862 = vmatpush1.bf16.msra.mxu0 %v2447
      %2863 = vmatprep.subr.bf16.mxu0 %v2464
      %2864 = vmatpush1.bf16.msra.mxu0 %v2463
      %2865 = vmatprep.subr.bf16.mxu0 %v2480
      %2866 = vmatpush1.bf16.msra.mxu0 %v2479
      %2867 = vmatprep.subr.bf16.mxu0 %v2496
      %2868 = vmatpush1.bf16.msra.mxu0 %v2495
      %2869 = vmatprep.subr.bf16.mxu0 %v2512
      %2870 = vmatpush1.bf16.msra.mxu0 %v2511
      %2871 = vmatprep.subr.bf16.mxu0 %v2528
      %2872 = vmatpush1.bf16.msra.mxu0 %v2527
      %2873 = vmatprep.subr.bf16.mxu0 %v2544
      %2874 = vmatpush1.bf16.msra.mxu0 %v2543
      %2875 = vmatprep.subr.bf16.mxu0 %v2560
      %2876 = vmatpush1.bf16.msra.mxu0 %v2559
      %2877 = vmatprep.subr.bf16.mxu0 %v2576
      %2878 = vmatpush1.bf16.msra.mxu0 %v2575
      %2879 = vmatprep.mubr.bf16.mxu0 %v1196
      %2880 = vmatmul.mubr.bf16.gmra.mrb[0].mxu0 %v1195
      %v2881 = vpop.f32.mrb[0].mxu0
      %v2882 = vadd.f32 %v1490, %v2881
      %v2883 = vpop.f32.mrb[0].mxu0
      %v2884 = vadd.f32 %v1494, %v2883
      %v2885 = vpop.f32.mrb[0].mxu0
      %v2886 = vadd.f32 %v1490, %v2885
      %v2887 = vpop.f32.mrb[0].mxu0
      %v2888 = vadd.f32 %v1494, %v2887
      %2889 = vmatprep.mubr.bf16.mxu0 %v1198
      %2890 = vmatmul.mubr.bf16.gmra.mrb[0].mxu0 %v1197
      %v2891 = vpop.f32.mrb[0].mxu0
      %v2892 = vadd.f32 %v1490, %v2891
      %v2893 = vpop.f32.mrb[0].mxu0
      %v2894 = vadd.f32 %v1494, %v2893
      %v2895 = vpop.f32.mrb[0].mxu0
      %v2896 = vadd.f32 %v1490, %v2895
      %v2897 = vpop.f32.mrb[0].mxu0
      %v2898 = vadd.f32 %v1494, %v2897
      %2899 = vmatprep.mubr.bf16.mxu0 %v1200
      %2900 = vmatmul.mubr.bf16.gmra.mrb[0].mxu0 %v1199
      %v2901 = vpop.f32.mrb[0].mxu0
      %v2902 = vadd.f32 %v1490, %v2901
      %v2903 = vpop.f32.mrb[0].mxu0
      %v2904 = vadd.f32 %v1494, %v2903
      %v2905 = vpop.f32.mrb[0].mxu0
      %v2906 = vadd.f32 %v1490, %v2905
      %v2907 = vpop.f32.mrb[0].mxu0
      %v2908 = vadd.f32 %v1494, %v2907
      %2909 = vmatprep.mubr.bf16.mxu0 %v1202
      %2910 = vmatmul.mubr.bf16.gmra.mrb[0].mxu0 %v1201
      %v2911 = vpop.f32.mrb[0].mxu0
      %v2912 = vadd.f32 %v1490, %v2911
      %v2913 = vpop.f32.mrb[0].mxu0
      %v2914 = vadd.f32 %v1494, %v2913
      %v2915 = vpop.f32.mrb[0].mxu0
      %v2916 = vadd.f32 %v1490, %v2915
      %v2917 = vpop.f32.mrb[0].mxu0
      %v2918 = vadd.f32 %v1494, %v2917
      %2919 = vmatprep.mubr.bf16.mxu0 %v1204
      %2920 = vmatmul.mubr.bf16.gmra.mrb[0].mxu0 %v1203
      %v2921 = vpop.f32.mrb[0].mxu0
      %v2922 = vadd.f32 %v1490, %v2921
      %v2923 = vpop.f32.mrb[0].mxu0
      %v2924 = vadd.f32 %v1494, %v2923
      %v2925 = vpop.f32.mrb[0].mxu0
      %v2926 = vadd.f32 %v1490, %v2925
      %v2927 = vpop.f32.mrb[0].mxu0
      %v2928 = vadd.f32 %v1494, %v2927
      %2929 = vmatprep.mubr.bf16.mxu0 %v1206
      %2930 = vmatmul.mubr.bf16.gmra.mrb[0].mxu0 %v1205
      %v2931 = vpop.f32.mrb[0].mxu0
      %v2932 = vadd.f32 %v1490, %v2931
      %v2933 = vpop.f32.mrb[0].mxu0
      %v2934 = vadd.f32 %v1494, %v2933
      %v2935 = vpop.f32.mrb[0].mxu0
      %v2936 = vadd.f32 %v1490, %v2935
      %v2937 = vpop.f32.mrb[0].mxu0
      %v2938 = vadd.f32 %v1494, %v2937
      %2939 = vmatprep.mubr.bf16.mxu0 %v1208
      %2940 = vmatmul.mubr.bf16.gmra.mrb[0].mxu0 %v1207
      %v2941 = vpop.f32.mrb[0].mxu0
      %v2942 = vadd.f32 %v1490, %v2941
      %v2943 = vpop.f32.mrb[0].mxu0
      %v2944 = vadd.f32 %v1494, %v2943
      %v2945 = vpop.f32.mrb[0].mxu0
      %v2946 = vadd.f32 %v1490, %v2945
      %v2947 = vpop.f32.mrb[0].mxu0
      %v2948 = vadd.f32 %v1494, %v2947
      %2949 = vmatprep.mubr.bf16.mxu0 %v1210
      %2950 = vmatmul.mubr.bf16.gmra.mrb[0].mxu0 %v1209
      %v2951 = vpop.f32.mrb[0].mxu0
      %v2952 = vadd.f32 %v1490, %v2951
      %v2953 = vpop.f32.mrb[0].mxu0
      %v2954 = vadd.f32 %v1494, %v2953
      %v2955 = vpop.f32.mrb[0].mxu0
      %v2956 = vadd.f32 %v1490, %v2955
      %v2957 = vpop.f32.mrb[0].mxu0
      %v2958 = vadd.f32 %v1494, %v2957
      %2959 = vmatprep.mubr.bf16.mxu0 %v1212
      %2960 = vmatmul.mubr.bf16.gmra.mrb[0].mxu0 %v1211
      %v2961 = vpop.f32.mrb[0].mxu0
      %v2962 = vadd.f32 %v1490, %v2961
      %v2963 = vpop.f32.mrb[0].mxu0
      %v2964 = vadd.f32 %v1494, %v2963
      %v2965 = vpop.f32.mrb[0].mxu0
      %v2966 = vadd.f32 %v1490, %v2965
      %v2967 = vpop.f32.mrb[0].mxu0
      %v2968 = vadd.f32 %v1494, %v2967
      %2969 = vmatprep.mubr.bf16.mxu0 %v1214
      %2970 = vmatmul.mubr.bf16.gmra.mrb[0].mxu0 %v1213
      %v2971 = vpop.f32.mrb[0].mxu0
      %v2972 = vadd.f32 %v1490, %v2971
      %v2973 = vpop.f32.mrb[0].mxu0
      %v2974 = vadd.f32 %v1494, %v2973
      %v2975 = vpop.f32.mrb[0].mxu0
      %v2976 = vadd.f32 %v1490, %v2975
      %v2977 = vpop.f32.mrb[0].mxu0
      %v2978 = vadd.f32 %v1494, %v2977
      %2979 = vmatprep.mubr.bf16.mxu0 %v1216
      %2980 = vmatmul.mubr.bf16.gmra.mrb[0].mxu0 %v1215
      %v2981 = vpop.f32.mrb[0].mxu0
      %v2982 = vadd.f32 %v1490, %v2981
      %v2983 = vpop.f32.mrb[0].mxu0
      %v2984 = vadd.f32 %v1494, %v2983
      %v2985 = vpop.f32.mrb[0].mxu0
      %v2986 = vadd.f32 %v1490, %v2985
      %v2987 = vpop.f32.mrb[0].mxu0
      %v2988 = vadd.f32 %v1494, %v2987
      %2989 = vmatprep.mubr.bf16.mxu0 %v1218
      %2990 = vmatmul.mubr.bf16.gmra.mrb[0].mxu0 %v1217
      %v2991 = vpop.f32.mrb[0].mxu0
      %v2992 = vadd.f32 %v1490, %v2991
      %v2993 = vpop.f32.mrb[0].mxu0
      %v2994 = vadd.f32 %v1494, %v2993
      %v2995 = vpop.f32.mrb[0].mxu0
      %v2996 = vadd.f32 %v1490, %v2995
      %v2997 = vpop.f32.mrb[0].mxu0
      %v2998 = vadd.f32 %v1494, %v2997
      %2999 = vmatprep.mubr.bf16.mxu0 %v1220
      %3000 = vmatmul.mubr.bf16.gmra.mrb[0].mxu0 %v1219
      %v3001 = vpop.f32.mrb[0].mxu0
      %v3002 = vadd.f32 %v1490, %v3001
      %v3003 = vpop.f32.mrb[0].mxu0
      %v3004 = vadd.f32 %v1494, %v3003
      %v3005 = vpop.f32.mrb[0].mxu0
      %v3006 = vadd.f32 %v1490, %v3005
      %v3007 = vpop.f32.mrb[0].mxu0
      %v3008 = vadd.f32 %v1494, %v3007
      %3009 = vmatprep.mubr.bf16.mxu0 %v1222
      %3010 = vmatmul.mubr.bf16.gmra.mrb[0].mxu0 %v1221
      %v3011 = vpop.f32.mrb[0].mxu0
      %v3012 = vadd.f32 %v1490, %v3011
      %v3013 = vpop.f32.mrb[0].mxu0
      %v3014 = vadd.f32 %v1494, %v3013
      %v3015 = vpop.f32.mrb[0].mxu0
      %v3016 = vadd.f32 %v1490, %v3015
      %v3017 = vpop.f32.mrb[0].mxu0
      %v3018 = vadd.f32 %v1494, %v3017
      %3019 = vmatprep.mubr.bf16.mxu0 %v1224
      %3020 = vmatmul.mubr.bf16.gmra.mrb[0].mxu0 %v1223
      %v3021 = vpop.f32.mrb[0].mxu0
      %v3022 = vadd.f32 %v1490, %v3021
      %v3023 = vpop.f32.mrb[0].mxu0
      %v3024 = vadd.f32 %v1494, %v3023
      %v3025 = vpop.f32.mrb[0].mxu0
      %v3026 = vadd.f32 %v1490, %v3025
      %v3027 = vpop.f32.mrb[0].mxu0
      %v3028 = vadd.f32 %v1494, %v3027
      %3029 = vmatprep.mubr.bf16.mxu0 %v1226
      %3030 = vmatmul.mubr.bf16.gmra.mrb[0].mxu0 %v1225
      %v3031 = vpop.f32.mrb[0].mxu0
      %v3032 = vadd.f32 %v1490, %v3031
      %v3033 = vpop.f32.mrb[0].mxu0
      %v3034 = vadd.f32 %v1494, %v3033
      %v3035 = vpop.f32.mrb[0].mxu0
      %v3036 = vadd.f32 %v1490, %v3035
      %v3037 = vpop.f32.mrb[0].mxu0
      %v3038 = vadd.f32 %v1494, %v3037
      %3039 = vdwg.mxu0
      %3040 = vmatprep.subr.bf16.mxu0 %v2338
      %3041 = vmatpush1.bf16.msra.mxu0 %v2337
      %3042 = vmatprep.subr.bf16.mxu0 %v2354
      %3043 = vmatpush1.bf16.msra.mxu0 %v2353
      %3044 = vmatprep.subr.bf16.mxu0 %v2370
      %3045 = vmatpush1.bf16.msra.mxu0 %v2369
      %3046 = vmatprep.subr.bf16.mxu0 %v2386
      %3047 = vmatpush1.bf16.msra.mxu0 %v2385
      %3048 = vmatprep.subr.bf16.mxu0 %v2402
      %3049 = vmatpush1.bf16.msra.mxu0 %v2401
      %3050 = vmatprep.subr.bf16.mxu0 %v2418
      %3051 = vmatpush1.bf16.msra.mxu0 %v2417
      %3052 = vmatprep.subr.bf16.mxu0 %v2434
      %3053 = vmatpush1.bf16.msra.mxu0 %v2433
      %3054 = vmatprep.subr.bf16.mxu0 %v2450
      %3055 = vmatpush1.bf16.msra.mxu0 %v2449
      %3056 = vmatprep.subr.bf16.mxu0 %v2466
      %3057 = vmatpush1.bf16.msra.mxu0 %v2465
      %3058 = vmatprep.subr.bf16.mxu0 %v2482
      %3059 = vmatpush1.bf16.msra.mxu0 %v2481
      %3060 = vmatprep.subr.bf16.mxu0 %v2498
      %3061 = vmatpush1.bf16.msra.mxu0 %v2497
      %3062 = vmatprep.subr.bf16.mxu0 %v2514
      %3063 = vmatpush1.bf16.msra.mxu0 %v2513
      %3064 = vmatprep.subr.bf16.mxu0 %v2530
      %3065 = vmatpush1.bf16.msra.mxu0 %v2529
      %3066 = vmatprep.subr.bf16.mxu0 %v2546
      %3067 = vmatpush1.bf16.msra.mxu0 %v2545
      %3068 = vmatprep.subr.bf16.mxu0 %v2562
      %3069 = vmatpush1.bf16.msra.mxu0 %v2561
      %3070 = vmatprep.subr.bf16.mxu0 %v2578
      %3071 = vmatpush1.bf16.msra.mxu0 %v2577
      %3072 = vmatprep.mubr.bf16.mxu0 %v1196
      %3073 = vmatmul.mubr.bf16.gmra.mrb[0].mxu0 %v1195
      %v3074 = vpop.f32.mrb[0].mxu0
      %v3075 = vadd.f32 %v1498, %v3074
      %v3076 = vpop.f32.mrb[0].mxu0
      %v3077 = vadd.f32 %v1502, %v3076
      %v3078 = vpop.f32.mrb[0].mxu0
      %v3079 = vadd.f32 %v1498, %v3078
      %v3080 = vpop.f32.mrb[0].mxu0
      %v3081 = vadd.f32 %v1502, %v3080
      %3082 = vmatprep.mubr.bf16.mxu0 %v1198
      %3083 = vmatmul.mubr.bf16.gmra.mrb[0].mxu0 %v1197
      %v3084 = vpop.f32.mrb[0].mxu0
      %v3085 = vadd.f32 %v1498, %v3084
      %v3086 = vpop.f32.mrb[0].mxu0
      %v3087 = vadd.f32 %v1502, %v3086
      %v3088 = vpop.f32.mrb[0].mxu0
      %v3089 = vadd.f32 %v1498, %v3088
      %v3090 = vpop.f32.mrb[0].mxu0
      %v3091 = vadd.f32 %v1502, %v3090
      %3092 = vmatprep.mubr.bf16.mxu0 %v1200
      %3093 = vmatmul.mubr.bf16.gmra.mrb[0].mxu0 %v1199
      %v3094 = vpop.f32.mrb[0].mxu0
      %v3095 = vadd.f32 %v1498, %v3094
      %v3096 = vpop.f32.mrb[0].mxu0
      %v3097 = vadd.f32 %v1502, %v3096
      %v3098 = vpop.f32.mrb[0].mxu0
      %v3099 = vadd.f32 %v1498, %v3098
      %v3100 = vpop.f32.mrb[0].mxu0
      %v3101 = vadd.f32 %v1502, %v3100
      %3102 = vmatprep.mubr.bf16.mxu0 %v1202
      %3103 = vmatmul.mubr.bf16.gmra.mrb[0].mxu0 %v1201
      %v3104 = vpop.f32.mrb[0].mxu0
      %v3105 = vadd.f32 %v1498, %v3104
      %v3106 = vpop.f32.mrb[0].mxu0
      %v3107 = vadd.f32 %v1502, %v3106
      %v3108 = vpop.f32.mrb[0].mxu0
      %v3109 = vadd.f32 %v1498, %v3108
      %v3110 = vpop.f32.mrb[0].mxu0
      %v3111 = vadd.f32 %v1502, %v3110
      %3112 = vmatprep.mubr.bf16.mxu0 %v1204
      %3113 = vmatmul.mubr.bf16.gmra.mrb[0].mxu0 %v1203
      %v3114 = vpop.f32.mrb[0].mxu0
      %v3115 = vadd.f32 %v1498, %v3114
      %v3116 = vpop.f32.mrb[0].mxu0
      %v3117 = vadd.f32 %v1502, %v3116
      %v3118 = vpop.f32.mrb[0].mxu0
      %v3119 = vadd.f32 %v1498, %v3118
      %v3120 = vpop.f32.mrb[0].mxu0
      %v3121 = vadd.f32 %v1502, %v3120
      %3122 = vmatprep.mubr.bf16.mxu0 %v1206
      %3123 = vmatmul.mubr.bf16.gmra.mrb[0].mxu0 %v1205
      %v3124 = vpop.f32.mrb[0].mxu0
      %v3125 = vadd.f32 %v1498, %v3124
      %v3126 = vpop.f32.mrb[0].mxu0
      %v3127 = vadd.f32 %v1502, %v3126
      %v3128 = vpop.f32.mrb[0].mxu0
      %v3129 = vadd.f32 %v1498, %v3128
      %v3130 = vpop.f32.mrb[0].mxu0
      %v3131 = vadd.f32 %v1502, %v3130
      %3132 = vmatprep.mubr.bf16.mxu0 %v1208
      %3133 = vmatmul.mubr.bf16.gmra.mrb[0].mxu0 %v1207
      %v3134 = vpop.f32.mrb[0].mxu0
      %v3135 = vadd.f32 %v1498, %v3134
      %v3136 = vpop.f32.mrb[0].mxu0
      %v3137 = vadd.f32 %v1502, %v3136
      %v3138 = vpop.f32.mrb[0].mxu0
      %v3139 = vadd.f32 %v1498, %v3138
      %v3140 = vpop.f32.mrb[0].mxu0
      %v3141 = vadd.f32 %v1502, %v3140
      %3142 = vmatprep.mubr.bf16.mxu0 %v1210
      %3143 = vmatmul.mubr.bf16.gmra.mrb[0].mxu0 %v1209
      %v3144 = vpop.f32.mrb[0].mxu0
      %v3145 = vadd.f32 %v1498, %v3144
      %v3146 = vpop.f32.mrb[0].mxu0
      %v3147 = vadd.f32 %v1502, %v3146
      %v3148 = vpop.f32.mrb[0].mxu0
      %v3149 = vadd.f32 %v1498, %v3148
      %v3150 = vpop.f32.mrb[0].mxu0
      %v3151 = vadd.f32 %v1502, %v3150
      %3152 = vmatprep.mubr.bf16.mxu0 %v1212
      %3153 = vmatmul.mubr.bf16.gmra.mrb[0].mxu0 %v1211
      %v3154 = vpop.f32.mrb[0].mxu0
      %v3155 = vadd.f32 %v1498, %v3154
      %v3156 = vpop.f32.mrb[0].mxu0
      %v3157 = vadd.f32 %v1502, %v3156
      %v3158 = vpop.f32.mrb[0].mxu0
      %v3159 = vadd.f32 %v1498, %v3158
      %v3160 = vpop.f32.mrb[0].mxu0
      %v3161 = vadd.f32 %v1502, %v3160
      %3162 = vmatprep.mubr.bf16.mxu0 %v1214
      %3163 = vmatmul.mubr.bf16.gmra.mrb[0].mxu0 %v1213
      %v3164 = vpop.f32.mrb[0].mxu0
      %v3165 = vadd.f32 %v1498, %v3164
      %v3166 = vpop.f32.mrb[0].mxu0
      %v3167 = vadd.f32 %v1502, %v3166
      %v3168 = vpop.f32.mrb[0].mxu0
      %v3169 = vadd.f32 %v1498, %v3168
      %v3170 = vpop.f32.mrb[0].mxu0
      %v3171 = vadd.f32 %v1502, %v3170
      %3172 = vmatprep.mubr.bf16.mxu0 %v1216
      %3173 = vmatmul.mubr.bf16.gmra.mrb[0].mxu0 %v1215
      %v3174 = vpop.f32.mrb[0].mxu0
      %v3175 = vadd.f32 %v1498, %v3174
      %v3176 = vpop.f32.mrb[0].mxu0
      %v3177 = vadd.f32 %v1502, %v3176
      %v3178 = vpop.f32.mrb[0].mxu0
      %v3179 = vadd.f32 %v1498, %v3178
      %v3180 = vpop.f32.mrb[0].mxu0
      %v3181 = vadd.f32 %v1502, %v3180
      %3182 = vmatprep.mubr.bf16.mxu0 %v1218
      %3183 = vmatmul.mubr.bf16.gmra.mrb[0].mxu0 %v1217
      %v3184 = vpop.f32.mrb[0].mxu0
      %v3185 = vadd.f32 %v1498, %v3184
      %v3186 = vpop.f32.mrb[0].mxu0
      %v3187 = vadd.f32 %v1502, %v3186
      %v3188 = vpop.f32.mrb[0].mxu0
      %v3189 = vadd.f32 %v1498, %v3188
      %v3190 = vpop.f32.mrb[0].mxu0
      %v3191 = vadd.f32 %v1502, %v3190
      %3192 = vmatprep.mubr.bf16.mxu0 %v1220
      %3193 = vmatmul.mubr.bf16.gmra.mrb[0].mxu0 %v1219
      %v3194 = vpop.f32.mrb[0].mxu0
      %v3195 = vadd.f32 %v1498, %v3194
      %v3196 = vpop.f32.mrb[0].mxu0
      %v3197 = vadd.f32 %v1502, %v3196
      %v3198 = vpop.f32.mrb[0].mxu0
      %v3199 = vadd.f32 %v1498, %v3198
      %v3200 = vpop.f32.mrb[0].mxu0
      %v3201 = vadd.f32 %v1502, %v3200
      %3202 = vmatprep.mubr.bf16.mxu0 %v1222
      %3203 = vmatmul.mubr.bf16.gmra.mrb[0].mxu0 %v1221
      %v3204 = vpop.f32.mrb[0].mxu0
      %v3205 = vadd.f32 %v1498, %v3204
      %v3206 = vpop.f32.mrb[0].mxu0
      %v3207 = vadd.f32 %v1502, %v3206
      %v3208 = vpop.f32.mrb[0].mxu0
      %v3209 = vadd.f32 %v1498, %v3208
      %v3210 = vpop.f32.mrb[0].mxu0
      %v3211 = vadd.f32 %v1502, %v3210
      %3212 = vmatprep.mubr.bf16.mxu0 %v1224
      %3213 = vmatmul.mubr.bf16.gmra.mrb[0].mxu0 %v1223
      %v3214 = vpop.f32.mrb[0].mxu0
      %v3215 = vadd.f32 %v1498, %v3214
      %v3216 = vpop.f32.mrb[0].mxu0
      %v3217 = vadd.f32 %v1502, %v3216
      %v3218 = vpop.f32.mrb[0].mxu0
      %v3219 = vadd.f32 %v1498, %v3218
      %v3220 = vpop.f32.mrb[0].mxu0
      %v3221 = vadd.f32 %v1502, %v3220
      %3222 = vmatprep.mubr.bf16.mxu0 %v1226
      %3223 = vmatmul.mubr.bf16.gmra.mrb[0].mxu0 %v1225
      %v3224 = vpop.f32.mrb[0].mxu0
      %v3225 = vadd.f32 %v1498, %v3224
      %v3226 = vpop.f32.mrb[0].mxu0
      %v3227 = vadd.f32 %v1502, %v3226
      %v3228 = vpop.f32.mrb[0].mxu0
      %v3229 = vadd.f32 %v1498, %v3228
      %v3230 = vpop.f32.mrb[0].mxu0
      %v3231 = vadd.f32 %v1502, %v3230
      %3232 = vdwg.mxu0
      %3233 = vmatprep.subr.bf16.mxu0 %v2340
      %3234 = vmatpush1.bf16.msra.mxu0 %v2339
      %3235 = vmatprep.subr.bf16.mxu0 %v2356
      %3236 = vmatpush1.bf16.msra.mxu0 %v2355
      %3237 = vmatprep.subr.bf16.mxu0 %v2372
      %3238 = vmatpush1.bf16.msra.mxu0 %v2371
      %3239 = vmatprep.subr.bf16.mxu0 %v2388
      %3240 = vmatpush1.bf16.msra.mxu0 %v2387
      %3241 = vmatprep.subr.bf16.mxu0 %v2404
      %3242 = vmatpush1.bf16.msra.mxu0 %v2403
      %3243 = vmatprep.subr.bf16.mxu0 %v2420
      %3244 = vmatpush1.bf16.msra.mxu0 %v2419
      %3245 = vmatprep.subr.bf16.mxu0 %v2436
      %3246 = vmatpush1.bf16.msra.mxu0 %v2435
      %3247 = vmatprep.subr.bf16.mxu0 %v2452
      %3248 = vmatpush1.bf16.msra.mxu0 %v2451
      %3249 = vmatprep.subr.bf16.mxu0 %v2468
      %3250 = vmatpush1.bf16.msra.mxu0 %v2467
      %3251 = vmatprep.subr.bf16.mxu0 %v2484
      %3252 = vmatpush1.bf16.msra.mxu0 %v2483
      %3253 = vmatprep.subr.bf16.mxu0 %v2500
      %3254 = vmatpush1.bf16.msra.mxu0 %v2499
      %3255 = vmatprep.subr.bf16.mxu0 %v2516
      %3256 = vmatpush1.bf16.msra.mxu0 %v2515
      %3257 = vmatprep.subr.bf16.mxu0 %v2532
      %3258 = vmatpush1.bf16.msra.mxu0 %v2531
      %3259 = vmatprep.subr.bf16.mxu0 %v2548
      %3260 = vmatpush1.bf16.msra.mxu0 %v2547
      %3261 = vmatprep.subr.bf16.mxu0 %v2564
      %3262 = vmatpush1.bf16.msra.mxu0 %v2563
      %3263 = vmatprep.subr.bf16.mxu0 %v2580
      %3264 = vmatpush1.bf16.msra.mxu0 %v2579
      %3265 = vmatprep.mubr.bf16.mxu0 %v1196
      %3266 = vmatmul.mubr.bf16.gmra.mrb[0].mxu0 %v1195
      %v3267 = vpop.f32.mrb[0].mxu0
      %v3268 = vadd.f32 %v1506, %v3267
      %v3269 = vpop.f32.mrb[0].mxu0
      %v3270 = vadd.f32 %v1510, %v3269
      %v3271 = vpop.f32.mrb[0].mxu0
      %v3272 = vadd.f32 %v1506, %v3271
      %v3273 = vpop.f32.mrb[0].mxu0
      %v3274 = vadd.f32 %v1510, %v3273
      %3275 = vmatprep.mubr.bf16.mxu0 %v1198
      %3276 = vmatmul.mubr.bf16.gmra.mrb[0].mxu0 %v1197
      %v3277 = vpop.f32.mrb[0].mxu0
      %v3278 = vadd.f32 %v1506, %v3277
      %v3279 = vpop.f32.mrb[0].mxu0
      %v3280 = vadd.f32 %v1510, %v3279
      %v3281 = vpop.f32.mrb[0].mxu0
      %v3282 = vadd.f32 %v1506, %v3281
      %v3283 = vpop.f32.mrb[0].mxu0
      %v3284 = vadd.f32 %v1510, %v3283
      %3285 = vmatprep.mubr.bf16.mxu0 %v1200
      %3286 = vmatmul.mubr.bf16.gmra.mrb[0].mxu0 %v1199
      %v3287 = vpop.f32.mrb[0].mxu0
      %v3288 = vadd.f32 %v1506, %v3287
      %v3289 = vpop.f32.mrb[0].mxu0
      %v3290 = vadd.f32 %v1510, %v3289
      %v3291 = vpop.f32.mrb[0].mxu0
      %v3292 = vadd.f32 %v1506, %v3291
      %v3293 = vpop.f32.mrb[0].mxu0
      %v3294 = vadd.f32 %v1510, %v3293
      %3295 = vmatprep.mubr.bf16.mxu0 %v1202
      %3296 = vmatmul.mubr.bf16.gmra.mrb[0].mxu0 %v1201
      %v3297 = vpop.f32.mrb[0].mxu0
      %v3298 = vadd.f32 %v1506, %v3297
      %v3299 = vpop.f32.mrb[0].mxu0
      %v3300 = vadd.f32 %v1510, %v3299
      %v3301 = vpop.f32.mrb[0].mxu0
      %v3302 = vadd.f32 %v1506, %v3301
      %v3303 = vpop.f32.mrb[0].mxu0
      %v3304 = vadd.f32 %v1510, %v3303
      %3305 = vmatprep.mubr.bf16.mxu0 %v1204
      %3306 = vmatmul.mubr.bf16.gmra.mrb[0].mxu0 %v1203
      %v3307 = vpop.f32.mrb[0].mxu0
      %v3308 = vadd.f32 %v1506, %v3307
      %v3309 = vpop.f32.mrb[0].mxu0
      %v3310 = vadd.f32 %v1510, %v3309
      %v3311 = vpop.f32.mrb[0].mxu0
      %v3312 = vadd.f32 %v1506, %v3311
      %v3313 = vpop.f32.mrb[0].mxu0
      %v3314 = vadd.f32 %v1510, %v3313
      %3315 = vmatprep.mubr.bf16.mxu0 %v1206
      %3316 = vmatmul.mubr.bf16.gmra.mrb[0].mxu0 %v1205
      %v3317 = vpop.f32.mrb[0].mxu0
      %v3318 = vadd.f32 %v1506, %v3317
      %v3319 = vpop.f32.mrb[0].mxu0
      %v3320 = vadd.f32 %v1510, %v3319
      %v3321 = vpop.f32.mrb[0].mxu0
      %v3322 = vadd.f32 %v1506, %v3321
      %v3323 = vpop.f32.mrb[0].mxu0
      %v3324 = vadd.f32 %v1510, %v3323
      %3325 = vmatprep.mubr.bf16.mxu0 %v1208
      %3326 = vmatmul.mubr.bf16.gmra.mrb[0].mxu0 %v1207
      %v3327 = vpop.f32.mrb[0].mxu0
      %v3328 = vadd.f32 %v1506, %v3327
      %v3329 = vpop.f32.mrb[0].mxu0
      %v3330 = vadd.f32 %v1510, %v3329
      %v3331 = vpop.f32.mrb[0].mxu0
      %v3332 = vadd.f32 %v1506, %v3331
      %v3333 = vpop.f32.mrb[0].mxu0
      %v3334 = vadd.f32 %v1510, %v3333
      %3335 = vmatprep.mubr.bf16.mxu0 %v1210
      %3336 = vmatmul.mubr.bf16.gmra.mrb[0].mxu0 %v1209
      %v3337 = vpop.f32.mrb[0].mxu0
      %v3338 = vadd.f32 %v1506, %v3337
      %v3339 = vpop.f32.mrb[0].mxu0
      %v3340 = vadd.f32 %v1510, %v3339
      %v3341 = vpop.f32.mrb[0].mxu0
      %v3342 = vadd.f32 %v1506, %v3341
      %v3343 = vpop.f32.mrb[0].mxu0
      %v3344 = vadd.f32 %v1510, %v3343
      %3345 = vmatprep.mubr.bf16.mxu0 %v1212
      %3346 = vmatmul.mubr.bf16.gmra.mrb[0].mxu0 %v1211
      %v3347 = vpop.f32.mrb[0].mxu0
      %v3348 = vadd.f32 %v1506, %v3347
      %v3349 = vpop.f32.mrb[0].mxu0
      %v3350 = vadd.f32 %v1510, %v3349
      %v3351 = vpop.f32.mrb[0].mxu0
      %v3352 = vadd.f32 %v1506, %v3351
      %v3353 = vpop.f32.mrb[0].mxu0
      %v3354 = vadd.f32 %v1510, %v3353
      %3355 = vmatprep.mubr.bf16.mxu0 %v1214
      %3356 = vmatmul.mubr.bf16.gmra.mrb[0].mxu0 %v1213
      %v3357 = vpop.f32.mrb[0].mxu0
      %v3358 = vadd.f32 %v1506, %v3357
      %v3359 = vpop.f32.mrb[0].mxu0
      %v3360 = vadd.f32 %v1510, %v3359
      %v3361 = vpop.f32.mrb[0].mxu0
      %v3362 = vadd.f32 %v1506, %v3361
      %v3363 = vpop.f32.mrb[0].mxu0
      %v3364 = vadd.f32 %v1510, %v3363
      %3365 = vmatprep.mubr.bf16.mxu0 %v1216
      %3366 = vmatmul.mubr.bf16.gmra.mrb[0].mxu0 %v1215
      %v3367 = vpop.f32.mrb[0].mxu0
      %v3368 = vadd.f32 %v1506, %v3367
      %v3369 = vpop.f32.mrb[0].mxu0
      %v3370 = vadd.f32 %v1510, %v3369
      %v3371 = vpop.f32.mrb[0].mxu0
      %v3372 = vadd.f32 %v1506, %v3371
      %v3373 = vpop.f32.mrb[0].mxu0
      %v3374 = vadd.f32 %v1510, %v3373
      %3375 = vmatprep.mubr.bf16.mxu0 %v1218
      %3376 = vmatmul.mubr.bf16.gmra.mrb[0].mxu0 %v1217
      %v3377 = vpop.f32.mrb[0].mxu0
      %v3378 = vadd.f32 %v1506, %v3377
      %v3379 = vpop.f32.mrb[0].mxu0
      %v3380 = vadd.f32 %v1510, %v3379
      %v3381 = vpop.f32.mrb[0].mxu0
      %v3382 = vadd.f32 %v1506, %v3381
      %v3383 = vpop.f32.mrb[0].mxu0
      %v3384 = vadd.f32 %v1510, %v3383
      %3385 = vmatprep.mubr.bf16.mxu0 %v1220
      %3386 = vmatmul.mubr.bf16.gmra.mrb[0].mxu0 %v1219
      %v3387 = vpop.f32.mrb[0].mxu0
      %v3388 = vadd.f32 %v1506, %v3387
      %v3389 = vpop.f32.mrb[0].mxu0
      %v3390 = vadd.f32 %v1510, %v3389
      %v3391 = vpop.f32.mrb[0].mxu0
      %v3392 = vadd.f32 %v1506, %v3391
      %v3393 = vpop.f32.mrb[0].mxu0
      %v3394 = vadd.f32 %v1510, %v3393
      %3395 = vmatprep.mubr.bf16.mxu0 %v1222
      %3396 = vmatmul.mubr.bf16.gmra.mrb[0].mxu0 %v1221
      %v3397 = vpop.f32.mrb[0].mxu0
      %v3398 = vadd.f32 %v1506, %v3397
      %v3399 = vpop.f32.mrb[0].mxu0
      %v3400 = vadd.f32 %v1510, %v3399
      %v3401 = vpop.f32.mrb[0].mxu0
      %v3402 = vadd.f32 %v1506, %v3401
      %v3403 = vpop.f32.mrb[0].mxu0
      %v3404 = vadd.f32 %v1510, %v3403
      %3405 = vmatprep.mubr.bf16.mxu0 %v1224
      %3406 = vmatmul.mubr.bf16.gmra.mrb[0].mxu0 %v1223
      %v3407 = vpop.f32.mrb[0].mxu0
      %v3408 = vadd.f32 %v1506, %v3407
      %v3409 = vpop.f32.mrb[0].mxu0
      %v3410 = vadd.f32 %v1510, %v3409
      %v3411 = vpop.f32.mrb[0].mxu0
      %v3412 = vadd.f32 %v1506, %v3411
      %v3413 = vpop.f32.mrb[0].mxu0
      %v3414 = vadd.f32 %v1510, %v3413
      %3415 = vmatprep.mubr.bf16.mxu0 %v1226
      %3416 = vmatmul.mubr.bf16.gmra.mrb[0].mxu0 %v1225
      %v3417 = vpop.f32.mrb[0].mxu0
      %v3418 = vadd.f32 %v1506, %v3417
      %v3419 = vpop.f32.mrb[0].mxu0
      %v3420 = vadd.f32 %v1510, %v3419
      %v3421 = vpop.f32.mrb[0].mxu0
      %v3422 = vadd.f32 %v1506, %v3421
      %v3423 = vpop.f32.mrb[0].mxu0
      %v3424 = vadd.f32 %v1510, %v3423
      %3425 = vdwg.mxu0
      %3426 = vmatprep.subr.bf16.mxu0 %v2342
      %3427 = vmatpush1.bf16.msra.mxu0 %v2341
      %3428 = vmatprep.subr.bf16.mxu0 %v2358
      %3429 = vmatpush1.bf16.msra.mxu0 %v2357
      %3430 = vmatprep.subr.bf16.mxu0 %v2374
      %3431 = vmatpush1.bf16.msra.mxu0 %v2373
      %3432 = vmatprep.subr.bf16.mxu0 %v2390
      %3433 = vmatpush1.bf16.msra.mxu0 %v2389
      %3434 = vmatprep.subr.bf16.mxu0 %v2406
      %3435 = vmatpush1.bf16.msra.mxu0 %v2405
      %3436 = vmatprep.subr.bf16.mxu0 %v2422
      %3437 = vmatpush1.bf16.msra.mxu0 %v2421
      %3438 = vmatprep.subr.bf16.mxu0 %v2438
      %3439 = vmatpush1.bf16.msra.mxu0 %v2437
      %3440 = vmatprep.subr.bf16.mxu0 %v2454
      %3441 = vmatpush1.bf16.msra.mxu0 %v2453
      %3442 = vmatprep.subr.bf16.mxu0 %v2470
      %3443 = vmatpush1.bf16.msra.mxu0 %v2469
      %3444 = vmatprep.subr.bf16.mxu0 %v2486
      %3445 = vmatpush1.bf16.msra.mxu0 %v2485
      %3446 = vmatprep.subr.bf16.mxu0 %v2502
      %3447 = vmatpush1.bf16.msra.mxu0 %v2501
      %3448 = vmatprep.subr.bf16.mxu0 %v2518
      %3449 = vmatpush1.bf16.msra.mxu0 %v2517
      %3450 = vmatprep.subr.bf16.mxu0 %v2534
      %3451 = vmatpush1.bf16.msra.mxu0 %v2533
      %3452 = vmatprep.subr.bf16.mxu0 %v2550
      %3453 = vmatpush1.bf16.msra.mxu0 %v2549
      %3454 = vmatprep.subr.bf16.mxu0 %v2566
      %3455 = vmatpush1.bf16.msra.mxu0 %v2565
      %3456 = vmatprep.subr.bf16.mxu0 %v2582
      %3457 = vmatpush1.bf16.msra.mxu0 %v2581
      %3458 = vmatprep.mubr.bf16.mxu0 %v1196
      %3459 = vmatmul.mubr.bf16.gmra.mrb[0].mxu0 %v1195
      %v3460 = vpop.f32.mrb[0].mxu0
      %v3461 = vadd.f32 %v1514, %v3460
      %v3462 = vpop.f32.mrb[0].mxu0
      %v3463 = vadd.f32 %v1518, %v3462
      %v3464 = vpop.f32.mrb[0].mxu0
      %v3465 = vadd.f32 %v1514, %v3464
      %v3466 = vpop.f32.mrb[0].mxu0
      %v3467 = vadd.f32 %v1518, %v3466
      %3468 = vmatprep.mubr.bf16.mxu0 %v1198
      %3469 = vmatmul.mubr.bf16.gmra.mrb[0].mxu0 %v1197
      %v3470 = vpop.f32.mrb[0].mxu0
      %v3471 = vadd.f32 %v1514, %v3470
      %v3472 = vpop.f32.mrb[0].mxu0
      %v3473 = vadd.f32 %v1518, %v3472
      %v3474 = vpop.f32.mrb[0].mxu0
      %v3475 = vadd.f32 %v1514, %v3474
      %v3476 = vpop.f32.mrb[0].mxu0
      %v3477 = vadd.f32 %v1518, %v3476
      %3478 = vmatprep.mubr.bf16.mxu0 %v1200
      %3479 = vmatmul.mubr.bf16.gmra.mrb[0].mxu0 %v1199
      %v3480 = vpop.f32.mrb[0].mxu0
      %v3481 = vadd.f32 %v1514, %v3480
      %v3482 = vpop.f32.mrb[0].mxu0
      %v3483 = vadd.f32 %v1518, %v3482
      %v3484 = vpop.f32.mrb[0].mxu0
      %v3485 = vadd.f32 %v1514, %v3484
      %v3486 = vpop.f32.mrb[0].mxu0
      %v3487 = vadd.f32 %v1518, %v3486
      %3488 = vmatprep.mubr.bf16.mxu0 %v1202
      %3489 = vmatmul.mubr.bf16.gmra.mrb[0].mxu0 %v1201
      %v3490 = vpop.f32.mrb[0].mxu0
      %v3491 = vadd.f32 %v1514, %v3490
      %v3492 = vpop.f32.mrb[0].mxu0
      %v3493 = vadd.f32 %v1518, %v3492
      %v3494 = vpop.f32.mrb[0].mxu0
      %v3495 = vadd.f32 %v1514, %v3494
      %v3496 = vpop.f32.mrb[0].mxu0
      %v3497 = vadd.f32 %v1518, %v3496
      %3498 = vmatprep.mubr.bf16.mxu0 %v1204
      %3499 = vmatmul.mubr.bf16.gmra.mrb[0].mxu0 %v1203
      %v3500 = vpop.f32.mrb[0].mxu0
      %v3501 = vadd.f32 %v1514, %v3500
      %v3502 = vpop.f32.mrb[0].mxu0
      %v3503 = vadd.f32 %v1518, %v3502
      %v3504 = vpop.f32.mrb[0].mxu0
      %v3505 = vadd.f32 %v1514, %v3504
      %v3506 = vpop.f32.mrb[0].mxu0
      %v3507 = vadd.f32 %v1518, %v3506
      %3508 = vmatprep.mubr.bf16.mxu0 %v1206
      %3509 = vmatmul.mubr.bf16.gmra.mrb[0].mxu0 %v1205
      %v3510 = vpop.f32.mrb[0].mxu0
      %v3511 = vadd.f32 %v1514, %v3510
      %v3512 = vpop.f32.mrb[0].mxu0
      %v3513 = vadd.f32 %v1518, %v3512
      %v3514 = vpop.f32.mrb[0].mxu0
      %v3515 = vadd.f32 %v1514, %v3514
      %v3516 = vpop.f32.mrb[0].mxu0
      %v3517 = vadd.f32 %v1518, %v3516
      %3518 = vmatprep.mubr.bf16.mxu0 %v1208
      %3519 = vmatmul.mubr.bf16.gmra.mrb[0].mxu0 %v1207
      %v3520 = vpop.f32.mrb[0].mxu0
      %v3521 = vadd.f32 %v1514, %v3520
      %v3522 = vpop.f32.mrb[0].mxu0
      %v3523 = vadd.f32 %v1518, %v3522
      %v3524 = vpop.f32.mrb[0].mxu0
      %v3525 = vadd.f32 %v1514, %v3524
      %v3526 = vpop.f32.mrb[0].mxu0
      %v3527 = vadd.f32 %v1518, %v3526
      %3528 = vmatprep.mubr.bf16.mxu0 %v1210
      %3529 = vmatmul.mubr.bf16.gmra.mrb[0].mxu0 %v1209
      %v3530 = vpop.f32.mrb[0].mxu0
      %v3531 = vadd.f32 %v1514, %v3530
      %v3532 = vpop.f32.mrb[0].mxu0
      %v3533 = vadd.f32 %v1518, %v3532
      %v3534 = vpop.f32.mrb[0].mxu0
      %v3535 = vadd.f32 %v1514, %v3534
      %v3536 = vpop.f32.mrb[0].mxu0
      %v3537 = vadd.f32 %v1518, %v3536
      %3538 = vmatprep.mubr.bf16.mxu0 %v1212
      %3539 = vmatmul.mubr.bf16.gmra.mrb[0].mxu0 %v1211
      %v3540 = vpop.f32.mrb[0].mxu0
      %v3541 = vadd.f32 %v1514, %v3540
      %v3542 = vpop.f32.mrb[0].mxu0
      %v3543 = vadd.f32 %v1518, %v3542
      %v3544 = vpop.f32.mrb[0].mxu0
      %v3545 = vadd.f32 %v1514, %v3544
      %v3546 = vpop.f32.mrb[0].mxu0
      %v3547 = vadd.f32 %v1518, %v3546
      %3548 = vmatprep.mubr.bf16.mxu0 %v1214
      %3549 = vmatmul.mubr.bf16.gmra.mrb[0].mxu0 %v1213
      %v3550 = vpop.f32.mrb[0].mxu0
      %v3551 = vadd.f32 %v1514, %v3550
      %v3552 = vpop.f32.mrb[0].mxu0
      %v3553 = vadd.f32 %v1518, %v3552
      %v3554 = vpop.f32.mrb[0].mxu0
      %v3555 = vadd.f32 %v1514, %v3554
      %v3556 = vpop.f32.mrb[0].mxu0
      %v3557 = vadd.f32 %v1518, %v3556
      %3558 = vmatprep.mubr.bf16.mxu0 %v1216
      %3559 = vmatmul.mubr.bf16.gmra.mrb[0].mxu0 %v1215
      %v3560 = vpop.f32.mrb[0].mxu0
      %v3561 = vadd.f32 %v1514, %v3560
      %v3562 = vpop.f32.mrb[0].mxu0
      %v3563 = vadd.f32 %v1518, %v3562
      %v3564 = vpop.f32.mrb[0].mxu0
      %v3565 = vadd.f32 %v1514, %v3564
      %v3566 = vpop.f32.mrb[0].mxu0
      %v3567 = vadd.f32 %v1518, %v3566
      %3568 = vmatprep.mubr.bf16.mxu0 %v1218
      %3569 = vmatmul.mubr.bf16.gmra.mrb[0].mxu0 %v1217
      %v3570 = vpop.f32.mrb[0].mxu0
      %v3571 = vadd.f32 %v1514, %v3570
      %v3572 = vpop.f32.mrb[0].mxu0
      %v3573 = vadd.f32 %v1518, %v3572
      %v3574 = vpop.f32.mrb[0].mxu0
      %v3575 = vadd.f32 %v1514, %v3574
      %v3576 = vpop.f32.mrb[0].mxu0
      %v3577 = vadd.f32 %v1518, %v3576
      %3578 = vmatprep.mubr.bf16.mxu0 %v1220
      %3579 = vmatmul.mubr.bf16.gmra.mrb[0].mxu0 %v1219
      %v3580 = vpop.f32.mrb[0].mxu0
      %v3581 = vadd.f32 %v1514, %v3580
      %v3582 = vpop.f32.mrb[0].mxu0
      %v3583 = vadd.f32 %v1518, %v3582
      %v3584 = vpop.f32.mrb[0].mxu0
      %v3585 = vadd.f32 %v1514, %v3584
      %v3586 = vpop.f32.mrb[0].mxu0
      %v3587 = vadd.f32 %v1518, %v3586
      %3588 = vmatprep.mubr.bf16.mxu0 %v1222
      %3589 = vmatmul.mubr.bf16.gmra.mrb[0].mxu0 %v1221
      %v3590 = vpop.f32.mrb[0].mxu0
      %v3591 = vadd.f32 %v1514, %v3590
      %v3592 = vpop.f32.mrb[0].mxu0
      %v3593 = vadd.f32 %v1518, %v3592
      %v3594 = vpop.f32.mrb[0].mxu0
      %v3595 = vadd.f32 %v1514, %v3594
      %v3596 = vpop.f32.mrb[0].mxu0
      %v3597 = vadd.f32 %v1518, %v3596
      %3598 = vmatprep.mubr.bf16.mxu0 %v1224
      %3599 = vmatmul.mubr.bf16.gmra.mrb[0].mxu0 %v1223
      %v3600 = vpop.f32.mrb[0].mxu0
      %v3601 = vadd.f32 %v1514, %v3600
      %v3602 = vpop.f32.mrb[0].mxu0
      %v3603 = vadd.f32 %v1518, %v3602
      %v3604 = vpop.f32.mrb[0].mxu0
      %v3605 = vadd.f32 %v1514, %v3604
      %v3606 = vpop.f32.mrb[0].mxu0
      %v3607 = vadd.f32 %v1518, %v3606
      %3608 = vmatprep.mubr.bf16.mxu0 %v1226
      %3609 = vmatmul.mubr.bf16.gmra.mrb[0].mxu0 %v1225
      %v3610 = vpop.f32.mrb[0].mxu0
      %v3611 = vadd.f32 %v1514, %v3610
      %v3612 = vpop.f32.mrb[0].mxu0
      %v3613 = vadd.f32 %v1518, %v3612
      %v3614 = vpop.f32.mrb[0].mxu0
      %v3615 = vadd.f32 %v1514, %v3614
      %v3616 = vpop.f32.mrb[0].mxu0
      %v3617 = vadd.f32 %v1518, %v3616
      %3618 = vdwg.mxu0
      %3619 = vmatprep.subr.bf16.mxu0 %v2344
      %3620 = vmatpush1.bf16.msra.mxu0 %v2343
      %3621 = vmatprep.subr.bf16.mxu0 %v2360
      %3622 = vmatpush1.bf16.msra.mxu0 %v2359
      %3623 = vmatprep.subr.bf16.mxu0 %v2376
      %3624 = vmatpush1.bf16.msra.mxu0 %v2375
      %3625 = vmatprep.subr.bf16.mxu0 %v2392
      %3626 = vmatpush1.bf16.msra.mxu0 %v2391
      %3627 = vmatprep.subr.bf16.mxu0 %v2408
      %3628 = vmatpush1.bf16.msra.mxu0 %v2407
      %3629 = vmatprep.subr.bf16.mxu0 %v2424
      %3630 = vmatpush1.bf16.msra.mxu0 %v2423
      %3631 = vmatprep.subr.bf16.mxu0 %v2440
      %3632 = vmatpush1.bf16.msra.mxu0 %v2439
      %3633 = vmatprep.subr.bf16.mxu0 %v2456
      %3634 = vmatpush1.bf16.msra.mxu0 %v2455
      %3635 = vmatprep.subr.bf16.mxu0 %v2472
      %3636 = vmatpush1.bf16.msra.mxu0 %v2471
      %3637 = vmatprep.subr.bf16.mxu0 %v2488
      %3638 = vmatpush1.bf16.msra.mxu0 %v2487
      %3639 = vmatprep.subr.bf16.mxu0 %v2504
      %3640 = vmatpush1.bf16.msra.mxu0 %v2503
      %3641 = vmatprep.subr.bf16.mxu0 %v2520
      %3642 = vmatpush1.bf16.msra.mxu0 %v2519
      %3643 = vmatprep.subr.bf16.mxu0 %v2536
      %3644 = vmatpush1.bf16.msra.mxu0 %v2535
      %3645 = vmatprep.subr.bf16.mxu0 %v2552
      %3646 = vmatpush1.bf16.msra.mxu0 %v2551
      %3647 = vmatprep.subr.bf16.mxu0 %v2568
      %3648 = vmatpush1.bf16.msra.mxu0 %v2567
      %3649 = vmatprep.subr.bf16.mxu0 %v2584
      %3650 = vmatpush1.bf16.msra.mxu0 %v2583
      %3651 = vmatprep.mubr.bf16.mxu0 %v1196
      %3652 = vmatmul.mubr.bf16.gmra.mrb[0].mxu0 %v1195
      %v3653 = vpop.f32.mrb[0].mxu0
      %v3654 = vadd.f32 %v1522, %v3653
      %v3655 = vpop.f32.mrb[0].mxu0
      %v3656 = vadd.f32 %v1526, %v3655
      %v3657 = vpop.f32.mrb[0].mxu0
      %v3658 = vadd.f32 %v1522, %v3657
      %v3659 = vpop.f32.mrb[0].mxu0
      %v3660 = vadd.f32 %v1526, %v3659
      %3661 = vmatprep.mubr.bf16.mxu0 %v1198
      %3662 = vmatmul.mubr.bf16.gmra.mrb[0].mxu0 %v1197
      %v3663 = vpop.f32.mrb[0].mxu0
      %v3664 = vadd.f32 %v1522, %v3663
      %v3665 = vpop.f32.mrb[0].mxu0
      %v3666 = vadd.f32 %v1526, %v3665
      %v3667 = vpop.f32.mrb[0].mxu0
      %v3668 = vadd.f32 %v1522, %v3667
      %v3669 = vpop.f32.mrb[0].mxu0
      %v3670 = vadd.f32 %v1526, %v3669
      %3671 = vmatprep.mubr.bf16.mxu0 %v1200
      %3672 = vmatmul.mubr.bf16.gmra.mrb[0].mxu0 %v1199
      %v3673 = vpop.f32.mrb[0].mxu0
      %v3674 = vadd.f32 %v1522, %v3673
      %v3675 = vpop.f32.mrb[0].mxu0
      %v3676 = vadd.f32 %v1526, %v3675
      %v3677 = vpop.f32.mrb[0].mxu0
      %v3678 = vadd.f32 %v1522, %v3677
      %v3679 = vpop.f32.mrb[0].mxu0
      %v3680 = vadd.f32 %v1526, %v3679
      %3681 = vmatprep.mubr.bf16.mxu0 %v1202
      %3682 = vmatmul.mubr.bf16.gmra.mrb[0].mxu0 %v1201
      %v3683 = vpop.f32.mrb[0].mxu0
      %v3684 = vadd.f32 %v1522, %v3683
      %v3685 = vpop.f32.mrb[0].mxu0
      %v3686 = vadd.f32 %v1526, %v3685
      %v3687 = vpop.f32.mrb[0].mxu0
      %v3688 = vadd.f32 %v1522, %v3687
      %v3689 = vpop.f32.mrb[0].mxu0
      %v3690 = vadd.f32 %v1526, %v3689
      %3691 = vmatprep.mubr.bf16.mxu0 %v1204
      %3692 = vmatmul.mubr.bf16.gmra.mrb[0].mxu0 %v1203
      %v3693 = vpop.f32.mrb[0].mxu0
      %v3694 = vadd.f32 %v1522, %v3693
      %v3695 = vpop.f32.mrb[0].mxu0
      %v3696 = vadd.f32 %v1526, %v3695
      %v3697 = vpop.f32.mrb[0].mxu0
      %v3698 = vadd.f32 %v1522, %v3697
      %v3699 = vpop.f32.mrb[0].mxu0
      %v3700 = vadd.f32 %v1526, %v3699
      %3701 = vmatprep.mubr.bf16.mxu0 %v1206
      %3702 = vmatmul.mubr.bf16.gmra.mrb[0].mxu0 %v1205
      %v3703 = vpop.f32.mrb[0].mxu0
      %v3704 = vadd.f32 %v1522, %v3703
      %v3705 = vpop.f32.mrb[0].mxu0
      %v3706 = vadd.f32 %v1526, %v3705
      %v3707 = vpop.f32.mrb[0].mxu0
      %v3708 = vadd.f32 %v1522, %v3707
      %v3709 = vpop.f32.mrb[0].mxu0
      %v3710 = vadd.f32 %v1526, %v3709
      %3711 = vmatprep.mubr.bf16.mxu0 %v1208
      %3712 = vmatmul.mubr.bf16.gmra.mrb[0].mxu0 %v1207
      %v3713 = vpop.f32.mrb[0].mxu0
      %v3714 = vadd.f32 %v1522, %v3713
      %v3715 = vpop.f32.mrb[0].mxu0
      %v3716 = vadd.f32 %v1526, %v3715
      %v3717 = vpop.f32.mrb[0].mxu0
      %v3718 = vadd.f32 %v1522, %v3717
      %v3719 = vpop.f32.mrb[0].mxu0
      %v3720 = vadd.f32 %v1526, %v3719
      %3721 = vmatprep.mubr.bf16.mxu0 %v1210
      %3722 = vmatmul.mubr.bf16.gmra.mrb[0].mxu0 %v1209
      %v3723 = vpop.f32.mrb[0].mxu0
      %v3724 = vadd.f32 %v1522, %v3723
      %v3725 = vpop.f32.mrb[0].mxu0
      %v3726 = vadd.f32 %v1526, %v3725
      %v3727 = vpop.f32.mrb[0].mxu0
      %v3728 = vadd.f32 %v1522, %v3727
      %v3729 = vpop.f32.mrb[0].mxu0
      %v3730 = vadd.f32 %v1526, %v3729
      %3731 = vmatprep.mubr.bf16.mxu0 %v1212
      %3732 = vmatmul.mubr.bf16.gmra.mrb[0].mxu0 %v1211
      %v3733 = vpop.f32.mrb[0].mxu0
      %v3734 = vadd.f32 %v1522, %v3733
      %v3735 = vpop.f32.mrb[0].mxu0
      %v3736 = vadd.f32 %v1526, %v3735
      %v3737 = vpop.f32.mrb[0].mxu0
      %v3738 = vadd.f32 %v1522, %v3737
      %v3739 = vpop.f32.mrb[0].mxu0
      %v3740 = vadd.f32 %v1526, %v3739
      %3741 = vmatprep.mubr.bf16.mxu0 %v1214
      %3742 = vmatmul.mubr.bf16.gmra.mrb[0].mxu0 %v1213
      %v3743 = vpop.f32.mrb[0].mxu0
      %v3744 = vadd.f32 %v1522, %v3743
      %v3745 = vpop.f32.mrb[0].mxu0
      %v3746 = vadd.f32 %v1526, %v3745
      %v3747 = vpop.f32.mrb[0].mxu0
      %v3748 = vadd.f32 %v1522, %v3747
      %v3749 = vpop.f32.mrb[0].mxu0
      %v3750 = vadd.f32 %v1526, %v3749
      %3751 = vmatprep.mubr.bf16.mxu0 %v1216
      %3752 = vmatmul.mubr.bf16.gmra.mrb[0].mxu0 %v1215
      %v3753 = vpop.f32.mrb[0].mxu0
      %v3754 = vadd.f32 %v1522, %v3753
      %v3755 = vpop.f32.mrb[0].mxu0
      %v3756 = vadd.f32 %v1526, %v3755
      %v3757 = vpop.f32.mrb[0].mxu0
      %v3758 = vadd.f32 %v1522, %v3757
      %v3759 = vpop.f32.mrb[0].mxu0
      %v3760 = vadd.f32 %v1526, %v3759
      %3761 = vmatprep.mubr.bf16.mxu0 %v1218
      %3762 = vmatmul.mubr.bf16.gmra.mrb[0].mxu0 %v1217
      %v3763 = vpop.f32.mrb[0].mxu0
      %v3764 = vadd.f32 %v1522, %v3763
      %v3765 = vpop.f32.mrb[0].mxu0
      %v3766 = vadd.f32 %v1526, %v3765
      %v3767 = vpop.f32.mrb[0].mxu0
      %v3768 = vadd.f32 %v1522, %v3767
      %v3769 = vpop.f32.mrb[0].mxu0
      %v3770 = vadd.f32 %v1526, %v3769
      %3771 = vmatprep.mubr.bf16.mxu0 %v1220
      %3772 = vmatmul.mubr.bf16.gmra.mrb[0].mxu0 %v1219
      %v3773 = vpop.f32.mrb[0].mxu0
      %v3774 = vadd.f32 %v1522, %v3773
      %v3775 = vpop.f32.mrb[0].mxu0
      %v3776 = vadd.f32 %v1526, %v3775
      %v3777 = vpop.f32.mrb[0].mxu0
      %v3778 = vadd.f32 %v1522, %v3777
      %v3779 = vpop.f32.mrb[0].mxu0
      %v3780 = vadd.f32 %v1526, %v3779
      %3781 = vmatprep.mubr.bf16.mxu0 %v1222
      %3782 = vmatmul.mubr.bf16.gmra.mrb[0].mxu0 %v1221
      %v3783 = vpop.f32.mrb[0].mxu0
      %v3784 = vadd.f32 %v1522, %v3783
      %v3785 = vpop.f32.mrb[0].mxu0
      %v3786 = vadd.f32 %v1526, %v3785
      %v3787 = vpop.f32.mrb[0].mxu0
      %v3788 = vadd.f32 %v1522, %v3787
      %v3789 = vpop.f32.mrb[0].mxu0
      %v3790 = vadd.f32 %v1526, %v3789
      %3791 = vmatprep.mubr.bf16.mxu0 %v1224
      %3792 = vmatmul.mubr.bf16.gmra.mrb[0].mxu0 %v1223
      %v3793 = vpop.f32.mrb[0].mxu0
      %v3794 = vadd.f32 %v1522, %v3793
      %v3795 = vpop.f32.mrb[0].mxu0
      %v3796 = vadd.f32 %v1526, %v3795
      %v3797 = vpop.f32.mrb[0].mxu0
      %v3798 = vadd.f32 %v1522, %v3797
      %v3799 = vpop.f32.mrb[0].mxu0
      %v3800 = vadd.f32 %v1526, %v3799
      %3801 = vmatprep.mubr.bf16.mxu0 %v1226
      %3802 = vmatmul.mubr.bf16.gmra.mrb[0].mxu0 %v1225
      %v3803 = vpop.f32.mrb[0].mxu0
      %v3804 = vadd.f32 %v1522, %v3803
      %v3805 = vpop.f32.mrb[0].mxu0
      %v3806 = vadd.f32 %v1526, %v3805
      %v3807 = vpop.f32.mrb[0].mxu0
      %v3808 = vadd.f32 %v1522, %v3807
      %v3809 = vpop.f32.mrb[0].mxu0
      %v3810 = vadd.f32 %v1526, %v3809
      %3811 = vdwg.mxu0
      %3812 = vmatprep.subr.bf16.mxu0 %v2346
      %3813 = vmatpush1.bf16.msra.mxu0 %v2345
      %3814 = vmatprep.subr.bf16.mxu0 %v2362
      %3815 = vmatpush1.bf16.msra.mxu0 %v2361
      %3816 = vmatprep.subr.bf16.mxu0 %v2378
      %3817 = vmatpush1.bf16.msra.mxu0 %v2377
      %3818 = vmatprep.subr.bf16.mxu0 %v2394
      %3819 = vmatpush1.bf16.msra.mxu0 %v2393
      %3820 = vmatprep.subr.bf16.mxu0 %v2410
      %3821 = vmatpush1.bf16.msra.mxu0 %v2409
      %3822 = vmatprep.subr.bf16.mxu0 %v2426
      %3823 = vmatpush1.bf16.msra.mxu0 %v2425
      %3824 = vmatprep.subr.bf16.mxu0 %v2442
      %3825 = vmatpush1.bf16.msra.mxu0 %v2441
      %3826 = vmatprep.subr.bf16.mxu0 %v2458
      %3827 = vmatpush1.bf16.msra.mxu0 %v2457
      %3828 = vmatprep.subr.bf16.mxu0 %v2474
      %3829 = vmatpush1.bf16.msra.mxu0 %v2473
      %3830 = vmatprep.subr.bf16.mxu0 %v2490
      %3831 = vmatpush1.bf16.msra.mxu0 %v2489
      %3832 = vmatprep.subr.bf16.mxu0 %v2506
      %3833 = vmatpush1.bf16.msra.mxu0 %v2505
      %3834 = vmatprep.subr.bf16.mxu0 %v2522
      %3835 = vmatpush1.bf16.msra.mxu0 %v2521
      %3836 = vmatprep.subr.bf16.mxu0 %v2538
      %3837 = vmatpush1.bf16.msra.mxu0 %v2537
      %3838 = vmatprep.subr.bf16.mxu0 %v2554
      %3839 = vmatpush1.bf16.msra.mxu0 %v2553
      %3840 = vmatprep.subr.bf16.mxu0 %v2570
      %3841 = vmatpush1.bf16.msra.mxu0 %v2569
      %3842 = vmatprep.subr.bf16.mxu0 %v2586
      %3843 = vmatpush1.bf16.msra.mxu0 %v2585
      %3844 = vmatprep.mubr.bf16.mxu0 %v1196
      %3845 = vmatmul.mubr.bf16.gmra.mrb[0].mxu0 %v1195
      %v3846 = vpop.f32.mrb[0].mxu0
      %v3847 = vadd.f32 %v1530, %v3846
      %v3848 = vpop.f32.mrb[0].mxu0
      %v3849 = vadd.f32 %v1534, %v3848
      %v3850 = vpop.f32.mrb[0].mxu0
      %v3851 = vadd.f32 %v1530, %v3850
      %v3852 = vpop.f32.mrb[0].mxu0
      %v3853 = vadd.f32 %v1534, %v3852
      %3854 = vmatprep.mubr.bf16.mxu0 %v1198
      %3855 = vmatmul.mubr.bf16.gmra.mrb[0].mxu0 %v1197
      %v3856 = vpop.f32.mrb[0].mxu0
      %v3857 = vadd.f32 %v1530, %v3856
      %v3858 = vpop.f32.mrb[0].mxu0
      %v3859 = vadd.f32 %v1534, %v3858
      %v3860 = vpop.f32.mrb[0].mxu0
      %v3861 = vadd.f32 %v1530, %v3860
      %v3862 = vpop.f32.mrb[0].mxu0
      %v3863 = vadd.f32 %v1534, %v3862
      %3864 = vmatprep.mubr.bf16.mxu0 %v1200
      %3865 = vmatmul.mubr.bf16.gmra.mrb[0].mxu0 %v1199
      %v3866 = vpop.f32.mrb[0].mxu0
      %v3867 = vadd.f32 %v1530, %v3866
      %v3868 = vpop.f32.mrb[0].mxu0
      %v3869 = vadd.f32 %v1534, %v3868
      %v3870 = vpop.f32.mrb[0].mxu0
      %v3871 = vadd.f32 %v1530, %v3870
      %v3872 = vpop.f32.mrb[0].mxu0
      %v3873 = vadd.f32 %v1534, %v3872
      %3874 = vmatprep.mubr.bf16.mxu0 %v1202
      %3875 = vmatmul.mubr.bf16.gmra.mrb[0].mxu0 %v1201
      %v3876 = vpop.f32.mrb[0].mxu0
      %v3877 = vadd.f32 %v1530, %v3876
      %v3878 = vpop.f32.mrb[0].mxu0
      %v3879 = vadd.f32 %v1534, %v3878
      %v3880 = vpop.f32.mrb[0].mxu0
      %v3881 = vadd.f32 %v1530, %v3880
      %v3882 = vpop.f32.mrb[0].mxu0
      %v3883 = vadd.f32 %v1534, %v3882
      %3884 = vmatprep.mubr.bf16.mxu0 %v1204
      %3885 = vmatmul.mubr.bf16.gmra.mrb[0].mxu0 %v1203
      %v3886 = vpop.f32.mrb[0].mxu0
      %v3887 = vadd.f32 %v1530, %v3886
      %v3888 = vpop.f32.mrb[0].mxu0
      %v3889 = vadd.f32 %v1534, %v3888
      %v3890 = vpop.f32.mrb[0].mxu0
      %v3891 = vadd.f32 %v1530, %v3890
      %v3892 = vpop.f32.mrb[0].mxu0
      %v3893 = vadd.f32 %v1534, %v3892
      %3894 = vmatprep.mubr.bf16.mxu0 %v1206
      %3895 = vmatmul.mubr.bf16.gmra.mrb[0].mxu0 %v1205
      %v3896 = vpop.f32.mrb[0].mxu0
      %v3897 = vadd.f32 %v1530, %v3896
      %v3898 = vpop.f32.mrb[0].mxu0
      %v3899 = vadd.f32 %v1534, %v3898
      %v3900 = vpop.f32.mrb[0].mxu0
      %v3901 = vadd.f32 %v1530, %v3900
      %v3902 = vpop.f32.mrb[0].mxu0
      %v3903 = vadd.f32 %v1534, %v3902
      %3904 = vmatprep.mubr.bf16.mxu0 %v1208
      %3905 = vmatmul.mubr.bf16.gmra.mrb[0].mxu0 %v1207
      %v3906 = vpop.f32.mrb[0].mxu0
      %v3907 = vadd.f32 %v1530, %v3906
      %v3908 = vpop.f32.mrb[0].mxu0
      %v3909 = vadd.f32 %v1534, %v3908
      %v3910 = vpop.f32.mrb[0].mxu0
      %v3911 = vadd.f32 %v1530, %v3910
      %v3912 = vpop.f32.mrb[0].mxu0
      %v3913 = vadd.f32 %v1534, %v3912
      %3914 = vmatprep.mubr.bf16.mxu0 %v1210
      %3915 = vmatmul.mubr.bf16.gmra.mrb[0].mxu0 %v1209
      %v3916 = vpop.f32.mrb[0].mxu0
      %v3917 = vadd.f32 %v1530, %v3916
      %v3918 = vpop.f32.mrb[0].mxu0
      %v3919 = vadd.f32 %v1534, %v3918
      %v3920 = vpop.f32.mrb[0].mxu0
      %v3921 = vadd.f32 %v1530, %v3920
      %v3922 = vpop.f32.mrb[0].mxu0
      %v3923 = vadd.f32 %v1534, %v3922
      %3924 = vmatprep.mubr.bf16.mxu0 %v1212
      %3925 = vmatmul.mubr.bf16.gmra.mrb[0].mxu0 %v1211
      %v3926 = vpop.f32.mrb[0].mxu0
      %v3927 = vadd.f32 %v1530, %v3926
      %v3928 = vpop.f32.mrb[0].mxu0
      %v3929 = vadd.f32 %v1534, %v3928
      %v3930 = vpop.f32.mrb[0].mxu0
      %v3931 = vadd.f32 %v1530, %v3930
      %v3932 = vpop.f32.mrb[0].mxu0
      %v3933 = vadd.f32 %v1534, %v3932
      %3934 = vmatprep.mubr.bf16.mxu0 %v1214
      %3935 = vmatmul.mubr.bf16.gmra.mrb[0].mxu0 %v1213
      %v3936 = vpop.f32.mrb[0].mxu0
      %v3937 = vadd.f32 %v1530, %v3936
      %v3938 = vpop.f32.mrb[0].mxu0
      %v3939 = vadd.f32 %v1534, %v3938
      %v3940 = vpop.f32.mrb[0].mxu0
      %v3941 = vadd.f32 %v1530, %v3940
      %v3942 = vpop.f32.mrb[0].mxu0
      %v3943 = vadd.f32 %v1534, %v3942
      %3944 = vmatprep.mubr.bf16.mxu0 %v1216
      %3945 = vmatmul.mubr.bf16.gmra.mrb[0].mxu0 %v1215
      %v3946 = vpop.f32.mrb[0].mxu0
      %v3947 = vadd.f32 %v1530, %v3946
      %v3948 = vpop.f32.mrb[0].mxu0
      %v3949 = vadd.f32 %v1534, %v3948
      %v3950 = vpop.f32.mrb[0].mxu0
      %v3951 = vadd.f32 %v1530, %v3950
      %v3952 = vpop.f32.mrb[0].mxu0
      %v3953 = vadd.f32 %v1534, %v3952
      %3954 = vmatprep.mubr.bf16.mxu0 %v1218
      %3955 = vmatmul.mubr.bf16.gmra.mrb[0].mxu0 %v1217
      %v3956 = vpop.f32.mrb[0].mxu0
      %v3957 = vadd.f32 %v1530, %v3956
      %v3958 = vpop.f32.mrb[0].mxu0
      %v3959 = vadd.f32 %v1534, %v3958
      %v3960 = vpop.f32.mrb[0].mxu0
      %v3961 = vadd.f32 %v1530, %v3960
      %v3962 = vpop.f32.mrb[0].mxu0
      %v3963 = vadd.f32 %v1534, %v3962
      %3964 = vmatprep.mubr.bf16.mxu0 %v1220
      %3965 = vmatmul.mubr.bf16.gmra.mrb[0].mxu0 %v1219
      %v3966 = vpop.f32.mrb[0].mxu0
      %v3967 = vadd.f32 %v1530, %v3966
      %v3968 = vpop.f32.mrb[0].mxu0
      %v3969 = vadd.f32 %v1534, %v3968
      %v3970 = vpop.f32.mrb[0].mxu0
      %v3971 = vadd.f32 %v1530, %v3970
      %v3972 = vpop.f32.mrb[0].mxu0
      %v3973 = vadd.f32 %v1534, %v3972
      %3974 = vmatprep.mubr.bf16.mxu0 %v1222
      %3975 = vmatmul.mubr.bf16.gmra.mrb[0].mxu0 %v1221
      %v3976 = vpop.f32.mrb[0].mxu0
      %v3977 = vadd.f32 %v1530, %v3976
      %v3978 = vpop.f32.mrb[0].mxu0
      %v3979 = vadd.f32 %v1534, %v3978
      %v3980 = vpop.f32.mrb[0].mxu0
      %v3981 = vadd.f32 %v1530, %v3980
      %v3982 = vpop.f32.mrb[0].mxu0
      %v3983 = vadd.f32 %v1534, %v3982
      %3984 = vmatprep.mubr.bf16.mxu0 %v1224
      %3985 = vmatmul.mubr.bf16.gmra.mrb[0].mxu0 %v1223
      %v3986 = vpop.f32.mrb[0].mxu0
      %v3987 = vadd.f32 %v1530, %v3986
      %v3988 = vpop.f32.mrb[0].mxu0
      %v3989 = vadd.f32 %v1534, %v3988
      %v3990 = vpop.f32.mrb[0].mxu0
      %v3991 = vadd.f32 %v1530, %v3990
      %v3992 = vpop.f32.mrb[0].mxu0
      %v3993 = vadd.f32 %v1534, %v3992
      %3994 = vmatprep.mubr.bf16.mxu0 %v1226
      %3995 = vmatmul.mubr.bf16.gmra.mrb[0].mxu0 %v1225
      %v3996 = vpop.f32.mrb[0].mxu0
      %v3997 = vadd.f32 %v1530, %v3996
      %v3998 = vpop.f32.mrb[0].mxu0
      %v3999 = vadd.f32 %v1534, %v3998
      %v4000 = vpop.f32.mrb[0].mxu0
      %v4001 = vadd.f32 %v1530, %v4000
      %v4002 = vpop.f32.mrb[0].mxu0
      %v4003 = vadd.f32 %v1534, %v4002
      %4004 = vdwg.mxu0
      %4005 = vmatprep.subr.bf16.mxu0 %v2348
      %4006 = vmatpush1.bf16.msra.mxu0 %v2347
      %4007 = vmatprep.subr.bf16.mxu0 %v2364
      %4008 = vmatpush1.bf16.msra.mxu0 %v2363
      %4009 = vmatprep.subr.bf16.mxu0 %v2380
      %4010 = vmatpush1.bf16.msra.mxu0 %v2379
      %4011 = vmatprep.subr.bf16.mxu0 %v2396
      %4012 = vmatpush1.bf16.msra.mxu0 %v2395
      %4013 = vmatprep.subr.bf16.mxu0 %v2412
      %4014 = vmatpush1.bf16.msra.mxu0 %v2411
      %4015 = vmatprep.subr.bf16.mxu0 %v2428
      %4016 = vmatpush1.bf16.msra.mxu0 %v2427
      %4017 = vmatprep.subr.bf16.mxu0 %v2444
      %4018 = vmatpush1.bf16.msra.mxu0 %v2443
      %4019 = vmatprep.subr.bf16.mxu0 %v2460
      %4020 = vmatpush1.bf16.msra.mxu0 %v2459
      %4021 = vmatprep.subr.bf16.mxu0 %v2476
      %4022 = vmatpush1.bf16.msra.mxu0 %v2475
      %4023 = vmatprep.subr.bf16.mxu0 %v2492
      %4024 = vmatpush1.bf16.msra.mxu0 %v2491
      %4025 = vmatprep.subr.bf16.mxu0 %v2508
      %4026 = vmatpush1.bf16.msra.mxu0 %v2507
      %4027 = vmatprep.subr.bf16.mxu0 %v2524
      %4028 = vmatpush1.bf16.msra.mxu0 %v2523
      %4029 = vmatprep.subr.bf16.mxu0 %v2540
      %4030 = vmatpush1.bf16.msra.mxu0 %v2539
      %4031 = vmatprep.subr.bf16.mxu0 %v2556
      %4032 = vmatpush1.bf16.msra.mxu0 %v2555
      %4033 = vmatprep.subr.bf16.mxu0 %v2572
      %4034 = vmatpush1.bf16.msra.mxu0 %v2571
      %4035 = vmatprep.subr.bf16.mxu0 %v2588
      %4036 = vmatpush1.bf16.msra.mxu0 %v2587
      %4037 = vmatprep.mubr.bf16.mxu0 %v1196
      %4038 = vmatmul.mubr.bf16.gmra.mrb[0].mxu0 %v1195
      %v4039 = vpop.f32.mrb[0].mxu0
      %v4040 = vadd.f32 %v1538, %v4039
      %v4041 = vpop.f32.mrb[0].mxu0
      %v4042 = vadd.f32 %v1542, %v4041
      %v4043 = vpop.f32.mrb[0].mxu0
      %v4044 = vadd.f32 %v1538, %v4043
      %v4045 = vpop.f32.mrb[0].mxu0
      %v4046 = vadd.f32 %v1542, %v4045
      %4047 = vmatprep.mubr.bf16.mxu0 %v1198
      %4048 = vmatmul.mubr.bf16.gmra.mrb[0].mxu0 %v1197
      %v4049 = vpop.f32.mrb[0].mxu0
      %v4050 = vadd.f32 %v1538, %v4049
      %v4051 = vpop.f32.mrb[0].mxu0
      %v4052 = vadd.f32 %v1542, %v4051
      %v4053 = vpop.f32.mrb[0].mxu0
      %v4054 = vadd.f32 %v1538, %v4053
      %v4055 = vpop.f32.mrb[0].mxu0
      %v4056 = vadd.f32 %v1542, %v4055
      %4057 = vmatprep.mubr.bf16.mxu0 %v1200
      %4058 = vmatmul.mubr.bf16.gmra.mrb[0].mxu0 %v1199
      %v4059 = vpop.f32.mrb[0].mxu0
      %v4060 = vadd.f32 %v1538, %v4059
      %v4061 = vpop.f32.mrb[0].mxu0
      %v4062 = vadd.f32 %v1542, %v4061
      %v4063 = vpop.f32.mrb[0].mxu0
      %v4064 = vadd.f32 %v1538, %v4063
      %v4065 = vpop.f32.mrb[0].mxu0
      %v4066 = vadd.f32 %v1542, %v4065
      %4067 = vmatprep.mubr.bf16.mxu0 %v1202
      %4068 = vmatmul.mubr.bf16.gmra.mrb[0].mxu0 %v1201
      %v4069 = vpop.f32.mrb[0].mxu0
      %v4070 = vadd.f32 %v1538, %v4069
      %v4071 = vpop.f32.mrb[0].mxu0
      %v4072 = vadd.f32 %v1542, %v4071
      %v4073 = vpop.f32.mrb[0].mxu0
      %v4074 = vadd.f32 %v1538, %v4073
      %v4075 = vpop.f32.mrb[0].mxu0
      %v4076 = vadd.f32 %v1542, %v4075
      %4077 = vmatprep.mubr.bf16.mxu0 %v1204
      %4078 = vmatmul.mubr.bf16.gmra.mrb[0].mxu0 %v1203
      %v4079 = vpop.f32.mrb[0].mxu0
      %v4080 = vadd.f32 %v1538, %v4079
      %v4081 = vpop.f32.mrb[0].mxu0
      %v4082 = vadd.f32 %v1542, %v4081
      %v4083 = vpop.f32.mrb[0].mxu0
      %v4084 = vadd.f32 %v1538, %v4083
      %v4085 = vpop.f32.mrb[0].mxu0
      %v4086 = vadd.f32 %v1542, %v4085
      %4087 = vmatprep.mubr.bf16.mxu0 %v1206
      %4088 = vmatmul.mubr.bf16.gmra.mrb[0].mxu0 %v1205
      %v4089 = vpop.f32.mrb[0].mxu0
      %v4090 = vadd.f32 %v1538, %v4089
      %v4091 = vpop.f32.mrb[0].mxu0
      %v4092 = vadd.f32 %v1542, %v4091
      %v4093 = vpop.f32.mrb[0].mxu0
      %v4094 = vadd.f32 %v1538, %v4093
      %v4095 = vpop.f32.mrb[0].mxu0
      %v4096 = vadd.f32 %v1542, %v4095
      %4097 = vmatprep.mubr.bf16.mxu0 %v1208
      %4098 = vmatmul.mubr.bf16.gmra.mrb[0].mxu0 %v1207
      %v4099 = vpop.f32.mrb[0].mxu0
      %v4100 = vadd.f32 %v1538, %v4099
      %v4101 = vpop.f32.mrb[0].mxu0
      %v4102 = vadd.f32 %v1542, %v4101
      %v4103 = vpop.f32.mrb[0].mxu0
      %v4104 = vadd.f32 %v1538, %v4103
      %v4105 = vpop.f32.mrb[0].mxu0
      %v4106 = vadd.f32 %v1542, %v4105
      %4107 = vmatprep.mubr.bf16.mxu0 %v1210
      %4108 = vmatmul.mubr.bf16.gmra.mrb[0].mxu0 %v1209
      %v4109 = vpop.f32.mrb[0].mxu0
      %v4110 = vadd.f32 %v1538, %v4109
      %v4111 = vpop.f32.mrb[0].mxu0
      %v4112 = vadd.f32 %v1542, %v4111
      %v4113 = vpop.f32.mrb[0].mxu0
      %v4114 = vadd.f32 %v1538, %v4113
      %v4115 = vpop.f32.mrb[0].mxu0
      %v4116 = vadd.f32 %v1542, %v4115
      %4117 = vmatprep.mubr.bf16.mxu0 %v1212
      %4118 = vmatmul.mubr.bf16.gmra.mrb[0].mxu0 %v1211
      %v4119 = vpop.f32.mrb[0].mxu0
      %v4120 = vadd.f32 %v1538, %v4119
      %v4121 = vpop.f32.mrb[0].mxu0
      %v4122 = vadd.f32 %v1542, %v4121
      %v4123 = vpop.f32.mrb[0].mxu0
      %v4124 = vadd.f32 %v1538, %v4123
      %v4125 = vpop.f32.mrb[0].mxu0
      %v4126 = vadd.f32 %v1542, %v4125
      %4127 = vmatprep.mubr.bf16.mxu0 %v1214
      %4128 = vmatmul.mubr.bf16.gmra.mrb[0].mxu0 %v1213
      %v4129 = vpop.f32.mrb[0].mxu0
      %v4130 = vadd.f32 %v1538, %v4129
      %v4131 = vpop.f32.mrb[0].mxu0
      %v4132 = vadd.f32 %v1542, %v4131
      %v4133 = vpop.f32.mrb[0].mxu0
      %v4134 = vadd.f32 %v1538, %v4133
      %v4135 = vpop.f32.mrb[0].mxu0
      %v4136 = vadd.f32 %v1542, %v4135
      %4137 = vmatprep.mubr.bf16.mxu0 %v1216
      %4138 = vmatmul.mubr.bf16.gmra.mrb[0].mxu0 %v1215
      %v4139 = vpop.f32.mrb[0].mxu0
      %v4140 = vadd.f32 %v1538, %v4139
      %v4141 = vpop.f32.mrb[0].mxu0
      %v4142 = vadd.f32 %v1542, %v4141
      %v4143 = vpop.f32.mrb[0].mxu0
      %v4144 = vadd.f32 %v1538, %v4143
      %v4145 = vpop.f32.mrb[0].mxu0
      %v4146 = vadd.f32 %v1542, %v4145
      %4147 = vmatprep.mubr.bf16.mxu0 %v1218
      %4148 = vmatmul.mubr.bf16.gmra.mrb[0].mxu0 %v1217
      %v4149 = vpop.f32.mrb[0].mxu0
      %v4150 = vadd.f32 %v1538, %v4149
      %v4151 = vpop.f32.mrb[0].mxu0
      %v4152 = vadd.f32 %v1542, %v4151
      %v4153 = vpop.f32.mrb[0].mxu0
      %v4154 = vadd.f32 %v1538, %v4153
      %v4155 = vpop.f32.mrb[0].mxu0
      %v4156 = vadd.f32 %v1542, %v4155
      %4157 = vmatprep.mubr.bf16.mxu0 %v1220
      %4158 = vmatmul.mubr.bf16.gmra.mrb[0].mxu0 %v1219
      %v4159 = vpop.f32.mrb[0].mxu0
      %v4160 = vadd.f32 %v1538, %v4159
      %v4161 = vpop.f32.mrb[0].mxu0
      %v4162 = vadd.f32 %v1542, %v4161
      %v4163 = vpop.f32.mrb[0].mxu0
      %v4164 = vadd.f32 %v1538, %v4163
      %v4165 = vpop.f32.mrb[0].mxu0
      %v4166 = vadd.f32 %v1542, %v4165
      %4167 = vmatprep.mubr.bf16.mxu0 %v1222
      %4168 = vmatmul.mubr.bf16.gmra.mrb[0].mxu0 %v1221
      %v4169 = vpop.f32.mrb[0].mxu0
      %v4170 = vadd.f32 %v1538, %v4169
      %v4171 = vpop.f32.mrb[0].mxu0
      %v4172 = vadd.f32 %v1542, %v4171
      %v4173 = vpop.f32.mrb[0].mxu0
      %v4174 = vadd.f32 %v1538, %v4173
      %v4175 = vpop.f32.mrb[0].mxu0
      %v4176 = vadd.f32 %v1542, %v4175
      %4177 = vmatprep.mubr.bf16.mxu0 %v1224
      %4178 = vmatmul.mubr.bf16.gmra.mrb[0].mxu0 %v1223
      %v4179 = vpop.f32.mrb[0].mxu0
      %v4180 = vadd.f32 %v1538, %v4179
      %v4181 = vpop.f32.mrb[0].mxu0
      %v4182 = vadd.f32 %v1542, %v4181
      %v4183 = vpop.f32.mrb[0].mxu0
      %v4184 = vadd.f32 %v1538, %v4183
      %v4185 = vpop.f32.mrb[0].mxu0
      %v4186 = vadd.f32 %v1542, %v4185
      %4187 = vmatprep.mubr.bf16.mxu0 %v1226
      %4188 = vmatmul.mubr.bf16.gmra.mrb[0].mxu0 %v1225
      %v4189 = vpop.f32.mrb[0].mxu0
      %v4190 = vadd.f32 %v1538, %v4189
      %v4191 = vpop.f32.mrb[0].mxu0
      %v4192 = vadd.f32 %v1542, %v4191
      %v4193 = vpop.f32.mrb[0].mxu0
      %v4194 = vadd.f32 %v1538, %v4193
      %v4195 = vpop.f32.mrb[0].mxu0
      %v4196 = vadd.f32 %v1542, %v4195
      %4197 = vdwg.mxu0
      %4198 = vmatprep.subr.bf16.mxu0 %v2350
      %4199 = vmatpush1.bf16.msra.mxu0 %v2349
      %4200 = vmatprep.subr.bf16.mxu0 %v2366
      %4201 = vmatpush1.bf16.msra.mxu0 %v2365
      %4202 = vmatprep.subr.bf16.mxu0 %v2382
      %4203 = vmatpush1.bf16.msra.mxu0 %v2381
      %4204 = vmatprep.subr.bf16.mxu0 %v2398
      %4205 = vmatpush1.bf16.msra.mxu0 %v2397
      %4206 = vmatprep.subr.bf16.mxu0 %v2414
      %4207 = vmatpush1.bf16.msra.mxu0 %v2413
      %4208 = vmatprep.subr.bf16.mxu0 %v2430
      %4209 = vmatpush1.bf16.msra.mxu0 %v2429
      %4210 = vmatprep.subr.bf16.mxu0 %v2446
      %4211 = vmatpush1.bf16.msra.mxu0 %v2445
      %4212 = vmatprep.subr.bf16.mxu0 %v2462
      %4213 = vmatpush1.bf16.msra.mxu0 %v2461
      %4214 = vmatprep.subr.bf16.mxu0 %v2478
      %4215 = vmatpush1.bf16.msra.mxu0 %v2477
      %4216 = vmatprep.subr.bf16.mxu0 %v2494
      %4217 = vmatpush1.bf16.msra.mxu0 %v2493
      %4218 = vmatprep.subr.bf16.mxu0 %v2510
      %4219 = vmatpush1.bf16.msra.mxu0 %v2509
      %4220 = vmatprep.subr.bf16.mxu0 %v2526
      %4221 = vmatpush1.bf16.msra.mxu0 %v2525
      %4222 = vmatprep.subr.bf16.mxu0 %v2542
      %4223 = vmatpush1.bf16.msra.mxu0 %v2541
      %4224 = vmatprep.subr.bf16.mxu0 %v2558
      %4225 = vmatpush1.bf16.msra.mxu0 %v2557
      %4226 = vmatprep.subr.bf16.mxu0 %v2574
      %4227 = vmatpush1.bf16.msra.mxu0 %v2573
      %4228 = vmatprep.subr.bf16.mxu0 %v2590
      %4229 = vmatpush1.bf16.msra.mxu0 %v2589
      %4230 = vmatprep.mubr.bf16.mxu0 %v1196
      %4231 = vmatmul.mubr.bf16.gmra.mrb[0].mxu0 %v1195
      %v4232 = vpop.f32.mrb[0].mxu0
      %v4233 = vadd.f32 %v1546, %v4232
      %v4234 = vpop.f32.mrb[0].mxu0
      %v4235 = vadd.f32 %v1550, %v4234
      %v4236 = vpop.f32.mrb[0].mxu0
      %v4237 = vadd.f32 %v1546, %v4236
      %v4238 = vpop.f32.mrb[0].mxu0
      %v4239 = vadd.f32 %v1550, %v4238
      %4240 = vmatprep.mubr.bf16.mxu0 %v1198
      %4241 = vmatmul.mubr.bf16.gmra.mrb[0].mxu0 %v1197
      %v4242 = vpop.f32.mrb[0].mxu0
      %v4243 = vadd.f32 %v1546, %v4242
      %v4244 = vpop.f32.mrb[0].mxu0
      %v4245 = vadd.f32 %v1550, %v4244
      %v4246 = vpop.f32.mrb[0].mxu0
      %v4247 = vadd.f32 %v1546, %v4246
      %v4248 = vpop.f32.mrb[0].mxu0
      %v4249 = vadd.f32 %v1550, %v4248
      %4250 = vmatprep.mubr.bf16.mxu0 %v1200
      %4251 = vmatmul.mubr.bf16.gmra.mrb[0].mxu0 %v1199
      %v4252 = vpop.f32.mrb[0].mxu0
      %v4253 = vadd.f32 %v1546, %v4252
      %v4254 = vpop.f32.mrb[0].mxu0
      %v4255 = vadd.f32 %v1550, %v4254
      %v4256 = vpop.f32.mrb[0].mxu0
      %v4257 = vadd.f32 %v1546, %v4256
      %v4258 = vpop.f32.mrb[0].mxu0
      %v4259 = vadd.f32 %v1550, %v4258
      %4260 = vmatprep.mubr.bf16.mxu0 %v1202
      %4261 = vmatmul.mubr.bf16.gmra.mrb[0].mxu0 %v1201
      %v4262 = vpop.f32.mrb[0].mxu0
      %v4263 = vadd.f32 %v1546, %v4262
      %v4264 = vpop.f32.mrb[0].mxu0
      %v4265 = vadd.f32 %v1550, %v4264
      %v4266 = vpop.f32.mrb[0].mxu0
      %v4267 = vadd.f32 %v1546, %v4266
      %v4268 = vpop.f32.mrb[0].mxu0
      %v4269 = vadd.f32 %v1550, %v4268
      %4270 = vmatprep.mubr.bf16.mxu0 %v1204
      %4271 = vmatmul.mubr.bf16.gmra.mrb[0].mxu0 %v1203
      %v4272 = vpop.f32.mrb[0].mxu0
      %v4273 = vadd.f32 %v1546, %v4272
      %v4274 = vpop.f32.mrb[0].mxu0
      %v4275 = vadd.f32 %v1550, %v4274
      %v4276 = vpop.f32.mrb[0].mxu0
      %v4277 = vadd.f32 %v1546, %v4276
      %v4278 = vpop.f32.mrb[0].mxu0
      %v4279 = vadd.f32 %v1550, %v4278
      %4280 = vmatprep.mubr.bf16.mxu0 %v1206
      %4281 = vmatmul.mubr.bf16.gmra.mrb[0].mxu0 %v1205
      %v4282 = vpop.f32.mrb[0].mxu0
      %v4283 = vadd.f32 %v1546, %v4282
      %v4284 = vpop.f32.mrb[0].mxu0
      %v4285 = vadd.f32 %v1550, %v4284
      %v4286 = vpop.f32.mrb[0].mxu0
      %v4287 = vadd.f32 %v1546, %v4286
      %v4288 = vpop.f32.mrb[0].mxu0
      %v4289 = vadd.f32 %v1550, %v4288
      %4290 = vmatprep.mubr.bf16.mxu0 %v1208
      %4291 = vmatmul.mubr.bf16.gmra.mrb[0].mxu0 %v1207
      %v4292 = vpop.f32.mrb[0].mxu0
      %v4293 = vadd.f32 %v1546, %v4292
      %v4294 = vpop.f32.mrb[0].mxu0
      %v4295 = vadd.f32 %v1550, %v4294
      %v4296 = vpop.f32.mrb[0].mxu0
      %v4297 = vadd.f32 %v1546, %v4296
      %v4298 = vpop.f32.mrb[0].mxu0
      %v4299 = vadd.f32 %v1550, %v4298
      %4300 = vmatprep.mubr.bf16.mxu0 %v1210
      %4301 = vmatmul.mubr.bf16.gmra.mrb[0].mxu0 %v1209
      %v4302 = vpop.f32.mrb[0].mxu0
      %v4303 = vadd.f32 %v1546, %v4302
      %v4304 = vpop.f32.mrb[0].mxu0
      %v4305 = vadd.f32 %v1550, %v4304
      %v4306 = vpop.f32.mrb[0].mxu0
      %v4307 = vadd.f32 %v1546, %v4306
      %v4308 = vpop.f32.mrb[0].mxu0
      %v4309 = vadd.f32 %v1550, %v4308
      %4310 = vmatprep.mubr.bf16.mxu0 %v1212
      %4311 = vmatmul.mubr.bf16.gmra.mrb[0].mxu0 %v1211
      %v4312 = vpop.f32.mrb[0].mxu0
      %v4313 = vadd.f32 %v1546, %v4312
      %v4314 = vpop.f32.mrb[0].mxu0
      %v4315 = vadd.f32 %v1550, %v4314
      %v4316 = vpop.f32.mrb[0].mxu0
      %v4317 = vadd.f32 %v1546, %v4316
      %v4318 = vpop.f32.mrb[0].mxu0
      %v4319 = vadd.f32 %v1550, %v4318
      %4320 = vmatprep.mubr.bf16.mxu0 %v1214
      %4321 = vmatmul.mubr.bf16.gmra.mrb[0].mxu0 %v1213
      %v4322 = vpop.f32.mrb[0].mxu0
      %v4323 = vadd.f32 %v1546, %v4322
      %v4324 = vpop.f32.mrb[0].mxu0
      %v4325 = vadd.f32 %v1550, %v4324
      %v4326 = vpop.f32.mrb[0].mxu0
      %v4327 = vadd.f32 %v1546, %v4326
      %v4328 = vpop.f32.mrb[0].mxu0
      %v4329 = vadd.f32 %v1550, %v4328
      %4330 = vmatprep.mubr.bf16.mxu0 %v1216
      %4331 = vmatmul.mubr.bf16.gmra.mrb[0].mxu0 %v1215
      %v4332 = vpop.f32.mrb[0].mxu0
      %v4333 = vadd.f32 %v1546, %v4332
      %v4334 = vpop.f32.mrb[0].mxu0
      %v4335 = vadd.f32 %v1550, %v4334
      %v4336 = vpop.f32.mrb[0].mxu0
      %v4337 = vadd.f32 %v1546, %v4336
      %v4338 = vpop.f32.mrb[0].mxu0
      %v4339 = vadd.f32 %v1550, %v4338
      %4340 = vmatprep.mubr.bf16.mxu0 %v1218
      %4341 = vmatmul.mubr.bf16.gmra.mrb[0].mxu0 %v1217
      %v4342 = vpop.f32.mrb[0].mxu0
      %v4343 = vadd.f32 %v1546, %v4342
      %v4344 = vpop.f32.mrb[0].mxu0
      %v4345 = vadd.f32 %v1550, %v4344
      %v4346 = vpop.f32.mrb[0].mxu0
      %v4347 = vadd.f32 %v1546, %v4346
      %v4348 = vpop.f32.mrb[0].mxu0
      %v4349 = vadd.f32 %v1550, %v4348
      %4350 = vmatprep.mubr.bf16.mxu0 %v1220
      %4351 = vmatmul.mubr.bf16.gmra.mrb[0].mxu0 %v1219
      %v4352 = vpop.f32.mrb[0].mxu0
      %v4353 = vadd.f32 %v1546, %v4352
      %v4354 = vpop.f32.mrb[0].mxu0
      %v4355 = vadd.f32 %v1550, %v4354
      %v4356 = vpop.f32.mrb[0].mxu0
      %v4357 = vadd.f32 %v1546, %v4356
      %v4358 = vpop.f32.mrb[0].mxu0
      %v4359 = vadd.f32 %v1550, %v4358
      %4360 = vmatprep.mubr.bf16.mxu0 %v1222
      %4361 = vmatmul.mubr.bf16.gmra.mrb[0].mxu0 %v1221
      %v4362 = vpop.f32.mrb[0].mxu0
      %v4363 = vadd.f32 %v1546, %v4362
      %v4364 = vpop.f32.mrb[0].mxu0
      %v4365 = vadd.f32 %v1550, %v4364
      %v4366 = vpop.f32.mrb[0].mxu0
      %v4367 = vadd.f32 %v1546, %v4366
      %v4368 = vpop.f32.mrb[0].mxu0
      %v4369 = vadd.f32 %v1550, %v4368
      %4370 = vmatprep.mubr.bf16.mxu0 %v1224
      %4371 = vmatmul.mubr.bf16.gmra.mrb[0].mxu0 %v1223
      %v4372 = vpop.f32.mrb[0].mxu0
      %v4373 = vadd.f32 %v1546, %v4372
      %v4374 = vpop.f32.mrb[0].mxu0
      %v4375 = vadd.f32 %v1550, %v4374
      %v4376 = vpop.f32.mrb[0].mxu0
      %v4377 = vadd.f32 %v1546, %v4376
      %v4378 = vpop.f32.mrb[0].mxu0
      %v4379 = vadd.f32 %v1550, %v4378
      %4380 = vmatprep.mubr.bf16.mxu0 %v1226
      %4381 = vmatmul.mubr.bf16.gmra.mrb[0].mxu0 %v1225
      %v4382 = vpop.f32.mrb[0].mxu0
      %v4383 = vadd.f32 %v1546, %v4382
      %v4384 = vpop.f32.mrb[0].mxu0
      %v4385 = vadd.f32 %v1550, %v4384
      %v4386 = vpop.f32.mrb[0].mxu0
      %v4387 = vadd.f32 %v1546, %v4386
      %v4388 = vpop.f32.mrb[0].mxu0
      %v4389 = vadd.f32 %v1550, %v4388
      %4390 = vdwg.mxu0
      %v4391 = vmax.f32 %v2882, 0.0
      %v4392 = vmax.f32 %v2884, 0.0
      %v4393 = vmax.f32 %v3075, 0.0
      %v4394 = vmax.f32 %v3077, 0.0
      %v4395 = vmax.f32 %v3268, 0.0
      %v4396 = vmax.f32 %v3270, 0.0
      %v4397 = vmax.f32 %v3461, 0.0
      %v4398 = vmax.f32 %v3463, 0.0
      %v4399 = vmax.f32 %v3654, 0.0
      %v4400 = vmax.f32 %v3656, 0.0
      %v4401 = vmax.f32 %v3847, 0.0
      %v4402 = vmax.f32 %v3849, 0.0
      %v4403 = vmax.f32 %v4040, 0.0
      %v4404 = vmax.f32 %v4042, 0.0
      %v4405 = vmax.f32 %v4233, 0.0
      %v4406 = vmax.f32 %v4235, 0.0
      %v4407 = vmax.f32 %v2886, 0.0
      %v4408 = vmax.f32 %v2888, 0.0
      %v4409 = vmax.f32 %v3079, 0.0
      %v4410 = vmax.f32 %v3081, 0.0
      %v4411 = vmax.f32 %v3272, 0.0
      %v4412 = vmax.f32 %v3274, 0.0
      %v4413 = vmax.f32 %v3465, 0.0
      %v4414 = vmax.f32 %v3467, 0.0
      %v4415 = vmax.f32 %v3658, 0.0
      %v4416 = vmax.f32 %v3660, 0.0
      %v4417 = vmax.f32 %v3851, 0.0
      %v4418 = vmax.f32 %v3853, 0.0
      %v4419 = vmax.f32 %v4044, 0.0
      %v4420 = vmax.f32 %v4046, 0.0
      %v4421 = vmax.f32 %v4237, 0.0
      %v4422 = vmax.f32 %v4239, 0.0
      %v4423 = vmax.f32 %v2892, 0.0
      %v4424 = vmax.f32 %v2894, 0.0
      %v4425 = vmax.f32 %v3085, 0.0
      %v4426 = vmax.f32 %v3087, 0.0
      %v4427 = vmax.f32 %v3278, 0.0
      %v4428 = vmax.f32 %v3280, 0.0
      %v4429 = vmax.f32 %v3471, 0.0
      %v4430 = vmax.f32 %v3473, 0.0
      %v4431 = vmax.f32 %v3664, 0.0
      %v4432 = vmax.f32 %v3666, 0.0
      %v4433 = vmax.f32 %v3857, 0.0
      %v4434 = vmax.f32 %v3859, 0.0
      %v4435 = vmax.f32 %v4050, 0.0
      %v4436 = vmax.f32 %v4052, 0.0
      %v4437 = vmax.f32 %v4243, 0.0
      %v4438 = vmax.f32 %v4245, 0.0
      %v4439 = vmax.f32 %v2896, 0.0
      %v4440 = vmax.f32 %v2898, 0.0
      %v4441 = vmax.f32 %v3089, 0.0
      %v4442 = vmax.f32 %v3091, 0.0
      %v4443 = vmax.f32 %v3282, 0.0
      %v4444 = vmax.f32 %v3284, 0.0
      %v4445 = vmax.f32 %v3475, 0.0
      %v4446 = vmax.f32 %v3477, 0.0
      %v4447 = vmax.f32 %v3668, 0.0
      %v4448 = vmax.f32 %v3670, 0.0
      %v4449 = vmax.f32 %v3861, 0.0
      %v4450 = vmax.f32 %v3863, 0.0
      %v4451 = vmax.f32 %v4054, 0.0
      %v4452 = vmax.f32 %v4056, 0.0
      %v4453 = vmax.f32 %v4247, 0.0
      %v4454 = vmax.f32 %v4249, 0.0
      %v4455 = vmax.f32 %v2902, 0.0
      %v4456 = vmax.f32 %v2904, 0.0
      %v4457 = vmax.f32 %v3095, 0.0
      %v4458 = vmax.f32 %v3097, 0.0
      %v4459 = vmax.f32 %v3288, 0.0
      %v4460 = vmax.f32 %v3290, 0.0
      %v4461 = vmax.f32 %v3481, 0.0
      %v4462 = vmax.f32 %v3483, 0.0
      %v4463 = vmax.f32 %v3674, 0.0
      %v4464 = vmax.f32 %v3676, 0.0
      %v4465 = vmax.f32 %v3867, 0.0
      %v4466 = vmax.f32 %v3869, 0.0
      %v4467 = vmax.f32 %v4060, 0.0
      %v4468 = vmax.f32 %v4062, 0.0
      %v4469 = vmax.f32 %v4253, 0.0
      %v4470 = vmax.f32 %v4255, 0.0
      %v4471 = vmax.f32 %v2906, 0.0
      %v4472 = vmax.f32 %v2908, 0.0
      %v4473 = vmax.f32 %v3099, 0.0
      %v4474 = vmax.f32 %v3101, 0.0
      %v4475 = vmax.f32 %v3292, 0.0
      %v4476 = vmax.f32 %v3294, 0.0
      %v4477 = vmax.f32 %v3485, 0.0
      %v4478 = vmax.f32 %v3487, 0.0
      %v4479 = vmax.f32 %v3678, 0.0
      %v4480 = vmax.f32 %v3680, 0.0
      %v4481 = vmax.f32 %v3871, 0.0
      %v4482 = vmax.f32 %v3873, 0.0
      %v4483 = vmax.f32 %v4064, 0.0
      %v4484 = vmax.f32 %v4066, 0.0
      %v4485 = vmax.f32 %v4257, 0.0
      %v4486 = vmax.f32 %v4259, 0.0
      %v4487 = vmax.f32 %v2912, 0.0
      %v4488 = vmax.f32 %v2914, 0.0
      %v4489 = vmax.f32 %v3105, 0.0
      %v4490 = vmax.f32 %v3107, 0.0
      %v4491 = vmax.f32 %v3298, 0.0
      %v4492 = vmax.f32 %v3300, 0.0
      %v4493 = vmax.f32 %v3491, 0.0
      %v4494 = vmax.f32 %v3493, 0.0
      %v4495 = vmax.f32 %v3684, 0.0
      %v4496 = vmax.f32 %v3686, 0.0
      %v4497 = vmax.f32 %v3877, 0.0
      %v4498 = vmax.f32 %v3879, 0.0
      %v4499 = vmax.f32 %v4070, 0.0
      %v4500 = vmax.f32 %v4072, 0.0
      %v4501 = vmax.f32 %v4263, 0.0
      %v4502 = vmax.f32 %v4265, 0.0
      %v4503 = vmax.f32 %v2916, 0.0
      %v4504 = vmax.f32 %v2918, 0.0
      %v4505 = vmax.f32 %v3109, 0.0
      %v4506 = vmax.f32 %v3111, 0.0
      %v4507 = vmax.f32 %v3302, 0.0
      %v4508 = vmax.f32 %v3304, 0.0
      %v4509 = vmax.f32 %v3495, 0.0
      %v4510 = vmax.f32 %v3497, 0.0
      %v4511 = vmax.f32 %v3688, 0.0
      %v4512 = vmax.f32 %v3690, 0.0
      %v4513 = vmax.f32 %v3881, 0.0
      %v4514 = vmax.f32 %v3883, 0.0
      %v4515 = vmax.f32 %v4074, 0.0
      %v4516 = vmax.f32 %v4076, 0.0
      %v4517 = vmax.f32 %v4267, 0.0
      %v4518 = vmax.f32 %v4269, 0.0
      %v4519 = vmax.f32 %v2922, 0.0
      %v4520 = vmax.f32 %v2924, 0.0
      %v4521 = vmax.f32 %v3115, 0.0
      %v4522 = vmax.f32 %v3117, 0.0
      %v4523 = vmax.f32 %v3308, 0.0
      %v4524 = vmax.f32 %v3310, 0.0
      %v4525 = vmax.f32 %v3501, 0.0
      %v4526 = vmax.f32 %v3503, 0.0
      %v4527 = vmax.f32 %v3694, 0.0
      %v4528 = vmax.f32 %v3696, 0.0
      %v4529 = vmax.f32 %v3887, 0.0
      %v4530 = vmax.f32 %v3889, 0.0
      %v4531 = vmax.f32 %v4080, 0.0
      %v4532 = vmax.f32 %v4082, 0.0
      %v4533 = vmax.f32 %v4273, 0.0
      %v4534 = vmax.f32 %v4275, 0.0
      %v4535 = vmax.f32 %v2926, 0.0
      %v4536 = vmax.f32 %v2928, 0.0
      %v4537 = vmax.f32 %v3119, 0.0
      %v4538 = vmax.f32 %v3121, 0.0
      %v4539 = vmax.f32 %v3312, 0.0
      %v4540 = vmax.f32 %v3314, 0.0
      %v4541 = vmax.f32 %v3505, 0.0
      %v4542 = vmax.f32 %v3507, 0.0
      %v4543 = vmax.f32 %v3698, 0.0
      %v4544 = vmax.f32 %v3700, 0.0
      %v4545 = vmax.f32 %v3891, 0.0
      %v4546 = vmax.f32 %v3893, 0.0
      %v4547 = vmax.f32 %v4084, 0.0
      %v4548 = vmax.f32 %v4086, 0.0
      %v4549 = vmax.f32 %v4277, 0.0
      %v4550 = vmax.f32 %v4279, 0.0
      %v4551 = vmax.f32 %v2932, 0.0
      %v4552 = vmax.f32 %v2934, 0.0
      %v4553 = vmax.f32 %v3125, 0.0
      %v4554 = vmax.f32 %v3127, 0.0
      %v4555 = vmax.f32 %v3318, 0.0
      %v4556 = vmax.f32 %v3320, 0.0
      %v4557 = vmax.f32 %v3511, 0.0
      %v4558 = vmax.f32 %v3513, 0.0
      %v4559 = vmax.f32 %v3704, 0.0
      %v4560 = vmax.f32 %v3706, 0.0
      %v4561 = vmax.f32 %v3897, 0.0
      %v4562 = vmax.f32 %v3899, 0.0
      %v4563 = vmax.f32 %v4090, 0.0
      %v4564 = vmax.f32 %v4092, 0.0
      %v4565 = vmax.f32 %v4283, 0.0
      %v4566 = vmax.f32 %v4285, 0.0
      %v4567 = vmax.f32 %v2936, 0.0
      %v4568 = vmax.f32 %v2938, 0.0
      %v4569 = vmax.f32 %v3129, 0.0
      %v4570 = vmax.f32 %v3131, 0.0
      %v4571 = vmax.f32 %v3322, 0.0
      %v4572 = vmax.f32 %v3324, 0.0
      %v4573 = vmax.f32 %v3515, 0.0
      %v4574 = vmax.f32 %v3517, 0.0
      %v4575 = vmax.f32 %v3708, 0.0
      %v4576 = vmax.f32 %v3710, 0.0
      %v4577 = vmax.f32 %v3901, 0.0
      %v4578 = vmax.f32 %v3903, 0.0
      %v4579 = vmax.f32 %v4094, 0.0
      %v4580 = vmax.f32 %v4096, 0.0
      %v4581 = vmax.f32 %v4287, 0.0
      %v4582 = vmax.f32 %v4289, 0.0
      %v4583 = vmax.f32 %v2942, 0.0
      %v4584 = vmax.f32 %v2944, 0.0
      %v4585 = vmax.f32 %v3135, 0.0
      %v4586 = vmax.f32 %v3137, 0.0
      %v4587 = vmax.f32 %v3328, 0.0
      %v4588 = vmax.f32 %v3330, 0.0
      %v4589 = vmax.f32 %v3521, 0.0
      %v4590 = vmax.f32 %v3523, 0.0
      %v4591 = vmax.f32 %v3714, 0.0
      %v4592 = vmax.f32 %v3716, 0.0
      %v4593 = vmax.f32 %v3907, 0.0
      %v4594 = vmax.f32 %v3909, 0.0
      %v4595 = vmax.f32 %v4100, 0.0
      %v4596 = vmax.f32 %v4102, 0.0
      %v4597 = vmax.f32 %v4293, 0.0
      %v4598 = vmax.f32 %v4295, 0.0
      %v4599 = vmax.f32 %v2946, 0.0
      %v4600 = vmax.f32 %v2948, 0.0
      %v4601 = vmax.f32 %v3139, 0.0
      %v4602 = vmax.f32 %v3141, 0.0
      %v4603 = vmax.f32 %v3332, 0.0
      %v4604 = vmax.f32 %v3334, 0.0
      %v4605 = vmax.f32 %v3525, 0.0
      %v4606 = vmax.f32 %v3527, 0.0
      %v4607 = vmax.f32 %v3718, 0.0
      %v4608 = vmax.f32 %v3720, 0.0
      %v4609 = vmax.f32 %v3911, 0.0
      %v4610 = vmax.f32 %v3913, 0.0
      %v4611 = vmax.f32 %v4104, 0.0
      %v4612 = vmax.f32 %v4106, 0.0
      %v4613 = vmax.f32 %v4297, 0.0
      %v4614 = vmax.f32 %v4299, 0.0
      %v4615 = vmax.f32 %v2952, 0.0
      %v4616 = vmax.f32 %v2954, 0.0
      %v4617 = vmax.f32 %v3145, 0.0
      %v4618 = vmax.f32 %v3147, 0.0
      %v4619 = vmax.f32 %v3338, 0.0
      %v4620 = vmax.f32 %v3340, 0.0
      %v4621 = vmax.f32 %v3531, 0.0
      %v4622 = vmax.f32 %v3533, 0.0
      %v4623 = vmax.f32 %v3724, 0.0
      %v4624 = vmax.f32 %v3726, 0.0
      %v4625 = vmax.f32 %v3917, 0.0
      %v4626 = vmax.f32 %v3919, 0.0
      %v4627 = vmax.f32 %v4110, 0.0
      %v4628 = vmax.f32 %v4112, 0.0
      %v4629 = vmax.f32 %v4303, 0.0
      %v4630 = vmax.f32 %v4305, 0.0
      %v4631 = vmax.f32 %v2956, 0.0
      %v4632 = vmax.f32 %v2958, 0.0
      %v4633 = vmax.f32 %v3149, 0.0
      %v4634 = vmax.f32 %v3151, 0.0
      %v4635 = vmax.f32 %v3342, 0.0
      %v4636 = vmax.f32 %v3344, 0.0
      %v4637 = vmax.f32 %v3535, 0.0
      %v4638 = vmax.f32 %v3537, 0.0
      %v4639 = vmax.f32 %v3728, 0.0
      %v4640 = vmax.f32 %v3730, 0.0
      %v4641 = vmax.f32 %v3921, 0.0
      %v4642 = vmax.f32 %v3923, 0.0
      %v4643 = vmax.f32 %v4114, 0.0
      %v4644 = vmax.f32 %v4116, 0.0
      %v4645 = vmax.f32 %v4307, 0.0
      %v4646 = vmax.f32 %v4309, 0.0
      %v4647 = vmax.f32 %v2962, 0.0
      %v4648 = vmax.f32 %v2964, 0.0
      %v4649 = vmax.f32 %v3155, 0.0
      %v4650 = vmax.f32 %v3157, 0.0
      %v4651 = vmax.f32 %v3348, 0.0
      %v4652 = vmax.f32 %v3350, 0.0
      %v4653 = vmax.f32 %v3541, 0.0
      %v4654 = vmax.f32 %v3543, 0.0
      %v4655 = vmax.f32 %v3734, 0.0
      %v4656 = vmax.f32 %v3736, 0.0
      %v4657 = vmax.f32 %v3927, 0.0
      %v4658 = vmax.f32 %v3929, 0.0
      %v4659 = vmax.f32 %v4120, 0.0
      %v4660 = vmax.f32 %v4122, 0.0
      %v4661 = vmax.f32 %v4313, 0.0
      %v4662 = vmax.f32 %v4315, 0.0
      %v4663 = vmax.f32 %v2966, 0.0
      %v4664 = vmax.f32 %v2968, 0.0
      %v4665 = vmax.f32 %v3159, 0.0
      %v4666 = vmax.f32 %v3161, 0.0
      %v4667 = vmax.f32 %v3352, 0.0
      %v4668 = vmax.f32 %v3354, 0.0
      %v4669 = vmax.f32 %v3545, 0.0
      %v4670 = vmax.f32 %v3547, 0.0
      %v4671 = vmax.f32 %v3738, 0.0
      %v4672 = vmax.f32 %v3740, 0.0
      %v4673 = vmax.f32 %v3931, 0.0
      %v4674 = vmax.f32 %v3933, 0.0
      %v4675 = vmax.f32 %v4124, 0.0
      %v4676 = vmax.f32 %v4126, 0.0
      %v4677 = vmax.f32 %v4317, 0.0
      %v4678 = vmax.f32 %v4319, 0.0
      %v4679 = vmax.f32 %v2972, 0.0
      %v4680 = vmax.f32 %v2974, 0.0
      %v4681 = vmax.f32 %v3165, 0.0
      %v4682 = vmax.f32 %v3167, 0.0
      %v4683 = vmax.f32 %v3358, 0.0
      %v4684 = vmax.f32 %v3360, 0.0
      %v4685 = vmax.f32 %v3551, 0.0
      %v4686 = vmax.f32 %v3553, 0.0
      %v4687 = vmax.f32 %v3744, 0.0
      %v4688 = vmax.f32 %v3746, 0.0
      %v4689 = vmax.f32 %v3937, 0.0
      %v4690 = vmax.f32 %v3939, 0.0
      %v4691 = vmax.f32 %v4130, 0.0
      %v4692 = vmax.f32 %v4132, 0.0
      %v4693 = vmax.f32 %v4323, 0.0
      %v4694 = vmax.f32 %v4325, 0.0
      %v4695 = vmax.f32 %v2976, 0.0
      %v4696 = vmax.f32 %v2978, 0.0
      %v4697 = vmax.f32 %v3169, 0.0
      %v4698 = vmax.f32 %v3171, 0.0
      %v4699 = vmax.f32 %v3362, 0.0
      %v4700 = vmax.f32 %v3364, 0.0
      %v4701 = vmax.f32 %v3555, 0.0
      %v4702 = vmax.f32 %v3557, 0.0
      %v4703 = vmax.f32 %v3748, 0.0
      %v4704 = vmax.f32 %v3750, 0.0
      %v4705 = vmax.f32 %v3941, 0.0
      %v4706 = vmax.f32 %v3943, 0.0
      %v4707 = vmax.f32 %v4134, 0.0
      %v4708 = vmax.f32 %v4136, 0.0
      %v4709 = vmax.f32 %v4327, 0.0
      %v4710 = vmax.f32 %v4329, 0.0
      %v4711 = vmax.f32 %v2982, 0.0
      %v4712 = vmax.f32 %v2984, 0.0
      %v4713 = vmax.f32 %v3175, 0.0
      %v4714 = vmax.f32 %v3177, 0.0
      %v4715 = vmax.f32 %v3368, 0.0
      %v4716 = vmax.f32 %v3370, 0.0
      %v4717 = vmax.f32 %v3561, 0.0
      %v4718 = vmax.f32 %v3563, 0.0
      %v4719 = vmax.f32 %v3754, 0.0
      %v4720 = vmax.f32 %v3756, 0.0
      %v4721 = vmax.f32 %v3947, 0.0
      %v4722 = vmax.f32 %v3949, 0.0
      %v4723 = vmax.f32 %v4140, 0.0
      %v4724 = vmax.f32 %v4142, 0.0
      %v4725 = vmax.f32 %v4333, 0.0
      %v4726 = vmax.f32 %v4335, 0.0
      %v4727 = vmax.f32 %v2986, 0.0
      %v4728 = vmax.f32 %v2988, 0.0
      %v4729 = vmax.f32 %v3179, 0.0
      %v4730 = vmax.f32 %v3181, 0.0
      %v4731 = vmax.f32 %v3372, 0.0
      %v4732 = vmax.f32 %v3374, 0.0
      %v4733 = vmax.f32 %v3565, 0.0
      %v4734 = vmax.f32 %v3567, 0.0
      %v4735 = vmax.f32 %v3758, 0.0
      %v4736 = vmax.f32 %v3760, 0.0
      %v4737 = vmax.f32 %v3951, 0.0
      %v4738 = vmax.f32 %v3953, 0.0
      %v4739 = vmax.f32 %v4144, 0.0
      %v4740 = vmax.f32 %v4146, 0.0
      %v4741 = vmax.f32 %v4337, 0.0
      %v4742 = vmax.f32 %v4339, 0.0
      %v4743 = vmax.f32 %v2992, 0.0
      %v4744 = vmax.f32 %v2994, 0.0
      %v4745 = vmax.f32 %v3185, 0.0
      %v4746 = vmax.f32 %v3187, 0.0
      %v4747 = vmax.f32 %v3378, 0.0
      %v4748 = vmax.f32 %v3380, 0.0
      %v4749 = vmax.f32 %v3571, 0.0
      %v4750 = vmax.f32 %v3573, 0.0
      %v4751 = vmax.f32 %v3764, 0.0
      %v4752 = vmax.f32 %v3766, 0.0
      %v4753 = vmax.f32 %v3957, 0.0
      %v4754 = vmax.f32 %v3959, 0.0
      %v4755 = vmax.f32 %v4150, 0.0
      %v4756 = vmax.f32 %v4152, 0.0
      %v4757 = vmax.f32 %v4343, 0.0
      %v4758 = vmax.f32 %v4345, 0.0
      %v4759 = vmax.f32 %v2996, 0.0
      %v4760 = vmax.f32 %v2998, 0.0
      %v4761 = vmax.f32 %v3189, 0.0
      %v4762 = vmax.f32 %v3191, 0.0
      %v4763 = vmax.f32 %v3382, 0.0
      %v4764 = vmax.f32 %v3384, 0.0
      %v4765 = vmax.f32 %v3575, 0.0
      %v4766 = vmax.f32 %v3577, 0.0
      %v4767 = vmax.f32 %v3768, 0.0
      %v4768 = vmax.f32 %v3770, 0.0
      %v4769 = vmax.f32 %v3961, 0.0
      %v4770 = vmax.f32 %v3963, 0.0
      %v4771 = vmax.f32 %v4154, 0.0
      %v4772 = vmax.f32 %v4156, 0.0
      %v4773 = vmax.f32 %v4347, 0.0
      %v4774 = vmax.f32 %v4349, 0.0
      %v4775 = vmax.f32 %v3002, 0.0
      %v4776 = vmax.f32 %v3004, 0.0
      %v4777 = vmax.f32 %v3195, 0.0
      %v4778 = vmax.f32 %v3197, 0.0
      %v4779 = vmax.f32 %v3388, 0.0
      %v4780 = vmax.f32 %v3390, 0.0
      %v4781 = vmax.f32 %v3581, 0.0
      %v4782 = vmax.f32 %v3583, 0.0
      %v4783 = vmax.f32 %v3774, 0.0
      %v4784 = vmax.f32 %v3776, 0.0
      %v4785 = vmax.f32 %v3967, 0.0
      %v4786 = vmax.f32 %v3969, 0.0
      %v4787 = vmax.f32 %v4160, 0.0
      %v4788 = vmax.f32 %v4162, 0.0
      %v4789 = vmax.f32 %v4353, 0.0
      %v4790 = vmax.f32 %v4355, 0.0
      %v4791 = vmax.f32 %v3006, 0.0
      %v4792 = vmax.f32 %v3008, 0.0
      %v4793 = vmax.f32 %v3199, 0.0
      %v4794 = vmax.f32 %v3201, 0.0
      %v4795 = vmax.f32 %v3392, 0.0
      %v4796 = vmax.f32 %v3394, 0.0
      %v4797 = vmax.f32 %v3585, 0.0
      %v4798 = vmax.f32 %v3587, 0.0
      %v4799 = vmax.f32 %v3778, 0.0
      %v4800 = vmax.f32 %v3780, 0.0
      %v4801 = vmax.f32 %v3971, 0.0
      %v4802 = vmax.f32 %v3973, 0.0
      %v4803 = vmax.f32 %v4164, 0.0
      %v4804 = vmax.f32 %v4166, 0.0
      %v4805 = vmax.f32 %v4357, 0.0
      %v4806 = vmax.f32 %v4359, 0.0
      %v4807 = vmax.f32 %v3012, 0.0
      %v4808 = vmax.f32 %v3014, 0.0
      %v4809 = vmax.f32 %v3205, 0.0
      %v4810 = vmax.f32 %v3207, 0.0
      %v4811 = vmax.f32 %v3398, 0.0
      %v4812 = vmax.f32 %v3400, 0.0
      %v4813 = vmax.f32 %v3591, 0.0
      %v4814 = vmax.f32 %v3593, 0.0
      %v4815 = vmax.f32 %v3784, 0.0
      %v4816 = vmax.f32 %v3786, 0.0
      %v4817 = vmax.f32 %v3977, 0.0
      %v4818 = vmax.f32 %v3979, 0.0
      %v4819 = vmax.f32 %v4170, 0.0
      %v4820 = vmax.f32 %v4172, 0.0
      %v4821 = vmax.f32 %v4363, 0.0
      %v4822 = vmax.f32 %v4365, 0.0
      %v4823 = vmax.f32 %v3016, 0.0
      %v4824 = vmax.f32 %v3018, 0.0
      %v4825 = vmax.f32 %v3209, 0.0
      %v4826 = vmax.f32 %v3211, 0.0
      %v4827 = vmax.f32 %v3402, 0.0
      %v4828 = vmax.f32 %v3404, 0.0
      %v4829 = vmax.f32 %v3595, 0.0
      %v4830 = vmax.f32 %v3597, 0.0
      %v4831 = vmax.f32 %v3788, 0.0
      %v4832 = vmax.f32 %v3790, 0.0
      %v4833 = vmax.f32 %v3981, 0.0
      %v4834 = vmax.f32 %v3983, 0.0
      %v4835 = vmax.f32 %v4174, 0.0
      %v4836 = vmax.f32 %v4176, 0.0
      %v4837 = vmax.f32 %v4367, 0.0
      %v4838 = vmax.f32 %v4369, 0.0
      %v4839 = vmax.f32 %v3022, 0.0
      %v4840 = vmax.f32 %v3024, 0.0
      %v4841 = vmax.f32 %v3215, 0.0
      %v4842 = vmax.f32 %v3217, 0.0
      %v4843 = vmax.f32 %v3408, 0.0
      %v4844 = vmax.f32 %v3410, 0.0
      %v4845 = vmax.f32 %v3601, 0.0
      %v4846 = vmax.f32 %v3603, 0.0
      %v4847 = vmax.f32 %v3794, 0.0
      %v4848 = vmax.f32 %v3796, 0.0
      %v4849 = vmax.f32 %v3987, 0.0
      %v4850 = vmax.f32 %v3989, 0.0
      %v4851 = vmax.f32 %v4180, 0.0
      %v4852 = vmax.f32 %v4182, 0.0
      %v4853 = vmax.f32 %v4373, 0.0
      %v4854 = vmax.f32 %v4375, 0.0
      %v4855 = vmax.f32 %v3026, 0.0
      %v4856 = vmax.f32 %v3028, 0.0
      %v4857 = vmax.f32 %v3219, 0.0
      %v4858 = vmax.f32 %v3221, 0.0
      %v4859 = vmax.f32 %v3412, 0.0
      %v4860 = vmax.f32 %v3414, 0.0
      %v4861 = vmax.f32 %v3605, 0.0
      %v4862 = vmax.f32 %v3607, 0.0
      %v4863 = vmax.f32 %v3798, 0.0
      %v4864 = vmax.f32 %v3800, 0.0
      %v4865 = vmax.f32 %v3991, 0.0
      %v4866 = vmax.f32 %v3993, 0.0
      %v4867 = vmax.f32 %v4184, 0.0
      %v4868 = vmax.f32 %v4186, 0.0
      %v4869 = vmax.f32 %v4377, 0.0
      %v4870 = vmax.f32 %v4379, 0.0
      %v4871 = vmax.f32 %v3032, 0.0
      %v4872 = vmax.f32 %v3034, 0.0
      %v4873 = vmax.f32 %v3225, 0.0
      %v4874 = vmax.f32 %v3227, 0.0
      %v4875 = vmax.f32 %v3418, 0.0
      %v4876 = vmax.f32 %v3420, 0.0
      %v4877 = vmax.f32 %v3611, 0.0
      %v4878 = vmax.f32 %v3613, 0.0
      %v4879 = vmax.f32 %v3804, 0.0
      %v4880 = vmax.f32 %v3806, 0.0
      %v4881 = vmax.f32 %v3997, 0.0
      %v4882 = vmax.f32 %v3999, 0.0
      %v4883 = vmax.f32 %v4190, 0.0
      %v4884 = vmax.f32 %v4192, 0.0
      %v4885 = vmax.f32 %v4383, 0.0
      %v4886 = vmax.f32 %v4385, 0.0
      %v4887 = vmax.f32 %v3036, 0.0
      %v4888 = vmax.f32 %v3038, 0.0
      %v4889 = vmax.f32 %v3229, 0.0
      %v4890 = vmax.f32 %v3231, 0.0
      %v4891 = vmax.f32 %v3422, 0.0
      %v4892 = vmax.f32 %v3424, 0.0
      %v4893 = vmax.f32 %v3615, 0.0
      %v4894 = vmax.f32 %v3617, 0.0
      %v4895 = vmax.f32 %v3808, 0.0
      %v4896 = vmax.f32 %v3810, 0.0
      %v4897 = vmax.f32 %v4001, 0.0
      %v4898 = vmax.f32 %v4003, 0.0
      %v4899 = vmax.f32 %v4194, 0.0
      %v4900 = vmax.f32 %v4196, 0.0
      %v4901 = vmax.f32 %v4387, 0.0
      %v4902 = vmax.f32 %v4389, 0.0
      %v4903 = vadd.f32 %v4391, %v4407
      %v4904 = vadd.f32 %v4903, %v4423
      %v4905 = vadd.f32 %v4904, %v4439
      %v4906 = vadd.f32 %v4905, %v4455
      %v4907 = vadd.f32 %v4906, %v4471
      %v4908 = vadd.f32 %v4907, %v4487
      %v4909 = vadd.f32 %v4908, %v4503
      %v4910 = vadd.f32 %v4909, %v4519
      %v4911 = vadd.f32 %v4910, %v4535
      %v4912 = vadd.f32 %v4911, %v4551
      %v4913 = vadd.f32 %v4912, %v4567
      %v4914 = vadd.f32 %v4913, %v4583
      %v4915 = vadd.f32 %v4914, %v4599
      %v4916 = vadd.f32 %v4915, %v4615
      %v4917 = vadd.f32 %v4916, %v4631
      %v4918 = vadd.f32 %v4917, %v4647
      %v4919 = vadd.f32 %v4918, %v4663
      %v4920 = vadd.f32 %v4919, %v4679
      %v4921 = vadd.f32 %v4920, %v4695
      %v4922 = vadd.f32 %v4921, %v4711
      %v4923 = vadd.f32 %v4922, %v4727
      %v4924 = vadd.f32 %v4923, %v4743
      %v4925 = vadd.f32 %v4924, %v4759
      %v4926 = vadd.f32 %v4925, %v4775
      %v4927 = vadd.f32 %v4926, %v4791
      %v4928 = vadd.f32 %v4927, %v4807
      %v4929 = vadd.f32 %v4928, %v4823
      %v4930 = vadd.f32 %v4929, %v4839
      %v4931 = vadd.f32 %v4930, %v4855
      %v4932 = vadd.f32 %v4931, %v4871
      %v4933 = vadd.f32 %v4932, %v4887
      %v4934 = vrot.slane %v4933, 4
      %v4935 = vadd.f32 %v4933, %v4934
      %v4936 = vrot.slane %v4935, 2
      %v4937 = vadd.f32 %v4935, %v4936
      %v4938 = vrot.slane %v4937, 1
      %v4939 = vadd.f32 %v4937, %v4938
      %v4940 = vadd.f32 %v4392, %v4408
      %v4941 = vadd.f32 %v4940, %v4424
      %v4942 = vadd.f32 %v4941, %v4440
      %v4943 = vadd.f32 %v4942, %v4456
      %v4944 = vadd.f32 %v4943, %v4472
      %v4945 = vadd.f32 %v4944, %v4488
      %v4946 = vadd.f32 %v4945, %v4504
      %v4947 = vadd.f32 %v4946, %v4520
      %v4948 = vadd.f32 %v4947, %v4536
      %v4949 = vadd.f32 %v4948, %v4552
      %v4950 = vadd.f32 %v4949, %v4568
      %v4951 = vadd.f32 %v4950, %v4584
      %v4952 = vadd.f32 %v4951, %v4600
      %v4953 = vadd.f32 %v4952, %v4616
      %v4954 = vadd.f32 %v4953, %v4632
      %v4955 = vadd.f32 %v4954, %v4648
      %v4956 = vadd.f32 %v4955, %v4664
      %v4957 = vadd.f32 %v4956, %v4680
      %v4958 = vadd.f32 %v4957, %v4696
      %v4959 = vadd.f32 %v4958, %v4712
      %v4960 = vadd.f32 %v4959, %v4728
      %v4961 = vadd.f32 %v4960, %v4744
      %v4962 = vadd.f32 %v4961, %v4760
      %v4963 = vadd.f32 %v4962, %v4776
      %v4964 = vadd.f32 %v4963, %v4792
      %v4965 = vadd.f32 %v4964, %v4808
      %v4966 = vadd.f32 %v4965, %v4824
      %v4967 = vadd.f32 %v4966, %v4840
      %v4968 = vadd.f32 %v4967, %v4856
      %v4969 = vadd.f32 %v4968, %v4872
      %v4970 = vadd.f32 %v4969, %v4888
      %v4971 = vrot.slane %v4970, 4
      %v4972 = vadd.f32 %v4970, %v4971
      %v4973 = vrot.slane %v4972, 2
      %v4974 = vadd.f32 %v4972, %v4973
      %v4975 = vrot.slane %v4974, 1
      %v4976 = vadd.f32 %v4974, %v4975
      %v4977 = vadd.f32 %v4393, %v4409
      %v4978 = vadd.f32 %v4977, %v4425
      %v4979 = vadd.f32 %v4978, %v4441
      %v4980 = vadd.f32 %v4979, %v4457
      %v4981 = vadd.f32 %v4980, %v4473
      %v4982 = vadd.f32 %v4981, %v4489
      %v4983 = vadd.f32 %v4982, %v4505
      %v4984 = vadd.f32 %v4983, %v4521
      %v4985 = vadd.f32 %v4984, %v4537
      %v4986 = vadd.f32 %v4985, %v4553
      %v4987 = vadd.f32 %v4986, %v4569
      %v4988 = vadd.f32 %v4987, %v4585
      %v4989 = vadd.f32 %v4988, %v4601
      %v4990 = vadd.f32 %v4989, %v4617
      %v4991 = vadd.f32 %v4990, %v4633
      %v4992 = vadd.f32 %v4991, %v4649
      %v4993 = vadd.f32 %v4992, %v4665
      %v4994 = vadd.f32 %v4993, %v4681
      %v4995 = vadd.f32 %v4994, %v4697
      %v4996 = vadd.f32 %v4995, %v4713
      %v4997 = vadd.f32 %v4996, %v4729
      %v4998 = vadd.f32 %v4997, %v4745
      %v4999 = vadd.f32 %v4998, %v4761
      %v5000 = vadd.f32 %v4999, %v4777
      %v5001 = vadd.f32 %v5000, %v4793
      %v5002 = vadd.f32 %v5001, %v4809
      %v5003 = vadd.f32 %v5002, %v4825
      %v5004 = vadd.f32 %v5003, %v4841
      %v5005 = vadd.f32 %v5004, %v4857
      %v5006 = vadd.f32 %v5005, %v4873
      %v5007 = vadd.f32 %v5006, %v4889
      %v5008 = vrot.slane %v5007, 4
      %v5009 = vadd.f32 %v5007, %v5008
      %v5010 = vrot.slane %v5009, 2
      %v5011 = vadd.f32 %v5009, %v5010
      %v5012 = vrot.slane %v5011, 1
      %v5013 = vadd.f32 %v5011, %v5012
      %v5014 = vadd.f32 %v4394, %v4410
      %v5015 = vadd.f32 %v5014, %v4426
      %v5016 = vadd.f32 %v5015, %v4442
      %v5017 = vadd.f32 %v5016, %v4458
      %v5018 = vadd.f32 %v5017, %v4474
      %v5019 = vadd.f32 %v5018, %v4490
      %v5020 = vadd.f32 %v5019, %v4506
      %v5021 = vadd.f32 %v5020, %v4522
      %v5022 = vadd.f32 %v5021, %v4538
      %v5023 = vadd.f32 %v5022, %v4554
      %v5024 = vadd.f32 %v5023, %v4570
      %v5025 = vadd.f32 %v5024, %v4586
      %v5026 = vadd.f32 %v5025, %v4602
      %v5027 = vadd.f32 %v5026, %v4618
      %v5028 = vadd.f32 %v5027, %v4634
      %v5029 = vadd.f32 %v5028, %v4650
      %v5030 = vadd.f32 %v5029, %v4666
      %v5031 = vadd.f32 %v5030, %v4682
      %v5032 = vadd.f32 %v5031, %v4698
      %v5033 = vadd.f32 %v5032, %v4714
      %v5034 = vadd.f32 %v5033, %v4730
      %v5035 = vadd.f32 %v5034, %v4746
      %v5036 = vadd.f32 %v5035, %v4762
      %v5037 = vadd.f32 %v5036, %v4778
      %v5038 = vadd.f32 %v5037, %v4794
      %v5039 = vadd.f32 %v5038, %v4810
      %v5040 = vadd.f32 %v5039, %v4826
      %v5041 = vadd.f32 %v5040, %v4842
      %v5042 = vadd.f32 %v5041, %v4858
      %v5043 = vadd.f32 %v5042, %v4874
      %v5044 = vadd.f32 %v5043, %v4890
      %v5045 = vrot.slane %v5044, 4
      %v5046 = vadd.f32 %v5044, %v5045
      %v5047 = vrot.slane %v5046, 2
      %v5048 = vadd.f32 %v5046, %v5047
      %v5049 = vrot.slane %v5048, 1
      %v5050 = vadd.f32 %v5048, %v5049
      %v5051 = vadd.f32 %v4395, %v4411
      %v5052 = vadd.f32 %v5051, %v4427
      %v5053 = vadd.f32 %v5052, %v4443
      %v5054 = vadd.f32 %v5053, %v4459
      %v5055 = vadd.f32 %v5054, %v4475
      %v5056 = vadd.f32 %v5055, %v4491
      %v5057 = vadd.f32 %v5056, %v4507
      %v5058 = vadd.f32 %v5057, %v4523
      %v5059 = vadd.f32 %v5058, %v4539
      %v5060 = vadd.f32 %v5059, %v4555
      %v5061 = vadd.f32 %v5060, %v4571
      %v5062 = vadd.f32 %v5061, %v4587
      %v5063 = vadd.f32 %v5062, %v4603
      %v5064 = vadd.f32 %v5063, %v4619
      %v5065 = vadd.f32 %v5064, %v4635
      %v5066 = vadd.f32 %v5065, %v4651
      %v5067 = vadd.f32 %v5066, %v4667
      %v5068 = vadd.f32 %v5067, %v4683
      %v5069 = vadd.f32 %v5068, %v4699
      %v5070 = vadd.f32 %v5069, %v4715
      %v5071 = vadd.f32 %v5070, %v4731
      %v5072 = vadd.f32 %v5071, %v4747
      %v5073 = vadd.f32 %v5072, %v4763
      %v5074 = vadd.f32 %v5073, %v4779
      %v5075 = vadd.f32 %v5074, %v4795
      %v5076 = vadd.f32 %v5075, %v4811
      %v5077 = vadd.f32 %v5076, %v4827
      %v5078 = vadd.f32 %v5077, %v4843
      %v5079 = vadd.f32 %v5078, %v4859
      %v5080 = vadd.f32 %v5079, %v4875
      %v5081 = vadd.f32 %v5080, %v4891
      %v5082 = vrot.slane %v5081, 4
      %v5083 = vadd.f32 %v5081, %v5082
      %v5084 = vrot.slane %v5083, 2
      %v5085 = vadd.f32 %v5083, %v5084
      %v5086 = vrot.slane %v5085, 1
      %v5087 = vadd.f32 %v5085, %v5086
      %v5088 = vadd.f32 %v4396, %v4412
      %v5089 = vadd.f32 %v5088, %v4428
      %v5090 = vadd.f32 %v5089, %v4444
      %v5091 = vadd.f32 %v5090, %v4460
      %v5092 = vadd.f32 %v5091, %v4476
      %v5093 = vadd.f32 %v5092, %v4492
      %v5094 = vadd.f32 %v5093, %v4508
      %v5095 = vadd.f32 %v5094, %v4524
      %v5096 = vadd.f32 %v5095, %v4540
      %v5097 = vadd.f32 %v5096, %v4556
      %v5098 = vadd.f32 %v5097, %v4572
      %v5099 = vadd.f32 %v5098, %v4588
      %v5100 = vadd.f32 %v5099, %v4604
      %v5101 = vadd.f32 %v5100, %v4620
      %v5102 = vadd.f32 %v5101, %v4636
      %v5103 = vadd.f32 %v5102, %v4652
      %v5104 = vadd.f32 %v5103, %v4668
      %v5105 = vadd.f32 %v5104, %v4684
      %v5106 = vadd.f32 %v5105, %v4700
      %v5107 = vadd.f32 %v5106, %v4716
      %v5108 = vadd.f32 %v5107, %v4732
      %v5109 = vadd.f32 %v5108, %v4748
      %v5110 = vadd.f32 %v5109, %v4764
      %v5111 = vadd.f32 %v5110, %v4780
      %v5112 = vadd.f32 %v5111, %v4796
      %v5113 = vadd.f32 %v5112, %v4812
      %v5114 = vadd.f32 %v5113, %v4828
      %v5115 = vadd.f32 %v5114, %v4844
      %v5116 = vadd.f32 %v5115, %v4860
      %v5117 = vadd.f32 %v5116, %v4876
      %v5118 = vadd.f32 %v5117, %v4892
      %v5119 = vrot.slane %v5118, 4
      %v5120 = vadd.f32 %v5118, %v5119
      %v5121 = vrot.slane %v5120, 2
      %v5122 = vadd.f32 %v5120, %v5121
      %v5123 = vrot.slane %v5122, 1
      %v5124 = vadd.f32 %v5122, %v5123
      %v5125 = vadd.f32 %v4397, %v4413
      %v5126 = vadd.f32 %v5125, %v4429
      %v5127 = vadd.f32 %v5126, %v4445
      %v5128 = vadd.f32 %v5127, %v4461
      %v5129 = vadd.f32 %v5128, %v4477
      %v5130 = vadd.f32 %v5129, %v4493
      %v5131 = vadd.f32 %v5130, %v4509
      %v5132 = vadd.f32 %v5131, %v4525
      %v5133 = vadd.f32 %v5132, %v4541
      %v5134 = vadd.f32 %v5133, %v4557
      %v5135 = vadd.f32 %v5134, %v4573
      %v5136 = vadd.f32 %v5135, %v4589
      %v5137 = vadd.f32 %v5136, %v4605
      %v5138 = vadd.f32 %v5137, %v4621
      %v5139 = vadd.f32 %v5138, %v4637
      %v5140 = vadd.f32 %v5139, %v4653
      %v5141 = vadd.f32 %v5140, %v4669
      %v5142 = vadd.f32 %v5141, %v4685
      %v5143 = vadd.f32 %v5142, %v4701
      %v5144 = vadd.f32 %v5143, %v4717
      %v5145 = vadd.f32 %v5144, %v4733
      %v5146 = vadd.f32 %v5145, %v4749
      %v5147 = vadd.f32 %v5146, %v4765
      %v5148 = vadd.f32 %v5147, %v4781
      %v5149 = vadd.f32 %v5148, %v4797
      %v5150 = vadd.f32 %v5149, %v4813
      %v5151 = vadd.f32 %v5150, %v4829
      %v5152 = vadd.f32 %v5151, %v4845
      %v5153 = vadd.f32 %v5152, %v4861
      %v5154 = vadd.f32 %v5153, %v4877
      %v5155 = vadd.f32 %v5154, %v4893
      %v5156 = vrot.slane %v5155, 4
      %v5157 = vadd.f32 %v5155, %v5156
      %v5158 = vrot.slane %v5157, 2
      %v5159 = vadd.f32 %v5157, %v5158
      %v5160 = vrot.slane %v5159, 1
      %v5161 = vadd.f32 %v5159, %v5160
      %v5162 = vadd.f32 %v4398, %v4414
      %v5163 = vadd.f32 %v5162, %v4430
      %v5164 = vadd.f32 %v5163, %v4446
      %v5165 = vadd.f32 %v5164, %v4462
      %v5166 = vadd.f32 %v5165, %v4478
      %v5167 = vadd.f32 %v5166, %v4494
      %v5168 = vadd.f32 %v5167, %v4510
      %v5169 = vadd.f32 %v5168, %v4526
      %v5170 = vadd.f32 %v5169, %v4542
      %v5171 = vadd.f32 %v5170, %v4558
      %v5172 = vadd.f32 %v5171, %v4574
      %v5173 = vadd.f32 %v5172, %v4590
      %v5174 = vadd.f32 %v5173, %v4606
      %v5175 = vadd.f32 %v5174, %v4622
      %v5176 = vadd.f32 %v5175, %v4638
      %v5177 = vadd.f32 %v5176, %v4654
      %v5178 = vadd.f32 %v5177, %v4670
      %v5179 = vadd.f32 %v5178, %v4686
      %v5180 = vadd.f32 %v5179, %v4702
      %v5181 = vadd.f32 %v5180, %v4718
      %v5182 = vadd.f32 %v5181, %v4734
      %v5183 = vadd.f32 %v5182, %v4750
      %v5184 = vadd.f32 %v5183, %v4766
      %v5185 = vadd.f32 %v5184, %v4782
      %v5186 = vadd.f32 %v5185, %v4798
      %v5187 = vadd.f32 %v5186, %v4814
      %v5188 = vadd.f32 %v5187, %v4830
      %v5189 = vadd.f32 %v5188, %v4846
      %v5190 = vadd.f32 %v5189, %v4862
      %v5191 = vadd.f32 %v5190, %v4878
      %v5192 = vadd.f32 %v5191, %v4894
      %v5193 = vrot.slane %v5192, 4
      %v5194 = vadd.f32 %v5192, %v5193
      %v5195 = vrot.slane %v5194, 2
      %v5196 = vadd.f32 %v5194, %v5195
      %v5197 = vrot.slane %v5196, 1
      %v5198 = vadd.f32 %v5196, %v5197
      %v5199 = vadd.f32 %v4399, %v4415
      %v5200 = vadd.f32 %v5199, %v4431
      %v5201 = vadd.f32 %v5200, %v4447
      %v5202 = vadd.f32 %v5201, %v4463
      %v5203 = vadd.f32 %v5202, %v4479
      %v5204 = vadd.f32 %v5203, %v4495
      %v5205 = vadd.f32 %v5204, %v4511
      %v5206 = vadd.f32 %v5205, %v4527
      %v5207 = vadd.f32 %v5206, %v4543
      %v5208 = vadd.f32 %v5207, %v4559
      %v5209 = vadd.f32 %v5208, %v4575
      %v5210 = vadd.f32 %v5209, %v4591
      %v5211 = vadd.f32 %v5210, %v4607
      %v5212 = vadd.f32 %v5211, %v4623
      %v5213 = vadd.f32 %v5212, %v4639
      %v5214 = vadd.f32 %v5213, %v4655
      %v5215 = vadd.f32 %v5214, %v4671
      %v5216 = vadd.f32 %v5215, %v4687
      %v5217 = vadd.f32 %v5216, %v4703
      %v5218 = vadd.f32 %v5217, %v4719
      %v5219 = vadd.f32 %v5218, %v4735
      %v5220 = vadd.f32 %v5219, %v4751
      %v5221 = vadd.f32 %v5220, %v4767
      %v5222 = vadd.f32 %v5221, %v4783
      %v5223 = vadd.f32 %v5222, %v4799
      %v5224 = vadd.f32 %v5223, %v4815
      %v5225 = vadd.f32 %v5224, %v4831
      %v5226 = vadd.f32 %v5225, %v4847
      %v5227 = vadd.f32 %v5226, %v4863
      %v5228 = vadd.f32 %v5227, %v4879
      %v5229 = vadd.f32 %v5228, %v4895
      %v5230 = vrot.slane %v5229, 4
      %v5231 = vadd.f32 %v5229, %v5230
      %v5232 = vrot.slane %v5231, 2
      %v5233 = vadd.f32 %v5231, %v5232
      %v5234 = vrot.slane %v5233, 1
      %v5235 = vadd.f32 %v5233, %v5234
      %v5236 = vadd.f32 %v4400, %v4416
      %v5237 = vadd.f32 %v5236, %v4432
      %v5238 = vadd.f32 %v5237, %v4448
      %v5239 = vadd.f32 %v5238, %v4464
      %v5240 = vadd.f32 %v5239, %v4480
      %v5241 = vadd.f32 %v5240, %v4496
      %v5242 = vadd.f32 %v5241, %v4512
      %v5243 = vadd.f32 %v5242, %v4528
      %v5244 = vadd.f32 %v5243, %v4544
      %v5245 = vadd.f32 %v5244, %v4560
      %v5246 = vadd.f32 %v5245, %v4576
      %v5247 = vadd.f32 %v5246, %v4592
      %v5248 = vadd.f32 %v5247, %v4608
      %v5249 = vadd.f32 %v5248, %v4624
      %v5250 = vadd.f32 %v5249, %v4640
      %v5251 = vadd.f32 %v5250, %v4656
      %v5252 = vadd.f32 %v5251, %v4672
      %v5253 = vadd.f32 %v5252, %v4688
      %v5254 = vadd.f32 %v5253, %v4704
      %v5255 = vadd.f32 %v5254, %v4720
      %v5256 = vadd.f32 %v5255, %v4736
      %v5257 = vadd.f32 %v5256, %v4752
      %v5258 = vadd.f32 %v5257, %v4768
      %v5259 = vadd.f32 %v5258, %v4784
      %v5260 = vadd.f32 %v5259, %v4800
      %v5261 = vadd.f32 %v5260, %v4816
      %v5262 = vadd.f32 %v5261, %v4832
      %v5263 = vadd.f32 %v5262, %v4848
      %v5264 = vadd.f32 %v5263, %v4864
      %v5265 = vadd.f32 %v5264, %v4880
      %v5266 = vadd.f32 %v5265, %v4896
      %v5267 = vrot.slane %v5266, 4
      %v5268 = vadd.f32 %v5266, %v5267
      %v5269 = vrot.slane %v5268, 2
      %v5270 = vadd.f32 %v5268, %v5269
      %v5271 = vrot.slane %v5270, 1
      %v5272 = vadd.f32 %v5270, %v5271
      %v5273 = vadd.f32 %v4401, %v4417
      %v5274 = vadd.f32 %v5273, %v4433
      %v5275 = vadd.f32 %v5274, %v4449
      %v5276 = vadd.f32 %v5275, %v4465
      %v5277 = vadd.f32 %v5276, %v4481
      %v5278 = vadd.f32 %v5277, %v4497
      %v5279 = vadd.f32 %v5278, %v4513
      %v5280 = vadd.f32 %v5279, %v4529
      %v5281 = vadd.f32 %v5280, %v4545
      %v5282 = vadd.f32 %v5281, %v4561
      %v5283 = vadd.f32 %v5282, %v4577
      %v5284 = vadd.f32 %v5283, %v4593
      %v5285 = vadd.f32 %v5284, %v4609
      %v5286 = vadd.f32 %v5285, %v4625
      %v5287 = vadd.f32 %v5286, %v4641
      %v5288 = vadd.f32 %v5287, %v4657
      %v5289 = vadd.f32 %v5288, %v4673
      %v5290 = vadd.f32 %v5289, %v4689
      %v5291 = vadd.f32 %v5290, %v4705
      %v5292 = vadd.f32 %v5291, %v4721
      %v5293 = vadd.f32 %v5292, %v4737
      %v5294 = vadd.f32 %v5293, %v4753
      %v5295 = vadd.f32 %v5294, %v4769
      %v5296 = vadd.f32 %v5295, %v4785
      %v5297 = vadd.f32 %v5296, %v4801
      %v5298 = vadd.f32 %v5297, %v4817
      %v5299 = vadd.f32 %v5298, %v4833
      %v5300 = vadd.f32 %v5299, %v4849
      %v5301 = vadd.f32 %v5300, %v4865
      %v5302 = vadd.f32 %v5301, %v4881
      %v5303 = vadd.f32 %v5302, %v4897
      %v5304 = vrot.slane %v5303, 4
      %v5305 = vadd.f32 %v5303, %v5304
      %v5306 = vrot.slane %v5305, 2
      %v5307 = vadd.f32 %v5305, %v5306
      %v5308 = vrot.slane %v5307, 1
      %v5309 = vadd.f32 %v5307, %v5308
      %v5310 = vadd.f32 %v4402, %v4418
      %v5311 = vadd.f32 %v5310, %v4434
      %v5312 = vadd.f32 %v5311, %v4450
      %v5313 = vadd.f32 %v5312, %v4466
      %v5314 = vadd.f32 %v5313, %v4482
      %v5315 = vadd.f32 %v5314, %v4498
      %v5316 = vadd.f32 %v5315, %v4514
      %v5317 = vadd.f32 %v5316, %v4530
      %v5318 = vadd.f32 %v5317, %v4546
      %v5319 = vadd.f32 %v5318, %v4562
      %v5320 = vadd.f32 %v5319, %v4578
      %v5321 = vadd.f32 %v5320, %v4594
      %v5322 = vadd.f32 %v5321, %v4610
      %v5323 = vadd.f32 %v5322, %v4626
      %v5324 = vadd.f32 %v5323, %v4642
      %v5325 = vadd.f32 %v5324, %v4658
      %v5326 = vadd.f32 %v5325, %v4674
      %v5327 = vadd.f32 %v5326, %v4690
      %v5328 = vadd.f32 %v5327, %v4706
      %v5329 = vadd.f32 %v5328, %v4722
      %v5330 = vadd.f32 %v5329, %v4738
      %v5331 = vadd.f32 %v5330, %v4754
      %v5332 = vadd.f32 %v5331, %v4770
      %v5333 = vadd.f32 %v5332, %v4786
      %v5334 = vadd.f32 %v5333, %v4802
      %v5335 = vadd.f32 %v5334, %v4818
      %v5336 = vadd.f32 %v5335, %v4834
      %v5337 = vadd.f32 %v5336, %v4850
      %v5338 = vadd.f32 %v5337, %v4866
      %v5339 = vadd.f32 %v5338, %v4882
      %v5340 = vadd.f32 %v5339, %v4898
      %v5341 = vrot.slane %v5340, 4
      %v5342 = vadd.f32 %v5340, %v5341
      %v5343 = vrot.slane %v5342, 2
      %v5344 = vadd.f32 %v5342, %v5343
      %v5345 = vrot.slane %v5344, 1
      %v5346 = vadd.f32 %v5344, %v5345
      %v5347 = vadd.f32 %v4403, %v4419
      %v5348 = vadd.f32 %v5347, %v4435
      %v5349 = vadd.f32 %v5348, %v4451
      %v5350 = vadd.f32 %v5349, %v4467
      %v5351 = vadd.f32 %v5350, %v4483
      %v5352 = vadd.f32 %v5351, %v4499
      %v5353 = vadd.f32 %v5352, %v4515
      %v5354 = vadd.f32 %v5353, %v4531
      %v5355 = vadd.f32 %v5354, %v4547
      %v5356 = vadd.f32 %v5355, %v4563
      %v5357 = vadd.f32 %v5356, %v4579
      %v5358 = vadd.f32 %v5357, %v4595
      %v5359 = vadd.f32 %v5358, %v4611
      %v5360 = vadd.f32 %v5359, %v4627
      %v5361 = vadd.f32 %v5360, %v4643
      %v5362 = vadd.f32 %v5361, %v4659
      %v5363 = vadd.f32 %v5362, %v4675
      %v5364 = vadd.f32 %v5363, %v4691
      %v5365 = vadd.f32 %v5364, %v4707
      %v5366 = vadd.f32 %v5365, %v4723
      %v5367 = vadd.f32 %v5366, %v4739
      %v5368 = vadd.f32 %v5367, %v4755
      %v5369 = vadd.f32 %v5368, %v4771
      %v5370 = vadd.f32 %v5369, %v4787
      %v5371 = vadd.f32 %v5370, %v4803
      %v5372 = vadd.f32 %v5371, %v4819
      %v5373 = vadd.f32 %v5372, %v4835
      %v5374 = vadd.f32 %v5373, %v4851
      %v5375 = vadd.f32 %v5374, %v4867
      %v5376 = vadd.f32 %v5375, %v4883
      %v5377 = vadd.f32 %v5376, %v4899
      %v5378 = vrot.slane %v5377, 4
      %v5379 = vadd.f32 %v5377, %v5378
      %v5380 = vrot.slane %v5379, 2
      %v5381 = vadd.f32 %v5379, %v5380
      %v5382 = vrot.slane %v5381, 1
      %v5383 = vadd.f32 %v5381, %v5382
      %v5384 = vadd.f32 %v4404, %v4420
      %v5385 = vadd.f32 %v5384, %v4436
      %v5386 = vadd.f32 %v5385, %v4452
      %v5387 = vadd.f32 %v5386, %v4468
      %v5388 = vadd.f32 %v5387, %v4484
      %v5389 = vadd.f32 %v5388, %v4500
      %v5390 = vadd.f32 %v5389, %v4516
      %v5391 = vadd.f32 %v5390, %v4532
      %v5392 = vadd.f32 %v5391, %v4548
      %v5393 = vadd.f32 %v5392, %v4564
      %v5394 = vadd.f32 %v5393, %v4580
      %v5395 = vadd.f32 %v5394, %v4596
      %v5396 = vadd.f32 %v5395, %v4612
      %v5397 = vadd.f32 %v5396, %v4628
      %v5398 = vadd.f32 %v5397, %v4644
      %v5399 = vadd.f32 %v5398, %v4660
      %v5400 = vadd.f32 %v5399, %v4676
      %v5401 = vadd.f32 %v5400, %v4692
      %v5402 = vadd.f32 %v5401, %v4708
      %v5403 = vadd.f32 %v5402, %v4724
      %v5404 = vadd.f32 %v5403, %v4740
      %v5405 = vadd.f32 %v5404, %v4756
      %v5406 = vadd.f32 %v5405, %v4772
      %v5407 = vadd.f32 %v5406, %v4788
      %v5408 = vadd.f32 %v5407, %v4804
      %v5409 = vadd.f32 %v5408, %v4820
      %v5410 = vadd.f32 %v5409, %v4836
      %v5411 = vadd.f32 %v5410, %v4852
      %v5412 = vadd.f32 %v5411, %v4868
      %v5413 = vadd.f32 %v5412, %v4884
      %v5414 = vadd.f32 %v5413, %v4900
      %v5415 = vrot.slane %v5414, 4
      %v5416 = vadd.f32 %v5414, %v5415
      %v5417 = vrot.slane %v5416, 2
      %v5418 = vadd.f32 %v5416, %v5417
      %v5419 = vrot.slane %v5418, 1
      %v5420 = vadd.f32 %v5418, %v5419
      %v5421 = vadd.f32 %v4405, %v4421
      %v5422 = vadd.f32 %v5421, %v4437
      %v5423 = vadd.f32 %v5422, %v4453
      %v5424 = vadd.f32 %v5423, %v4469
      %v5425 = vadd.f32 %v5424, %v4485
      %v5426 = vadd.f32 %v5425, %v4501
      %v5427 = vadd.f32 %v5426, %v4517
      %v5428 = vadd.f32 %v5427, %v4533
      %v5429 = vadd.f32 %v5428, %v4549
      %v5430 = vadd.f32 %v5429, %v4565
      %v5431 = vadd.f32 %v5430, %v4581
      %v5432 = vadd.f32 %v5431, %v4597
      %v5433 = vadd.f32 %v5432, %v4613
      %v5434 = vadd.f32 %v5433, %v4629
      %v5435 = vadd.f32 %v5434, %v4645
      %v5436 = vadd.f32 %v5435, %v4661
      %v5437 = vadd.f32 %v5436, %v4677
      %v5438 = vadd.f32 %v5437, %v4693
      %v5439 = vadd.f32 %v5438, %v4709
      %v5440 = vadd.f32 %v5439, %v4725
      %v5441 = vadd.f32 %v5440, %v4741
      %v5442 = vadd.f32 %v5441, %v4757
      %v5443 = vadd.f32 %v5442, %v4773
      %v5444 = vadd.f32 %v5443, %v4789
      %v5445 = vadd.f32 %v5444, %v4805
      %v5446 = vadd.f32 %v5445, %v4821
      %v5447 = vadd.f32 %v5446, %v4837
      %v5448 = vadd.f32 %v5447, %v4853
      %v5449 = vadd.f32 %v5448, %v4869
      %v5450 = vadd.f32 %v5449, %v4885
      %v5451 = vadd.f32 %v5450, %v4901
      %v5452 = vrot.slane %v5451, 4
      %v5453 = vadd.f32 %v5451, %v5452
      %v5454 = vrot.slane %v5453, 2
      %v5455 = vadd.f32 %v5453, %v5454
      %v5456 = vrot.slane %v5455, 1
      %v5457 = vadd.f32 %v5455, %v5456
      %v5458 = vadd.f32 %v4406, %v4422
      %v5459 = vadd.f32 %v5458, %v4438
      %v5460 = vadd.f32 %v5459, %v4454
      %v5461 = vadd.f32 %v5460, %v4470
      %v5462 = vadd.f32 %v5461, %v4486
      %v5463 = vadd.f32 %v5462, %v4502
      %v5464 = vadd.f32 %v5463, %v4518
      %v5465 = vadd.f32 %v5464, %v4534
      %v5466 = vadd.f32 %v5465, %v4550
      %v5467 = vadd.f32 %v5466, %v4566
      %v5468 = vadd.f32 %v5467, %v4582
      %v5469 = vadd.f32 %v5468, %v4598
      %v5470 = vadd.f32 %v5469, %v4614
      %v5471 = vadd.f32 %v5470, %v4630
      %v5472 = vadd.f32 %v5471, %v4646
      %v5473 = vadd.f32 %v5472, %v4662
      %v5474 = vadd.f32 %v5473, %v4678
      %v5475 = vadd.f32 %v5474, %v4694
      %v5476 = vadd.f32 %v5475, %v4710
      %v5477 = vadd.f32 %v5476, %v4726
      %v5478 = vadd.f32 %v5477, %v4742
      %v5479 = vadd.f32 %v5478, %v4758
      %v5480 = vadd.f32 %v5479, %v4774
      %v5481 = vadd.f32 %v5480, %v4790
      %v5482 = vadd.f32 %v5481, %v4806
      %v5483 = vadd.f32 %v5482, %v4822
      %v5484 = vadd.f32 %v5483, %v4838
      %v5485 = vadd.f32 %v5484, %v4854
      %v5486 = vadd.f32 %v5485, %v4870
      %v5487 = vadd.f32 %v5486, %v4886
      %v5488 = vadd.f32 %v5487, %v4902
      %v5489 = vrot.slane %v5488, 4
      %v5490 = vadd.f32 %v5488, %v5489
      %v5491 = vrot.slane %v5490, 2
      %v5492 = vadd.f32 %v5490, %v5491
      %v5493 = vrot.slane %v5492, 1
      %v5494 = vadd.f32 %v5492, %v5493
      %v5495 = vld [vmem:[%s363] sm:$0xff]
      %v5496 = vld [vmem:[%s363 + $0x8] sm:$0xff]
      %v5513 = vcombine.low %v4939, %v4976
      %v5514 = vcombine.low %v5013, %v5050
      %v5515 = vcombine.low %v5087, %v5124
      %v5516 = vcombine.low %v5161, %v5198
      %v5518 = vunpack.c.l.s4 1966171168
      %v5519 = vunpack.c.0.s8 %v5518
      %v5520 = vlaneseq
      %v5521 = vshrl.u32 %v5520, 7
      %v5522 = vsub.s32 %v5519, %v5521
      %v5523 = vrot.slane %v5513, %v5522
      %v5525 = vunpack.c.l.s4 1966171168
      %v5526 = vunpack.c.0.s8 %v5525
      %v5527 = vlaneseq
      %v5528 = vshrl.u32 %v5527, 7
      %v5529 = vsub.s32 %v5526, %v5528
      %v5530 = vrot.slane %v5514, %v5529
      %v5532 = vunpack.c.l.s4 1966171168
      %v5533 = vunpack.c.0.s8 %v5532
      %v5534 = vlaneseq
      %v5535 = vshrl.u32 %v5534, 7
      %v5536 = vsub.s32 %v5533, %v5535
      %v5537 = vrot.slane %v5515, %v5536
      %v5539 = vunpack.c.l.s4 1966171168
      %v5540 = vunpack.c.0.s8 %v5539
      %v5541 = vlaneseq
      %v5542 = vshrl.u32 %v5541, 7
      %v5543 = vsub.s32 %v5540, %v5542
      %v5544 = vrot.slane %v5516, %v5543
      %v5545 = vcombine.low %v5523, %v5530
      %v5546 = vcombine.low %v5537, %v5544
      %v5548 = vunpack.c.l.s4 1966171168
      %v5549 = vunpack.c.0.s8 %v5548
      %v5550 = vlaneseq
      %v5551 = vshrl.u32 %v5550, 7
      %v5552 = vsub.s32 %v5549, %v5551
      %v5553 = vrot.slane %v5545, %v5552
      %v5555 = vunpack.c.l.s4 1966171168
      %v5556 = vunpack.c.0.s8 %v5555
      %v5557 = vlaneseq
      %v5558 = vshrl.u32 %v5557, 7
      %v5559 = vsub.s32 %v5556, %v5558
      %v5560 = vrot.slane %v5546, %v5559
      %v5561 = vcombine.low %v5553, %v5560
      %v5562 = vcombine.low %v5235, %v5272
      %v5563 = vcombine.low %v5309, %v5346
      %v5564 = vcombine.low %v5383, %v5420
      %v5565 = vcombine.low %v5457, %v5494
      %v5567 = vunpack.c.l.s4 1966171168
      %v5568 = vunpack.c.0.s8 %v5567
      %v5569 = vlaneseq
      %v5570 = vshrl.u32 %v5569, 7
      %v5571 = vsub.s32 %v5568, %v5570
      %v5572 = vrot.slane %v5562, %v5571
      %v5574 = vunpack.c.l.s4 1966171168
      %v5575 = vunpack.c.0.s8 %v5574
      %v5576 = vlaneseq
      %v5577 = vshrl.u32 %v5576, 7
      %v5578 = vsub.s32 %v5575, %v5577
      %v5579 = vrot.slane %v5563, %v5578
      %v5581 = vunpack.c.l.s4 1966171168
      %v5582 = vunpack.c.0.s8 %v5581
      %v5583 = vlaneseq
      %v5584 = vshrl.u32 %v5583, 7
      %v5585 = vsub.s32 %v5582, %v5584
      %v5586 = vrot.slane %v5564, %v5585
      %v5588 = vunpack.c.l.s4 1966171168
      %v5589 = vunpack.c.0.s8 %v5588
      %v5590 = vlaneseq
      %v5591 = vshrl.u32 %v5590, 7
      %v5592 = vsub.s32 %v5589, %v5591
      %v5593 = vrot.slane %v5565, %v5592
      %v5594 = vcombine.low %v5572, %v5579
      %v5595 = vcombine.low %v5586, %v5593
      %v5597 = vunpack.c.l.s4 1966171168
      %v5598 = vunpack.c.0.s8 %v5597
      %v5599 = vlaneseq
      %v5600 = vshrl.u32 %v5599, 7
      %v5601 = vsub.s32 %v5598, %v5600
      %v5602 = vrot.slane %v5594, %v5601
      %v5604 = vunpack.c.l.s4 1966171168
      %v5605 = vunpack.c.0.s8 %v5604
      %v5606 = vlaneseq
      %v5607 = vshrl.u32 %v5606, 7
      %v5608 = vsub.s32 %v5605, %v5607
      %v5609 = vrot.slane %v5595, %v5608
      %v5610 = vcombine.low %v5602, %v5609
      %v5613 = vadd.f32 %v5495, %v5561
      %v5614 = vadd.f32 %v5496, %v5610
      %5615 = vst [vmem:[%s363] sm:$0xff] %v5613
      %5616 = vst [vmem:[%s363 + $0x8] sm:$0xff] %v5614
      %p5617 = scmp.lt.s32.totalorder %s22, 1
      %s5618 = scalar_select %p5617, %s22, 1
      %s5619 = smul.addr %s5618, 16
      %s5620 = scalar_lea.vmem %s7, %s5619
      // Predicated region
      $region53: #{_lambda_.3} parent=47 // pred_check
        %p5621 = pneg %p214
      $region54: #{_lambda_.3} parent=47 // pred_check_branch
        %5623 = sbr.rel (%p5621) target = $region56
      $region55: #{_lambda_.3} parent=47 // pred_region
        _
      $region56: #{_lambda_.3} parent=47 // pred_fallthru
        _
    $region48: #{_lambda_.3} parent=5 // pred_fallthru
      _
    %p5624 = scmp.le.s32.totalorder 2, %s13
    // Predicated region
    $region57: #{_lambda_.3} parent=5 // pred_check
      %p5625 = pneg %p5624
    $region58: #{_lambda_.3} parent=5 // pred_check_branch
      %5627 = sbr.rel (%p5625) target = $region60
    $region59: #{_lambda_.3} parent=5 // pred_region
      %s5628 = ssub.s32 %s13, 2
      // Predicated region
      $region61: #{_lambda_.3} parent=59 // pred_check
        %p5629 = pneg %p220
      $region62: #{_lambda_.3} parent=59 // pred_check_branch
        %5631 = sbr.rel (%p5629) target = $region64
      $region63: #{_lambda_.3} parent=59 // pred_region
        %p5632 = scmp.lt.s32.totalorder %s24, 1
        %s5633 = scalar_select %p5632, %s24, 1
        %s5634 = smul.addr %s5633, 16
        %s5635 = scalar_lea.vmem %s7, %s5634
      $region64: #{_lambda_.3} parent=59 // pred_fallthru
        _
    $region60: #{_lambda_.3} parent=5 // pred_fallthru
      _
  $region6: #{_lambda_.3} parent=0 // loop_footer
    %s17 = sadd.s32 1, %s13
  $region7: #{_lambda_.3} parent=0 // loop_footer_branch
    %12 = sbr.rel target = $region3
  $region8: #{_lambda_.3} parent=0 // loop_exit
    _

</llo_original>
